<compile_context>
chip_gen: v5e
topology: v5e:2x2
jax: 0.10.0
libtpu: 0.0.40
codegen_flags: <defaults>
</compile_context>

<pallas_src>
import jax
import jax.numpy as jnp
from jax import lax
from jax.experimental import pallas as pl
from jax.experimental.pallas import tpu as pltpu

EPS = 1e-5


# ----------------------------- fused kernel --------------------------------

def _gbn_fused_kernel(xp_ref, w1_ref, w2_ref, w3_ref, w4_ref, w5_ref, w6_ref,
                      w7_ref, w8_ref, sel_ref, sc_ref, bi_ref,
                      out_ref,
                      a1, a2, p3, a4, a5, a6p, a7, gapbuf):
    """Whole GBNNet forward; all activations stay resident in VMEM scratch.

    Activation layout: (N, H, C, W) -> channels on sublanes, width on lanes.
    """
    N = xp_ref.shape[0]
    f32 = jnp.float32

    def affine(li, cout):
        # per-layer eval-mode BN folded to y = relu(conv) * scale + bias
        return sc_ref[li, :cout, :], bi_ref[li, :cout, :]        # (cout, 1)

    # ---- conv1: tap-expanded input (N,26,9,26) x w1 (8,9) -> a1 (N,26,8,26)
    w1 = w1_ref[...]
    sc1, bi1 = affine(0, 8)
    for n in range(N):
        def c1_body(y, c, n=n):
            acc = jnp.dot(w1, xp_ref[n, y], preferred_element_type=f32)  # (8,26)
            a1[n, y] = jnp.maximum(acc, 0.0) * sc1 + bi1
            return c
        lax.fori_loop(0, 26, c1_body, 0)

    # generic 3x3 conv (+ ReLU + eval-BN) on the VMEM-resident activation
    def conv3x3(src, dst, w_ref, Ho, Wo, sc, bi, row_off=0, col_off=0):
        wt = [w_ref[t] for t in range(9)]                        # (Cout, Cin)
        for n in range(N):
            def body(y, c, n=n):
                acc = jnp.dot(wt[0], src[n, y, :, pl.ds(0, Wo)],
                              preferred_element_type=f32)
                for t in range(1, 9):
                    i, j = t // 3, t % 3
                    acc = acc + jnp.dot(wt[t], src[n, y + i, :, pl.ds(j, Wo)],
                                        preferred_element_type=f32)
                if sc is not None:
                    acc = jnp.maximum(acc, 0.0) * sc + bi
                dst[n, y + row_off, :, pl.ds(col_off, Wo)] = acc
                return c
            lax.fori_loop(0, Ho, body, 0)

    # ---- conv2: a1 -> a2 (N,24,16,24)
    sc2, bi2 = affine(1, 16)
    conv3x3(a1, a2, w2_ref, 24, 24, sc2, bi2)

    # ---- conv3 (1x1, no ReLU/BN) fused with 2x2 max-pool: a2 -> p3 (N,12,8,12)
    w3 = w3_ref[...]                 # (8, 16)
    s_even = sel_ref[0]              # (24, 12): picks even columns
    s_odd = sel_ref[1]               # (24, 12): picks odd columns
    for n in range(N):
        def pool_body(yq, c, n=n):
            r0 = jnp.dot(w3, a2[n, 2 * yq], preferred_element_type=f32)      # (8,24)
            r1 = jnp.dot(w3, a2[n, 2 * yq + 1], preferred_element_type=f32)
            m = jnp.maximum(r0, r1)                                          # H-max
            ev = jnp.dot(m, s_even, preferred_element_type=f32)              # (8,12)
            od = jnp.dot(m, s_odd, preferred_element_type=f32)
            p3[n, yq] = jnp.maximum(ev, od)                                  # W-max
            return c
        lax.fori_loop(0, 12, pool_body, 0)

    # ---- conv4 / conv5
    sc4, bi4 = affine(2, 16)
    conv3x3(p3, a4, w4_ref, 10, 10, sc4, bi4)
    sc5, bi5 = affine(3, 16)
    conv3x3(a4, a5, w5_ref, 8, 8, sc5, bi5)

    # ---- conv6 writes directly into the zero-padded buffer used by conv7 (pad=1)
    a6p[...] = jnp.zeros(a6p.shape, f32)
    sc6, bi6 = affine(4, 16)
    conv3x3(a5, a6p, w6_ref, 6, 6, sc6, bi6, row_off=1, col_off=1)

    # ---- conv7 (padding=1): a6p (N,8,16,8) -> a7 (N,6,16,6)
    sc7, bi7 = affine(5, 16)
    conv3x3(a6p, a7, w7_ref, 6, 6, sc7, bi7)

    # ---- GAP(6x6) + 1x1 head conv + log_softmax -> out_ref (10, N)
    for n in range(N):
        tot = jnp.zeros((16, 1), f32)
        for y in range(6):                                        # static unroll
            tot = tot + jnp.sum(a7[n, y], axis=1, keepdims=True)  # lane reduce
        gapbuf[:, n:n + 1] = tot * (1.0 / 36.0)
    logits = jnp.dot(w8_ref[...], gapbuf[...], preferred_element_type=f32)  # (10,N)
    mx = jnp.max(logits, axis=0, keepdims=True)
    z = logits - mx
    lse = jnp.log(jnp.sum(jnp.exp(z), axis=0, keepdims=True))
    out_ref[...] = z - lse


# ----------------------------- wrappers -------------------------------------

def _full_spec(shape):
    # whole-array block, no grid
    return pl.BlockSpec(shape, lambda: (0,) * len(shape))


def prepare_inputs(params):
    """One-time host-side re-layout of weights/BN constants for the kernel."""
    def t9(w):  # (Cout, Cin, 3, 3) -> (9, Cout, Cin), tap index t = i*3 + j
        return jnp.transpose(w, (2, 3, 0, 1)).reshape(9, w.shape[0], w.shape[1])

    sc = jnp.zeros((6, 16, 1), jnp.float32)
    bi = jnp.zeros((6, 16, 1), jnp.float32)
    for li, name in enumerate(("bn1", "bn2", "bn4", "bn5", "bn6", "bn7")):
        s, b = params[name]
        sc = sc.at[li, :s.shape[0], 0].set(s)
        bi = bi.at[li, :b.shape[0], 0].set(b)

    eye = jnp.eye(12, dtype=jnp.float32)
    sel = (jnp.zeros((2, 24, 12), jnp.float32)
           .at[0, 0::2, :].set(eye)      # even columns
           .at[1, 1::2, :].set(eye))     # odd columns

    return {
        "w1": params["w1"].reshape(8, 9),
        "w2": t9(params["w2"]),
        "w3": params["w3"].reshape(8, 16),
        "w4": t9(params["w4"]),
        "w5": t9(params["w5"]),
        "w6": t9(params["w6"]),
        "w7": t9(params["w7"]),
        "w8": params["w8"].reshape(10, 16),
        "sel": sel, "sc": sc, "bi": bi,
    }


@jax.jit
def gbn_net_forward(prepped, x):
    N = x.shape[0]
    x2 = x[:, 0]                                              # (N, 28, 28)
    # tap-expand the 1-channel input only (tiny) so conv1 is one dot per row
    xp = jnp.stack([x2[:, i:i + 26, j:j + 26]
                    for i in range(3) for j in range(3)], axis=2)  # (N,26,9,26)

    inputs = (xp, prepped["w1"], prepped["w2"], prepped["w3"], prepped["w4"],
              prepped["w5"], prepped["w6"], prepped["w7"], prepped["w8"],
              prepped["sel"], prepped["sc"], prepped["bi"])

    out_t = pl.pallas_call(
        _gbn_fused_kernel,
        out_shape=jax.ShapeDtypeStruct((10, N), jnp.float32),
        in_specs=[_full_spec(a.shape) for a in inputs],
        out_specs=_full_spec((10, N)),
        scratch_shapes=[
            pltpu.VMEM((N, 26, 8, 26), jnp.float32),    # a1  (conv1 out)
            pltpu.VMEM((N, 24, 16, 24), jnp.float32),   # a2  (conv2 out)
            pltpu.VMEM((N, 12, 8, 12), jnp.float32),    # p3  (conv3 + maxpool)
            pltpu.VMEM((N, 10, 16, 10), jnp.float32),   # a4
            pltpu.VMEM((N, 8, 16, 8), jnp.float32),     # a5
            pltpu.VMEM((N, 8, 16, 8), jnp.float32),     # a6 zero-padded (conv7 in)
            pltpu.VMEM((N, 6, 16, 6), jnp.float32),     # a7
            pltpu.VMEM((16, N), jnp.float32),           # GAP buffer
        ],
    )(*inputs)
    return out_t.T                                            # (N, 10)


# ----------------------------- params ---------------------------------------

def init_params(key):
    ks = jax.random.split(key, 8)

    def conv_w(k, cout, cin, kh, kw):
        fan_in = cin * kh * kw
        return (jax.random.normal(k, (cout, cin, kh, kw), jnp.float32)
                * (2.0 / fan_in) ** 0.5)

    def bn(c):
        gamma = jnp.ones((c,), jnp.float32)
        beta = jnp.zeros((c,), jnp.float32)
        running_mean = jnp.zeros((c,), jnp.float32)
        running_var = jnp.ones((c,), jnp.float32)
        scale = gamma / jnp.sqrt(running_var + EPS)
        bias = beta - running_mean * scale
        return scale, bias

    return {
        "w1": conv_w(ks[0], 8, 1, 3, 3),
        "w2": conv_w(ks[1], 16, 8, 3, 3),
        "w3": conv_w(ks[2], 8, 16, 1, 1),
        "w4": conv_w(ks[3], 16, 8, 3, 3),
        "w5": conv_w(ks[4], 16, 16, 3, 3),
        "w6": conv_w(ks[5], 16, 16, 3, 3),
        "w7": conv_w(ks[6], 16, 16, 3, 3),
        "w8": conv_w(ks[7], 10, 16, 1, 1),
        "bn1": bn(8), "bn2": bn(16), "bn4": bn(16),
        "bn5": bn(16), "bn6": bn(16), "bn7": bn(16),
    }


# ----------------------------- reference (plain JAX) -------------------------

def _ref_forward(params, x):
    def conv(x, w, pad):
        return jax.lax.conv_general_dilated(
            x, w, (1, 1), [(pad, pad), (pad, pad)],
            dimension_numbers=("NCHW", "OIHW", "NCHW"))

    def block(x, w, sc, bi, pad=0):
        y = jnp.maximum(conv(x, w, pad), 0.0)
        return y * sc[None, :, None, None] + bi[None, :, None, None]

    x = block(x, params["w1"], *params["bn1"])
    x = block(x, params["w2"], *params["bn2"])
    x = conv(x, params["w3"], 0)
    N, C, H, W = x.shape
    x = x.reshape(N, C, H // 2, 2, W // 2, 2).max(axis=(3, 5))
    x = block(x, params["w4"], *params["bn4"])
    x = block(x, params["w5"], *params["bn5"])
    x = block(x, params["w6"], *params["bn6"])
    x = block(x, params["w7"], *params["bn7"], pad=1)
    x = x.mean(axis=(2, 3))                                   # GAP
    logits = jnp.einsum("nc,oc->no", x, params["w8"].reshape(10, 16))
    return jax.nn.log_softmax(logits, axis=-1)


# ----------------------------- main ------------------------------------------

if __name__ == "__main__":
    key = jax.random.PRNGKey(0)
    pkey, xkey = jax.random.split(key)
    params = init_params(pkey)
    x = jax.random.normal(xkey, (2, 1, 28, 28), jnp.float32)   # NCHW, MNIST-like

    prepped = prepare_inputs(params)
    out = jax.block_until_ready(gbn_net_forward(prepped, x))
    ref = jax.block_until_ready(_ref_forward(params, x))

    assert out.shape == (2, 10), out.shape
    assert bool(jnp.all(jnp.isfinite(out)))
    max_err = float(jnp.abs(out - ref).max())
    assert jnp.allclose(out, ref, rtol=1e-3, atol=1e-3), max_err
    # log_softmax rows sum to 1 in probability space
    assert jnp.allclose(jnp.exp(out).sum(-1), 1.0, atol=1e-4)

    print("KERNEL_OK")
</pallas_src>

<mosaic_0001>
module attributes {stable_mosaic.version = 11 : i64} {
  func.func @_gbn_fused_kernel(%arg0: memref<2x26x9x26xf32, #tpu.memory_space<vmem>>, %arg1: memref<8x9xf32, #tpu.memory_space<vmem>>, %arg2: memref<9x16x8xf32, #tpu.memory_space<vmem>>, %arg3: memref<8x16xf32, #tpu.memory_space<vmem>>, %arg4: memref<9x16x8xf32, #tpu.memory_space<vmem>>, %arg5: memref<9x16x16xf32, #tpu.memory_space<vmem>>, %arg6: memref<9x16x16xf32, #tpu.memory_space<vmem>>, %arg7: memref<9x16x16xf32, #tpu.memory_space<vmem>>, %arg8: memref<10x16xf32, #tpu.memory_space<vmem>>, %arg9: memref<2x24x12xf32, #tpu.memory_space<vmem>>, %arg10: memref<6x16x1xf32, #tpu.memory_space<vmem>>, %arg11: memref<6x16x1xf32, #tpu.memory_space<vmem>>, %arg12: memref<10x2xf32, #tpu.memory_space<vmem>>, %arg13: memref<2x26x8x26xf32, #tpu.memory_space<vmem>>, %arg14: memref<2x24x16x24xf32, #tpu.memory_space<vmem>>, %arg15: memref<2x12x8x12xf32, #tpu.memory_space<vmem>>, %arg16: memref<2x10x16x10xf32, #tpu.memory_space<vmem>>, %arg17: memref<2x8x16x8xf32, #tpu.memory_space<vmem>>, %arg18: memref<2x8x16x8xf32, #tpu.memory_space<vmem>>, %arg19: memref<2x6x16x6xf32, #tpu.memory_space<vmem>>, %arg20: memref<16x2xf32, #tpu.memory_space<vmem>>) attributes {dimension_semantics = [], scalar_prefetch = 0 : i64, scratch_operands = 8 : i64, tpu.core_type = #tpu.core_type<tc>} {
    %c0 = arith.constant 0 : index
    %c0_0 = arith.constant 0 : index
    %0 = vector.load %arg1[%c0, %c0_0] : memref<8x9xf32, #tpu.memory_space<vmem>>, vector<8x9xf32>
    %c0_1 = arith.constant 0 : index
    %c0_2 = arith.constant 0 : index
    %c0_3 = arith.constant 0 : index
    %1 = vector.load %arg10[%c0_1, %c0_2, %c0_3] : memref<6x16x1xf32, #tpu.memory_space<vmem>>, vector<1x8x1xf32>
    %2 = vector.shape_cast %1 : vector<1x8x1xf32> to vector<8x1xf32>
    %c0_4 = arith.constant 0 : index
    %c0_5 = arith.constant 0 : index
    %c0_6 = arith.constant 0 : index
    %3 = vector.load %arg11[%c0_4, %c0_5, %c0_6] : memref<6x16x1xf32, #tpu.memory_space<vmem>>, vector<1x8x1xf32>
    %4 = vector.shape_cast %3 : vector<1x8x1xf32> to vector<8x1xf32>
    %c0_i32 = arith.constant 0 : i32
    %c26_i32 = arith.constant 26 : i32
    %5 = arith.addi %c0_i32, %c26_i32 : i32
    %c1_i32 = arith.constant 1 : i32
    scf.for %arg21 = %c0_i32 to %5 step %c1_i32  : i32 {
      %c0_301 = arith.constant 0 : index
      %218 = arith.index_cast %arg21 : i32 to index
      %c0_302 = arith.constant 0 : index
      %c0_303 = arith.constant 0 : index
      %219 = vector.load %arg0[%c0_301, %218, %c0_302, %c0_303] : memref<2x26x9x26xf32, #tpu.memory_space<vmem>>, vector<1x1x9x26xf32>
      %220 = vector.shape_cast %219 : vector<1x1x9x26xf32> to vector<9x26xf32>
      %cst_304 = arith.constant dense<0.000000e+00> : vector<8x26xf32>
      %221 = tpu.matmul %0, %220, %cst_304 {dimension_numbers = #tpu.dot_dimension_numbers<[1], [0], [0], [1], [0, 0, 1, 1], [], []>} : vector<8x9xf32>, vector<9x26xf32>, vector<8x26xf32> -> vector<8x26xf32>
      %cst_305 = arith.constant 0.000000e+00 : f32
      %222 = vector.broadcast %cst_305 : f32 to vector<8x26xf32>
      %223 = arith.maximumf %221, %222 : vector<8x26xf32>
      %224 = vector.broadcast %2 : vector<8x1xf32> to vector<8x26xf32>
      %225 = arith.mulf %223, %224 : vector<8x26xf32>
      %226 = vector.broadcast %4 : vector<8x1xf32> to vector<8x26xf32>
      %227 = arith.addf %225, %226 : vector<8x26xf32>
      %c0_306 = arith.constant 0 : index
      %228 = arith.index_cast %arg21 : i32 to index
      %c0_307 = arith.constant 0 : index
      %c0_308 = arith.constant 0 : index
      %229 = vector.load %arg13[%c0_306, %228, %c0_307, %c0_308] : memref<2x26x8x26xf32, #tpu.memory_space<vmem>>, vector<1x1x8x26xf32>
      %230 = vector.shape_cast %229 : vector<1x1x8x26xf32> to vector<8x26xf32>
      %231 = vector.shape_cast %227 : vector<8x26xf32> to vector<1x1x8x26xf32>
      tpu.vector_store %arg13[%c0_306, %228, %c0_307, %c0_308], %231 {strides = array<i32>} : memref<2x26x8x26xf32, #tpu.memory_space<vmem>>, vector<1x1x8x26xf32>,
    }
    %c26_i32_7 = arith.constant 26 : i32
    %c0_i32_8 = arith.constant 0 : i32
    %c26_i32_9 = arith.constant 26 : i32
    %6 = arith.addi %c0_i32_8, %c26_i32_9 : i32
    %c1_i32_10 = arith.constant 1 : i32
    scf.for %arg21 = %c0_i32_8 to %6 step %c1_i32_10  : i32 {
      %c1_301 = arith.constant 1 : index
      %218 = arith.index_cast %arg21 : i32 to index
      %c0_302 = arith.constant 0 : index
      %c0_303 = arith.constant 0 : index
      %219 = vector.load %arg0[%c1_301, %218, %c0_302, %c0_303] : memref<2x26x9x26xf32, #tpu.memory_space<vmem>>, vector<1x1x9x26xf32>
      %220 = vector.shape_cast %219 : vector<1x1x9x26xf32> to vector<9x26xf32>
      %cst_304 = arith.constant dense<0.000000e+00> : vector<8x26xf32>
      %221 = tpu.matmul %0, %220, %cst_304 {dimension_numbers = #tpu.dot_dimension_numbers<[1], [0], [0], [1], [0, 0, 1, 1], [], []>} : vector<8x9xf32>, vector<9x26xf32>, vector<8x26xf32> -> vector<8x26xf32>
      %cst_305 = arith.constant 0.000000e+00 : f32
      %222 = vector.broadcast %cst_305 : f32 to vector<8x26xf32>
      %223 = arith.maximumf %221, %222 : vector<8x26xf32>
      %224 = vector.broadcast %2 : vector<8x1xf32> to vector<8x26xf32>
      %225 = arith.mulf %223, %224 : vector<8x26xf32>
      %226 = vector.broadcast %4 : vector<8x1xf32> to vector<8x26xf32>
      %227 = arith.addf %225, %226 : vector<8x26xf32>
      %c1_306 = arith.constant 1 : index
      %228 = arith.index_cast %arg21 : i32 to index
      %c0_307 = arith.constant 0 : index
      %c0_308 = arith.constant 0 : index
      %229 = vector.load %arg13[%c1_306, %228, %c0_307, %c0_308] : memref<2x26x8x26xf32, #tpu.memory_space<vmem>>, vector<1x1x8x26xf32>
      %230 = vector.shape_cast %229 : vector<1x1x8x26xf32> to vector<8x26xf32>
      %231 = vector.shape_cast %227 : vector<8x26xf32> to vector<1x1x8x26xf32>
      tpu.vector_store %arg13[%c1_306, %228, %c0_307, %c0_308], %231 {strides = array<i32>} : memref<2x26x8x26xf32, #tpu.memory_space<vmem>>, vector<1x1x8x26xf32>,
    }
    %c26_i32_11 = arith.constant 26 : i32
    %c1 = arith.constant 1 : index
    %c0_12 = arith.constant 0 : index
    %c0_13 = arith.constant 0 : index
    %7 = vector.load %arg10[%c1, %c0_12, %c0_13] : memref<6x16x1xf32, #tpu.memory_space<vmem>>, vector<1x16x1xf32>
    %8 = vector.shape_cast %7 : vector<1x16x1xf32> to vector<16x1xf32>
    %c1_14 = arith.constant 1 : index
    %c0_15 = arith.constant 0 : index
    %c0_16 = arith.constant 0 : index
    %9 = vector.load %arg11[%c1_14, %c0_15, %c0_16] : memref<6x16x1xf32, #tpu.memory_space<vmem>>, vector<1x16x1xf32>
    %10 = vector.shape_cast %9 : vector<1x16x1xf32> to vector<16x1xf32>
    %c0_17 = arith.constant 0 : index
    %c0_18 = arith.constant 0 : index
    %c0_19 = arith.constant 0 : index
    %11 = vector.load %arg2[%c0_17, %c0_18, %c0_19] : memref<9x16x8xf32, #tpu.memory_space<vmem>>, vector<1x16x8xf32>
    %12 = vector.shape_cast %11 : vector<1x16x8xf32> to vector<16x8xf32>
    %c1_20 = arith.constant 1 : index
    %c0_21 = arith.constant 0 : index
    %c0_22 = arith.constant 0 : index
    %13 = vector.load %arg2[%c1_20, %c0_21, %c0_22] : memref<9x16x8xf32, #tpu.memory_space<vmem>>, vector<1x16x8xf32>
    %14 = vector.shape_cast %13 : vector<1x16x8xf32> to vector<16x8xf32>
    %c2 = arith.constant 2 : index
    %c0_23 = arith.constant 0 : index
    %c0_24 = arith.constant 0 : index
    %15 = vector.load %arg2[%c2, %c0_23, %c0_24] : memref<9x16x8xf32, #tpu.memory_space<vmem>>, vector<1x16x8xf32>
    %16 = vector.shape_cast %15 : vector<1x16x8xf32> to vector<16x8xf32>
    %c3 = arith.constant 3 : index
    %c0_25 = arith.constant 0 : index
    %c0_26 = arith.constant 0 : index
    %17 = vector.load %arg2[%c3, %c0_25, %c0_26] : memref<9x16x8xf32, #tpu.memory_space<vmem>>, vector<1x16x8xf32>
    %18 = vector.shape_cast %17 : vector<1x16x8xf32> to vector<16x8xf32>
    %c4 = arith.constant 4 : index
    %c0_27 = arith.constant 0 : index
    %c0_28 = arith.constant 0 : index
    %19 = vector.load %arg2[%c4, %c0_27, %c0_28] : memref<9x16x8xf32, #tpu.memory_space<vmem>>, vector<1x16x8xf32>
    %20 = vector.shape_cast %19 : vector<1x16x8xf32> to vector<16x8xf32>
    %c5 = arith.constant 5 : index
    %c0_29 = arith.constant 0 : index
    %c0_30 = arith.constant 0 : index
    %21 = vector.load %arg2[%c5, %c0_29, %c0_30] : memref<9x16x8xf32, #tpu.memory_space<vmem>>, vector<1x16x8xf32>
    %22 = vector.shape_cast %21 : vector<1x16x8xf32> to vector<16x8xf32>
    %c6 = arith.constant 6 : index
    %c0_31 = arith.constant 0 : index
    %c0_32 = arith.constant 0 : index
    %23 = vector.load %arg2[%c6, %c0_31, %c0_32] : memref<9x16x8xf32, #tpu.memory_space<vmem>>, vector<1x16x8xf32>
    %24 = vector.shape_cast %23 : vector<1x16x8xf32> to vector<16x8xf32>
    %c7 = arith.constant 7 : index
    %c0_33 = arith.constant 0 : index
    %c0_34 = arith.constant 0 : index
    %25 = vector.load %arg2[%c7, %c0_33, %c0_34] : memref<9x16x8xf32, #tpu.memory_space<vmem>>, vector<1x16x8xf32>
    %26 = vector.shape_cast %25 : vector<1x16x8xf32> to vector<16x8xf32>
    %c8 = arith.constant 8 : index
    %c0_35 = arith.constant 0 : index
    %c0_36 = arith.constant 0 : index
    %27 = vector.load %arg2[%c8, %c0_35, %c0_36] : memref<9x16x8xf32, #tpu.memory_space<vmem>>, vector<1x16x8xf32>
    %28 = vector.shape_cast %27 : vector<1x16x8xf32> to vector<16x8xf32>
    %c0_i32_37 = arith.constant 0 : i32
    %c24_i32 = arith.constant 24 : i32
    %29 = arith.addi %c0_i32_37, %c24_i32 : i32
    %c1_i32_38 = arith.constant 1 : i32
    scf.for %arg21 = %c0_i32_37 to %29 step %c1_i32_38  : i32 {
      %c0_301 = arith.constant 0 : index
      %218 = arith.index_cast %arg21 : i32 to index
      %c0_302 = arith.constant 0 : index
      %c0_303 = arith.constant 0 : index
      %219 = vector.load %arg13[%c0_301, %218, %c0_302, %c0_303] : memref<2x26x8x26xf32, #tpu.memory_space<vmem>>, vector<1x1x8x24xf32>
      %220 = vector.shape_cast %219 : vector<1x1x8x24xf32> to vector<8x24xf32>
      %cst_304 = arith.constant dense<0.000000e+00> : vector<16x24xf32>
      %221 = tpu.matmul %12, %220, %cst_304 {dimension_numbers = #tpu.dot_dimension_numbers<[1], [0], [0], [1], [0, 0, 1, 1], [], []>} : vector<16x8xf32>, vector<8x24xf32>, vector<16x24xf32> -> vector<16x24xf32>
      %c0_i32_305 = arith.constant 0 : i32
      %222 = arith.addi %arg21, %c0_i32_305 : i32
      %c0_306 = arith.constant 0 : index
      %223 = arith.index_cast %222 : i32 to index
      %c0_307 = arith.constant 0 : index
      %c1_308 = arith.constant 1 : index
      %224 = vector.load %arg13[%c0_306, %223, %c0_307, %c1_308] : memref<2x26x8x26xf32, #tpu.memory_space<vmem>>, vector<1x1x8x24xf32>
      %225 = vector.shape_cast %224 : vector<1x1x8x24xf32> to vector<8x24xf32>
      %cst_309 = arith.constant dense<0.000000e+00> : vector<16x24xf32>
      %226 = tpu.matmul %14, %225, %cst_309 {dimension_numbers = #tpu.dot_dimension_numbers<[1], [0], [0], [1], [0, 0, 1, 1], [], []>} : vector<16x8xf32>, vector<8x24xf32>, vector<16x24xf32> -> vector<16x24xf32>
      %227 = arith.addf %221, %226 : vector<16x24xf32>
      %c0_i32_310 = arith.constant 0 : i32
      %228 = arith.addi %arg21, %c0_i32_310 : i32
      %c0_311 = arith.constant 0 : index
      %229 = arith.index_cast %228 : i32 to index
      %c0_312 = arith.constant 0 : index
      %c2_313 = arith.constant 2 : index
      %230 = vector.load %arg13[%c0_311, %229, %c0_312, %c2_313] : memref<2x26x8x26xf32, #tpu.memory_space<vmem>>, vector<1x1x8x24xf32>
      %231 = vector.shape_cast %230 : vector<1x1x8x24xf32> to vector<8x24xf32>
      %cst_314 = arith.constant dense<0.000000e+00> : vector<16x24xf32>
      %232 = tpu.matmul %16, %231, %cst_314 {dimension_numbers = #tpu.dot_dimension_numbers<[1], [0], [0], [1], [0, 0, 1, 1], [], []>} : vector<16x8xf32>, vector<8x24xf32>, vector<16x24xf32> -> vector<16x24xf32>
      %233 = arith.addf %227, %232 : vector<16x24xf32>
      %c1_i32_315 = arith.constant 1 : i32
      %234 = arith.addi %arg21, %c1_i32_315 : i32
      %c0_316 = arith.constant 0 : index
      %235 = arith.index_cast %234 : i32 to index
      %c0_317 = arith.constant 0 : index
      %c0_318 = arith.constant 0 : index
      %236 = vector.load %arg13[%c0_316, %235, %c0_317, %c0_318] : memref<2x26x8x26xf32, #tpu.memory_space<vmem>>, vector<1x1x8x24xf32>
      %237 = vector.shape_cast %236 : vector<1x1x8x24xf32> to vector<8x24xf32>
      %cst_319 = arith.constant dense<0.000000e+00> : vector<16x24xf32>
      %238 = tpu.matmul %18, %237, %cst_319 {dimension_numbers = #tpu.dot_dimension_numbers<[1], [0], [0], [1], [0, 0, 1, 1], [], []>} : vector<16x8xf32>, vector<8x24xf32>, vector<16x24xf32> -> vector<16x24xf32>
      %239 = arith.addf %233, %238 : vector<16x24xf32>
      %c1_i32_320 = arith.constant 1 : i32
      %240 = arith.addi %arg21, %c1_i32_320 : i32
      %c0_321 = arith.constant 0 : index
      %241 = arith.index_cast %240 : i32 to index
      %c0_322 = arith.constant 0 : index
      %c1_323 = arith.constant 1 : index
      %242 = vector.load %arg13[%c0_321, %241, %c0_322, %c1_323] : memref<2x26x8x26xf32, #tpu.memory_space<vmem>>, vector<1x1x8x24xf32>
      %243 = vector.shape_cast %242 : vector<1x1x8x24xf32> to vector<8x24xf32>
      %cst_324 = arith.constant dense<0.000000e+00> : vector<16x24xf32>
      %244 = tpu.matmul %20, %243, %cst_324 {dimension_numbers = #tpu.dot_dimension_numbers<[1], [0], [0], [1], [0, 0, 1, 1], [], []>} : vector<16x8xf32>, vector<8x24xf32>, vector<16x24xf32> -> vector<16x24xf32>
      %245 = arith.addf %239, %244 : vector<16x24xf32>
      %c1_i32_325 = arith.constant 1 : i32
      %246 = arith.addi %arg21, %c1_i32_325 : i32
      %c0_326 = arith.constant 0 : index
      %247 = arith.index_cast %246 : i32 to index
      %c0_327 = arith.constant 0 : index
      %c2_328 = arith.constant 2 : index
      %248 = vector.load %arg13[%c0_326, %247, %c0_327, %c2_328] : memref<2x26x8x26xf32, #tpu.memory_space<vmem>>, vector<1x1x8x24xf32>
      %249 = vector.shape_cast %248 : vector<1x1x8x24xf32> to vector<8x24xf32>
      %cst_329 = arith.constant dense<0.000000e+00> : vector<16x24xf32>
      %250 = tpu.matmul %22, %249, %cst_329 {dimension_numbers = #tpu.dot_dimension_numbers<[1], [0], [0], [1], [0, 0, 1, 1], [], []>} : vector<16x8xf32>, vector<8x24xf32>, vector<16x24xf32> -> vector<16x24xf32>
      %251 = arith.addf %245, %250 : vector<16x24xf32>
      %c2_i32 = arith.constant 2 : i32
      %252 = arith.addi %arg21, %c2_i32 : i32
      %c0_330 = arith.constant 0 : index
      %253 = arith.index_cast %252 : i32 to index
      %c0_331 = arith.constant 0 : index
      %c0_332 = arith.constant 0 : index
      %254 = vector.load %arg13[%c0_330, %253, %c0_331, %c0_332] : memref<2x26x8x26xf32, #tpu.memory_space<vmem>>, vector<1x1x8x24xf32>
      %255 = vector.shape_cast %254 : vector<1x1x8x24xf32> to vector<8x24xf32>
      %cst_333 = arith.constant dense<0.000000e+00> : vector<16x24xf32>
      %256 = tpu.matmul %24, %255, %cst_333 {dimension_numbers = #tpu.dot_dimension_numbers<[1], [0], [0], [1], [0, 0, 1, 1], [], []>} : vector<16x8xf32>, vector<8x24xf32>, vector<16x24xf32> -> vector<16x24xf32>
      %257 = arith.addf %251, %256 : vector<16x24xf32>
      %c2_i32_334 = arith.constant 2 : i32
      %258 = arith.addi %arg21, %c2_i32_334 : i32
      %c0_335 = arith.constant 0 : index
      %259 = arith.index_cast %258 : i32 to index
      %c0_336 = arith.constant 0 : index
      %c1_337 = arith.constant 1 : index
      %260 = vector.load %arg13[%c0_335, %259, %c0_336, %c1_337] : memref<2x26x8x26xf32, #tpu.memory_space<vmem>>, vector<1x1x8x24xf32>
      %261 = vector.shape_cast %260 : vector<1x1x8x24xf32> to vector<8x24xf32>
      %cst_338 = arith.constant dense<0.000000e+00> : vector<16x24xf32>
      %262 = tpu.matmul %26, %261, %cst_338 {dimension_numbers = #tpu.dot_dimension_numbers<[1], [0], [0], [1], [0, 0, 1, 1], [], []>} : vector<16x8xf32>, vector<8x24xf32>, vector<16x24xf32> -> vector<16x24xf32>
      %263 = arith.addf %257, %262 : vector<16x24xf32>
      %c2_i32_339 = arith.constant 2 : i32
      %264 = arith.addi %arg21, %c2_i32_339 : i32
      %c0_340 = arith.constant 0 : index
      %265 = arith.index_cast %264 : i32 to index
      %c0_341 = arith.constant 0 : index
      %c2_342 = arith.constant 2 : index
      %266 = vector.load %arg13[%c0_340, %265, %c0_341, %c2_342] : memref<2x26x8x26xf32, #tpu.memory_space<vmem>>, vector<1x1x8x24xf32>
      %267 = vector.shape_cast %266 : vector<1x1x8x24xf32> to vector<8x24xf32>
      %cst_343 = arith.constant dense<0.000000e+00> : vector<16x24xf32>
      %268 = tpu.matmul %28, %267, %cst_343 {dimension_numbers = #tpu.dot_dimension_numbers<[1], [0], [0], [1], [0, 0, 1, 1], [], []>} : vector<16x8xf32>, vector<8x24xf32>, vector<16x24xf32> -> vector<16x24xf32>
      %269 = arith.addf %263, %268 : vector<16x24xf32>
      %cst_344 = arith.constant 0.000000e+00 : f32
      %270 = vector.broadcast %cst_344 : f32 to vector<16x24xf32>
      %271 = arith.maximumf %269, %270 : vector<16x24xf32>
      %272 = vector.broadcast %8 : vector<16x1xf32> to vector<16x24xf32>
      %273 = arith.mulf %271, %272 : vector<16x24xf32>
      %274 = vector.broadcast %10 : vector<16x1xf32> to vector<16x24xf32>
      %275 = arith.addf %273, %274 : vector<16x24xf32>
      %c0_i32_345 = arith.constant 0 : i32
      %276 = arith.addi %arg21, %c0_i32_345 : i32
      %c0_346 = arith.constant 0 : index
      %277 = arith.index_cast %276 : i32 to index
      %c0_347 = arith.constant 0 : index
      %c0_348 = arith.constant 0 : index
      %278 = vector.load %arg14[%c0_346, %277, %c0_347, %c0_348] : memref<2x24x16x24xf32, #tpu.memory_space<vmem>>, vector<1x1x16x24xf32>
      %279 = vector.shape_cast %278 : vector<1x1x16x24xf32> to vector<16x24xf32>
      %280 = vector.shape_cast %275 : vector<16x24xf32> to vector<1x1x16x24xf32>
      tpu.vector_store %arg14[%c0_346, %277, %c0_347, %c0_348], %280 {strides = array<i32>} : memref<2x24x16x24xf32, #tpu.memory_space<vmem>>, vector<1x1x16x24xf32>,
    }
    %c24_i32_39 = arith.constant 24 : i32
    %c0_i32_40 = arith.constant 0 : i32
    %c24_i32_41 = arith.constant 24 : i32
    %30 = arith.addi %c0_i32_40, %c24_i32_41 : i32
    %c1_i32_42 = arith.constant 1 : i32
    scf.for %arg21 = %c0_i32_40 to %30 step %c1_i32_42  : i32 {
      %c1_301 = arith.constant 1 : index
      %218 = arith.index_cast %arg21 : i32 to index
      %c0_302 = arith.constant 0 : index
      %c0_303 = arith.constant 0 : index
      %219 = vector.load %arg13[%c1_301, %218, %c0_302, %c0_303] : memref<2x26x8x26xf32, #tpu.memory_space<vmem>>, vector<1x1x8x24xf32>
      %220 = vector.shape_cast %219 : vector<1x1x8x24xf32> to vector<8x24xf32>
      %cst_304 = arith.constant dense<0.000000e+00> : vector<16x24xf32>
      %221 = tpu.matmul %12, %220, %cst_304 {dimension_numbers = #tpu.dot_dimension_numbers<[1], [0], [0], [1], [0, 0, 1, 1], [], []>} : vector<16x8xf32>, vector<8x24xf32>, vector<16x24xf32> -> vector<16x24xf32>
      %c0_i32_305 = arith.constant 0 : i32
      %222 = arith.addi %arg21, %c0_i32_305 : i32
      %c1_306 = arith.constant 1 : index
      %223 = arith.index_cast %222 : i32 to index
      %c0_307 = arith.constant 0 : index
      %c1_308 = arith.constant 1 : index
      %224 = vector.load %arg13[%c1_306, %223, %c0_307, %c1_308] : memref<2x26x8x26xf32, #tpu.memory_space<vmem>>, vector<1x1x8x24xf32>
      %225 = vector.shape_cast %224 : vector<1x1x8x24xf32> to vector<8x24xf32>
      %cst_309 = arith.constant dense<0.000000e+00> : vector<16x24xf32>
      %226 = tpu.matmul %14, %225, %cst_309 {dimension_numbers = #tpu.dot_dimension_numbers<[1], [0], [0], [1], [0, 0, 1, 1], [], []>} : vector<16x8xf32>, vector<8x24xf32>, vector<16x24xf32> -> vector<16x24xf32>
      %227 = arith.addf %221, %226 : vector<16x24xf32>
      %c0_i32_310 = arith.constant 0 : i32
      %228 = arith.addi %arg21, %c0_i32_310 : i32
      %c1_311 = arith.constant 1 : index
      %229 = arith.index_cast %228 : i32 to index
      %c0_312 = arith.constant 0 : index
      %c2_313 = arith.constant 2 : index
      %230 = vector.load %arg13[%c1_311, %229, %c0_312, %c2_313] : memref<2x26x8x26xf32, #tpu.memory_space<vmem>>, vector<1x1x8x24xf32>
      %231 = vector.shape_cast %230 : vector<1x1x8x24xf32> to vector<8x24xf32>
      %cst_314 = arith.constant dense<0.000000e+00> : vector<16x24xf32>
      %232 = tpu.matmul %16, %231, %cst_314 {dimension_numbers = #tpu.dot_dimension_numbers<[1], [0], [0], [1], [0, 0, 1, 1], [], []>} : vector<16x8xf32>, vector<8x24xf32>, vector<16x24xf32> -> vector<16x24xf32>
      %233 = arith.addf %227, %232 : vector<16x24xf32>
      %c1_i32_315 = arith.constant 1 : i32
      %234 = arith.addi %arg21, %c1_i32_315 : i32
      %c1_316 = arith.constant 1 : index
      %235 = arith.index_cast %234 : i32 to index
      %c0_317 = arith.constant 0 : index
      %c0_318 = arith.constant 0 : index
      %236 = vector.load %arg13[%c1_316, %235, %c0_317, %c0_318] : memref<2x26x8x26xf32, #tpu.memory_space<vmem>>, vector<1x1x8x24xf32>
      %237 = vector.shape_cast %236 : vector<1x1x8x24xf32> to vector<8x24xf32>
      %cst_319 = arith.constant dense<0.000000e+00> : vector<16x24xf32>
      %238 = tpu.matmul %18, %237, %cst_319 {dimension_numbers = #tpu.dot_dimension_numbers<[1], [0], [0], [1], [0, 0, 1, 1], [], []>} : vector<16x8xf32>, vector<8x24xf32>, vector<16x24xf32> -> vector<16x24xf32>
      %239 = arith.addf %233, %238 : vector<16x24xf32>
      %c1_i32_320 = arith.constant 1 : i32
      %240 = arith.addi %arg21, %c1_i32_320 : i32
      %c1_321 = arith.constant 1 : index
      %241 = arith.index_cast %240 : i32 to index
      %c0_322 = arith.constant 0 : index
      %c1_323 = arith.constant 1 : index
      %242 = vector.load %arg13[%c1_321, %241, %c0_322, %c1_323] : memref<2x26x8x26xf32, #tpu.memory_space<vmem>>, vector<1x1x8x24xf32>
      %243 = vector.shape_cast %242 : vector<1x1x8x24xf32> to vector<8x24xf32>
      %cst_324 = arith.constant dense<0.000000e+00> : vector<16x24xf32>
      %244 = tpu.matmul %20, %243, %cst_324 {dimension_numbers = #tpu.dot_dimension_numbers<[1], [0], [0], [1], [0, 0, 1, 1], [], []>} : vector<16x8xf32>, vector<8x24xf32>, vector<16x24xf32> -> vector<16x24xf32>
      %245 = arith.addf %239, %244 : vector<16x24xf32>
      %c1_i32_325 = arith.constant 1 : i32
      %246 = arith.addi %arg21, %c1_i32_325 : i32
      %c1_326 = arith.constant 1 : index
      %247 = arith.index_cast %246 : i32 to index
      %c0_327 = arith.constant 0 : index
      %c2_328 = arith.constant 2 : index
      %248 = vector.load %arg13[%c1_326, %247, %c0_327, %c2_328] : memref<2x26x8x26xf32, #tpu.memory_space<vmem>>, vector<1x1x8x24xf32>
      %249 = vector.shape_cast %248 : vector<1x1x8x24xf32> to vector<8x24xf32>
      %cst_329 = arith.constant dense<0.000000e+00> : vector<16x24xf32>
      %250 = tpu.matmul %22, %249, %cst_329 {dimension_numbers = #tpu.dot_dimension_numbers<[1], [0], [0], [1], [0, 0, 1, 1], [], []>} : vector<16x8xf32>, vector<8x24xf32>, vector<16x24xf32> -> vector<16x24xf32>
      %251 = arith.addf %245, %250 : vector<16x24xf32>
      %c2_i32 = arith.constant 2 : i32
      %252 = arith.addi %arg21, %c2_i32 : i32
      %c1_330 = arith.constant 1 : index
      %253 = arith.index_cast %252 : i32 to index
      %c0_331 = arith.constant 0 : index
      %c0_332 = arith.constant 0 : index
      %254 = vector.load %arg13[%c1_330, %253, %c0_331, %c0_332] : memref<2x26x8x26xf32, #tpu.memory_space<vmem>>, vector<1x1x8x24xf32>
      %255 = vector.shape_cast %254 : vector<1x1x8x24xf32> to vector<8x24xf32>
      %cst_333 = arith.constant dense<0.000000e+00> : vector<16x24xf32>
      %256 = tpu.matmul %24, %255, %cst_333 {dimension_numbers = #tpu.dot_dimension_numbers<[1], [0], [0], [1], [0, 0, 1, 1], [], []>} : vector<16x8xf32>, vector<8x24xf32>, vector<16x24xf32> -> vector<16x24xf32>
      %257 = arith.addf %251, %256 : vector<16x24xf32>
      %c2_i32_334 = arith.constant 2 : i32
      %258 = arith.addi %arg21, %c2_i32_334 : i32
      %c1_335 = arith.constant 1 : index
      %259 = arith.index_cast %258 : i32 to index
      %c0_336 = arith.constant 0 : index
      %c1_337 = arith.constant 1 : index
      %260 = vector.load %arg13[%c1_335, %259, %c0_336, %c1_337] : memref<2x26x8x26xf32, #tpu.memory_space<vmem>>, vector<1x1x8x24xf32>
      %261 = vector.shape_cast %260 : vector<1x1x8x24xf32> to vector<8x24xf32>
      %cst_338 = arith.constant dense<0.000000e+00> : vector<16x24xf32>
      %262 = tpu.matmul %26, %261, %cst_338 {dimension_numbers = #tpu.dot_dimension_numbers<[1], [0], [0], [1], [0, 0, 1, 1], [], []>} : vector<16x8xf32>, vector<8x24xf32>, vector<16x24xf32> -> vector<16x24xf32>
      %263 = arith.addf %257, %262 : vector<16x24xf32>
      %c2_i32_339 = arith.constant 2 : i32
      %264 = arith.addi %arg21, %c2_i32_339 : i32
      %c1_340 = arith.constant 1 : index
      %265 = arith.index_cast %264 : i32 to index
      %c0_341 = arith.constant 0 : index
      %c2_342 = arith.constant 2 : index
      %266 = vector.load %arg13[%c1_340, %265, %c0_341, %c2_342] : memref<2x26x8x26xf32, #tpu.memory_space<vmem>>, vector<1x1x8x24xf32>
      %267 = vector.shape_cast %266 : vector<1x1x8x24xf32> to vector<8x24xf32>
      %cst_343 = arith.constant dense<0.000000e+00> : vector<16x24xf32>
      %268 = tpu.matmul %28, %267, %cst_343 {dimension_numbers = #tpu.dot_dimension_numbers<[1], [0], [0], [1], [0, 0, 1, 1], [], []>} : vector<16x8xf32>, vector<8x24xf32>, vector<16x24xf32> -> vector<16x24xf32>
      %269 = arith.addf %263, %268 : vector<16x24xf32>
      %cst_344 = arith.constant 0.000000e+00 : f32
      %270 = vector.broadcast %cst_344 : f32 to vector<16x24xf32>
      %271 = arith.maximumf %269, %270 : vector<16x24xf32>
      %272 = vector.broadcast %8 : vector<16x1xf32> to vector<16x24xf32>
      %273 = arith.mulf %271, %272 : vector<16x24xf32>
      %274 = vector.broadcast %10 : vector<16x1xf32> to vector<16x24xf32>
      %275 = arith.addf %273, %274 : vector<16x24xf32>
      %c0_i32_345 = arith.constant 0 : i32
      %276 = arith.addi %arg21, %c0_i32_345 : i32
      %c1_346 = arith.constant 1 : index
      %277 = arith.index_cast %276 : i32 to index
      %c0_347 = arith.constant 0 : index
      %c0_348 = arith.constant 0 : index
      %278 = vector.load %arg14[%c1_346, %277, %c0_347, %c0_348] : memref<2x24x16x24xf32, #tpu.memory_space<vmem>>, vector<1x1x16x24xf32>
      %279 = vector.shape_cast %278 : vector<1x1x16x24xf32> to vector<16x24xf32>
      %280 = vector.shape_cast %275 : vector<16x24xf32> to vector<1x1x16x24xf32>
      tpu.vector_store %arg14[%c1_346, %277, %c0_347, %c0_348], %280 {strides = array<i32>} : memref<2x24x16x24xf32, #tpu.memory_space<vmem>>, vector<1x1x16x24xf32>,
    }
    %c24_i32_43 = arith.constant 24 : i32
    %c0_44 = arith.constant 0 : index
    %c0_45 = arith.constant 0 : index
    %31 = vector.load %arg3[%c0_44, %c0_45] : memref<8x16xf32, #tpu.memory_space<vmem>>, vector<8x16xf32>
    %c0_46 = arith.constant 0 : index
    %c0_47 = arith.constant 0 : index
    %c0_48 = arith.constant 0 : index
    %32 = vector.load %arg9[%c0_46, %c0_47, %c0_48] : memref<2x24x12xf32, #tpu.memory_space<vmem>>, vector<1x24x12xf32>
    %33 = vector.shape_cast %32 : vector<1x24x12xf32> to vector<24x12xf32>
    %c1_49 = arith.constant 1 : index
    %c0_50 = arith.constant 0 : index
    %c0_51 = arith.constant 0 : index
    %34 = vector.load %arg9[%c1_49, %c0_50, %c0_51] : memref<2x24x12xf32, #tpu.memory_space<vmem>>, vector<1x24x12xf32>
    %35 = vector.shape_cast %34 : vector<1x24x12xf32> to vector<24x12xf32>
    %c0_i32_52 = arith.constant 0 : i32
    %c12_i32 = arith.constant 12 : i32
    %36 = arith.addi %c0_i32_52, %c12_i32 : i32
    %c1_i32_53 = arith.constant 1 : i32
    scf.for %arg21 = %c0_i32_52 to %36 step %c1_i32_53  : i32 {
      %c2_i32 = arith.constant 2 : i32
      %218 = arith.muli %c2_i32, %arg21 : i32
      %c0_301 = arith.constant 0 : index
      %219 = arith.index_cast %218 : i32 to index
      %c0_302 = arith.constant 0 : index
      %c0_303 = arith.constant 0 : index
      %220 = vector.load %arg14[%c0_301, %219, %c0_302, %c0_303] : memref<2x24x16x24xf32, #tpu.memory_space<vmem>>, vector<1x1x16x24xf32>
      %221 = vector.shape_cast %220 : vector<1x1x16x24xf32> to vector<16x24xf32>
      %cst_304 = arith.constant dense<0.000000e+00> : vector<8x24xf32>
      %222 = tpu.matmul %31, %221, %cst_304 {dimension_numbers = #tpu.dot_dimension_numbers<[1], [0], [0], [1], [0, 0, 1, 1], [], []>} : vector<8x16xf32>, vector<16x24xf32>, vector<8x24xf32> -> vector<8x24xf32>
      %c2_i32_305 = arith.constant 2 : i32
      %223 = arith.muli %c2_i32_305, %arg21 : i32
      %c1_i32_306 = arith.constant 1 : i32
      %224 = arith.addi %223, %c1_i32_306 : i32
      %c0_307 = arith.constant 0 : index
      %225 = arith.index_cast %224 : i32 to index
      %c0_308 = arith.constant 0 : index
      %c0_309 = arith.constant 0 : index
      %226 = vector.load %arg14[%c0_307, %225, %c0_308, %c0_309] : memref<2x24x16x24xf32, #tpu.memory_space<vmem>>, vector<1x1x16x24xf32>
      %227 = vector.shape_cast %226 : vector<1x1x16x24xf32> to vector<16x24xf32>
      %cst_310 = arith.constant dense<0.000000e+00> : vector<8x24xf32>
      %228 = tpu.matmul %31, %227, %cst_310 {dimension_numbers = #tpu.dot_dimension_numbers<[1], [0], [0], [1], [0, 0, 1, 1], [], []>} : vector<8x16xf32>, vector<16x24xf32>, vector<8x24xf32> -> vector<8x24xf32>
      %229 = arith.maximumf %222, %228 : vector<8x24xf32>
      %cst_311 = arith.constant dense<0.000000e+00> : vector<8x12xf32>
      %230 = tpu.matmul %229, %33, %cst_311 {dimension_numbers = #tpu.dot_dimension_numbers<[1], [0], [0], [1], [0, 0, 1, 1], [], []>} : vector<8x24xf32>, vector<24x12xf32>, vector<8x12xf32> -> vector<8x12xf32>
      %cst_312 = arith.constant dense<0.000000e+00> : vector<8x12xf32>
      %231 = tpu.matmul %229, %35, %cst_312 {dimension_numbers = #tpu.dot_dimension_numbers<[1], [0], [0], [1], [0, 0, 1, 1], [], []>} : vector<8x24xf32>, vector<24x12xf32>, vector<8x12xf32> -> vector<8x12xf32>
      %232 = arith.maximumf %230, %231 : vector<8x12xf32>
      %c0_313 = arith.constant 0 : index
      %233 = arith.index_cast %arg21 : i32 to index
      %c0_314 = arith.constant 0 : index
      %c0_315 = arith.constant 0 : index
      %234 = vector.load %arg15[%c0_313, %233, %c0_314, %c0_315] : memref<2x12x8x12xf32, #tpu.memory_space<vmem>>, vector<1x1x8x12xf32>
      %235 = vector.shape_cast %234 : vector<1x1x8x12xf32> to vector<8x12xf32>
      %236 = vector.shape_cast %232 : vector<8x12xf32> to vector<1x1x8x12xf32>
      tpu.vector_store %arg15[%c0_313, %233, %c0_314, %c0_315], %236 {strides = array<i32>} : memref<2x12x8x12xf32, #tpu.memory_space<vmem>>, vector<1x1x8x12xf32>,
    }
    %c12_i32_54 = arith.constant 12 : i32
    %c0_i32_55 = arith.constant 0 : i32
    %c12_i32_56 = arith.constant 12 : i32
    %37 = arith.addi %c0_i32_55, %c12_i32_56 : i32
    %c1_i32_57 = arith.constant 1 : i32
    scf.for %arg21 = %c0_i32_55 to %37 step %c1_i32_57  : i32 {
      %c2_i32 = arith.constant 2 : i32
      %218 = arith.muli %c2_i32, %arg21 : i32
      %c1_301 = arith.constant 1 : index
      %219 = arith.index_cast %218 : i32 to index
      %c0_302 = arith.constant 0 : index
      %c0_303 = arith.constant 0 : index
      %220 = vector.load %arg14[%c1_301, %219, %c0_302, %c0_303] : memref<2x24x16x24xf32, #tpu.memory_space<vmem>>, vector<1x1x16x24xf32>
      %221 = vector.shape_cast %220 : vector<1x1x16x24xf32> to vector<16x24xf32>
      %cst_304 = arith.constant dense<0.000000e+00> : vector<8x24xf32>
      %222 = tpu.matmul %31, %221, %cst_304 {dimension_numbers = #tpu.dot_dimension_numbers<[1], [0], [0], [1], [0, 0, 1, 1], [], []>} : vector<8x16xf32>, vector<16x24xf32>, vector<8x24xf32> -> vector<8x24xf32>
      %c2_i32_305 = arith.constant 2 : i32
      %223 = arith.muli %c2_i32_305, %arg21 : i32
      %c1_i32_306 = arith.constant 1 : i32
      %224 = arith.addi %223, %c1_i32_306 : i32
      %c1_307 = arith.constant 1 : index
      %225 = arith.index_cast %224 : i32 to index
      %c0_308 = arith.constant 0 : index
      %c0_309 = arith.constant 0 : index
      %226 = vector.load %arg14[%c1_307, %225, %c0_308, %c0_309] : memref<2x24x16x24xf32, #tpu.memory_space<vmem>>, vector<1x1x16x24xf32>
      %227 = vector.shape_cast %226 : vector<1x1x16x24xf32> to vector<16x24xf32>
      %cst_310 = arith.constant dense<0.000000e+00> : vector<8x24xf32>
      %228 = tpu.matmul %31, %227, %cst_310 {dimension_numbers = #tpu.dot_dimension_numbers<[1], [0], [0], [1], [0, 0, 1, 1], [], []>} : vector<8x16xf32>, vector<16x24xf32>, vector<8x24xf32> -> vector<8x24xf32>
      %229 = arith.maximumf %222, %228 : vector<8x24xf32>
      %cst_311 = arith.constant dense<0.000000e+00> : vector<8x12xf32>
      %230 = tpu.matmul %229, %33, %cst_311 {dimension_numbers = #tpu.dot_dimension_numbers<[1], [0], [0], [1], [0, 0, 1, 1], [], []>} : vector<8x24xf32>, vector<24x12xf32>, vector<8x12xf32> -> vector<8x12xf32>
      %cst_312 = arith.constant dense<0.000000e+00> : vector<8x12xf32>
      %231 = tpu.matmul %229, %35, %cst_312 {dimension_numbers = #tpu.dot_dimension_numbers<[1], [0], [0], [1], [0, 0, 1, 1], [], []>} : vector<8x24xf32>, vector<24x12xf32>, vector<8x12xf32> -> vector<8x12xf32>
      %232 = arith.maximumf %230, %231 : vector<8x12xf32>
      %c1_313 = arith.constant 1 : index
      %233 = arith.index_cast %arg21 : i32 to index
      %c0_314 = arith.constant 0 : index
      %c0_315 = arith.constant 0 : index
      %234 = vector.load %arg15[%c1_313, %233, %c0_314, %c0_315] : memref<2x12x8x12xf32, #tpu.memory_space<vmem>>, vector<1x1x8x12xf32>
      %235 = vector.shape_cast %234 : vector<1x1x8x12xf32> to vector<8x12xf32>
      %236 = vector.shape_cast %232 : vector<8x12xf32> to vector<1x1x8x12xf32>
      tpu.vector_store %arg15[%c1_313, %233, %c0_314, %c0_315], %236 {strides = array<i32>} : memref<2x12x8x12xf32, #tpu.memory_space<vmem>>, vector<1x1x8x12xf32>,
    }
    %c12_i32_58 = arith.constant 12 : i32
    %c2_59 = arith.constant 2 : index
    %c0_60 = arith.constant 0 : index
    %c0_61 = arith.constant 0 : index
    %38 = vector.load %arg10[%c2_59, %c0_60, %c0_61] : memref<6x16x1xf32, #tpu.memory_space<vmem>>, vector<1x16x1xf32>
    %39 = vector.shape_cast %38 : vector<1x16x1xf32> to vector<16x1xf32>
    %c2_62 = arith.constant 2 : index
    %c0_63 = arith.constant 0 : index
    %c0_64 = arith.constant 0 : index
    %40 = vector.load %arg11[%c2_62, %c0_63, %c0_64] : memref<6x16x1xf32, #tpu.memory_space<vmem>>, vector<1x16x1xf32>
    %41 = vector.shape_cast %40 : vector<1x16x1xf32> to vector<16x1xf32>
    %c0_65 = arith.constant 0 : index
    %c0_66 = arith.constant 0 : index
    %c0_67 = arith.constant 0 : index
    %42 = vector.load %arg4[%c0_65, %c0_66, %c0_67] : memref<9x16x8xf32, #tpu.memory_space<vmem>>, vector<1x16x8xf32>
    %43 = vector.shape_cast %42 : vector<1x16x8xf32> to vector<16x8xf32>
    %c1_68 = arith.constant 1 : index
    %c0_69 = arith.constant 0 : index
    %c0_70 = arith.constant 0 : index
    %44 = vector.load %arg4[%c1_68, %c0_69, %c0_70] : memref<9x16x8xf32, #tpu.memory_space<vmem>>, vector<1x16x8xf32>
    %45 = vector.shape_cast %44 : vector<1x16x8xf32> to vector<16x8xf32>
    %c2_71 = arith.constant 2 : index
    %c0_72 = arith.constant 0 : index
    %c0_73 = arith.constant 0 : index
    %46 = vector.load %arg4[%c2_71, %c0_72, %c0_73] : memref<9x16x8xf32, #tpu.memory_space<vmem>>, vector<1x16x8xf32>
    %47 = vector.shape_cast %46 : vector<1x16x8xf32> to vector<16x8xf32>
    %c3_74 = arith.constant 3 : index
    %c0_75 = arith.constant 0 : index
    %c0_76 = arith.constant 0 : index
    %48 = vector.load %arg4[%c3_74, %c0_75, %c0_76] : memref<9x16x8xf32, #tpu.memory_space<vmem>>, vector<1x16x8xf32>
    %49 = vector.shape_cast %48 : vector<1x16x8xf32> to vector<16x8xf32>
    %c4_77 = arith.constant 4 : index
    %c0_78 = arith.constant 0 : index
    %c0_79 = arith.constant 0 : index
    %50 = vector.load %arg4[%c4_77, %c0_78, %c0_79] : memref<9x16x8xf32, #tpu.memory_space<vmem>>, vector<1x16x8xf32>
    %51 = vector.shape_cast %50 : vector<1x16x8xf32> to vector<16x8xf32>
    %c5_80 = arith.constant 5 : index
    %c0_81 = arith.constant 0 : index
    %c0_82 = arith.constant 0 : index
    %52 = vector.load %arg4[%c5_80, %c0_81, %c0_82] : memref<9x16x8xf32, #tpu.memory_space<vmem>>, vector<1x16x8xf32>
    %53 = vector.shape_cast %52 : vector<1x16x8xf32> to vector<16x8xf32>
    %c6_83 = arith.constant 6 : index
    %c0_84 = arith.constant 0 : index
    %c0_85 = arith.constant 0 : index
    %54 = vector.load %arg4[%c6_83, %c0_84, %c0_85] : memref<9x16x8xf32, #tpu.memory_space<vmem>>, vector<1x16x8xf32>
    %55 = vector.shape_cast %54 : vector<1x16x8xf32> to vector<16x8xf32>
    %c7_86 = arith.constant 7 : index
    %c0_87 = arith.constant 0 : index
    %c0_88 = arith.constant 0 : index
    %56 = vector.load %arg4[%c7_86, %c0_87, %c0_88] : memref<9x16x8xf32, #tpu.memory_space<vmem>>, vector<1x16x8xf32>
    %57 = vector.shape_cast %56 : vector<1x16x8xf32> to vector<16x8xf32>
    %c8_89 = arith.constant 8 : index
    %c0_90 = arith.constant 0 : index
    %c0_91 = arith.constant 0 : index
    %58 = vector.load %arg4[%c8_89, %c0_90, %c0_91] : memref<9x16x8xf32, #tpu.memory_space<vmem>>, vector<1x16x8xf32>
    %59 = vector.shape_cast %58 : vector<1x16x8xf32> to vector<16x8xf32>
    %c0_i32_92 = arith.constant 0 : i32
    %c10_i32 = arith.constant 10 : i32
    %60 = arith.addi %c0_i32_92, %c10_i32 : i32
    %c1_i32_93 = arith.constant 1 : i32
    scf.for %arg21 = %c0_i32_92 to %60 step %c1_i32_93  : i32 {
      %c0_301 = arith.constant 0 : index
      %218 = arith.index_cast %arg21 : i32 to index
      %c0_302 = arith.constant 0 : index
      %c0_303 = arith.constant 0 : index
      %219 = vector.load %arg15[%c0_301, %218, %c0_302, %c0_303] : memref<2x12x8x12xf32, #tpu.memory_space<vmem>>, vector<1x1x8x10xf32>
      %220 = vector.shape_cast %219 : vector<1x1x8x10xf32> to vector<8x10xf32>
      %cst_304 = arith.constant dense<0.000000e+00> : vector<16x10xf32>
      %221 = tpu.matmul %43, %220, %cst_304 {dimension_numbers = #tpu.dot_dimension_numbers<[1], [0], [0], [1], [0, 0, 1, 1], [], []>} : vector<16x8xf32>, vector<8x10xf32>, vector<16x10xf32> -> vector<16x10xf32>
      %c0_i32_305 = arith.constant 0 : i32
      %222 = arith.addi %arg21, %c0_i32_305 : i32
      %c0_306 = arith.constant 0 : index
      %223 = arith.index_cast %222 : i32 to index
      %c0_307 = arith.constant 0 : index
      %c1_308 = arith.constant 1 : index
      %224 = vector.load %arg15[%c0_306, %223, %c0_307, %c1_308] : memref<2x12x8x12xf32, #tpu.memory_space<vmem>>, vector<1x1x8x10xf32>
      %225 = vector.shape_cast %224 : vector<1x1x8x10xf32> to vector<8x10xf32>
      %cst_309 = arith.constant dense<0.000000e+00> : vector<16x10xf32>
      %226 = tpu.matmul %45, %225, %cst_309 {dimension_numbers = #tpu.dot_dimension_numbers<[1], [0], [0], [1], [0, 0, 1, 1], [], []>} : vector<16x8xf32>, vector<8x10xf32>, vector<16x10xf32> -> vector<16x10xf32>
      %227 = arith.addf %221, %226 : vector<16x10xf32>
      %c0_i32_310 = arith.constant 0 : i32
      %228 = arith.addi %arg21, %c0_i32_310 : i32
      %c0_311 = arith.constant 0 : index
      %229 = arith.index_cast %228 : i32 to index
      %c0_312 = arith.constant 0 : index
      %c2_313 = arith.constant 2 : index
      %230 = vector.load %arg15[%c0_311, %229, %c0_312, %c2_313] : memref<2x12x8x12xf32, #tpu.memory_space<vmem>>, vector<1x1x8x10xf32>
      %231 = vector.shape_cast %230 : vector<1x1x8x10xf32> to vector<8x10xf32>
      %cst_314 = arith.constant dense<0.000000e+00> : vector<16x10xf32>
      %232 = tpu.matmul %47, %231, %cst_314 {dimension_numbers = #tpu.dot_dimension_numbers<[1], [0], [0], [1], [0, 0, 1, 1], [], []>} : vector<16x8xf32>, vector<8x10xf32>, vector<16x10xf32> -> vector<16x10xf32>
      %233 = arith.addf %227, %232 : vector<16x10xf32>
      %c1_i32_315 = arith.constant 1 : i32
      %234 = arith.addi %arg21, %c1_i32_315 : i32
      %c0_316 = arith.constant 0 : index
      %235 = arith.index_cast %234 : i32 to index
      %c0_317 = arith.constant 0 : index
      %c0_318 = arith.constant 0 : index
      %236 = vector.load %arg15[%c0_316, %235, %c0_317, %c0_318] : memref<2x12x8x12xf32, #tpu.memory_space<vmem>>, vector<1x1x8x10xf32>
      %237 = vector.shape_cast %236 : vector<1x1x8x10xf32> to vector<8x10xf32>
      %cst_319 = arith.constant dense<0.000000e+00> : vector<16x10xf32>
      %238 = tpu.matmul %49, %237, %cst_319 {dimension_numbers = #tpu.dot_dimension_numbers<[1], [0], [0], [1], [0, 0, 1, 1], [], []>} : vector<16x8xf32>, vector<8x10xf32>, vector<16x10xf32> -> vector<16x10xf32>
      %239 = arith.addf %233, %238 : vector<16x10xf32>
      %c1_i32_320 = arith.constant 1 : i32
      %240 = arith.addi %arg21, %c1_i32_320 : i32
      %c0_321 = arith.constant 0 : index
      %241 = arith.index_cast %240 : i32 to index
      %c0_322 = arith.constant 0 : index
      %c1_323 = arith.constant 1 : index
      %242 = vector.load %arg15[%c0_321, %241, %c0_322, %c1_323] : memref<2x12x8x12xf32, #tpu.memory_space<vmem>>, vector<1x1x8x10xf32>
      %243 = vector.shape_cast %242 : vector<1x1x8x10xf32> to vector<8x10xf32>
      %cst_324 = arith.constant dense<0.000000e+00> : vector<16x10xf32>
      %244 = tpu.matmul %51, %243, %cst_324 {dimension_numbers = #tpu.dot_dimension_numbers<[1], [0], [0], [1], [0, 0, 1, 1], [], []>} : vector<16x8xf32>, vector<8x10xf32>, vector<16x10xf32> -> vector<16x10xf32>
      %245 = arith.addf %239, %244 : vector<16x10xf32>
      %c1_i32_325 = arith.constant 1 : i32
      %246 = arith.addi %arg21, %c1_i32_325 : i32
      %c0_326 = arith.constant 0 : index
      %247 = arith.index_cast %246 : i32 to index
      %c0_327 = arith.constant 0 : index
      %c2_328 = arith.constant 2 : index
      %248 = vector.load %arg15[%c0_326, %247, %c0_327, %c2_328] : memref<2x12x8x12xf32, #tpu.memory_space<vmem>>, vector<1x1x8x10xf32>
      %249 = vector.shape_cast %248 : vector<1x1x8x10xf32> to vector<8x10xf32>
      %cst_329 = arith.constant dense<0.000000e+00> : vector<16x10xf32>
      %250 = tpu.matmul %53, %249, %cst_329 {dimension_numbers = #tpu.dot_dimension_numbers<[1], [0], [0], [1], [0, 0, 1, 1], [], []>} : vector<16x8xf32>, vector<8x10xf32>, vector<16x10xf32> -> vector<16x10xf32>
      %251 = arith.addf %245, %250 : vector<16x10xf32>
      %c2_i32 = arith.constant 2 : i32
      %252 = arith.addi %arg21, %c2_i32 : i32
      %c0_330 = arith.constant 0 : index
      %253 = arith.index_cast %252 : i32 to index
      %c0_331 = arith.constant 0 : index
      %c0_332 = arith.constant 0 : index
      %254 = vector.load %arg15[%c0_330, %253, %c0_331, %c0_332] : memref<2x12x8x12xf32, #tpu.memory_space<vmem>>, vector<1x1x8x10xf32>
      %255 = vector.shape_cast %254 : vector<1x1x8x10xf32> to vector<8x10xf32>
      %cst_333 = arith.constant dense<0.000000e+00> : vector<16x10xf32>
      %256 = tpu.matmul %55, %255, %cst_333 {dimension_numbers = #tpu.dot_dimension_numbers<[1], [0], [0], [1], [0, 0, 1, 1], [], []>} : vector<16x8xf32>, vector<8x10xf32>, vector<16x10xf32> -> vector<16x10xf32>
      %257 = arith.addf %251, %256 : vector<16x10xf32>
      %c2_i32_334 = arith.constant 2 : i32
      %258 = arith.addi %arg21, %c2_i32_334 : i32
      %c0_335 = arith.constant 0 : index
      %259 = arith.index_cast %258 : i32 to index
      %c0_336 = arith.constant 0 : index
      %c1_337 = arith.constant 1 : index
      %260 = vector.load %arg15[%c0_335, %259, %c0_336, %c1_337] : memref<2x12x8x12xf32, #tpu.memory_space<vmem>>, vector<1x1x8x10xf32>
      %261 = vector.shape_cast %260 : vector<1x1x8x10xf32> to vector<8x10xf32>
      %cst_338 = arith.constant dense<0.000000e+00> : vector<16x10xf32>
      %262 = tpu.matmul %57, %261, %cst_338 {dimension_numbers = #tpu.dot_dimension_numbers<[1], [0], [0], [1], [0, 0, 1, 1], [], []>} : vector<16x8xf32>, vector<8x10xf32>, vector<16x10xf32> -> vector<16x10xf32>
      %263 = arith.addf %257, %262 : vector<16x10xf32>
      %c2_i32_339 = arith.constant 2 : i32
      %264 = arith.addi %arg21, %c2_i32_339 : i32
      %c0_340 = arith.constant 0 : index
      %265 = arith.index_cast %264 : i32 to index
      %c0_341 = arith.constant 0 : index
      %c2_342 = arith.constant 2 : index
      %266 = vector.load %arg15[%c0_340, %265, %c0_341, %c2_342] : memref<2x12x8x12xf32, #tpu.memory_space<vmem>>, vector<1x1x8x10xf32>
      %267 = vector.shape_cast %266 : vector<1x1x8x10xf32> to vector<8x10xf32>
      %cst_343 = arith.constant dense<0.000000e+00> : vector<16x10xf32>
      %268 = tpu.matmul %59, %267, %cst_343 {dimension_numbers = #tpu.dot_dimension_numbers<[1], [0], [0], [1], [0, 0, 1, 1], [], []>} : vector<16x8xf32>, vector<8x10xf32>, vector<16x10xf32> -> vector<16x10xf32>
      %269 = arith.addf %263, %268 : vector<16x10xf32>
      %cst_344 = arith.constant 0.000000e+00 : f32
      %270 = vector.broadcast %cst_344 : f32 to vector<16x10xf32>
      %271 = arith.maximumf %269, %270 : vector<16x10xf32>
      %272 = vector.broadcast %39 : vector<16x1xf32> to vector<16x10xf32>
      %273 = arith.mulf %271, %272 : vector<16x10xf32>
      %274 = vector.broadcast %41 : vector<16x1xf32> to vector<16x10xf32>
      %275 = arith.addf %273, %274 : vector<16x10xf32>
      %c0_i32_345 = arith.constant 0 : i32
      %276 = arith.addi %arg21, %c0_i32_345 : i32
      %c0_346 = arith.constant 0 : index
      %277 = arith.index_cast %276 : i32 to index
      %c0_347 = arith.constant 0 : index
      %c0_348 = arith.constant 0 : index
      %278 = vector.load %arg16[%c0_346, %277, %c0_347, %c0_348] : memref<2x10x16x10xf32, #tpu.memory_space<vmem>>, vector<1x1x16x10xf32>
      %279 = vector.shape_cast %278 : vector<1x1x16x10xf32> to vector<16x10xf32>
      %280 = vector.shape_cast %275 : vector<16x10xf32> to vector<1x1x16x10xf32>
      tpu.vector_store %arg16[%c0_346, %277, %c0_347, %c0_348], %280 {strides = array<i32>} : memref<2x10x16x10xf32, #tpu.memory_space<vmem>>, vector<1x1x16x10xf32>,
    }
    %c10_i32_94 = arith.constant 10 : i32
    %c0_i32_95 = arith.constant 0 : i32
    %c10_i32_96 = arith.constant 10 : i32
    %61 = arith.addi %c0_i32_95, %c10_i32_96 : i32
    %c1_i32_97 = arith.constant 1 : i32
    scf.for %arg21 = %c0_i32_95 to %61 step %c1_i32_97  : i32 {
      %c1_301 = arith.constant 1 : index
      %218 = arith.index_cast %arg21 : i32 to index
      %c0_302 = arith.constant 0 : index
      %c0_303 = arith.constant 0 : index
      %219 = vector.load %arg15[%c1_301, %218, %c0_302, %c0_303] : memref<2x12x8x12xf32, #tpu.memory_space<vmem>>, vector<1x1x8x10xf32>
      %220 = vector.shape_cast %219 : vector<1x1x8x10xf32> to vector<8x10xf32>
      %cst_304 = arith.constant dense<0.000000e+00> : vector<16x10xf32>
      %221 = tpu.matmul %43, %220, %cst_304 {dimension_numbers = #tpu.dot_dimension_numbers<[1], [0], [0], [1], [0, 0, 1, 1], [], []>} : vector<16x8xf32>, vector<8x10xf32>, vector<16x10xf32> -> vector<16x10xf32>
      %c0_i32_305 = arith.constant 0 : i32
      %222 = arith.addi %arg21, %c0_i32_305 : i32
      %c1_306 = arith.constant 1 : index
      %223 = arith.index_cast %222 : i32 to index
      %c0_307 = arith.constant 0 : index
      %c1_308 = arith.constant 1 : index
      %224 = vector.load %arg15[%c1_306, %223, %c0_307, %c1_308] : memref<2x12x8x12xf32, #tpu.memory_space<vmem>>, vector<1x1x8x10xf32>
      %225 = vector.shape_cast %224 : vector<1x1x8x10xf32> to vector<8x10xf32>
      %cst_309 = arith.constant dense<0.000000e+00> : vector<16x10xf32>
      %226 = tpu.matmul %45, %225, %cst_309 {dimension_numbers = #tpu.dot_dimension_numbers<[1], [0], [0], [1], [0, 0, 1, 1], [], []>} : vector<16x8xf32>, vector<8x10xf32>, vector<16x10xf32> -> vector<16x10xf32>
      %227 = arith.addf %221, %226 : vector<16x10xf32>
      %c0_i32_310 = arith.constant 0 : i32
      %228 = arith.addi %arg21, %c0_i32_310 : i32
      %c1_311 = arith.constant 1 : index
      %229 = arith.index_cast %228 : i32 to index
      %c0_312 = arith.constant 0 : index
      %c2_313 = arith.constant 2 : index
      %230 = vector.load %arg15[%c1_311, %229, %c0_312, %c2_313] : memref<2x12x8x12xf32, #tpu.memory_space<vmem>>, vector<1x1x8x10xf32>
      %231 = vector.shape_cast %230 : vector<1x1x8x10xf32> to vector<8x10xf32>
      %cst_314 = arith.constant dense<0.000000e+00> : vector<16x10xf32>
      %232 = tpu.matmul %47, %231, %cst_314 {dimension_numbers = #tpu.dot_dimension_numbers<[1], [0], [0], [1], [0, 0, 1, 1], [], []>} : vector<16x8xf32>, vector<8x10xf32>, vector<16x10xf32> -> vector<16x10xf32>
      %233 = arith.addf %227, %232 : vector<16x10xf32>
      %c1_i32_315 = arith.constant 1 : i32
      %234 = arith.addi %arg21, %c1_i32_315 : i32
      %c1_316 = arith.constant 1 : index
      %235 = arith.index_cast %234 : i32 to index
      %c0_317 = arith.constant 0 : index
      %c0_318 = arith.constant 0 : index
      %236 = vector.load %arg15[%c1_316, %235, %c0_317, %c0_318] : memref<2x12x8x12xf32, #tpu.memory_space<vmem>>, vector<1x1x8x10xf32>
      %237 = vector.shape_cast %236 : vector<1x1x8x10xf32> to vector<8x10xf32>
      %cst_319 = arith.constant dense<0.000000e+00> : vector<16x10xf32>
      %238 = tpu.matmul %49, %237, %cst_319 {dimension_numbers = #tpu.dot_dimension_numbers<[1], [0], [0], [1], [0, 0, 1, 1], [], []>} : vector<16x8xf32>, vector<8x10xf32>, vector<16x10xf32> -> vector<16x10xf32>
      %239 = arith.addf %233, %238 : vector<16x10xf32>
      %c1_i32_320 = arith.constant 1 : i32
      %240 = arith.addi %arg21, %c1_i32_320 : i32
      %c1_321 = arith.constant 1 : index
      %241 = arith.index_cast %240 : i32 to index
      %c0_322 = arith.constant 0 : index
      %c1_323 = arith.constant 1 : index
      %242 = vector.load %arg15[%c1_321, %241, %c0_322, %c1_323] : memref<2x12x8x12xf32, #tpu.memory_space<vmem>>, vector<1x1x8x10xf32>
      %243 = vector.shape_cast %242 : vector<1x1x8x10xf32> to vector<8x10xf32>
      %cst_324 = arith.constant dense<0.000000e+00> : vector<16x10xf32>
      %244 = tpu.matmul %51, %243, %cst_324 {dimension_numbers = #tpu.dot_dimension_numbers<[1], [0], [0], [1], [0, 0, 1, 1], [], []>} : vector<16x8xf32>, vector<8x10xf32>, vector<16x10xf32> -> vector<16x10xf32>
      %245 = arith.addf %239, %244 : vector<16x10xf32>
      %c1_i32_325 = arith.constant 1 : i32
      %246 = arith.addi %arg21, %c1_i32_325 : i32
      %c1_326 = arith.constant 1 : index
      %247 = arith.index_cast %246 : i32 to index
      %c0_327 = arith.constant 0 : index
      %c2_328 = arith.constant 2 : index
      %248 = vector.load %arg15[%c1_326, %247, %c0_327, %c2_328] : memref<2x12x8x12xf32, #tpu.memory_space<vmem>>, vector<1x1x8x10xf32>
      %249 = vector.shape_cast %248 : vector<1x1x8x10xf32> to vector<8x10xf32>
      %cst_329 = arith.constant dense<0.000000e+00> : vector<16x10xf32>
      %250 = tpu.matmul %53, %249, %cst_329 {dimension_numbers = #tpu.dot_dimension_numbers<[1], [0], [0], [1], [0, 0, 1, 1], [], []>} : vector<16x8xf32>, vector<8x10xf32>, vector<16x10xf32> -> vector<16x10xf32>
      %251 = arith.addf %245, %250 : vector<16x10xf32>
      %c2_i32 = arith.constant 2 : i32
      %252 = arith.addi %arg21, %c2_i32 : i32
      %c1_330 = arith.constant 1 : index
      %253 = arith.index_cast %252 : i32 to index
      %c0_331 = arith.constant 0 : index
      %c0_332 = arith.constant 0 : index
      %254 = vector.load %arg15[%c1_330, %253, %c0_331, %c0_332] : memref<2x12x8x12xf32, #tpu.memory_space<vmem>>, vector<1x1x8x10xf32>
      %255 = vector.shape_cast %254 : vector<1x1x8x10xf32> to vector<8x10xf32>
      %cst_333 = arith.constant dense<0.000000e+00> : vector<16x10xf32>
      %256 = tpu.matmul %55, %255, %cst_333 {dimension_numbers = #tpu.dot_dimension_numbers<[1], [0], [0], [1], [0, 0, 1, 1], [], []>} : vector<16x8xf32>, vector<8x10xf32>, vector<16x10xf32> -> vector<16x10xf32>
      %257 = arith.addf %251, %256 : vector<16x10xf32>
      %c2_i32_334 = arith.constant 2 : i32
      %258 = arith.addi %arg21, %c2_i32_334 : i32
      %c1_335 = arith.constant 1 : index
      %259 = arith.index_cast %258 : i32 to index
      %c0_336 = arith.constant 0 : index
      %c1_337 = arith.constant 1 : index
      %260 = vector.load %arg15[%c1_335, %259, %c0_336, %c1_337] : memref<2x12x8x12xf32, #tpu.memory_space<vmem>>, vector<1x1x8x10xf32>
      %261 = vector.shape_cast %260 : vector<1x1x8x10xf32> to vector<8x10xf32>
      %cst_338 = arith.constant dense<0.000000e+00> : vector<16x10xf32>
      %262 = tpu.matmul %57, %261, %cst_338 {dimension_numbers = #tpu.dot_dimension_numbers<[1], [0], [0], [1], [0, 0, 1, 1], [], []>} : vector<16x8xf32>, vector<8x10xf32>, vector<16x10xf32> -> vector<16x10xf32>
      %263 = arith.addf %257, %262 : vector<16x10xf32>
      %c2_i32_339 = arith.constant 2 : i32
      %264 = arith.addi %arg21, %c2_i32_339 : i32
      %c1_340 = arith.constant 1 : index
      %265 = arith.index_cast %264 : i32 to index
      %c0_341 = arith.constant 0 : index
      %c2_342 = arith.constant 2 : index
      %266 = vector.load %arg15[%c1_340, %265, %c0_341, %c2_342] : memref<2x12x8x12xf32, #tpu.memory_space<vmem>>, vector<1x1x8x10xf32>
      %267 = vector.shape_cast %266 : vector<1x1x8x10xf32> to vector<8x10xf32>
      %cst_343 = arith.constant dense<0.000000e+00> : vector<16x10xf32>
      %268 = tpu.matmul %59, %267, %cst_343 {dimension_numbers = #tpu.dot_dimension_numbers<[1], [0], [0], [1], [0, 0, 1, 1], [], []>} : vector<16x8xf32>, vector<8x10xf32>, vector<16x10xf32> -> vector<16x10xf32>
      %269 = arith.addf %263, %268 : vector<16x10xf32>
      %cst_344 = arith.constant 0.000000e+00 : f32
      %270 = vector.broadcast %cst_344 : f32 to vector<16x10xf32>
      %271 = arith.maximumf %269, %270 : vector<16x10xf32>
      %272 = vector.broadcast %39 : vector<16x1xf32> to vector<16x10xf32>
      %273 = arith.mulf %271, %272 : vector<16x10xf32>
      %274 = vector.broadcast %41 : vector<16x1xf32> to vector<16x10xf32>
      %275 = arith.addf %273, %274 : vector<16x10xf32>
      %c0_i32_345 = arith.constant 0 : i32
      %276 = arith.addi %arg21, %c0_i32_345 : i32
      %c1_346 = arith.constant 1 : index
      %277 = arith.index_cast %276 : i32 to index
      %c0_347 = arith.constant 0 : index
      %c0_348 = arith.constant 0 : index
      %278 = vector.load %arg16[%c1_346, %277, %c0_347, %c0_348] : memref<2x10x16x10xf32, #tpu.memory_space<vmem>>, vector<1x1x16x10xf32>
      %279 = vector.shape_cast %278 : vector<1x1x16x10xf32> to vector<16x10xf32>
      %280 = vector.shape_cast %275 : vector<16x10xf32> to vector<1x1x16x10xf32>
      tpu.vector_store %arg16[%c1_346, %277, %c0_347, %c0_348], %280 {strides = array<i32>} : memref<2x10x16x10xf32, #tpu.memory_space<vmem>>, vector<1x1x16x10xf32>,
    }
    %c10_i32_98 = arith.constant 10 : i32
    %c3_99 = arith.constant 3 : index
    %c0_100 = arith.constant 0 : index
    %c0_101 = arith.constant 0 : index
    %62 = vector.load %arg10[%c3_99, %c0_100, %c0_101] : memref<6x16x1xf32, #tpu.memory_space<vmem>>, vector<1x16x1xf32>
    %63 = vector.shape_cast %62 : vector<1x16x1xf32> to vector<16x1xf32>
    %c3_102 = arith.constant 3 : index
    %c0_103 = arith.constant 0 : index
    %c0_104 = arith.constant 0 : index
    %64 = vector.load %arg11[%c3_102, %c0_103, %c0_104] : memref<6x16x1xf32, #tpu.memory_space<vmem>>, vector<1x16x1xf32>
    %65 = vector.shape_cast %64 : vector<1x16x1xf32> to vector<16x1xf32>
    %c0_105 = arith.constant 0 : index
    %c0_106 = arith.constant 0 : index
    %c0_107 = arith.constant 0 : index
    %66 = vector.load %arg5[%c0_105, %c0_106, %c0_107] : memref<9x16x16xf32, #tpu.memory_space<vmem>>, vector<1x16x16xf32>
    %67 = vector.shape_cast %66 : vector<1x16x16xf32> to vector<16x16xf32>
    %c1_108 = arith.constant 1 : index
    %c0_109 = arith.constant 0 : index
    %c0_110 = arith.constant 0 : index
    %68 = vector.load %arg5[%c1_108, %c0_109, %c0_110] : memref<9x16x16xf32, #tpu.memory_space<vmem>>, vector<1x16x16xf32>
    %69 = vector.shape_cast %68 : vector<1x16x16xf32> to vector<16x16xf32>
    %c2_111 = arith.constant 2 : index
    %c0_112 = arith.constant 0 : index
    %c0_113 = arith.constant 0 : index
    %70 = vector.load %arg5[%c2_111, %c0_112, %c0_113] : memref<9x16x16xf32, #tpu.memory_space<vmem>>, vector<1x16x16xf32>
    %71 = vector.shape_cast %70 : vector<1x16x16xf32> to vector<16x16xf32>
    %c3_114 = arith.constant 3 : index
    %c0_115 = arith.constant 0 : index
    %c0_116 = arith.constant 0 : index
    %72 = vector.load %arg5[%c3_114, %c0_115, %c0_116] : memref<9x16x16xf32, #tpu.memory_space<vmem>>, vector<1x16x16xf32>
    %73 = vector.shape_cast %72 : vector<1x16x16xf32> to vector<16x16xf32>
    %c4_117 = arith.constant 4 : index
    %c0_118 = arith.constant 0 : index
    %c0_119 = arith.constant 0 : index
    %74 = vector.load %arg5[%c4_117, %c0_118, %c0_119] : memref<9x16x16xf32, #tpu.memory_space<vmem>>, vector<1x16x16xf32>
    %75 = vector.shape_cast %74 : vector<1x16x16xf32> to vector<16x16xf32>
    %c5_120 = arith.constant 5 : index
    %c0_121 = arith.constant 0 : index
    %c0_122 = arith.constant 0 : index
    %76 = vector.load %arg5[%c5_120, %c0_121, %c0_122] : memref<9x16x16xf32, #tpu.memory_space<vmem>>, vector<1x16x16xf32>
    %77 = vector.shape_cast %76 : vector<1x16x16xf32> to vector<16x16xf32>
    %c6_123 = arith.constant 6 : index
    %c0_124 = arith.constant 0 : index
    %c0_125 = arith.constant 0 : index
    %78 = vector.load %arg5[%c6_123, %c0_124, %c0_125] : memref<9x16x16xf32, #tpu.memory_space<vmem>>, vector<1x16x16xf32>
    %79 = vector.shape_cast %78 : vector<1x16x16xf32> to vector<16x16xf32>
    %c7_126 = arith.constant 7 : index
    %c0_127 = arith.constant 0 : index
    %c0_128 = arith.constant 0 : index
    %80 = vector.load %arg5[%c7_126, %c0_127, %c0_128] : memref<9x16x16xf32, #tpu.memory_space<vmem>>, vector<1x16x16xf32>
    %81 = vector.shape_cast %80 : vector<1x16x16xf32> to vector<16x16xf32>
    %c8_129 = arith.constant 8 : index
    %c0_130 = arith.constant 0 : index
    %c0_131 = arith.constant 0 : index
    %82 = vector.load %arg5[%c8_129, %c0_130, %c0_131] : memref<9x16x16xf32, #tpu.memory_space<vmem>>, vector<1x16x16xf32>
    %83 = vector.shape_cast %82 : vector<1x16x16xf32> to vector<16x16xf32>
    %c0_i32_132 = arith.constant 0 : i32
    %c8_i32 = arith.constant 8 : i32
    %84 = arith.addi %c0_i32_132, %c8_i32 : i32
    %c1_i32_133 = arith.constant 1 : i32
    scf.for %arg21 = %c0_i32_132 to %84 step %c1_i32_133  : i32 {
      %c0_301 = arith.constant 0 : index
      %218 = arith.index_cast %arg21 : i32 to index
      %c0_302 = arith.constant 0 : index
      %c0_303 = arith.constant 0 : index
      %219 = vector.load %arg16[%c0_301, %218, %c0_302, %c0_303] : memref<2x10x16x10xf32, #tpu.memory_space<vmem>>, vector<1x1x16x8xf32>
      %220 = vector.shape_cast %219 : vector<1x1x16x8xf32> to vector<16x8xf32>
      %cst_304 = arith.constant dense<0.000000e+00> : vector<16x8xf32>
      %221 = tpu.matmul %67, %220, %cst_304 {dimension_numbers = #tpu.dot_dimension_numbers<[1], [0], [0], [1], [0, 0, 1, 1], [], []>} : vector<16x16xf32>, vector<16x8xf32>, vector<16x8xf32> -> vector<16x8xf32>
      %c0_i32_305 = arith.constant 0 : i32
      %222 = arith.addi %arg21, %c0_i32_305 : i32
      %c0_306 = arith.constant 0 : index
      %223 = arith.index_cast %222 : i32 to index
      %c0_307 = arith.constant 0 : index
      %c1_308 = arith.constant 1 : index
      %224 = vector.load %arg16[%c0_306, %223, %c0_307, %c1_308] : memref<2x10x16x10xf32, #tpu.memory_space<vmem>>, vector<1x1x16x8xf32>
      %225 = vector.shape_cast %224 : vector<1x1x16x8xf32> to vector<16x8xf32>
      %cst_309 = arith.constant dense<0.000000e+00> : vector<16x8xf32>
      %226 = tpu.matmul %69, %225, %cst_309 {dimension_numbers = #tpu.dot_dimension_numbers<[1], [0], [0], [1], [0, 0, 1, 1], [], []>} : vector<16x16xf32>, vector<16x8xf32>, vector<16x8xf32> -> vector<16x8xf32>
      %227 = arith.addf %221, %226 : vector<16x8xf32>
      %c0_i32_310 = arith.constant 0 : i32
      %228 = arith.addi %arg21, %c0_i32_310 : i32
      %c0_311 = arith.constant 0 : index
      %229 = arith.index_cast %228 : i32 to index
      %c0_312 = arith.constant 0 : index
      %c2_313 = arith.constant 2 : index
      %230 = vector.load %arg16[%c0_311, %229, %c0_312, %c2_313] : memref<2x10x16x10xf32, #tpu.memory_space<vmem>>, vector<1x1x16x8xf32>
      %231 = vector.shape_cast %230 : vector<1x1x16x8xf32> to vector<16x8xf32>
      %cst_314 = arith.constant dense<0.000000e+00> : vector<16x8xf32>
      %232 = tpu.matmul %71, %231, %cst_314 {dimension_numbers = #tpu.dot_dimension_numbers<[1], [0], [0], [1], [0, 0, 1, 1], [], []>} : vector<16x16xf32>, vector<16x8xf32>, vector<16x8xf32> -> vector<16x8xf32>
      %233 = arith.addf %227, %232 : vector<16x8xf32>
      %c1_i32_315 = arith.constant 1 : i32
      %234 = arith.addi %arg21, %c1_i32_315 : i32
      %c0_316 = arith.constant 0 : index
      %235 = arith.index_cast %234 : i32 to index
      %c0_317 = arith.constant 0 : index
      %c0_318 = arith.constant 0 : index
      %236 = vector.load %arg16[%c0_316, %235, %c0_317, %c0_318] : memref<2x10x16x10xf32, #tpu.memory_space<vmem>>, vector<1x1x16x8xf32>
      %237 = vector.shape_cast %236 : vector<1x1x16x8xf32> to vector<16x8xf32>
      %cst_319 = arith.constant dense<0.000000e+00> : vector<16x8xf32>
      %238 = tpu.matmul %73, %237, %cst_319 {dimension_numbers = #tpu.dot_dimension_numbers<[1], [0], [0], [1], [0, 0, 1, 1], [], []>} : vector<16x16xf32>, vector<16x8xf32>, vector<16x8xf32> -> vector<16x8xf32>
      %239 = arith.addf %233, %238 : vector<16x8xf32>
      %c1_i32_320 = arith.constant 1 : i32
      %240 = arith.addi %arg21, %c1_i32_320 : i32
      %c0_321 = arith.constant 0 : index
      %241 = arith.index_cast %240 : i32 to index
      %c0_322 = arith.constant 0 : index
      %c1_323 = arith.constant 1 : index
      %242 = vector.load %arg16[%c0_321, %241, %c0_322, %c1_323] : memref<2x10x16x10xf32, #tpu.memory_space<vmem>>, vector<1x1x16x8xf32>
      %243 = vector.shape_cast %242 : vector<1x1x16x8xf32> to vector<16x8xf32>
      %cst_324 = arith.constant dense<0.000000e+00> : vector<16x8xf32>
      %244 = tpu.matmul %75, %243, %cst_324 {dimension_numbers = #tpu.dot_dimension_numbers<[1], [0], [0], [1], [0, 0, 1, 1], [], []>} : vector<16x16xf32>, vector<16x8xf32>, vector<16x8xf32> -> vector<16x8xf32>
      %245 = arith.addf %239, %244 : vector<16x8xf32>
      %c1_i32_325 = arith.constant 1 : i32
      %246 = arith.addi %arg21, %c1_i32_325 : i32
      %c0_326 = arith.constant 0 : index
      %247 = arith.index_cast %246 : i32 to index
      %c0_327 = arith.constant 0 : index
      %c2_328 = arith.constant 2 : index
      %248 = vector.load %arg16[%c0_326, %247, %c0_327, %c2_328] : memref<2x10x16x10xf32, #tpu.memory_space<vmem>>, vector<1x1x16x8xf32>
      %249 = vector.shape_cast %248 : vector<1x1x16x8xf32> to vector<16x8xf32>
      %cst_329 = arith.constant dense<0.000000e+00> : vector<16x8xf32>
      %250 = tpu.matmul %77, %249, %cst_329 {dimension_numbers = #tpu.dot_dimension_numbers<[1], [0], [0], [1], [0, 0, 1, 1], [], []>} : vector<16x16xf32>, vector<16x8xf32>, vector<16x8xf32> -> vector<16x8xf32>
      %251 = arith.addf %245, %250 : vector<16x8xf32>
      %c2_i32 = arith.constant 2 : i32
      %252 = arith.addi %arg21, %c2_i32 : i32
      %c0_330 = arith.constant 0 : index
      %253 = arith.index_cast %252 : i32 to index
      %c0_331 = arith.constant 0 : index
      %c0_332 = arith.constant 0 : index
      %254 = vector.load %arg16[%c0_330, %253, %c0_331, %c0_332] : memref<2x10x16x10xf32, #tpu.memory_space<vmem>>, vector<1x1x16x8xf32>
      %255 = vector.shape_cast %254 : vector<1x1x16x8xf32> to vector<16x8xf32>
      %cst_333 = arith.constant dense<0.000000e+00> : vector<16x8xf32>
      %256 = tpu.matmul %79, %255, %cst_333 {dimension_numbers = #tpu.dot_dimension_numbers<[1], [0], [0], [1], [0, 0, 1, 1], [], []>} : vector<16x16xf32>, vector<16x8xf32>, vector<16x8xf32> -> vector<16x8xf32>
      %257 = arith.addf %251, %256 : vector<16x8xf32>
      %c2_i32_334 = arith.constant 2 : i32
      %258 = arith.addi %arg21, %c2_i32_334 : i32
      %c0_335 = arith.constant 0 : index
      %259 = arith.index_cast %258 : i32 to index
      %c0_336 = arith.constant 0 : index
      %c1_337 = arith.constant 1 : index
      %260 = vector.load %arg16[%c0_335, %259, %c0_336, %c1_337] : memref<2x10x16x10xf32, #tpu.memory_space<vmem>>, vector<1x1x16x8xf32>
      %261 = vector.shape_cast %260 : vector<1x1x16x8xf32> to vector<16x8xf32>
      %cst_338 = arith.constant dense<0.000000e+00> : vector<16x8xf32>
      %262 = tpu.matmul %81, %261, %cst_338 {dimension_numbers = #tpu.dot_dimension_numbers<[1], [0], [0], [1], [0, 0, 1, 1], [], []>} : vector<16x16xf32>, vector<16x8xf32>, vector<16x8xf32> -> vector<16x8xf32>
      %263 = arith.addf %257, %262 : vector<16x8xf32>
      %c2_i32_339 = arith.constant 2 : i32
      %264 = arith.addi %arg21, %c2_i32_339 : i32
      %c0_340 = arith.constant 0 : index
      %265 = arith.index_cast %264 : i32 to index
      %c0_341 = arith.constant 0 : index
      %c2_342 = arith.constant 2 : index
      %266 = vector.load %arg16[%c0_340, %265, %c0_341, %c2_342] : memref<2x10x16x10xf32, #tpu.memory_space<vmem>>, vector<1x1x16x8xf32>
      %267 = vector.shape_cast %266 : vector<1x1x16x8xf32> to vector<16x8xf32>
      %cst_343 = arith.constant dense<0.000000e+00> : vector<16x8xf32>
      %268 = tpu.matmul %83, %267, %cst_343 {dimension_numbers = #tpu.dot_dimension_numbers<[1], [0], [0], [1], [0, 0, 1, 1], [], []>} : vector<16x16xf32>, vector<16x8xf32>, vector<16x8xf32> -> vector<16x8xf32>
      %269 = arith.addf %263, %268 : vector<16x8xf32>
      %cst_344 = arith.constant 0.000000e+00 : f32
      %270 = vector.broadcast %cst_344 : f32 to vector<16x8xf32>
      %271 = arith.maximumf %269, %270 : vector<16x8xf32>
      %272 = vector.broadcast %63 : vector<16x1xf32> to vector<16x8xf32>
      %273 = arith.mulf %271, %272 : vector<16x8xf32>
      %274 = vector.broadcast %65 : vector<16x1xf32> to vector<16x8xf32>
      %275 = arith.addf %273, %274 : vector<16x8xf32>
      %c0_i32_345 = arith.constant 0 : i32
      %276 = arith.addi %arg21, %c0_i32_345 : i32
      %c0_346 = arith.constant 0 : index
      %277 = arith.index_cast %276 : i32 to index
      %c0_347 = arith.constant 0 : index
      %c0_348 = arith.constant 0 : index
      %278 = vector.load %arg17[%c0_346, %277, %c0_347, %c0_348] : memref<2x8x16x8xf32, #tpu.memory_space<vmem>>, vector<1x1x16x8xf32>
      %279 = vector.shape_cast %278 : vector<1x1x16x8xf32> to vector<16x8xf32>
      %280 = vector.shape_cast %275 : vector<16x8xf32> to vector<1x1x16x8xf32>
      tpu.vector_store %arg17[%c0_346, %277, %c0_347, %c0_348], %280 {strides = array<i32>} : memref<2x8x16x8xf32, #tpu.memory_space<vmem>>, vector<1x1x16x8xf32>,
    }
    %c8_i32_134 = arith.constant 8 : i32
    %c0_i32_135 = arith.constant 0 : i32
    %c8_i32_136 = arith.constant 8 : i32
    %85 = arith.addi %c0_i32_135, %c8_i32_136 : i32
    %c1_i32_137 = arith.constant 1 : i32
    scf.for %arg21 = %c0_i32_135 to %85 step %c1_i32_137  : i32 {
      %c1_301 = arith.constant 1 : index
      %218 = arith.index_cast %arg21 : i32 to index
      %c0_302 = arith.constant 0 : index
      %c0_303 = arith.constant 0 : index
      %219 = vector.load %arg16[%c1_301, %218, %c0_302, %c0_303] : memref<2x10x16x10xf32, #tpu.memory_space<vmem>>, vector<1x1x16x8xf32>
      %220 = vector.shape_cast %219 : vector<1x1x16x8xf32> to vector<16x8xf32>
      %cst_304 = arith.constant dense<0.000000e+00> : vector<16x8xf32>
      %221 = tpu.matmul %67, %220, %cst_304 {dimension_numbers = #tpu.dot_dimension_numbers<[1], [0], [0], [1], [0, 0, 1, 1], [], []>} : vector<16x16xf32>, vector<16x8xf32>, vector<16x8xf32> -> vector<16x8xf32>
      %c0_i32_305 = arith.constant 0 : i32
      %222 = arith.addi %arg21, %c0_i32_305 : i32
      %c1_306 = arith.constant 1 : index
      %223 = arith.index_cast %222 : i32 to index
      %c0_307 = arith.constant 0 : index
      %c1_308 = arith.constant 1 : index
      %224 = vector.load %arg16[%c1_306, %223, %c0_307, %c1_308] : memref<2x10x16x10xf32, #tpu.memory_space<vmem>>, vector<1x1x16x8xf32>
      %225 = vector.shape_cast %224 : vector<1x1x16x8xf32> to vector<16x8xf32>
      %cst_309 = arith.constant dense<0.000000e+00> : vector<16x8xf32>
      %226 = tpu.matmul %69, %225, %cst_309 {dimension_numbers = #tpu.dot_dimension_numbers<[1], [0], [0], [1], [0, 0, 1, 1], [], []>} : vector<16x16xf32>, vector<16x8xf32>, vector<16x8xf32> -> vector<16x8xf32>
      %227 = arith.addf %221, %226 : vector<16x8xf32>
      %c0_i32_310 = arith.constant 0 : i32
      %228 = arith.addi %arg21, %c0_i32_310 : i32
      %c1_311 = arith.constant 1 : index
      %229 = arith.index_cast %228 : i32 to index
      %c0_312 = arith.constant 0 : index
      %c2_313 = arith.constant 2 : index
      %230 = vector.load %arg16[%c1_311, %229, %c0_312, %c2_313] : memref<2x10x16x10xf32, #tpu.memory_space<vmem>>, vector<1x1x16x8xf32>
      %231 = vector.shape_cast %230 : vector<1x1x16x8xf32> to vector<16x8xf32>
      %cst_314 = arith.constant dense<0.000000e+00> : vector<16x8xf32>
      %232 = tpu.matmul %71, %231, %cst_314 {dimension_numbers = #tpu.dot_dimension_numbers<[1], [0], [0], [1], [0, 0, 1, 1], [], []>} : vector<16x16xf32>, vector<16x8xf32>, vector<16x8xf32> -> vector<16x8xf32>
      %233 = arith.addf %227, %232 : vector<16x8xf32>
      %c1_i32_315 = arith.constant 1 : i32
      %234 = arith.addi %arg21, %c1_i32_315 : i32
      %c1_316 = arith.constant 1 : index
      %235 = arith.index_cast %234 : i32 to index
      %c0_317 = arith.constant 0 : index
      %c0_318 = arith.constant 0 : index
      %236 = vector.load %arg16[%c1_316, %235, %c0_317, %c0_318] : memref<2x10x16x10xf32, #tpu.memory_space<vmem>>, vector<1x1x16x8xf32>
      %237 = vector.shape_cast %236 : vector<1x1x16x8xf32> to vector<16x8xf32>
      %cst_319 = arith.constant dense<0.000000e+00> : vector<16x8xf32>
      %238 = tpu.matmul %73, %237, %cst_319 {dimension_numbers = #tpu.dot_dimension_numbers<[1], [0], [0], [1], [0, 0, 1, 1], [], []>} : vector<16x16xf32>, vector<16x8xf32>, vector<16x8xf32> -> vector<16x8xf32>
      %239 = arith.addf %233, %238 : vector<16x8xf32>
      %c1_i32_320 = arith.constant 1 : i32
      %240 = arith.addi %arg21, %c1_i32_320 : i32
      %c1_321 = arith.constant 1 : index
      %241 = arith.index_cast %240 : i32 to index
      %c0_322 = arith.constant 0 : index
      %c1_323 = arith.constant 1 : index
      %242 = vector.load %arg16[%c1_321, %241, %c0_322, %c1_323] : memref<2x10x16x10xf32, #tpu.memory_space<vmem>>, vector<1x1x16x8xf32>
      %243 = vector.shape_cast %242 : vector<1x1x16x8xf32> to vector<16x8xf32>
      %cst_324 = arith.constant dense<0.000000e+00> : vector<16x8xf32>
      %244 = tpu.matmul %75, %243, %cst_324 {dimension_numbers = #tpu.dot_dimension_numbers<[1], [0], [0], [1], [0, 0, 1, 1], [], []>} : vector<16x16xf32>, vector<16x8xf32>, vector<16x8xf32> -> vector<16x8xf32>
      %245 = arith.addf %239, %244 : vector<16x8xf32>
      %c1_i32_325 = arith.constant 1 : i32
      %246 = arith.addi %arg21, %c1_i32_325 : i32
      %c1_326 = arith.constant 1 : index
      %247 = arith.index_cast %246 : i32 to index
      %c0_327 = arith.constant 0 : index
      %c2_328 = arith.constant 2 : index
      %248 = vector.load %arg16[%c1_326, %247, %c0_327, %c2_328] : memref<2x10x16x10xf32, #tpu.memory_space<vmem>>, vector<1x1x16x8xf32>
      %249 = vector.shape_cast %248 : vector<1x1x16x8xf32> to vector<16x8xf32>
      %cst_329 = arith.constant dense<0.000000e+00> : vector<16x8xf32>
      %250 = tpu.matmul %77, %249, %cst_329 {dimension_numbers = #tpu.dot_dimension_numbers<[1], [0], [0], [1], [0, 0, 1, 1], [], []>} : vector<16x16xf32>, vector<16x8xf32>, vector<16x8xf32> -> vector<16x8xf32>
      %251 = arith.addf %245, %250 : vector<16x8xf32>
      %c2_i32 = arith.constant 2 : i32
      %252 = arith.addi %arg21, %c2_i32 : i32
      %c1_330 = arith.constant 1 : index
      %253 = arith.index_cast %252 : i32 to index
      %c0_331 = arith.constant 0 : index
      %c0_332 = arith.constant 0 : index
      %254 = vector.load %arg16[%c1_330, %253, %c0_331, %c0_332] : memref<2x10x16x10xf32, #tpu.memory_space<vmem>>, vector<1x1x16x8xf32>
      %255 = vector.shape_cast %254 : vector<1x1x16x8xf32> to vector<16x8xf32>
      %cst_333 = arith.constant dense<0.000000e+00> : vector<16x8xf32>
      %256 = tpu.matmul %79, %255, %cst_333 {dimension_numbers = #tpu.dot_dimension_numbers<[1], [0], [0], [1], [0, 0, 1, 1], [], []>} : vector<16x16xf32>, vector<16x8xf32>, vector<16x8xf32> -> vector<16x8xf32>
      %257 = arith.addf %251, %256 : vector<16x8xf32>
      %c2_i32_334 = arith.constant 2 : i32
      %258 = arith.addi %arg21, %c2_i32_334 : i32
      %c1_335 = arith.constant 1 : index
      %259 = arith.index_cast %258 : i32 to index
      %c0_336 = arith.constant 0 : index
      %c1_337 = arith.constant 1 : index
      %260 = vector.load %arg16[%c1_335, %259, %c0_336, %c1_337] : memref<2x10x16x10xf32, #tpu.memory_space<vmem>>, vector<1x1x16x8xf32>
      %261 = vector.shape_cast %260 : vector<1x1x16x8xf32> to vector<16x8xf32>
      %cst_338 = arith.constant dense<0.000000e+00> : vector<16x8xf32>
      %262 = tpu.matmul %81, %261, %cst_338 {dimension_numbers = #tpu.dot_dimension_numbers<[1], [0], [0], [1], [0, 0, 1, 1], [], []>} : vector<16x16xf32>, vector<16x8xf32>, vector<16x8xf32> -> vector<16x8xf32>
      %263 = arith.addf %257, %262 : vector<16x8xf32>
      %c2_i32_339 = arith.constant 2 : i32
      %264 = arith.addi %arg21, %c2_i32_339 : i32
      %c1_340 = arith.constant 1 : index
      %265 = arith.index_cast %264 : i32 to index
      %c0_341 = arith.constant 0 : index
      %c2_342 = arith.constant 2 : index
      %266 = vector.load %arg16[%c1_340, %265, %c0_341, %c2_342] : memref<2x10x16x10xf32, #tpu.memory_space<vmem>>, vector<1x1x16x8xf32>
      %267 = vector.shape_cast %266 : vector<1x1x16x8xf32> to vector<16x8xf32>
      %cst_343 = arith.constant dense<0.000000e+00> : vector<16x8xf32>
      %268 = tpu.matmul %83, %267, %cst_343 {dimension_numbers = #tpu.dot_dimension_numbers<[1], [0], [0], [1], [0, 0, 1, 1], [], []>} : vector<16x16xf32>, vector<16x8xf32>, vector<16x8xf32> -> vector<16x8xf32>
      %269 = arith.addf %263, %268 : vector<16x8xf32>
      %cst_344 = arith.constant 0.000000e+00 : f32
      %270 = vector.broadcast %cst_344 : f32 to vector<16x8xf32>
      %271 = arith.maximumf %269, %270 : vector<16x8xf32>
      %272 = vector.broadcast %63 : vector<16x1xf32> to vector<16x8xf32>
      %273 = arith.mulf %271, %272 : vector<16x8xf32>
      %274 = vector.broadcast %65 : vector<16x1xf32> to vector<16x8xf32>
      %275 = arith.addf %273, %274 : vector<16x8xf32>
      %c0_i32_345 = arith.constant 0 : i32
      %276 = arith.addi %arg21, %c0_i32_345 : i32
      %c1_346 = arith.constant 1 : index
      %277 = arith.index_cast %276 : i32 to index
      %c0_347 = arith.constant 0 : index
      %c0_348 = arith.constant 0 : index
      %278 = vector.load %arg17[%c1_346, %277, %c0_347, %c0_348] : memref<2x8x16x8xf32, #tpu.memory_space<vmem>>, vector<1x1x16x8xf32>
      %279 = vector.shape_cast %278 : vector<1x1x16x8xf32> to vector<16x8xf32>
      %280 = vector.shape_cast %275 : vector<16x8xf32> to vector<1x1x16x8xf32>
      tpu.vector_store %arg17[%c1_346, %277, %c0_347, %c0_348], %280 {strides = array<i32>} : memref<2x8x16x8xf32, #tpu.memory_space<vmem>>, vector<1x1x16x8xf32>,
    }
    %c8_i32_138 = arith.constant 8 : i32
    %cst = arith.constant 0.000000e+00 : f32
    %86 = vector.broadcast %cst : f32 to vector<2x8x16x8xf32>
    %c0_139 = arith.constant 0 : index
    %c0_140 = arith.constant 0 : index
    %c0_141 = arith.constant 0 : index
    %c0_142 = arith.constant 0 : index
    %87 = vector.load %arg18[%c0_139, %c0_140, %c0_141, %c0_142] : memref<2x8x16x8xf32, #tpu.memory_space<vmem>>, vector<2x8x16x8xf32>
    tpu.vector_store %arg18[%c0_139, %c0_140, %c0_141, %c0_142], %86 {strides = array<i32>} : memref<2x8x16x8xf32, #tpu.memory_space<vmem>>, vector<2x8x16x8xf32>,
    %c4_143 = arith.constant 4 : index
    %c0_144 = arith.constant 0 : index
    %c0_145 = arith.constant 0 : index
    %88 = vector.load %arg10[%c4_143, %c0_144, %c0_145] : memref<6x16x1xf32, #tpu.memory_space<vmem>>, vector<1x16x1xf32>
    %89 = vector.shape_cast %88 : vector<1x16x1xf32> to vector<16x1xf32>
    %c4_146 = arith.constant 4 : index
    %c0_147 = arith.constant 0 : index
    %c0_148 = arith.constant 0 : index
    %90 = vector.load %arg11[%c4_146, %c0_147, %c0_148] : memref<6x16x1xf32, #tpu.memory_space<vmem>>, vector<1x16x1xf32>
    %91 = vector.shape_cast %90 : vector<1x16x1xf32> to vector<16x1xf32>
    %c0_149 = arith.constant 0 : index
    %c0_150 = arith.constant 0 : index
    %c0_151 = arith.constant 0 : index
    %92 = vector.load %arg6[%c0_149, %c0_150, %c0_151] : memref<9x16x16xf32, #tpu.memory_space<vmem>>, vector<1x16x16xf32>
    %93 = vector.shape_cast %92 : vector<1x16x16xf32> to vector<16x16xf32>
    %c1_152 = arith.constant 1 : index
    %c0_153 = arith.constant 0 : index
    %c0_154 = arith.constant 0 : index
    %94 = vector.load %arg6[%c1_152, %c0_153, %c0_154] : memref<9x16x16xf32, #tpu.memory_space<vmem>>, vector<1x16x16xf32>
    %95 = vector.shape_cast %94 : vector<1x16x16xf32> to vector<16x16xf32>
    %c2_155 = arith.constant 2 : index
    %c0_156 = arith.constant 0 : index
    %c0_157 = arith.constant 0 : index
    %96 = vector.load %arg6[%c2_155, %c0_156, %c0_157] : memref<9x16x16xf32, #tpu.memory_space<vmem>>, vector<1x16x16xf32>
    %97 = vector.shape_cast %96 : vector<1x16x16xf32> to vector<16x16xf32>
    %c3_158 = arith.constant 3 : index
    %c0_159 = arith.constant 0 : index
    %c0_160 = arith.constant 0 : index
    %98 = vector.load %arg6[%c3_158, %c0_159, %c0_160] : memref<9x16x16xf32, #tpu.memory_space<vmem>>, vector<1x16x16xf32>
    %99 = vector.shape_cast %98 : vector<1x16x16xf32> to vector<16x16xf32>
    %c4_161 = arith.constant 4 : index
    %c0_162 = arith.constant 0 : index
    %c0_163 = arith.constant 0 : index
    %100 = vector.load %arg6[%c4_161, %c0_162, %c0_163] : memref<9x16x16xf32, #tpu.memory_space<vmem>>, vector<1x16x16xf32>
    %101 = vector.shape_cast %100 : vector<1x16x16xf32> to vector<16x16xf32>
    %c5_164 = arith.constant 5 : index
    %c0_165 = arith.constant 0 : index
    %c0_166 = arith.constant 0 : index
    %102 = vector.load %arg6[%c5_164, %c0_165, %c0_166] : memref<9x16x16xf32, #tpu.memory_space<vmem>>, vector<1x16x16xf32>
    %103 = vector.shape_cast %102 : vector<1x16x16xf32> to vector<16x16xf32>
    %c6_167 = arith.constant 6 : index
    %c0_168 = arith.constant 0 : index
    %c0_169 = arith.constant 0 : index
    %104 = vector.load %arg6[%c6_167, %c0_168, %c0_169] : memref<9x16x16xf32, #tpu.memory_space<vmem>>, vector<1x16x16xf32>
    %105 = vector.shape_cast %104 : vector<1x16x16xf32> to vector<16x16xf32>
    %c7_170 = arith.constant 7 : index
    %c0_171 = arith.constant 0 : index
    %c0_172 = arith.constant 0 : index
    %106 = vector.load %arg6[%c7_170, %c0_171, %c0_172] : memref<9x16x16xf32, #tpu.memory_space<vmem>>, vector<1x16x16xf32>
    %107 = vector.shape_cast %106 : vector<1x16x16xf32> to vector<16x16xf32>
    %c8_173 = arith.constant 8 : index
    %c0_174 = arith.constant 0 : index
    %c0_175 = arith.constant 0 : index
    %108 = vector.load %arg6[%c8_173, %c0_174, %c0_175] : memref<9x16x16xf32, #tpu.memory_space<vmem>>, vector<1x16x16xf32>
    %109 = vector.shape_cast %108 : vector<1x16x16xf32> to vector<16x16xf32>
    %c0_i32_176 = arith.constant 0 : i32
    %c6_i32 = arith.constant 6 : i32
    %110 = arith.addi %c0_i32_176, %c6_i32 : i32
    %c1_i32_177 = arith.constant 1 : i32
    scf.for %arg21 = %c0_i32_176 to %110 step %c1_i32_177  : i32 {
      %c0_301 = arith.constant 0 : index
      %218 = arith.index_cast %arg21 : i32 to index
      %c0_302 = arith.constant 0 : index
      %c0_303 = arith.constant 0 : index
      %219 = vector.load %arg17[%c0_301, %218, %c0_302, %c0_303] : memref<2x8x16x8xf32, #tpu.memory_space<vmem>>, vector<1x1x16x6xf32>
      %220 = vector.shape_cast %219 : vector<1x1x16x6xf32> to vector<16x6xf32>
      %cst_304 = arith.constant dense<0.000000e+00> : vector<16x6xf32>
      %221 = tpu.matmul %93, %220, %cst_304 {dimension_numbers = #tpu.dot_dimension_numbers<[1], [0], [0], [1], [0, 0, 1, 1], [], []>} : vector<16x16xf32>, vector<16x6xf32>, vector<16x6xf32> -> vector<16x6xf32>
      %c0_i32_305 = arith.constant 0 : i32
      %222 = arith.addi %arg21, %c0_i32_305 : i32
      %c0_306 = arith.constant 0 : index
      %223 = arith.index_cast %222 : i32 to index
      %c0_307 = arith.constant 0 : index
      %c1_308 = arith.constant 1 : index
      %224 = vector.load %arg17[%c0_306, %223, %c0_307, %c1_308] : memref<2x8x16x8xf32, #tpu.memory_space<vmem>>, vector<1x1x16x6xf32>
      %225 = vector.shape_cast %224 : vector<1x1x16x6xf32> to vector<16x6xf32>
      %cst_309 = arith.constant dense<0.000000e+00> : vector<16x6xf32>
      %226 = tpu.matmul %95, %225, %cst_309 {dimension_numbers = #tpu.dot_dimension_numbers<[1], [0], [0], [1], [0, 0, 1, 1], [], []>} : vector<16x16xf32>, vector<16x6xf32>, vector<16x6xf32> -> vector<16x6xf32>
      %227 = arith.addf %221, %226 : vector<16x6xf32>
      %c0_i32_310 = arith.constant 0 : i32
      %228 = arith.addi %arg21, %c0_i32_310 : i32
      %c0_311 = arith.constant 0 : index
      %229 = arith.index_cast %228 : i32 to index
      %c0_312 = arith.constant 0 : index
      %c2_313 = arith.constant 2 : index
      %230 = vector.load %arg17[%c0_311, %229, %c0_312, %c2_313] : memref<2x8x16x8xf32, #tpu.memory_space<vmem>>, vector<1x1x16x6xf32>
      %231 = vector.shape_cast %230 : vector<1x1x16x6xf32> to vector<16x6xf32>
      %cst_314 = arith.constant dense<0.000000e+00> : vector<16x6xf32>
      %232 = tpu.matmul %97, %231, %cst_314 {dimension_numbers = #tpu.dot_dimension_numbers<[1], [0], [0], [1], [0, 0, 1, 1], [], []>} : vector<16x16xf32>, vector<16x6xf32>, vector<16x6xf32> -> vector<16x6xf32>
      %233 = arith.addf %227, %232 : vector<16x6xf32>
      %c1_i32_315 = arith.constant 1 : i32
      %234 = arith.addi %arg21, %c1_i32_315 : i32
      %c0_316 = arith.constant 0 : index
      %235 = arith.index_cast %234 : i32 to index
      %c0_317 = arith.constant 0 : index
      %c0_318 = arith.constant 0 : index
      %236 = vector.load %arg17[%c0_316, %235, %c0_317, %c0_318] : memref<2x8x16x8xf32, #tpu.memory_space<vmem>>, vector<1x1x16x6xf32>
      %237 = vector.shape_cast %236 : vector<1x1x16x6xf32> to vector<16x6xf32>
      %cst_319 = arith.constant dense<0.000000e+00> : vector<16x6xf32>
      %238 = tpu.matmul %99, %237, %cst_319 {dimension_numbers = #tpu.dot_dimension_numbers<[1], [0], [0], [1], [0, 0, 1, 1], [], []>} : vector<16x16xf32>, vector<16x6xf32>, vector<16x6xf32> -> vector<16x6xf32>
      %239 = arith.addf %233, %238 : vector<16x6xf32>
      %c1_i32_320 = arith.constant 1 : i32
      %240 = arith.addi %arg21, %c1_i32_320 : i32
      %c0_321 = arith.constant 0 : index
      %241 = arith.index_cast %240 : i32 to index
      %c0_322 = arith.constant 0 : index
      %c1_323 = arith.constant 1 : index
      %242 = vector.load %arg17[%c0_321, %241, %c0_322, %c1_323] : memref<2x8x16x8xf32, #tpu.memory_space<vmem>>, vector<1x1x16x6xf32>
      %243 = vector.shape_cast %242 : vector<1x1x16x6xf32> to vector<16x6xf32>
      %cst_324 = arith.constant dense<0.000000e+00> : vector<16x6xf32>
      %244 = tpu.matmul %101, %243, %cst_324 {dimension_numbers = #tpu.dot_dimension_numbers<[1], [0], [0], [1], [0, 0, 1, 1], [], []>} : vector<16x16xf32>, vector<16x6xf32>, vector<16x6xf32> -> vector<16x6xf32>
      %245 = arith.addf %239, %244 : vector<16x6xf32>
      %c1_i32_325 = arith.constant 1 : i32
      %246 = arith.addi %arg21, %c1_i32_325 : i32
      %c0_326 = arith.constant 0 : index
      %247 = arith.index_cast %246 : i32 to index
      %c0_327 = arith.constant 0 : index
      %c2_328 = arith.constant 2 : index
      %248 = vector.load %arg17[%c0_326, %247, %c0_327, %c2_328] : memref<2x8x16x8xf32, #tpu.memory_space<vmem>>, vector<1x1x16x6xf32>
      %249 = vector.shape_cast %248 : vector<1x1x16x6xf32> to vector<16x6xf32>
      %cst_329 = arith.constant dense<0.000000e+00> : vector<16x6xf32>
      %250 = tpu.matmul %103, %249, %cst_329 {dimension_numbers = #tpu.dot_dimension_numbers<[1], [0], [0], [1], [0, 0, 1, 1], [], []>} : vector<16x16xf32>, vector<16x6xf32>, vector<16x6xf32> -> vector<16x6xf32>
      %251 = arith.addf %245, %250 : vector<16x6xf32>
      %c2_i32 = arith.constant 2 : i32
      %252 = arith.addi %arg21, %c2_i32 : i32
      %c0_330 = arith.constant 0 : index
      %253 = arith.index_cast %252 : i32 to index
      %c0_331 = arith.constant 0 : index
      %c0_332 = arith.constant 0 : index
      %254 = vector.load %arg17[%c0_330, %253, %c0_331, %c0_332] : memref<2x8x16x8xf32, #tpu.memory_space<vmem>>, vector<1x1x16x6xf32>
      %255 = vector.shape_cast %254 : vector<1x1x16x6xf32> to vector<16x6xf32>
      %cst_333 = arith.constant dense<0.000000e+00> : vector<16x6xf32>
      %256 = tpu.matmul %105, %255, %cst_333 {dimension_numbers = #tpu.dot_dimension_numbers<[1], [0], [0], [1], [0, 0, 1, 1], [], []>} : vector<16x16xf32>, vector<16x6xf32>, vector<16x6xf32> -> vector<16x6xf32>
      %257 = arith.addf %251, %256 : vector<16x6xf32>
      %c2_i32_334 = arith.constant 2 : i32
      %258 = arith.addi %arg21, %c2_i32_334 : i32
      %c0_335 = arith.constant 0 : index
      %259 = arith.index_cast %258 : i32 to index
      %c0_336 = arith.constant 0 : index
      %c1_337 = arith.constant 1 : index
      %260 = vector.load %arg17[%c0_335, %259, %c0_336, %c1_337] : memref<2x8x16x8xf32, #tpu.memory_space<vmem>>, vector<1x1x16x6xf32>
      %261 = vector.shape_cast %260 : vector<1x1x16x6xf32> to vector<16x6xf32>
      %cst_338 = arith.constant dense<0.000000e+00> : vector<16x6xf32>
      %262 = tpu.matmul %107, %261, %cst_338 {dimension_numbers = #tpu.dot_dimension_numbers<[1], [0], [0], [1], [0, 0, 1, 1], [], []>} : vector<16x16xf32>, vector<16x6xf32>, vector<16x6xf32> -> vector<16x6xf32>
      %263 = arith.addf %257, %262 : vector<16x6xf32>
      %c2_i32_339 = arith.constant 2 : i32
      %264 = arith.addi %arg21, %c2_i32_339 : i32
      %c0_340 = arith.constant 0 : index
      %265 = arith.index_cast %264 : i32 to index
      %c0_341 = arith.constant 0 : index
      %c2_342 = arith.constant 2 : index
      %266 = vector.load %arg17[%c0_340, %265, %c0_341, %c2_342] : memref<2x8x16x8xf32, #tpu.memory_space<vmem>>, vector<1x1x16x6xf32>
      %267 = vector.shape_cast %266 : vector<1x1x16x6xf32> to vector<16x6xf32>
      %cst_343 = arith.constant dense<0.000000e+00> : vector<16x6xf32>
      %268 = tpu.matmul %109, %267, %cst_343 {dimension_numbers = #tpu.dot_dimension_numbers<[1], [0], [0], [1], [0, 0, 1, 1], [], []>} : vector<16x16xf32>, vector<16x6xf32>, vector<16x6xf32> -> vector<16x6xf32>
      %269 = arith.addf %263, %268 : vector<16x6xf32>
      %cst_344 = arith.constant 0.000000e+00 : f32
      %270 = vector.broadcast %cst_344 : f32 to vector<16x6xf32>
      %271 = arith.maximumf %269, %270 : vector<16x6xf32>
      %272 = vector.broadcast %89 : vector<16x1xf32> to vector<16x6xf32>
      %273 = arith.mulf %271, %272 : vector<16x6xf32>
      %274 = vector.broadcast %91 : vector<16x1xf32> to vector<16x6xf32>
      %275 = arith.addf %273, %274 : vector<16x6xf32>
      %c1_i32_345 = arith.constant 1 : i32
      %276 = arith.addi %arg21, %c1_i32_345 : i32
      %c0_346 = arith.constant 0 : index
      %277 = arith.index_cast %276 : i32 to index
      %c0_347 = arith.constant 0 : index
      %c1_348 = arith.constant 1 : index
      %278 = vector.load %arg18[%c0_346, %277, %c0_347, %c1_348] : memref<2x8x16x8xf32, #tpu.memory_space<vmem>>, vector<1x1x16x6xf32>
      %279 = vector.shape_cast %278 : vector<1x1x16x6xf32> to vector<16x6xf32>
      %280 = vector.shape_cast %275 : vector<16x6xf32> to vector<1x1x16x6xf32>
      tpu.vector_store %arg18[%c0_346, %277, %c0_347, %c1_348], %280 {strides = array<i32>} : memref<2x8x16x8xf32, #tpu.memory_space<vmem>>, vector<1x1x16x6xf32>,
    }
    %c6_i32_178 = arith.constant 6 : i32
    %c0_i32_179 = arith.constant 0 : i32
    %c6_i32_180 = arith.constant 6 : i32
    %111 = arith.addi %c0_i32_179, %c6_i32_180 : i32
    %c1_i32_181 = arith.constant 1 : i32
    scf.for %arg21 = %c0_i32_179 to %111 step %c1_i32_181  : i32 {
      %c1_301 = arith.constant 1 : index
      %218 = arith.index_cast %arg21 : i32 to index
      %c0_302 = arith.constant 0 : index
      %c0_303 = arith.constant 0 : index
      %219 = vector.load %arg17[%c1_301, %218, %c0_302, %c0_303] : memref<2x8x16x8xf32, #tpu.memory_space<vmem>>, vector<1x1x16x6xf32>
      %220 = vector.shape_cast %219 : vector<1x1x16x6xf32> to vector<16x6xf32>
      %cst_304 = arith.constant dense<0.000000e+00> : vector<16x6xf32>
      %221 = tpu.matmul %93, %220, %cst_304 {dimension_numbers = #tpu.dot_dimension_numbers<[1], [0], [0], [1], [0, 0, 1, 1], [], []>} : vector<16x16xf32>, vector<16x6xf32>, vector<16x6xf32> -> vector<16x6xf32>
      %c0_i32_305 = arith.constant 0 : i32
      %222 = arith.addi %arg21, %c0_i32_305 : i32
      %c1_306 = arith.constant 1 : index
      %223 = arith.index_cast %222 : i32 to index
      %c0_307 = arith.constant 0 : index
      %c1_308 = arith.constant 1 : index
      %224 = vector.load %arg17[%c1_306, %223, %c0_307, %c1_308] : memref<2x8x16x8xf32, #tpu.memory_space<vmem>>, vector<1x1x16x6xf32>
      %225 = vector.shape_cast %224 : vector<1x1x16x6xf32> to vector<16x6xf32>
      %cst_309 = arith.constant dense<0.000000e+00> : vector<16x6xf32>
      %226 = tpu.matmul %95, %225, %cst_309 {dimension_numbers = #tpu.dot_dimension_numbers<[1], [0], [0], [1], [0, 0, 1, 1], [], []>} : vector<16x16xf32>, vector<16x6xf32>, vector<16x6xf32> -> vector<16x6xf32>
      %227 = arith.addf %221, %226 : vector<16x6xf32>
      %c0_i32_310 = arith.constant 0 : i32
      %228 = arith.addi %arg21, %c0_i32_310 : i32
      %c1_311 = arith.constant 1 : index
      %229 = arith.index_cast %228 : i32 to index
      %c0_312 = arith.constant 0 : index
      %c2_313 = arith.constant 2 : index
      %230 = vector.load %arg17[%c1_311, %229, %c0_312, %c2_313] : memref<2x8x16x8xf32, #tpu.memory_space<vmem>>, vector<1x1x16x6xf32>
      %231 = vector.shape_cast %230 : vector<1x1x16x6xf32> to vector<16x6xf32>
      %cst_314 = arith.constant dense<0.000000e+00> : vector<16x6xf32>
      %232 = tpu.matmul %97, %231, %cst_314 {dimension_numbers = #tpu.dot_dimension_numbers<[1], [0], [0], [1], [0, 0, 1, 1], [], []>} : vector<16x16xf32>, vector<16x6xf32>, vector<16x6xf32> -> vector<16x6xf32>
      %233 = arith.addf %227, %232 : vector<16x6xf32>
      %c1_i32_315 = arith.constant 1 : i32
      %234 = arith.addi %arg21, %c1_i32_315 : i32
      %c1_316 = arith.constant 1 : index
      %235 = arith.index_cast %234 : i32 to index
      %c0_317 = arith.constant 0 : index
      %c0_318 = arith.constant 0 : index
      %236 = vector.load %arg17[%c1_316, %235, %c0_317, %c0_318] : memref<2x8x16x8xf32, #tpu.memory_space<vmem>>, vector<1x1x16x6xf32>
      %237 = vector.shape_cast %236 : vector<1x1x16x6xf32> to vector<16x6xf32>
      %cst_319 = arith.constant dense<0.000000e+00> : vector<16x6xf32>
      %238 = tpu.matmul %99, %237, %cst_319 {dimension_numbers = #tpu.dot_dimension_numbers<[1], [0], [0], [1], [0, 0, 1, 1], [], []>} : vector<16x16xf32>, vector<16x6xf32>, vector<16x6xf32> -> vector<16x6xf32>
      %239 = arith.addf %233, %238 : vector<16x6xf32>
      %c1_i32_320 = arith.constant 1 : i32
      %240 = arith.addi %arg21, %c1_i32_320 : i32
      %c1_321 = arith.constant 1 : index
      %241 = arith.index_cast %240 : i32 to index
      %c0_322 = arith.constant 0 : index
      %c1_323 = arith.constant 1 : index
      %242 = vector.load %arg17[%c1_321, %241, %c0_322, %c1_323] : memref<2x8x16x8xf32, #tpu.memory_space<vmem>>, vector<1x1x16x6xf32>
      %243 = vector.shape_cast %242 : vector<1x1x16x6xf32> to vector<16x6xf32>
      %cst_324 = arith.constant dense<0.000000e+00> : vector<16x6xf32>
      %244 = tpu.matmul %101, %243, %cst_324 {dimension_numbers = #tpu.dot_dimension_numbers<[1], [0], [0], [1], [0, 0, 1, 1], [], []>} : vector<16x16xf32>, vector<16x6xf32>, vector<16x6xf32> -> vector<16x6xf32>
      %245 = arith.addf %239, %244 : vector<16x6xf32>
      %c1_i32_325 = arith.constant 1 : i32
      %246 = arith.addi %arg21, %c1_i32_325 : i32
      %c1_326 = arith.constant 1 : index
      %247 = arith.index_cast %246 : i32 to index
      %c0_327 = arith.constant 0 : index
      %c2_328 = arith.constant 2 : index
      %248 = vector.load %arg17[%c1_326, %247, %c0_327, %c2_328] : memref<2x8x16x8xf32, #tpu.memory_space<vmem>>, vector<1x1x16x6xf32>
      %249 = vector.shape_cast %248 : vector<1x1x16x6xf32> to vector<16x6xf32>
      %cst_329 = arith.constant dense<0.000000e+00> : vector<16x6xf32>
      %250 = tpu.matmul %103, %249, %cst_329 {dimension_numbers = #tpu.dot_dimension_numbers<[1], [0], [0], [1], [0, 0, 1, 1], [], []>} : vector<16x16xf32>, vector<16x6xf32>, vector<16x6xf32> -> vector<16x6xf32>
      %251 = arith.addf %245, %250 : vector<16x6xf32>
      %c2_i32 = arith.constant 2 : i32
      %252 = arith.addi %arg21, %c2_i32 : i32
      %c1_330 = arith.constant 1 : index
      %253 = arith.index_cast %252 : i32 to index
      %c0_331 = arith.constant 0 : index
      %c0_332 = arith.constant 0 : index
      %254 = vector.load %arg17[%c1_330, %253, %c0_331, %c0_332] : memref<2x8x16x8xf32, #tpu.memory_space<vmem>>, vector<1x1x16x6xf32>
      %255 = vector.shape_cast %254 : vector<1x1x16x6xf32> to vector<16x6xf32>
      %cst_333 = arith.constant dense<0.000000e+00> : vector<16x6xf32>
      %256 = tpu.matmul %105, %255, %cst_333 {dimension_numbers = #tpu.dot_dimension_numbers<[1], [0], [0], [1], [0, 0, 1, 1], [], []>} : vector<16x16xf32>, vector<16x6xf32>, vector<16x6xf32> -> vector<16x6xf32>
      %257 = arith.addf %251, %256 : vector<16x6xf32>
      %c2_i32_334 = arith.constant 2 : i32
      %258 = arith.addi %arg21, %c2_i32_334 : i32
      %c1_335 = arith.constant 1 : index
      %259 = arith.index_cast %258 : i32 to index
      %c0_336 = arith.constant 0 : index
      %c1_337 = arith.constant 1 : index
      %260 = vector.load %arg17[%c1_335, %259, %c0_336, %c1_337] : memref<2x8x16x8xf32, #tpu.memory_space<vmem>>, vector<1x1x16x6xf32>
      %261 = vector.shape_cast %260 : vector<1x1x16x6xf32> to vector<16x6xf32>
      %cst_338 = arith.constant dense<0.000000e+00> : vector<16x6xf32>
      %262 = tpu.matmul %107, %261, %cst_338 {dimension_numbers = #tpu.dot_dimension_numbers<[1], [0], [0], [1], [0, 0, 1, 1], [], []>} : vector<16x16xf32>, vector<16x6xf32>, vector<16x6xf32> -> vector<16x6xf32>
      %263 = arith.addf %257, %262 : vector<16x6xf32>
      %c2_i32_339 = arith.constant 2 : i32
      %264 = arith.addi %arg21, %c2_i32_339 : i32
      %c1_340 = arith.constant 1 : index
      %265 = arith.index_cast %264 : i32 to index
      %c0_341 = arith.constant 0 : index
      %c2_342 = arith.constant 2 : index
      %266 = vector.load %arg17[%c1_340, %265, %c0_341, %c2_342] : memref<2x8x16x8xf32, #tpu.memory_space<vmem>>, vector<1x1x16x6xf32>
      %267 = vector.shape_cast %266 : vector<1x1x16x6xf32> to vector<16x6xf32>
      %cst_343 = arith.constant dense<0.000000e+00> : vector<16x6xf32>
      %268 = tpu.matmul %109, %267, %cst_343 {dimension_numbers = #tpu.dot_dimension_numbers<[1], [0], [0], [1], [0, 0, 1, 1], [], []>} : vector<16x16xf32>, vector<16x6xf32>, vector<16x6xf32> -> vector<16x6xf32>
      %269 = arith.addf %263, %268 : vector<16x6xf32>
      %cst_344 = arith.constant 0.000000e+00 : f32
      %270 = vector.broadcast %cst_344 : f32 to vector<16x6xf32>
      %271 = arith.maximumf %269, %270 : vector<16x6xf32>
      %272 = vector.broadcast %89 : vector<16x1xf32> to vector<16x6xf32>
      %273 = arith.mulf %271, %272 : vector<16x6xf32>
      %274 = vector.broadcast %91 : vector<16x1xf32> to vector<16x6xf32>
      %275 = arith.addf %273, %274 : vector<16x6xf32>
      %c1_i32_345 = arith.constant 1 : i32
      %276 = arith.addi %arg21, %c1_i32_345 : i32
      %c1_346 = arith.constant 1 : index
      %277 = arith.index_cast %276 : i32 to index
      %c0_347 = arith.constant 0 : index
      %c1_348 = arith.constant 1 : index
      %278 = vector.load %arg18[%c1_346, %277, %c0_347, %c1_348] : memref<2x8x16x8xf32, #tpu.memory_space<vmem>>, vector<1x1x16x6xf32>
      %279 = vector.shape_cast %278 : vector<1x1x16x6xf32> to vector<16x6xf32>
      %280 = vector.shape_cast %275 : vector<16x6xf32> to vector<1x1x16x6xf32>
      tpu.vector_store %arg18[%c1_346, %277, %c0_347, %c1_348], %280 {strides = array<i32>} : memref<2x8x16x8xf32, #tpu.memory_space<vmem>>, vector<1x1x16x6xf32>,
    }
    %c6_i32_182 = arith.constant 6 : i32
    %c5_183 = arith.constant 5 : index
    %c0_184 = arith.constant 0 : index
    %c0_185 = arith.constant 0 : index
    %112 = vector.load %arg10[%c5_183, %c0_184, %c0_185] : memref<6x16x1xf32, #tpu.memory_space<vmem>>, vector<1x16x1xf32>
    %113 = vector.shape_cast %112 : vector<1x16x1xf32> to vector<16x1xf32>
    %c5_186 = arith.constant 5 : index
    %c0_187 = arith.constant 0 : index
    %c0_188 = arith.constant 0 : index
    %114 = vector.load %arg11[%c5_186, %c0_187, %c0_188] : memref<6x16x1xf32, #tpu.memory_space<vmem>>, vector<1x16x1xf32>
    %115 = vector.shape_cast %114 : vector<1x16x1xf32> to vector<16x1xf32>
    %c0_189 = arith.constant 0 : index
    %c0_190 = arith.constant 0 : index
    %c0_191 = arith.constant 0 : index
    %116 = vector.load %arg7[%c0_189, %c0_190, %c0_191] : memref<9x16x16xf32, #tpu.memory_space<vmem>>, vector<1x16x16xf32>
    %117 = vector.shape_cast %116 : vector<1x16x16xf32> to vector<16x16xf32>
    %c1_192 = arith.constant 1 : index
    %c0_193 = arith.constant 0 : index
    %c0_194 = arith.constant 0 : index
    %118 = vector.load %arg7[%c1_192, %c0_193, %c0_194] : memref<9x16x16xf32, #tpu.memory_space<vmem>>, vector<1x16x16xf32>
    %119 = vector.shape_cast %118 : vector<1x16x16xf32> to vector<16x16xf32>
    %c2_195 = arith.constant 2 : index
    %c0_196 = arith.constant 0 : index
    %c0_197 = arith.constant 0 : index
    %120 = vector.load %arg7[%c2_195, %c0_196, %c0_197] : memref<9x16x16xf32, #tpu.memory_space<vmem>>, vector<1x16x16xf32>
    %121 = vector.shape_cast %120 : vector<1x16x16xf32> to vector<16x16xf32>
    %c3_198 = arith.constant 3 : index
    %c0_199 = arith.constant 0 : index
    %c0_200 = arith.constant 0 : index
    %122 = vector.load %arg7[%c3_198, %c0_199, %c0_200] : memref<9x16x16xf32, #tpu.memory_space<vmem>>, vector<1x16x16xf32>
    %123 = vector.shape_cast %122 : vector<1x16x16xf32> to vector<16x16xf32>
    %c4_201 = arith.constant 4 : index
    %c0_202 = arith.constant 0 : index
    %c0_203 = arith.constant 0 : index
    %124 = vector.load %arg7[%c4_201, %c0_202, %c0_203] : memref<9x16x16xf32, #tpu.memory_space<vmem>>, vector<1x16x16xf32>
    %125 = vector.shape_cast %124 : vector<1x16x16xf32> to vector<16x16xf32>
    %c5_204 = arith.constant 5 : index
    %c0_205 = arith.constant 0 : index
    %c0_206 = arith.constant 0 : index
    %126 = vector.load %arg7[%c5_204, %c0_205, %c0_206] : memref<9x16x16xf32, #tpu.memory_space<vmem>>, vector<1x16x16xf32>
    %127 = vector.shape_cast %126 : vector<1x16x16xf32> to vector<16x16xf32>
    %c6_207 = arith.constant 6 : index
    %c0_208 = arith.constant 0 : index
    %c0_209 = arith.constant 0 : index
    %128 = vector.load %arg7[%c6_207, %c0_208, %c0_209] : memref<9x16x16xf32, #tpu.memory_space<vmem>>, vector<1x16x16xf32>
    %129 = vector.shape_cast %128 : vector<1x16x16xf32> to vector<16x16xf32>
    %c7_210 = arith.constant 7 : index
    %c0_211 = arith.constant 0 : index
    %c0_212 = arith.constant 0 : index
    %130 = vector.load %arg7[%c7_210, %c0_211, %c0_212] : memref<9x16x16xf32, #tpu.memory_space<vmem>>, vector<1x16x16xf32>
    %131 = vector.shape_cast %130 : vector<1x16x16xf32> to vector<16x16xf32>
    %c8_213 = arith.constant 8 : index
    %c0_214 = arith.constant 0 : index
    %c0_215 = arith.constant 0 : index
    %132 = vector.load %arg7[%c8_213, %c0_214, %c0_215] : memref<9x16x16xf32, #tpu.memory_space<vmem>>, vector<1x16x16xf32>
    %133 = vector.shape_cast %132 : vector<1x16x16xf32> to vector<16x16xf32>
    %c0_i32_216 = arith.constant 0 : i32
    %c6_i32_217 = arith.constant 6 : i32
    %134 = arith.addi %c0_i32_216, %c6_i32_217 : i32
    %c1_i32_218 = arith.constant 1 : i32
    scf.for %arg21 = %c0_i32_216 to %134 step %c1_i32_218  : i32 {
      %c0_301 = arith.constant 0 : index
      %218 = arith.index_cast %arg21 : i32 to index
      %c0_302 = arith.constant 0 : index
      %c0_303 = arith.constant 0 : index
      %219 = vector.load %arg18[%c0_301, %218, %c0_302, %c0_303] : memref<2x8x16x8xf32, #tpu.memory_space<vmem>>, vector<1x1x16x6xf32>
      %220 = vector.shape_cast %219 : vector<1x1x16x6xf32> to vector<16x6xf32>
      %cst_304 = arith.constant dense<0.000000e+00> : vector<16x6xf32>
      %221 = tpu.matmul %117, %220, %cst_304 {dimension_numbers = #tpu.dot_dimension_numbers<[1], [0], [0], [1], [0, 0, 1, 1], [], []>} : vector<16x16xf32>, vector<16x6xf32>, vector<16x6xf32> -> vector<16x6xf32>
      %c0_i32_305 = arith.constant 0 : i32
      %222 = arith.addi %arg21, %c0_i32_305 : i32
      %c0_306 = arith.constant 0 : index
      %223 = arith.index_cast %222 : i32 to index
      %c0_307 = arith.constant 0 : index
      %c1_308 = arith.constant 1 : index
      %224 = vector.load %arg18[%c0_306, %223, %c0_307, %c1_308] : memref<2x8x16x8xf32, #tpu.memory_space<vmem>>, vector<1x1x16x6xf32>
      %225 = vector.shape_cast %224 : vector<1x1x16x6xf32> to vector<16x6xf32>
      %cst_309 = arith.constant dense<0.000000e+00> : vector<16x6xf32>
      %226 = tpu.matmul %119, %225, %cst_309 {dimension_numbers = #tpu.dot_dimension_numbers<[1], [0], [0], [1], [0, 0, 1, 1], [], []>} : vector<16x16xf32>, vector<16x6xf32>, vector<16x6xf32> -> vector<16x6xf32>
      %227 = arith.addf %221, %226 : vector<16x6xf32>
      %c0_i32_310 = arith.constant 0 : i32
      %228 = arith.addi %arg21, %c0_i32_310 : i32
      %c0_311 = arith.constant 0 : index
      %229 = arith.index_cast %228 : i32 to index
      %c0_312 = arith.constant 0 : index
      %c2_313 = arith.constant 2 : index
      %230 = vector.load %arg18[%c0_311, %229, %c0_312, %c2_313] : memref<2x8x16x8xf32, #tpu.memory_space<vmem>>, vector<1x1x16x6xf32>
      %231 = vector.shape_cast %230 : vector<1x1x16x6xf32> to vector<16x6xf32>
      %cst_314 = arith.constant dense<0.000000e+00> : vector<16x6xf32>
      %232 = tpu.matmul %121, %231, %cst_314 {dimension_numbers = #tpu.dot_dimension_numbers<[1], [0], [0], [1], [0, 0, 1, 1], [], []>} : vector<16x16xf32>, vector<16x6xf32>, vector<16x6xf32> -> vector<16x6xf32>
      %233 = arith.addf %227, %232 : vector<16x6xf32>
      %c1_i32_315 = arith.constant 1 : i32
      %234 = arith.addi %arg21, %c1_i32_315 : i32
      %c0_316 = arith.constant 0 : index
      %235 = arith.index_cast %234 : i32 to index
      %c0_317 = arith.constant 0 : index
      %c0_318 = arith.constant 0 : index
      %236 = vector.load %arg18[%c0_316, %235, %c0_317, %c0_318] : memref<2x8x16x8xf32, #tpu.memory_space<vmem>>, vector<1x1x16x6xf32>
      %237 = vector.shape_cast %236 : vector<1x1x16x6xf32> to vector<16x6xf32>
      %cst_319 = arith.constant dense<0.000000e+00> : vector<16x6xf32>
      %238 = tpu.matmul %123, %237, %cst_319 {dimension_numbers = #tpu.dot_dimension_numbers<[1], [0], [0], [1], [0, 0, 1, 1], [], []>} : vector<16x16xf32>, vector<16x6xf32>, vector<16x6xf32> -> vector<16x6xf32>
      %239 = arith.addf %233, %238 : vector<16x6xf32>
      %c1_i32_320 = arith.constant 1 : i32
      %240 = arith.addi %arg21, %c1_i32_320 : i32
      %c0_321 = arith.constant 0 : index
      %241 = arith.index_cast %240 : i32 to index
      %c0_322 = arith.constant 0 : index
      %c1_323 = arith.constant 1 : index
      %242 = vector.load %arg18[%c0_321, %241, %c0_322, %c1_323] : memref<2x8x16x8xf32, #tpu.memory_space<vmem>>, vector<1x1x16x6xf32>
      %243 = vector.shape_cast %242 : vector<1x1x16x6xf32> to vector<16x6xf32>
      %cst_324 = arith.constant dense<0.000000e+00> : vector<16x6xf32>
      %244 = tpu.matmul %125, %243, %cst_324 {dimension_numbers = #tpu.dot_dimension_numbers<[1], [0], [0], [1], [0, 0, 1, 1], [], []>} : vector<16x16xf32>, vector<16x6xf32>, vector<16x6xf32> -> vector<16x6xf32>
      %245 = arith.addf %239, %244 : vector<16x6xf32>
      %c1_i32_325 = arith.constant 1 : i32
      %246 = arith.addi %arg21, %c1_i32_325 : i32
      %c0_326 = arith.constant 0 : index
      %247 = arith.index_cast %246 : i32 to index
      %c0_327 = arith.constant 0 : index
      %c2_328 = arith.constant 2 : index
      %248 = vector.load %arg18[%c0_326, %247, %c0_327, %c2_328] : memref<2x8x16x8xf32, #tpu.memory_space<vmem>>, vector<1x1x16x6xf32>
      %249 = vector.shape_cast %248 : vector<1x1x16x6xf32> to vector<16x6xf32>
      %cst_329 = arith.constant dense<0.000000e+00> : vector<16x6xf32>
      %250 = tpu.matmul %127, %249, %cst_329 {dimension_numbers = #tpu.dot_dimension_numbers<[1], [0], [0], [1], [0, 0, 1, 1], [], []>} : vector<16x16xf32>, vector<16x6xf32>, vector<16x6xf32> -> vector<16x6xf32>
      %251 = arith.addf %245, %250 : vector<16x6xf32>
      %c2_i32 = arith.constant 2 : i32
      %252 = arith.addi %arg21, %c2_i32 : i32
      %c0_330 = arith.constant 0 : index
      %253 = arith.index_cast %252 : i32 to index
      %c0_331 = arith.constant 0 : index
      %c0_332 = arith.constant 0 : index
      %254 = vector.load %arg18[%c0_330, %253, %c0_331, %c0_332] : memref<2x8x16x8xf32, #tpu.memory_space<vmem>>, vector<1x1x16x6xf32>
      %255 = vector.shape_cast %254 : vector<1x1x16x6xf32> to vector<16x6xf32>
      %cst_333 = arith.constant dense<0.000000e+00> : vector<16x6xf32>
      %256 = tpu.matmul %129, %255, %cst_333 {dimension_numbers = #tpu.dot_dimension_numbers<[1], [0], [0], [1], [0, 0, 1, 1], [], []>} : vector<16x16xf32>, vector<16x6xf32>, vector<16x6xf32> -> vector<16x6xf32>
      %257 = arith.addf %251, %256 : vector<16x6xf32>
      %c2_i32_334 = arith.constant 2 : i32
      %258 = arith.addi %arg21, %c2_i32_334 : i32
      %c0_335 = arith.constant 0 : index
      %259 = arith.index_cast %258 : i32 to index
      %c0_336 = arith.constant 0 : index
      %c1_337 = arith.constant 1 : index
      %260 = vector.load %arg18[%c0_335, %259, %c0_336, %c1_337] : memref<2x8x16x8xf32, #tpu.memory_space<vmem>>, vector<1x1x16x6xf32>
      %261 = vector.shape_cast %260 : vector<1x1x16x6xf32> to vector<16x6xf32>
      %cst_338 = arith.constant dense<0.000000e+00> : vector<16x6xf32>
      %262 = tpu.matmul %131, %261, %cst_338 {dimension_numbers = #tpu.dot_dimension_numbers<[1], [0], [0], [1], [0, 0, 1, 1], [], []>} : vector<16x16xf32>, vector<16x6xf32>, vector<16x6xf32> -> vector<16x6xf32>
      %263 = arith.addf %257, %262 : vector<16x6xf32>
      %c2_i32_339 = arith.constant 2 : i32
      %264 = arith.addi %arg21, %c2_i32_339 : i32
      %c0_340 = arith.constant 0 : index
      %265 = arith.index_cast %264 : i32 to index
      %c0_341 = arith.constant 0 : index
      %c2_342 = arith.constant 2 : index
      %266 = vector.load %arg18[%c0_340, %265, %c0_341, %c2_342] : memref<2x8x16x8xf32, #tpu.memory_space<vmem>>, vector<1x1x16x6xf32>
      %267 = vector.shape_cast %266 : vector<1x1x16x6xf32> to vector<16x6xf32>
      %cst_343 = arith.constant dense<0.000000e+00> : vector<16x6xf32>
      %268 = tpu.matmul %133, %267, %cst_343 {dimension_numbers = #tpu.dot_dimension_numbers<[1], [0], [0], [1], [0, 0, 1, 1], [], []>} : vector<16x16xf32>, vector<16x6xf32>, vector<16x6xf32> -> vector<16x6xf32>
      %269 = arith.addf %263, %268 : vector<16x6xf32>
      %cst_344 = arith.constant 0.000000e+00 : f32
      %270 = vector.broadcast %cst_344 : f32 to vector<16x6xf32>
      %271 = arith.maximumf %269, %270 : vector<16x6xf32>
      %272 = vector.broadcast %113 : vector<16x1xf32> to vector<16x6xf32>
      %273 = arith.mulf %271, %272 : vector<16x6xf32>
      %274 = vector.broadcast %115 : vector<16x1xf32> to vector<16x6xf32>
      %275 = arith.addf %273, %274 : vector<16x6xf32>
      %c0_i32_345 = arith.constant 0 : i32
      %276 = arith.addi %arg21, %c0_i32_345 : i32
      %c0_346 = arith.constant 0 : index
      %277 = arith.index_cast %276 : i32 to index
      %c0_347 = arith.constant 0 : index
      %c0_348 = arith.constant 0 : index
      %278 = vector.load %arg19[%c0_346, %277, %c0_347, %c0_348] : memref<2x6x16x6xf32, #tpu.memory_space<vmem>>, vector<1x1x16x6xf32>
      %279 = vector.shape_cast %278 : vector<1x1x16x6xf32> to vector<16x6xf32>
      %280 = vector.shape_cast %275 : vector<16x6xf32> to vector<1x1x16x6xf32>
      tpu.vector_store %arg19[%c0_346, %277, %c0_347, %c0_348], %280 {strides = array<i32>} : memref<2x6x16x6xf32, #tpu.memory_space<vmem>>, vector<1x1x16x6xf32>,
    }
    %c6_i32_219 = arith.constant 6 : i32
    %c0_i32_220 = arith.constant 0 : i32
    %c6_i32_221 = arith.constant 6 : i32
    %135 = arith.addi %c0_i32_220, %c6_i32_221 : i32
    %c1_i32_222 = arith.constant 1 : i32
    scf.for %arg21 = %c0_i32_220 to %135 step %c1_i32_222  : i32 {
      %c1_301 = arith.constant 1 : index
      %218 = arith.index_cast %arg21 : i32 to index
      %c0_302 = arith.constant 0 : index
      %c0_303 = arith.constant 0 : index
      %219 = vector.load %arg18[%c1_301, %218, %c0_302, %c0_303] : memref<2x8x16x8xf32, #tpu.memory_space<vmem>>, vector<1x1x16x6xf32>
      %220 = vector.shape_cast %219 : vector<1x1x16x6xf32> to vector<16x6xf32>
      %cst_304 = arith.constant dense<0.000000e+00> : vector<16x6xf32>
      %221 = tpu.matmul %117, %220, %cst_304 {dimension_numbers = #tpu.dot_dimension_numbers<[1], [0], [0], [1], [0, 0, 1, 1], [], []>} : vector<16x16xf32>, vector<16x6xf32>, vector<16x6xf32> -> vector<16x6xf32>
      %c0_i32_305 = arith.constant 0 : i32
      %222 = arith.addi %arg21, %c0_i32_305 : i32
      %c1_306 = arith.constant 1 : index
      %223 = arith.index_cast %222 : i32 to index
      %c0_307 = arith.constant 0 : index
      %c1_308 = arith.constant 1 : index
      %224 = vector.load %arg18[%c1_306, %223, %c0_307, %c1_308] : memref<2x8x16x8xf32, #tpu.memory_space<vmem>>, vector<1x1x16x6xf32>
      %225 = vector.shape_cast %224 : vector<1x1x16x6xf32> to vector<16x6xf32>
      %cst_309 = arith.constant dense<0.000000e+00> : vector<16x6xf32>
      %226 = tpu.matmul %119, %225, %cst_309 {dimension_numbers = #tpu.dot_dimension_numbers<[1], [0], [0], [1], [0, 0, 1, 1], [], []>} : vector<16x16xf32>, vector<16x6xf32>, vector<16x6xf32> -> vector<16x6xf32>
      %227 = arith.addf %221, %226 : vector<16x6xf32>
      %c0_i32_310 = arith.constant 0 : i32
      %228 = arith.addi %arg21, %c0_i32_310 : i32
      %c1_311 = arith.constant 1 : index
      %229 = arith.index_cast %228 : i32 to index
      %c0_312 = arith.constant 0 : index
      %c2_313 = arith.constant 2 : index
      %230 = vector.load %arg18[%c1_311, %229, %c0_312, %c2_313] : memref<2x8x16x8xf32, #tpu.memory_space<vmem>>, vector<1x1x16x6xf32>
      %231 = vector.shape_cast %230 : vector<1x1x16x6xf32> to vector<16x6xf32>
      %cst_314 = arith.constant dense<0.000000e+00> : vector<16x6xf32>
      %232 = tpu.matmul %121, %231, %cst_314 {dimension_numbers = #tpu.dot_dimension_numbers<[1], [0], [0], [1], [0, 0, 1, 1], [], []>} : vector<16x16xf32>, vector<16x6xf32>, vector<16x6xf32> -> vector<16x6xf32>
      %233 = arith.addf %227, %232 : vector<16x6xf32>
      %c1_i32_315 = arith.constant 1 : i32
      %234 = arith.addi %arg21, %c1_i32_315 : i32
      %c1_316 = arith.constant 1 : index
      %235 = arith.index_cast %234 : i32 to index
      %c0_317 = arith.constant 0 : index
      %c0_318 = arith.constant 0 : index
      %236 = vector.load %arg18[%c1_316, %235, %c0_317, %c0_318] : memref<2x8x16x8xf32, #tpu.memory_space<vmem>>, vector<1x1x16x6xf32>
      %237 = vector.shape_cast %236 : vector<1x1x16x6xf32> to vector<16x6xf32>
      %cst_319 = arith.constant dense<0.000000e+00> : vector<16x6xf32>
      %238 = tpu.matmul %123, %237, %cst_319 {dimension_numbers = #tpu.dot_dimension_numbers<[1], [0], [0], [1], [0, 0, 1, 1], [], []>} : vector<16x16xf32>, vector<16x6xf32>, vector<16x6xf32> -> vector<16x6xf32>
      %239 = arith.addf %233, %238 : vector<16x6xf32>
      %c1_i32_320 = arith.constant 1 : i32
      %240 = arith.addi %arg21, %c1_i32_320 : i32
      %c1_321 = arith.constant 1 : index
      %241 = arith.index_cast %240 : i32 to index
      %c0_322 = arith.constant 0 : index
      %c1_323 = arith.constant 1 : index
      %242 = vector.load %arg18[%c1_321, %241, %c0_322, %c1_323] : memref<2x8x16x8xf32, #tpu.memory_space<vmem>>, vector<1x1x16x6xf32>
      %243 = vector.shape_cast %242 : vector<1x1x16x6xf32> to vector<16x6xf32>
      %cst_324 = arith.constant dense<0.000000e+00> : vector<16x6xf32>
      %244 = tpu.matmul %125, %243, %cst_324 {dimension_numbers = #tpu.dot_dimension_numbers<[1], [0], [0], [1], [0, 0, 1, 1], [], []>} : vector<16x16xf32>, vector<16x6xf32>, vector<16x6xf32> -> vector<16x6xf32>
      %245 = arith.addf %239, %244 : vector<16x6xf32>
      %c1_i32_325 = arith.constant 1 : i32
      %246 = arith.addi %arg21, %c1_i32_325 : i32
      %c1_326 = arith.constant 1 : index
      %247 = arith.index_cast %246 : i32 to index
      %c0_327 = arith.constant 0 : index
      %c2_328 = arith.constant 2 : index
      %248 = vector.load %arg18[%c1_326, %247, %c0_327, %c2_328] : memref<2x8x16x8xf32, #tpu.memory_space<vmem>>, vector<1x1x16x6xf32>
      %249 = vector.shape_cast %248 : vector<1x1x16x6xf32> to vector<16x6xf32>
      %cst_329 = arith.constant dense<0.000000e+00> : vector<16x6xf32>
      %250 = tpu.matmul %127, %249, %cst_329 {dimension_numbers = #tpu.dot_dimension_numbers<[1], [0], [0], [1], [0, 0, 1, 1], [], []>} : vector<16x16xf32>, vector<16x6xf32>, vector<16x6xf32> -> vector<16x6xf32>
      %251 = arith.addf %245, %250 : vector<16x6xf32>
      %c2_i32 = arith.constant 2 : i32
      %252 = arith.addi %arg21, %c2_i32 : i32
      %c1_330 = arith.constant 1 : index
      %253 = arith.index_cast %252 : i32 to index
      %c0_331 = arith.constant 0 : index
      %c0_332 = arith.constant 0 : index
      %254 = vector.load %arg18[%c1_330, %253, %c0_331, %c0_332] : memref<2x8x16x8xf32, #tpu.memory_space<vmem>>, vector<1x1x16x6xf32>
      %255 = vector.shape_cast %254 : vector<1x1x16x6xf32> to vector<16x6xf32>
      %cst_333 = arith.constant dense<0.000000e+00> : vector<16x6xf32>
      %256 = tpu.matmul %129, %255, %cst_333 {dimension_numbers = #tpu.dot_dimension_numbers<[1], [0], [0], [1], [0, 0, 1, 1], [], []>} : vector<16x16xf32>, vector<16x6xf32>, vector<16x6xf32> -> vector<16x6xf32>
      %257 = arith.addf %251, %256 : vector<16x6xf32>
      %c2_i32_334 = arith.constant 2 : i32
      %258 = arith.addi %arg21, %c2_i32_334 : i32
      %c1_335 = arith.constant 1 : index
      %259 = arith.index_cast %258 : i32 to index
      %c0_336 = arith.constant 0 : index
      %c1_337 = arith.constant 1 : index
      %260 = vector.load %arg18[%c1_335, %259, %c0_336, %c1_337] : memref<2x8x16x8xf32, #tpu.memory_space<vmem>>, vector<1x1x16x6xf32>
      %261 = vector.shape_cast %260 : vector<1x1x16x6xf32> to vector<16x6xf32>
      %cst_338 = arith.constant dense<0.000000e+00> : vector<16x6xf32>
      %262 = tpu.matmul %131, %261, %cst_338 {dimension_numbers = #tpu.dot_dimension_numbers<[1], [0], [0], [1], [0, 0, 1, 1], [], []>} : vector<16x16xf32>, vector<16x6xf32>, vector<16x6xf32> -> vector<16x6xf32>
      %263 = arith.addf %257, %262 : vector<16x6xf32>
      %c2_i32_339 = arith.constant 2 : i32
      %264 = arith.addi %arg21, %c2_i32_339 : i32
      %c1_340 = arith.constant 1 : index
      %265 = arith.index_cast %264 : i32 to index
      %c0_341 = arith.constant 0 : index
      %c2_342 = arith.constant 2 : index
      %266 = vector.load %arg18[%c1_340, %265, %c0_341, %c2_342] : memref<2x8x16x8xf32, #tpu.memory_space<vmem>>, vector<1x1x16x6xf32>
      %267 = vector.shape_cast %266 : vector<1x1x16x6xf32> to vector<16x6xf32>
      %cst_343 = arith.constant dense<0.000000e+00> : vector<16x6xf32>
      %268 = tpu.matmul %133, %267, %cst_343 {dimension_numbers = #tpu.dot_dimension_numbers<[1], [0], [0], [1], [0, 0, 1, 1], [], []>} : vector<16x16xf32>, vector<16x6xf32>, vector<16x6xf32> -> vector<16x6xf32>
      %269 = arith.addf %263, %268 : vector<16x6xf32>
      %cst_344 = arith.constant 0.000000e+00 : f32
      %270 = vector.broadcast %cst_344 : f32 to vector<16x6xf32>
      %271 = arith.maximumf %269, %270 : vector<16x6xf32>
      %272 = vector.broadcast %113 : vector<16x1xf32> to vector<16x6xf32>
      %273 = arith.mulf %271, %272 : vector<16x6xf32>
      %274 = vector.broadcast %115 : vector<16x1xf32> to vector<16x6xf32>
      %275 = arith.addf %273, %274 : vector<16x6xf32>
      %c0_i32_345 = arith.constant 0 : i32
      %276 = arith.addi %arg21, %c0_i32_345 : i32
      %c1_346 = arith.constant 1 : index
      %277 = arith.index_cast %276 : i32 to index
      %c0_347 = arith.constant 0 : index
      %c0_348 = arith.constant 0 : index
      %278 = vector.load %arg19[%c1_346, %277, %c0_347, %c0_348] : memref<2x6x16x6xf32, #tpu.memory_space<vmem>>, vector<1x1x16x6xf32>
      %279 = vector.shape_cast %278 : vector<1x1x16x6xf32> to vector<16x6xf32>
      %280 = vector.shape_cast %275 : vector<16x6xf32> to vector<1x1x16x6xf32>
      tpu.vector_store %arg19[%c1_346, %277, %c0_347, %c0_348], %280 {strides = array<i32>} : memref<2x6x16x6xf32, #tpu.memory_space<vmem>>, vector<1x1x16x6xf32>,
    }
    %c6_i32_223 = arith.constant 6 : i32
    %cst_224 = arith.constant 0.000000e+00 : f32
    %136 = vector.broadcast %cst_224 : f32 to vector<16x1xf32>
    %c0_225 = arith.constant 0 : index
    %c0_226 = arith.constant 0 : index
    %c0_227 = arith.constant 0 : index
    %c0_228 = arith.constant 0 : index
    %137 = vector.load %arg19[%c0_225, %c0_226, %c0_227, %c0_228] : memref<2x6x16x6xf32, #tpu.memory_space<vmem>>, vector<1x1x16x6xf32>
    %138 = vector.shape_cast %137 : vector<1x1x16x6xf32> to vector<16x6xf32>
    %cst_229 = arith.constant dense<0.000000e+00> : vector<16xf32>
    %139 = vector.multi_reduction <add>, %138, %cst_229 [1] : vector<16x6xf32> to vector<16xf32>
    %140 = vector.shape_cast %139 : vector<16xf32> to vector<16x1xf32>
    %141 = arith.addf %136, %140 : vector<16x1xf32>
    %c0_230 = arith.constant 0 : index
    %c1_231 = arith.constant 1 : index
    %c0_232 = arith.constant 0 : index
    %c0_233 = arith.constant 0 : index
    %142 = vector.load %arg19[%c0_230, %c1_231, %c0_232, %c0_233] : memref<2x6x16x6xf32, #tpu.memory_space<vmem>>, vector<1x1x16x6xf32>
    %143 = vector.shape_cast %142 : vector<1x1x16x6xf32> to vector<16x6xf32>
    %cst_234 = arith.constant dense<0.000000e+00> : vector<16xf32>
    %144 = vector.multi_reduction <add>, %143, %cst_234 [1] : vector<16x6xf32> to vector<16xf32>
    %145 = vector.shape_cast %144 : vector<16xf32> to vector<16x1xf32>
    %146 = arith.addf %141, %145 : vector<16x1xf32>
    %c0_235 = arith.constant 0 : index
    %c2_236 = arith.constant 2 : index
    %c0_237 = arith.constant 0 : index
    %c0_238 = arith.constant 0 : index
    %147 = vector.load %arg19[%c0_235, %c2_236, %c0_237, %c0_238] : memref<2x6x16x6xf32, #tpu.memory_space<vmem>>, vector<1x1x16x6xf32>
    %148 = vector.shape_cast %147 : vector<1x1x16x6xf32> to vector<16x6xf32>
    %cst_239 = arith.constant dense<0.000000e+00> : vector<16xf32>
    %149 = vector.multi_reduction <add>, %148, %cst_239 [1] : vector<16x6xf32> to vector<16xf32>
    %150 = vector.shape_cast %149 : vector<16xf32> to vector<16x1xf32>
    %151 = arith.addf %146, %150 : vector<16x1xf32>
    %c0_240 = arith.constant 0 : index
    %c3_241 = arith.constant 3 : index
    %c0_242 = arith.constant 0 : index
    %c0_243 = arith.constant 0 : index
    %152 = vector.load %arg19[%c0_240, %c3_241, %c0_242, %c0_243] : memref<2x6x16x6xf32, #tpu.memory_space<vmem>>, vector<1x1x16x6xf32>
    %153 = vector.shape_cast %152 : vector<1x1x16x6xf32> to vector<16x6xf32>
    %cst_244 = arith.constant dense<0.000000e+00> : vector<16xf32>
    %154 = vector.multi_reduction <add>, %153, %cst_244 [1] : vector<16x6xf32> to vector<16xf32>
    %155 = vector.shape_cast %154 : vector<16xf32> to vector<16x1xf32>
    %156 = arith.addf %151, %155 : vector<16x1xf32>
    %c0_245 = arith.constant 0 : index
    %c4_246 = arith.constant 4 : index
    %c0_247 = arith.constant 0 : index
    %c0_248 = arith.constant 0 : index
    %157 = vector.load %arg19[%c0_245, %c4_246, %c0_247, %c0_248] : memref<2x6x16x6xf32, #tpu.memory_space<vmem>>, vector<1x1x16x6xf32>
    %158 = vector.shape_cast %157 : vector<1x1x16x6xf32> to vector<16x6xf32>
    %cst_249 = arith.constant dense<0.000000e+00> : vector<16xf32>
    %159 = vector.multi_reduction <add>, %158, %cst_249 [1] : vector<16x6xf32> to vector<16xf32>
    %160 = vector.shape_cast %159 : vector<16xf32> to vector<16x1xf32>
    %161 = arith.addf %156, %160 : vector<16x1xf32>
    %c0_250 = arith.constant 0 : index
    %c5_251 = arith.constant 5 : index
    %c0_252 = arith.constant 0 : index
    %c0_253 = arith.constant 0 : index
    %162 = vector.load %arg19[%c0_250, %c5_251, %c0_252, %c0_253] : memref<2x6x16x6xf32, #tpu.memory_space<vmem>>, vector<1x1x16x6xf32>
    %163 = vector.shape_cast %162 : vector<1x1x16x6xf32> to vector<16x6xf32>
    %cst_254 = arith.constant dense<0.000000e+00> : vector<16xf32>
    %164 = vector.multi_reduction <add>, %163, %cst_254 [1] : vector<16x6xf32> to vector<16xf32>
    %165 = vector.shape_cast %164 : vector<16xf32> to vector<16x1xf32>
    %166 = arith.addf %161, %165 : vector<16x1xf32>
    %cst_255 = arith.constant 0.027777778 : f32
    %167 = vector.broadcast %cst_255 : f32 to vector<16x1xf32>
    %168 = arith.mulf %166, %167 : vector<16x1xf32>
    %c0_256 = arith.constant 0 : index
    %c0_257 = arith.constant 0 : index
    %169 = vector.load %arg20[%c0_256, %c0_257] : memref<16x2xf32, #tpu.memory_space<vmem>>, vector<16x1xf32>
    tpu.vector_store %arg20[%c0_256, %c0_257], %168 {strides = array<i32>} : memref<16x2xf32, #tpu.memory_space<vmem>>, vector<16x1xf32>,
    %cst_258 = arith.constant 0.000000e+00 : f32
    %170 = vector.broadcast %cst_258 : f32 to vector<16x1xf32>
    %c1_259 = arith.constant 1 : index
    %c0_260 = arith.constant 0 : index
    %c0_261 = arith.constant 0 : index
    %c0_262 = arith.constant 0 : index
    %171 = vector.load %arg19[%c1_259, %c0_260, %c0_261, %c0_262] : memref<2x6x16x6xf32, #tpu.memory_space<vmem>>, vector<1x1x16x6xf32>
    %172 = vector.shape_cast %171 : vector<1x1x16x6xf32> to vector<16x6xf32>
    %cst_263 = arith.constant dense<0.000000e+00> : vector<16xf32>
    %173 = vector.multi_reduction <add>, %172, %cst_263 [1] : vector<16x6xf32> to vector<16xf32>
    %174 = vector.shape_cast %173 : vector<16xf32> to vector<16x1xf32>
    %175 = arith.addf %170, %174 : vector<16x1xf32>
    %c1_264 = arith.constant 1 : index
    %c1_265 = arith.constant 1 : index
    %c0_266 = arith.constant 0 : index
    %c0_267 = arith.constant 0 : index
    %176 = vector.load %arg19[%c1_264, %c1_265, %c0_266, %c0_267] : memref<2x6x16x6xf32, #tpu.memory_space<vmem>>, vector<1x1x16x6xf32>
    %177 = vector.shape_cast %176 : vector<1x1x16x6xf32> to vector<16x6xf32>
    %cst_268 = arith.constant dense<0.000000e+00> : vector<16xf32>
    %178 = vector.multi_reduction <add>, %177, %cst_268 [1] : vector<16x6xf32> to vector<16xf32>
    %179 = vector.shape_cast %178 : vector<16xf32> to vector<16x1xf32>
    %180 = arith.addf %175, %179 : vector<16x1xf32>
    %c1_269 = arith.constant 1 : index
    %c2_270 = arith.constant 2 : index
    %c0_271 = arith.constant 0 : index
    %c0_272 = arith.constant 0 : index
    %181 = vector.load %arg19[%c1_269, %c2_270, %c0_271, %c0_272] : memref<2x6x16x6xf32, #tpu.memory_space<vmem>>, vector<1x1x16x6xf32>
    %182 = vector.shape_cast %181 : vector<1x1x16x6xf32> to vector<16x6xf32>
    %cst_273 = arith.constant dense<0.000000e+00> : vector<16xf32>
    %183 = vector.multi_reduction <add>, %182, %cst_273 [1] : vector<16x6xf32> to vector<16xf32>
    %184 = vector.shape_cast %183 : vector<16xf32> to vector<16x1xf32>
    %185 = arith.addf %180, %184 : vector<16x1xf32>
    %c1_274 = arith.constant 1 : index
    %c3_275 = arith.constant 3 : index
    %c0_276 = arith.constant 0 : index
    %c0_277 = arith.constant 0 : index
    %186 = vector.load %arg19[%c1_274, %c3_275, %c0_276, %c0_277] : memref<2x6x16x6xf32, #tpu.memory_space<vmem>>, vector<1x1x16x6xf32>
    %187 = vector.shape_cast %186 : vector<1x1x16x6xf32> to vector<16x6xf32>
    %cst_278 = arith.constant dense<0.000000e+00> : vector<16xf32>
    %188 = vector.multi_reduction <add>, %187, %cst_278 [1] : vector<16x6xf32> to vector<16xf32>
    %189 = vector.shape_cast %188 : vector<16xf32> to vector<16x1xf32>
    %190 = arith.addf %185, %189 : vector<16x1xf32>
    %c1_279 = arith.constant 1 : index
    %c4_280 = arith.constant 4 : index
    %c0_281 = arith.constant 0 : index
    %c0_282 = arith.constant 0 : index
    %191 = vector.load %arg19[%c1_279, %c4_280, %c0_281, %c0_282] : memref<2x6x16x6xf32, #tpu.memory_space<vmem>>, vector<1x1x16x6xf32>
    %192 = vector.shape_cast %191 : vector<1x1x16x6xf32> to vector<16x6xf32>
    %cst_283 = arith.constant dense<0.000000e+00> : vector<16xf32>
    %193 = vector.multi_reduction <add>, %192, %cst_283 [1] : vector<16x6xf32> to vector<16xf32>
    %194 = vector.shape_cast %193 : vector<16xf32> to vector<16x1xf32>
    %195 = arith.addf %190, %194 : vector<16x1xf32>
    %c1_284 = arith.constant 1 : index
    %c5_285 = arith.constant 5 : index
    %c0_286 = arith.constant 0 : index
    %c0_287 = arith.constant 0 : index
    %196 = vector.load %arg19[%c1_284, %c5_285, %c0_286, %c0_287] : memref<2x6x16x6xf32, #tpu.memory_space<vmem>>, vector<1x1x16x6xf32>
    %197 = vector.shape_cast %196 : vector<1x1x16x6xf32> to vector<16x6xf32>
    %cst_288 = arith.constant dense<0.000000e+00> : vector<16xf32>
    %198 = vector.multi_reduction <add>, %197, %cst_288 [1] : vector<16x6xf32> to vector<16xf32>
    %199 = vector.shape_cast %198 : vector<16xf32> to vector<16x1xf32>
    %200 = arith.addf %195, %199 : vector<16x1xf32>
    %cst_289 = arith.constant 0.027777778 : f32
    %201 = vector.broadcast %cst_289 : f32 to vector<16x1xf32>
    %202 = arith.mulf %200, %201 : vector<16x1xf32>
    %c0_290 = arith.constant 0 : index
    %c1_291 = arith.constant 1 : index
    %203 = vector.load %arg20[%c0_290, %c1_291] : memref<16x2xf32, #tpu.memory_space<vmem>>, vector<16x1xf32>
    tpu.vector_store %arg20[%c0_290, %c1_291], %202 {strides = array<i32>} : memref<16x2xf32, #tpu.memory_space<vmem>>, vector<16x1xf32>,
    %c0_292 = arith.constant 0 : index
    %c0_293 = arith.constant 0 : index
    %204 = vector.load %arg8[%c0_292, %c0_293] : memref<10x16xf32, #tpu.memory_space<vmem>>, vector<10x16xf32>
    %c0_294 = arith.constant 0 : index
    %c0_295 = arith.constant 0 : index
    %205 = vector.load %arg20[%c0_294, %c0_295] : memref<16x2xf32, #tpu.memory_space<vmem>>, vector<16x2xf32>
    %cst_296 = arith.constant dense<0.000000e+00> : vector<10x2xf32>
    %206 = tpu.matmul %204, %205, %cst_296 {dimension_numbers = #tpu.dot_dimension_numbers<[1], [0], [0], [1], [0, 0, 1, 1], [], []>} : vector<10x16xf32>, vector<16x2xf32>, vector<10x2xf32> -> vector<10x2xf32>
    %cst_297 = arith.constant dense<0xFF800000> : vector<2xf32>
    %207 = vector.multi_reduction <maximumf>, %206, %cst_297 [0] : vector<10x2xf32> to vector<2xf32>
    %208 = vector.shape_cast %207 : vector<2xf32> to vector<1x2xf32>
    %209 = vector.broadcast %208 : vector<1x2xf32> to vector<10x2xf32>
    %210 = arith.subf %206, %209 : vector<10x2xf32>
    %211 = math.exp %210 : vector<10x2xf32>
    %cst_298 = arith.constant dense<0.000000e+00> : vector<2xf32>
    %212 = vector.multi_reduction <add>, %211, %cst_298 [0] : vector<10x2xf32> to vector<2xf32>
    %213 = vector.shape_cast %212 : vector<2xf32> to vector<1x2xf32>
    %214 = math.log %213 : vector<1x2xf32>
    %215 = vector.broadcast %214 : vector<1x2xf32> to vector<10x2xf32>
    %216 = arith.subf %210, %215 : vector<10x2xf32>
    %c0_299 = arith.constant 0 : index
    %c0_300 = arith.constant 0 : index
    %217 = vector.load %arg12[%c0_299, %c0_300] : memref<10x2xf32, #tpu.memory_space<vmem>>, vector<10x2xf32>
    tpu.vector_store %arg12[%c0_299, %c0_300], %216 {strides = array<i32>} : memref<10x2xf32, #tpu.memory_space<vmem>>, vector<10x2xf32>,
    return
  }
}

</mosaic_0001>

<llo_original>
// kernel: gbn_net_forward.1
$region0: #{gbn_net_forward.1}
  #allocation0 [shape = 'u32[]', space=smem, size = 0x4, offset = 0x4, fixed_abs, tag = 'smem constant byte address 0x4 - core index']
  #allocation1 [shape = 'u32[72,128]{1,0:T(1,128)}', space=vmem, size = 0x9000, scoped, tag = 'internal scratch']
  #allocation2 [shape = 'f32[2,26,8,26]{3,2,1,0:T(8,128)}', space=vmem, size = 0x34000, scoped, tag = 'scratch operand']
  #allocation3 [shape = 'f32[2,24,16,24]{3,2,1,0:T(8,128)}', space=vmem, size = 0x60000, scoped, tag = 'scratch operand']
  #allocation4 [shape = 'f32[2,12,8,12]{3,2,1,0:T(8,128)}', space=vmem, size = 0x18000, scoped, tag = 'scratch operand']
  #allocation5 [shape = 'f32[2,10,16,10]{3,2,1,0:T(8,128)}', space=vmem, size = 0x28000, scoped, tag = 'scratch operand']
  #allocation6 [shape = 'f32[2,8,16,8]{3,2,1,0:T(8,128)}', space=vmem, size = 0x20000, scoped, tag = 'scratch operand']
  #allocation7 [shape = 'f32[2,8,16,8]{3,2,1,0:T(8,128)}', space=vmem, size = 0x20000, scoped, tag = 'scratch operand']
  #allocation8 [shape = 'f32[2,6,16,6]{3,2,1,0:T(8,128)}', space=vmem, size = 0x18000, scoped, tag = 'scratch operand']
  #allocation9 [shape = 'f32[16,2]{1,0:T(8,128)}', space=vmem, size = 0x2000, scoped, tag = 'scratch operand']
  %s0 = inlined_call_operand.vmem [shape: f32[2,26,9,26], index: 0, kind: input, shape index: {}]
  %s1 = inlined_call_operand.vmem [shape: f32[8,9], index: 1, kind: input, shape index: {}]
  %s2 = inlined_call_operand.vmem [shape: f32[9,16,8], index: 2, kind: input, shape index: {}]
  %s3 = inlined_call_operand.vmem [shape: f32[8,16], index: 3, kind: input, shape index: {}]
  %s4 = inlined_call_operand.vmem [shape: f32[9,16,8], index: 4, kind: input, shape index: {}]
  %s5 = inlined_call_operand.vmem [shape: f32[9,16,16], index: 5, kind: input, shape index: {}]
  %s6 = inlined_call_operand.vmem [shape: f32[9,16,16], index: 6, kind: input, shape index: {}]
  %s7 = inlined_call_operand.vmem [shape: f32[9,16,16], index: 7, kind: input, shape index: {}]
  %s8 = inlined_call_operand.vmem [shape: f32[10,16], index: 8, kind: input, shape index: {}]
  %s9 = inlined_call_operand.vmem [shape: f32[2,24,12], index: 9, kind: input, shape index: {}]
  %s10 = inlined_call_operand.vmem [shape: f32[6,16,1], index: 10, kind: input, shape index: {}]
  %s11 = inlined_call_operand.vmem [shape: f32[6,16,1], index: 11, kind: input, shape index: {}]
  %s12 = inlined_call_operand.vmem [shape: f32[10,2], index: 12, kind: output, shape index: {}]
  %s13 = sld [smem:[#allocation0]]
  $region156: #{gbn_net_forward.1} parent=0
    _
  %s15 = ssub.s32 1, %s13
  %s16 = scalar_select 0, %s15, %s13
  // Predicated region
  $region2: #{gbn_net_forward.1} parent=0 // pred_check
    _
  $region3: #{gbn_net_forward.1} parent=0 // pred_check_branch
    %18 = sbr.rel (0) target = $region5
  $region4: #{gbn_net_forward.1} parent=0 // pred_region
    _
  $region5: #{gbn_net_forward.1} parent=0 // pred_fallthru
    _
  // Predicated region
  $region6: #{gbn_net_forward.1} parent=0 // pred_check
    _
  $region7: #{gbn_net_forward.1} parent=0 // pred_check_branch
    %20 = sbr.rel (0) target = $region9
  $region8: #{gbn_net_forward.1} parent=0 // pred_region
    _
  $region9: #{gbn_net_forward.1} parent=0 // pred_fallthru
    _
  // Predicated region
  $region10: #{gbn_net_forward.1} parent=0 // pred_check
    _
  $region11: #{gbn_net_forward.1} parent=0 // pred_check_branch
    %22 = sbr.rel (0) target = $region13
  $region12: #{gbn_net_forward.1} parent=0 // pred_region
    _
  $region13: #{gbn_net_forward.1} parent=0 // pred_fallthru
    _
  // Predicated region
  $region14: #{gbn_net_forward.1} parent=0 // pred_check
    _
  $region15: #{gbn_net_forward.1} parent=0 // pred_check_branch
    %24 = sbr.rel (0) target = $region17
  $region16: #{gbn_net_forward.1} parent=0 // pred_region
    _
  $region17: #{gbn_net_forward.1} parent=0 // pred_fallthru
    _
  // Predicated region
  $region18: #{gbn_net_forward.1} parent=0 // pred_check
    _
  $region19: #{gbn_net_forward.1} parent=0 // pred_check_branch
    %26 = sbr.rel (0) target = $region21
  $region20: #{gbn_net_forward.1} parent=0 // pred_region
    _
  $region21: #{gbn_net_forward.1} parent=0 // pred_fallthru
    _
  // Predicated region
  $region22: #{gbn_net_forward.1} parent=0 // pred_check
    _
  $region23: #{gbn_net_forward.1} parent=0 // pred_check_branch
    %28 = sbr.rel (0) target = $region25
  $region24: #{gbn_net_forward.1} parent=0 // pred_region
    _
  $region25: #{gbn_net_forward.1} parent=0 // pred_fallthru
    _
  // Predicated region
  $region26: #{gbn_net_forward.1} parent=0 // pred_check
    _
  $region27: #{gbn_net_forward.1} parent=0 // pred_check_branch
    %30 = sbr.rel (0) target = $region29
  $region28: #{gbn_net_forward.1} parent=0 // pred_region
    _
  $region29: #{gbn_net_forward.1} parent=0 // pred_fallthru
    _
  // Predicated region
  $region30: #{gbn_net_forward.1} parent=0 // pred_check
    _
  $region31: #{gbn_net_forward.1} parent=0 // pred_check_branch
    %32 = sbr.rel (0) target = $region33
  $region32: #{gbn_net_forward.1} parent=0 // pred_region
    _
  $region33: #{gbn_net_forward.1} parent=0 // pred_fallthru
    _
  // Predicated region
  $region34: #{gbn_net_forward.1} parent=0 // pred_check
    _
  $region35: #{gbn_net_forward.1} parent=0 // pred_check_branch
    %34 = sbr.rel (0) target = $region37
  $region36: #{gbn_net_forward.1} parent=0 // pred_region
    _
  $region37: #{gbn_net_forward.1} parent=0 // pred_fallthru
    _
  // Predicated region
  $region38: #{gbn_net_forward.1} parent=0 // pred_check
    _
  $region39: #{gbn_net_forward.1} parent=0 // pred_check_branch
    %36 = sbr.rel (0) target = $region41
  $region40: #{gbn_net_forward.1} parent=0 // pred_region
    _
  $region41: #{gbn_net_forward.1} parent=0 // pred_fallthru
    _
  // Predicated region
  $region42: #{gbn_net_forward.1} parent=0 // pred_check
    _
  $region43: #{gbn_net_forward.1} parent=0 // pred_check_branch
    %38 = sbr.rel (0) target = $region45
  $region44: #{gbn_net_forward.1} parent=0 // pred_region
    _
  $region45: #{gbn_net_forward.1} parent=0 // pred_fallthru
    _
  // Predicated region
  $region46: #{gbn_net_forward.1} parent=0 // pred_check
    _
  $region47: #{gbn_net_forward.1} parent=0 // pred_check_branch
    %40 = sbr.rel (0) target = $region49
  $region48: #{gbn_net_forward.1} parent=0 // pred_region
    _
  $region49: #{gbn_net_forward.1} parent=0 // pred_fallthru
    _
  %v41 = vld [vmem:[%s1] sm:$0xff]
  %v42 = vld [vmem:[%s10] sm:$0xff]
  %v43 = vld [vmem:[%s11] sm:$0xff]
  loop: start=0, step=1, limit=26
  $region50: #{gbn_net_forward.1} parent=0 // loop_pre_header
    _
  $region51: #{gbn_net_forward.1} parent=0 // loop_header
    %s45 = sphi 0, %s49
    %p46 = scmp.ge.s32.totalorder %s45, 26
  $region52: #{gbn_net_forward.1} parent=0 // loop_header_branch
    %48 = sbr.rel (%p46) target = $region56
  $region53: #{gbn_net_forward.1} parent=0 // loop_body
    %s50 = smul.u32 %s45, 16
    %s51 = scalar_lea.vmem %s0, %s50
    %v52 = vld [vmem:[%s51] sm:$0xff]
    %v53 = vld [vmem:[%s51 + $0x8] sm:$0x1]
    %vm54 = vcmask 72704
    %v56 = vsel %vm54, %v41, 0
    %vm58 = vcmask 1040384
    %v60 = vsel %vm58, %v53, 0
    %62 = vmatpush.msra.mxu0 0.0
    %63 = vmatpush.msra.mxu0 0.0
    %64 = vmatpush.msra.mxu0 0.0
    %65 = vmatpush.msra.mxu0 0.0
    %66 = vmatpush.msra.mxu0 0.0
    %67 = vmatpush.msra.mxu0 0.0
    %68 = vmatpush.msra.mxu0 0.0
    %69 = vmatpush.msra.mxu0 0.0
    %70 = vmatpush.msra.mxu0 0.0
    %71 = vmatpush.msra.mxu0 0.0
    %72 = vmatpush.msra.mxu0 0.0
    %73 = vmatpush.msra.mxu0 0.0
    %74 = vmatpush.msra.mxu0 0.0
    %75 = vmatpush.msra.mxu0 0.0
    %76 = vmatpush.msra.mxu0 %v60
    %77 = vmatpush.msra.mxu0 %v52
    %78 = vmatmul.f32.gmra.mxu0 %v56
    %v79 = vpop.f32.mrf.mxu0
    %v80 = vadd.f32 0.0, %v79
    %81 = vdwg.mxu0
    %v82 = vmax.f32 %v80, 0.0
    %84 = vset.pattern.permute.xlu0 0
    %85 = vperm.xlu0 %84, %v42
    %v86 = vpop.permute.xlu0 %85
    %v88 = vmul.f32 %v82, %v86
    %90 = vset.pattern.permute.xlu0 0
    %91 = vperm.xlu0 %90, %v43
    %v92 = vpop.permute.xlu0 %91
    %v94 = vadd.f32 %v88, %v92
    %s95 = smul.u32 %s45, 8
    %s96 = scalar_lea.vmem [#allocation2], %s95
    %vm97 = vcmask 211968
    %98 = vst.msk [vmem:[%s96] sm:$0xff] %vm97, %v94
  $region54: #{gbn_net_forward.1} parent=0 // loop_footer
    %s49 = sadd.s32 1, %s45
  $region55: #{gbn_net_forward.1} parent=0 // loop_footer_branch
    %44 = sbr.rel target = $region51
  $region56: #{gbn_net_forward.1} parent=0 // loop_exit
    _
  loop: start=0, step=1, limit=26
  $region57: #{gbn_net_forward.1} parent=0 // loop_pre_header
    _
  $region58: #{gbn_net_forward.1} parent=0 // loop_header
    %s100 = sphi 0, %s104
    %p101 = scmp.ge.s32.totalorder %s100, 26
  $region59: #{gbn_net_forward.1} parent=0 // loop_header_branch
    %103 = sbr.rel (%p101) target = $region63
  $region60: #{gbn_net_forward.1} parent=0 // loop_body
    %s105 = smul.u32 %s100, 16
    %s106 = sadd.s32 %s105, 416
    %s107 = scalar_lea.vmem %s0, %s106
    %v108 = vld [vmem:[%s107] sm:$0xff]
    %v109 = vld [vmem:[%s107 + $0x8] sm:$0x1]
    %vm110 = vcmask 72704
    %v112 = vsel %vm110, %v41, 0
    %vm114 = vcmask 1040384
    %v116 = vsel %vm114, %v109, 0
    %118 = vmatpush.msra.mxu0 0.0
    %119 = vmatpush.msra.mxu0 0.0
    %120 = vmatpush.msra.mxu0 0.0
    %121 = vmatpush.msra.mxu0 0.0
    %122 = vmatpush.msra.mxu0 0.0
    %123 = vmatpush.msra.mxu0 0.0
    %124 = vmatpush.msra.mxu0 0.0
    %125 = vmatpush.msra.mxu0 0.0
    %126 = vmatpush.msra.mxu0 0.0
    %127 = vmatpush.msra.mxu0 0.0
    %128 = vmatpush.msra.mxu0 0.0
    %129 = vmatpush.msra.mxu0 0.0
    %130 = vmatpush.msra.mxu0 0.0
    %131 = vmatpush.msra.mxu0 0.0
    %132 = vmatpush.msra.mxu0 %v116
    %133 = vmatpush.msra.mxu0 %v108
    %134 = vmatmul.f32.gmra.mxu0 %v112
    %v135 = vpop.f32.mrf.mxu0
    %v136 = vadd.f32 0.0, %v135
    %137 = vdwg.mxu0
    %v138 = vmax.f32 %v136, 0.0
    %140 = vset.pattern.permute.xlu0 0
    %141 = vperm.xlu0 %140, %v42
    %v142 = vpop.permute.xlu0 %141
    %v144 = vmul.f32 %v138, %v142
    %146 = vset.pattern.permute.xlu0 0
    %147 = vperm.xlu0 %146, %v43
    %v148 = vpop.permute.xlu0 %147
    %v150 = vadd.f32 %v144, %v148
    %s151 = smul.u32 %s100, 8
    %s152 = sadd.s32 %s151, 208
    %s153 = scalar_lea.vmem [#allocation2], %s152
    %vm154 = vcmask 211968
    %155 = vst.msk [vmem:[%s153] sm:$0xff] %vm154, %v150
  $region61: #{gbn_net_forward.1} parent=0 // loop_footer
    %s104 = sadd.s32 1, %s100
  $region62: #{gbn_net_forward.1} parent=0 // loop_footer_branch
    %99 = sbr.rel target = $region58
  $region63: #{gbn_net_forward.1} parent=0 // loop_exit
    _
  %s156 = scalar_lea.vmem %s10, 16
  %v157 = vld [vmem:[%s156] sm:$0xff]
  %v158 = vld [vmem:[%s156 + $0x8] sm:$0xff]
  %s159 = scalar_lea.vmem %s11, 16
  %v160 = vld [vmem:[%s159] sm:$0xff]
  %v161 = vld [vmem:[%s159 + $0x8] sm:$0xff]
  %v162 = vld [vmem:[%s2] sm:$0xff]
  %v163 = vld [vmem:[%s2 + $0x8] sm:$0xff]
  %s164 = scalar_lea.vmem %s2, 16
  %v165 = vld [vmem:[%s164] sm:$0xff]
  %v166 = vld [vmem:[%s164 + $0x8] sm:$0xff]
  %s167 = scalar_lea.vmem %s2, 32
  %v168 = vld [vmem:[%s167] sm:$0xff]
  %v169 = vld [vmem:[%s167 + $0x8] sm:$0xff]
  %s170 = scalar_lea.vmem %s2, 48
  %v171 = vld [vmem:[%s170] sm:$0xff]
  %v172 = vld [vmem:[%s170 + $0x8] sm:$0xff]
  %s173 = scalar_lea.vmem %s2, 64
  %v174 = vld [vmem:[%s173] sm:$0xff]
  %v175 = vld [vmem:[%s173 + $0x8] sm:$0xff]
  %s176 = scalar_lea.vmem %s2, 80
  %v177 = vld [vmem:[%s176] sm:$0xff]
  %v178 = vld [vmem:[%s176 + $0x8] sm:$0xff]
  %s179 = scalar_lea.vmem %s2, 96
  %v180 = vld [vmem:[%s179] sm:$0xff]
  %v181 = vld [vmem:[%s179 + $0x8] sm:$0xff]
  %s182 = scalar_lea.vmem %s2, 112
  %v183 = vld [vmem:[%s182] sm:$0xff]
  %v184 = vld [vmem:[%s182 + $0x8] sm:$0xff]
  %s185 = scalar_lea.vmem %s2, 128
  %v186 = vld [vmem:[%s185] sm:$0xff]
  %v187 = vld [vmem:[%s185 + $0x8] sm:$0xff]
  loop: start=0, step=1, limit=24
  $region64: #{gbn_net_forward.1} parent=0 // loop_pre_header
    _
  $region65: #{gbn_net_forward.1} parent=0 // loop_header
    %s189 = sphi 0, %s193
    %p190 = scmp.ge.s32.totalorder %s189, 24
  $region66: #{gbn_net_forward.1} parent=0 // loop_header_branch
    %192 = sbr.rel (%p190) target = $region70
  $region67: #{gbn_net_forward.1} parent=0 // loop_body
    %s194 = smul.u32 %s189, 8
    %s195 = scalar_lea.vmem [#allocation2], %s194
    %v196 = vld [vmem:[%s195] sm:$0xff]
    %198 = vrot.lane.b32.xlu0 %v196, 127
    %v199 = vpop.permute.xlu0 %198
    %vm201 = vcmask 64512
    %v203 = vsel %vm201, %v165, 0
    %v206 = vsel %vm201, %v166, 0
    %208 = vmatpush.msra.mxu0 0.0
    %209 = vmatpush.msra.mxu0 0.0
    %210 = vmatpush.msra.mxu0 0.0
    %211 = vmatpush.msra.mxu0 0.0
    %212 = vmatpush.msra.mxu0 0.0
    %213 = vmatpush.msra.mxu0 0.0
    %214 = vmatpush.msra.mxu0 0.0
    %215 = vmatpush.msra.mxu0 0.0
    %216 = vmatpush.msra.mxu0 0.0
    %217 = vmatpush.msra.mxu0 0.0
    %218 = vmatpush.msra.mxu0 0.0
    %219 = vmatpush.msra.mxu0 0.0
    %220 = vmatpush.msra.mxu0 0.0
    %221 = vmatpush.msra.mxu0 0.0
    %222 = vmatpush.msra.mxu0 0.0
    %223 = vmatpush.msra.mxu0 %v199
    %224 = vmatmul.f32.gmra.mxu0 %v203
    %v225 = vpop.f32.mrf.mxu0
    %v226 = vadd.f32 0.0, %v225
    %227 = vmatmul.f32.gmra.mxu0 %v206
    %v228 = vpop.f32.mrf.mxu0
    %v229 = vadd.f32 0.0, %v228
    %230 = vdwg.mxu0
    %v232 = vsel %vm201, %v162, 0
    %v235 = vsel %vm201, %v163, 0
    %237 = vmatpush.msra.mxu0 0.0
    %238 = vmatpush.msra.mxu0 0.0
    %239 = vmatpush.msra.mxu0 0.0
    %240 = vmatpush.msra.mxu0 0.0
    %241 = vmatpush.msra.mxu0 0.0
    %242 = vmatpush.msra.mxu0 0.0
    %243 = vmatpush.msra.mxu0 0.0
    %244 = vmatpush.msra.mxu0 0.0
    %245 = vmatpush.msra.mxu0 0.0
    %246 = vmatpush.msra.mxu0 0.0
    %247 = vmatpush.msra.mxu0 0.0
    %248 = vmatpush.msra.mxu0 0.0
    %249 = vmatpush.msra.mxu0 0.0
    %250 = vmatpush.msra.mxu0 0.0
    %251 = vmatpush.msra.mxu0 0.0
    %252 = vmatpush.msra.mxu0 %v196
    %253 = vmatmul.f32.gmra.mxu0 %v232
    %v254 = vpop.f32.mrf.mxu0
    %v255 = vadd.f32 %v226, %v254
    %256 = vmatmul.f32.gmra.mxu0 %v235
    %v257 = vpop.f32.mrf.mxu0
    %v258 = vadd.f32 %v229, %v257
    %259 = vdwg.mxu0
    %260 = vrot.lane.b32.xlu0 %v196, 126
    %v261 = vpop.permute.xlu0 %260
    %v264 = vsel %vm201, %v168, 0
    %v267 = vsel %vm201, %v169, 0
    %269 = vmatpush.msra.mxu0 0.0
    %270 = vmatpush.msra.mxu0 0.0
    %271 = vmatpush.msra.mxu0 0.0
    %272 = vmatpush.msra.mxu0 0.0
    %273 = vmatpush.msra.mxu0 0.0
    %274 = vmatpush.msra.mxu0 0.0
    %275 = vmatpush.msra.mxu0 0.0
    %276 = vmatpush.msra.mxu0 0.0
    %277 = vmatpush.msra.mxu0 0.0
    %278 = vmatpush.msra.mxu0 0.0
    %279 = vmatpush.msra.mxu0 0.0
    %280 = vmatpush.msra.mxu0 0.0
    %281 = vmatpush.msra.mxu0 0.0
    %282 = vmatpush.msra.mxu0 0.0
    %283 = vmatpush.msra.mxu0 0.0
    %284 = vmatpush.msra.mxu0 %v261
    %285 = vmatmul.f32.gmra.mxu0 %v264
    %v286 = vpop.f32.mrf.mxu0
    %v287 = vadd.f32 0.0, %v286
    %288 = vmatmul.f32.gmra.mxu0 %v267
    %v289 = vpop.f32.mrf.mxu0
    %v290 = vadd.f32 0.0, %v289
    %291 = vdwg.mxu0
    %v292 = vadd.f32 %v255, %v287
    %v293 = vadd.f32 %v258, %v290
    %s294 = sadd.s32 %s189, 1
    %s295 = smul.u32 %s294, 8
    %s296 = scalar_lea.vmem [#allocation2], %s295
    %v297 = vld [vmem:[%s296] sm:$0xff]
    %v299 = vsel %vm201, %v171, 0
    %v302 = vsel %vm201, %v172, 0
    %304 = vmatpush.msra.mxu0 0.0
    %305 = vmatpush.msra.mxu0 0.0
    %306 = vmatpush.msra.mxu0 0.0
    %307 = vmatpush.msra.mxu0 0.0
    %308 = vmatpush.msra.mxu0 0.0
    %309 = vmatpush.msra.mxu0 0.0
    %310 = vmatpush.msra.mxu0 0.0
    %311 = vmatpush.msra.mxu0 0.0
    %312 = vmatpush.msra.mxu0 0.0
    %313 = vmatpush.msra.mxu0 0.0
    %314 = vmatpush.msra.mxu0 0.0
    %315 = vmatpush.msra.mxu0 0.0
    %316 = vmatpush.msra.mxu0 0.0
    %317 = vmatpush.msra.mxu0 0.0
    %318 = vmatpush.msra.mxu0 0.0
    %319 = vmatpush.msra.mxu0 %v297
    %320 = vmatmul.f32.gmra.mxu0 %v299
    %v321 = vpop.f32.mrf.mxu0
    %v322 = vadd.f32 0.0, %v321
    %323 = vmatmul.f32.gmra.mxu0 %v302
    %v324 = vpop.f32.mrf.mxu0
    %v325 = vadd.f32 0.0, %v324
    %326 = vdwg.mxu0
    %v327 = vadd.f32 %v292, %v322
    %v328 = vadd.f32 %v293, %v325
    %330 = vrot.lane.b32.xlu0 %v297, 127
    %v331 = vpop.permute.xlu0 %330
    %v334 = vsel %vm201, %v174, 0
    %v337 = vsel %vm201, %v175, 0
    %339 = vmatpush.msra.mxu0 0.0
    %340 = vmatpush.msra.mxu0 0.0
    %341 = vmatpush.msra.mxu0 0.0
    %342 = vmatpush.msra.mxu0 0.0
    %343 = vmatpush.msra.mxu0 0.0
    %344 = vmatpush.msra.mxu0 0.0
    %345 = vmatpush.msra.mxu0 0.0
    %346 = vmatpush.msra.mxu0 0.0
    %347 = vmatpush.msra.mxu0 0.0
    %348 = vmatpush.msra.mxu0 0.0
    %349 = vmatpush.msra.mxu0 0.0
    %350 = vmatpush.msra.mxu0 0.0
    %351 = vmatpush.msra.mxu0 0.0
    %352 = vmatpush.msra.mxu0 0.0
    %353 = vmatpush.msra.mxu0 0.0
    %354 = vmatpush.msra.mxu0 %v331
    %355 = vmatmul.f32.gmra.mxu0 %v334
    %v356 = vpop.f32.mrf.mxu0
    %v357 = vadd.f32 0.0, %v356
    %358 = vmatmul.f32.gmra.mxu0 %v337
    %v359 = vpop.f32.mrf.mxu0
    %v360 = vadd.f32 0.0, %v359
    %361 = vdwg.mxu0
    %v362 = vadd.f32 %v327, %v357
    %v363 = vadd.f32 %v328, %v360
    %364 = vrot.lane.b32.xlu0 %v297, 126
    %v365 = vpop.permute.xlu0 %364
    %v368 = vsel %vm201, %v177, 0
    %v371 = vsel %vm201, %v178, 0
    %373 = vmatpush.msra.mxu0 0.0
    %374 = vmatpush.msra.mxu0 0.0
    %375 = vmatpush.msra.mxu0 0.0
    %376 = vmatpush.msra.mxu0 0.0
    %377 = vmatpush.msra.mxu0 0.0
    %378 = vmatpush.msra.mxu0 0.0
    %379 = vmatpush.msra.mxu0 0.0
    %380 = vmatpush.msra.mxu0 0.0
    %381 = vmatpush.msra.mxu0 0.0
    %382 = vmatpush.msra.mxu0 0.0
    %383 = vmatpush.msra.mxu0 0.0
    %384 = vmatpush.msra.mxu0 0.0
    %385 = vmatpush.msra.mxu0 0.0
    %386 = vmatpush.msra.mxu0 0.0
    %387 = vmatpush.msra.mxu0 0.0
    %388 = vmatpush.msra.mxu0 %v365
    %389 = vmatmul.f32.gmra.mxu0 %v368
    %v390 = vpop.f32.mrf.mxu0
    %v391 = vadd.f32 0.0, %v390
    %392 = vmatmul.f32.gmra.mxu0 %v371
    %v393 = vpop.f32.mrf.mxu0
    %v394 = vadd.f32 0.0, %v393
    %395 = vdwg.mxu0
    %v396 = vadd.f32 %v362, %v391
    %v397 = vadd.f32 %v363, %v394
    %s398 = sadd.s32 %s189, 2
    %s399 = smul.u32 %s398, 8
    %s400 = scalar_lea.vmem [#allocation2], %s399
    %v401 = vld [vmem:[%s400] sm:$0xff]
    %v403 = vsel %vm201, %v180, 0
    %v406 = vsel %vm201, %v181, 0
    %408 = vmatpush.msra.mxu0 0.0
    %409 = vmatpush.msra.mxu0 0.0
    %410 = vmatpush.msra.mxu0 0.0
    %411 = vmatpush.msra.mxu0 0.0
    %412 = vmatpush.msra.mxu0 0.0
    %413 = vmatpush.msra.mxu0 0.0
    %414 = vmatpush.msra.mxu0 0.0
    %415 = vmatpush.msra.mxu0 0.0
    %416 = vmatpush.msra.mxu0 0.0
    %417 = vmatpush.msra.mxu0 0.0
    %418 = vmatpush.msra.mxu0 0.0
    %419 = vmatpush.msra.mxu0 0.0
    %420 = vmatpush.msra.mxu0 0.0
    %421 = vmatpush.msra.mxu0 0.0
    %422 = vmatpush.msra.mxu0 0.0
    %423 = vmatpush.msra.mxu0 %v401
    %424 = vmatmul.f32.gmra.mxu0 %v403
    %v425 = vpop.f32.mrf.mxu0
    %v426 = vadd.f32 0.0, %v425
    %427 = vmatmul.f32.gmra.mxu0 %v406
    %v428 = vpop.f32.mrf.mxu0
    %v429 = vadd.f32 0.0, %v428
    %430 = vdwg.mxu0
    %v431 = vadd.f32 %v396, %v426
    %v432 = vadd.f32 %v397, %v429
    %434 = vrot.lane.b32.xlu0 %v401, 127
    %v435 = vpop.permute.xlu0 %434
    %v438 = vsel %vm201, %v183, 0
    %v441 = vsel %vm201, %v184, 0
    %443 = vmatpush.msra.mxu0 0.0
    %444 = vmatpush.msra.mxu0 0.0
    %445 = vmatpush.msra.mxu0 0.0
    %446 = vmatpush.msra.mxu0 0.0
    %447 = vmatpush.msra.mxu0 0.0
    %448 = vmatpush.msra.mxu0 0.0
    %449 = vmatpush.msra.mxu0 0.0
    %450 = vmatpush.msra.mxu0 0.0
    %451 = vmatpush.msra.mxu0 0.0
    %452 = vmatpush.msra.mxu0 0.0
    %453 = vmatpush.msra.mxu0 0.0
    %454 = vmatpush.msra.mxu0 0.0
    %455 = vmatpush.msra.mxu0 0.0
    %456 = vmatpush.msra.mxu0 0.0
    %457 = vmatpush.msra.mxu0 0.0
    %458 = vmatpush.msra.mxu0 %v435
    %459 = vmatmul.f32.gmra.mxu0 %v438
    %v460 = vpop.f32.mrf.mxu0
    %v461 = vadd.f32 0.0, %v460
    %462 = vmatmul.f32.gmra.mxu0 %v441
    %v463 = vpop.f32.mrf.mxu0
    %v464 = vadd.f32 0.0, %v463
    %465 = vdwg.mxu0
    %v466 = vadd.f32 %v431, %v461
    %v467 = vadd.f32 %v432, %v464
    %468 = vrot.lane.b32.xlu0 %v401, 126
    %v469 = vpop.permute.xlu0 %468
    %v472 = vsel %vm201, %v186, 0
    %v475 = vsel %vm201, %v187, 0
    %477 = vmatpush.msra.mxu0 0.0
    %478 = vmatpush.msra.mxu0 0.0
    %479 = vmatpush.msra.mxu0 0.0
    %480 = vmatpush.msra.mxu0 0.0
    %481 = vmatpush.msra.mxu0 0.0
    %482 = vmatpush.msra.mxu0 0.0
    %483 = vmatpush.msra.mxu0 0.0
    %484 = vmatpush.msra.mxu0 0.0
    %485 = vmatpush.msra.mxu0 0.0
    %486 = vmatpush.msra.mxu0 0.0
    %487 = vmatpush.msra.mxu0 0.0
    %488 = vmatpush.msra.mxu0 0.0
    %489 = vmatpush.msra.mxu0 0.0
    %490 = vmatpush.msra.mxu0 0.0
    %491 = vmatpush.msra.mxu0 0.0
    %492 = vmatpush.msra.mxu0 %v469
    %493 = vmatmul.f32.gmra.mxu0 %v472
    %v494 = vpop.f32.mrf.mxu0
    %v495 = vadd.f32 0.0, %v494
    %496 = vmatmul.f32.gmra.mxu0 %v475
    %v497 = vpop.f32.mrf.mxu0
    %v498 = vadd.f32 0.0, %v497
    %499 = vdwg.mxu0
    %v500 = vadd.f32 %v466, %v495
    %v501 = vadd.f32 %v467, %v498
    %v502 = vmax.f32 %v500, 0.0
    %v503 = vmax.f32 %v501, 0.0
    %505 = vset.pattern.permute.xlu0 0
    %506 = vperm.xlu0 %505, %v157
    %v507 = vpop.permute.xlu0 %506
    %510 = vset.pattern.permute.xlu0 0
    %511 = vperm.xlu0 %510, %v158
    %v512 = vpop.permute.xlu0 %511
    %v514 = vmul.f32 %v502, %v507
    %v515 = vmul.f32 %v503, %v512
    %517 = vset.pattern.permute.xlu0 0
    %518 = vperm.xlu0 %517, %v160
    %v519 = vpop.permute.xlu0 %518
    %522 = vset.pattern.permute.xlu0 0
    %523 = vperm.xlu0 %522, %v161
    %v524 = vpop.permute.xlu0 %523
    %v526 = vadd.f32 %v514, %v519
    %v527 = vadd.f32 %v515, %v524
    %s528 = smul.u32 %s189, 16
    %s529 = scalar_lea.vmem [#allocation3], %s528
    %vm530 = vcmask 195584
    %531 = vst.msk [vmem:[%s529] sm:$0xff] %vm530, %v526
    %532 = vst.msk [vmem:[%s529 + $0x8] sm:$0xff] %vm530, %v527
  $region68: #{gbn_net_forward.1} parent=0 // loop_footer
    %s193 = sadd.s32 1, %s189
  $region69: #{gbn_net_forward.1} parent=0 // loop_footer_branch
    %188 = sbr.rel target = $region65
  $region70: #{gbn_net_forward.1} parent=0 // loop_exit
    _
  loop: start=0, step=1, limit=24
  $region71: #{gbn_net_forward.1} parent=0 // loop_pre_header
    _
  $region72: #{gbn_net_forward.1} parent=0 // loop_header
    %s534 = sphi 0, %s538
    %p535 = scmp.ge.s32.totalorder %s534, 24
  $region73: #{gbn_net_forward.1} parent=0 // loop_header_branch
    %537 = sbr.rel (%p535) target = $region77
  $region74: #{gbn_net_forward.1} parent=0 // loop_body
    %s539 = smul.u32 %s534, 8
    %s540 = sadd.s32 %s539, 208
    %s541 = scalar_lea.vmem [#allocation2], %s540
    %v542 = vld [vmem:[%s541] sm:$0xff]
    %544 = vrot.lane.b32.xlu0 %v542, 127
    %v545 = vpop.permute.xlu0 %544
    %vm547 = vcmask 64512
    %v549 = vsel %vm547, %v165, 0
    %v552 = vsel %vm547, %v166, 0
    %554 = vmatpush.msra.mxu0 0.0
    %555 = vmatpush.msra.mxu0 0.0
    %556 = vmatpush.msra.mxu0 0.0
    %557 = vmatpush.msra.mxu0 0.0
    %558 = vmatpush.msra.mxu0 0.0
    %559 = vmatpush.msra.mxu0 0.0
    %560 = vmatpush.msra.mxu0 0.0
    %561 = vmatpush.msra.mxu0 0.0
    %562 = vmatpush.msra.mxu0 0.0
    %563 = vmatpush.msra.mxu0 0.0
    %564 = vmatpush.msra.mxu0 0.0
    %565 = vmatpush.msra.mxu0 0.0
    %566 = vmatpush.msra.mxu0 0.0
    %567 = vmatpush.msra.mxu0 0.0
    %568 = vmatpush.msra.mxu0 0.0
    %569 = vmatpush.msra.mxu0 %v545
    %570 = vmatmul.f32.gmra.mxu0 %v549
    %v571 = vpop.f32.mrf.mxu0
    %v572 = vadd.f32 0.0, %v571
    %573 = vmatmul.f32.gmra.mxu0 %v552
    %v574 = vpop.f32.mrf.mxu0
    %v575 = vadd.f32 0.0, %v574
    %576 = vdwg.mxu0
    %v578 = vsel %vm547, %v162, 0
    %v581 = vsel %vm547, %v163, 0
    %583 = vmatpush.msra.mxu0 0.0
    %584 = vmatpush.msra.mxu0 0.0
    %585 = vmatpush.msra.mxu0 0.0
    %586 = vmatpush.msra.mxu0 0.0
    %587 = vmatpush.msra.mxu0 0.0
    %588 = vmatpush.msra.mxu0 0.0
    %589 = vmatpush.msra.mxu0 0.0
    %590 = vmatpush.msra.mxu0 0.0
    %591 = vmatpush.msra.mxu0 0.0
    %592 = vmatpush.msra.mxu0 0.0
    %593 = vmatpush.msra.mxu0 0.0
    %594 = vmatpush.msra.mxu0 0.0
    %595 = vmatpush.msra.mxu0 0.0
    %596 = vmatpush.msra.mxu0 0.0
    %597 = vmatpush.msra.mxu0 0.0
    %598 = vmatpush.msra.mxu0 %v542
    %599 = vmatmul.f32.gmra.mxu0 %v578
    %v600 = vpop.f32.mrf.mxu0
    %v601 = vadd.f32 %v572, %v600
    %602 = vmatmul.f32.gmra.mxu0 %v581
    %v603 = vpop.f32.mrf.mxu0
    %v604 = vadd.f32 %v575, %v603
    %605 = vdwg.mxu0
    %606 = vrot.lane.b32.xlu0 %v542, 126
    %v607 = vpop.permute.xlu0 %606
    %v610 = vsel %vm547, %v168, 0
    %v613 = vsel %vm547, %v169, 0
    %615 = vmatpush.msra.mxu0 0.0
    %616 = vmatpush.msra.mxu0 0.0
    %617 = vmatpush.msra.mxu0 0.0
    %618 = vmatpush.msra.mxu0 0.0
    %619 = vmatpush.msra.mxu0 0.0
    %620 = vmatpush.msra.mxu0 0.0
    %621 = vmatpush.msra.mxu0 0.0
    %622 = vmatpush.msra.mxu0 0.0
    %623 = vmatpush.msra.mxu0 0.0
    %624 = vmatpush.msra.mxu0 0.0
    %625 = vmatpush.msra.mxu0 0.0
    %626 = vmatpush.msra.mxu0 0.0
    %627 = vmatpush.msra.mxu0 0.0
    %628 = vmatpush.msra.mxu0 0.0
    %629 = vmatpush.msra.mxu0 0.0
    %630 = vmatpush.msra.mxu0 %v607
    %631 = vmatmul.f32.gmra.mxu0 %v610
    %v632 = vpop.f32.mrf.mxu0
    %v633 = vadd.f32 0.0, %v632
    %634 = vmatmul.f32.gmra.mxu0 %v613
    %v635 = vpop.f32.mrf.mxu0
    %v636 = vadd.f32 0.0, %v635
    %637 = vdwg.mxu0
    %v638 = vadd.f32 %v601, %v633
    %v639 = vadd.f32 %v604, %v636
    %s640 = sadd.s32 %s534, 1
    %s641 = smul.u32 %s640, 8
    %s642 = sadd.s32 %s641, 208
    %s643 = scalar_lea.vmem [#allocation2], %s642
    %v644 = vld [vmem:[%s643] sm:$0xff]
    %v646 = vsel %vm547, %v171, 0
    %v649 = vsel %vm547, %v172, 0
    %651 = vmatpush.msra.mxu0 0.0
    %652 = vmatpush.msra.mxu0 0.0
    %653 = vmatpush.msra.mxu0 0.0
    %654 = vmatpush.msra.mxu0 0.0
    %655 = vmatpush.msra.mxu0 0.0
    %656 = vmatpush.msra.mxu0 0.0
    %657 = vmatpush.msra.mxu0 0.0
    %658 = vmatpush.msra.mxu0 0.0
    %659 = vmatpush.msra.mxu0 0.0
    %660 = vmatpush.msra.mxu0 0.0
    %661 = vmatpush.msra.mxu0 0.0
    %662 = vmatpush.msra.mxu0 0.0
    %663 = vmatpush.msra.mxu0 0.0
    %664 = vmatpush.msra.mxu0 0.0
    %665 = vmatpush.msra.mxu0 0.0
    %666 = vmatpush.msra.mxu0 %v644
    %667 = vmatmul.f32.gmra.mxu0 %v646
    %v668 = vpop.f32.mrf.mxu0
    %v669 = vadd.f32 0.0, %v668
    %670 = vmatmul.f32.gmra.mxu0 %v649
    %v671 = vpop.f32.mrf.mxu0
    %v672 = vadd.f32 0.0, %v671
    %673 = vdwg.mxu0
    %v674 = vadd.f32 %v638, %v669
    %v675 = vadd.f32 %v639, %v672
    %677 = vrot.lane.b32.xlu0 %v644, 127
    %v678 = vpop.permute.xlu0 %677
    %v681 = vsel %vm547, %v174, 0
    %v684 = vsel %vm547, %v175, 0
    %686 = vmatpush.msra.mxu0 0.0
    %687 = vmatpush.msra.mxu0 0.0
    %688 = vmatpush.msra.mxu0 0.0
    %689 = vmatpush.msra.mxu0 0.0
    %690 = vmatpush.msra.mxu0 0.0
    %691 = vmatpush.msra.mxu0 0.0
    %692 = vmatpush.msra.mxu0 0.0
    %693 = vmatpush.msra.mxu0 0.0
    %694 = vmatpush.msra.mxu0 0.0
    %695 = vmatpush.msra.mxu0 0.0
    %696 = vmatpush.msra.mxu0 0.0
    %697 = vmatpush.msra.mxu0 0.0
    %698 = vmatpush.msra.mxu0 0.0
    %699 = vmatpush.msra.mxu0 0.0
    %700 = vmatpush.msra.mxu0 0.0
    %701 = vmatpush.msra.mxu0 %v678
    %702 = vmatmul.f32.gmra.mxu0 %v681
    %v703 = vpop.f32.mrf.mxu0
    %v704 = vadd.f32 0.0, %v703
    %705 = vmatmul.f32.gmra.mxu0 %v684
    %v706 = vpop.f32.mrf.mxu0
    %v707 = vadd.f32 0.0, %v706
    %708 = vdwg.mxu0
    %v709 = vadd.f32 %v674, %v704
    %v710 = vadd.f32 %v675, %v707
    %711 = vrot.lane.b32.xlu0 %v644, 126
    %v712 = vpop.permute.xlu0 %711
    %v715 = vsel %vm547, %v177, 0
    %v718 = vsel %vm547, %v178, 0
    %720 = vmatpush.msra.mxu0 0.0
    %721 = vmatpush.msra.mxu0 0.0
    %722 = vmatpush.msra.mxu0 0.0
    %723 = vmatpush.msra.mxu0 0.0
    %724 = vmatpush.msra.mxu0 0.0
    %725 = vmatpush.msra.mxu0 0.0
    %726 = vmatpush.msra.mxu0 0.0
    %727 = vmatpush.msra.mxu0 0.0
    %728 = vmatpush.msra.mxu0 0.0
    %729 = vmatpush.msra.mxu0 0.0
    %730 = vmatpush.msra.mxu0 0.0
    %731 = vmatpush.msra.mxu0 0.0
    %732 = vmatpush.msra.mxu0 0.0
    %733 = vmatpush.msra.mxu0 0.0
    %734 = vmatpush.msra.mxu0 0.0
    %735 = vmatpush.msra.mxu0 %v712
    %736 = vmatmul.f32.gmra.mxu0 %v715
    %v737 = vpop.f32.mrf.mxu0
    %v738 = vadd.f32 0.0, %v737
    %739 = vmatmul.f32.gmra.mxu0 %v718
    %v740 = vpop.f32.mrf.mxu0
    %v741 = vadd.f32 0.0, %v740
    %742 = vdwg.mxu0
    %v743 = vadd.f32 %v709, %v738
    %v744 = vadd.f32 %v710, %v741
    %s745 = sadd.s32 %s534, 2
    %s746 = smul.u32 %s745, 8
    %s747 = sadd.s32 %s746, 208
    %s748 = scalar_lea.vmem [#allocation2], %s747
    %v749 = vld [vmem:[%s748] sm:$0xff]
    %v751 = vsel %vm547, %v180, 0
    %v754 = vsel %vm547, %v181, 0
    %756 = vmatpush.msra.mxu0 0.0
    %757 = vmatpush.msra.mxu0 0.0
    %758 = vmatpush.msra.mxu0 0.0
    %759 = vmatpush.msra.mxu0 0.0
    %760 = vmatpush.msra.mxu0 0.0
    %761 = vmatpush.msra.mxu0 0.0
    %762 = vmatpush.msra.mxu0 0.0
    %763 = vmatpush.msra.mxu0 0.0
    %764 = vmatpush.msra.mxu0 0.0
    %765 = vmatpush.msra.mxu0 0.0
    %766 = vmatpush.msra.mxu0 0.0
    %767 = vmatpush.msra.mxu0 0.0
    %768 = vmatpush.msra.mxu0 0.0
    %769 = vmatpush.msra.mxu0 0.0
    %770 = vmatpush.msra.mxu0 0.0
    %771 = vmatpush.msra.mxu0 %v749
    %772 = vmatmul.f32.gmra.mxu0 %v751
    %v773 = vpop.f32.mrf.mxu0
    %v774 = vadd.f32 0.0, %v773
    %775 = vmatmul.f32.gmra.mxu0 %v754
    %v776 = vpop.f32.mrf.mxu0
    %v777 = vadd.f32 0.0, %v776
    %778 = vdwg.mxu0
    %v779 = vadd.f32 %v743, %v774
    %v780 = vadd.f32 %v744, %v777
    %782 = vrot.lane.b32.xlu0 %v749, 127
    %v783 = vpop.permute.xlu0 %782
    %v786 = vsel %vm547, %v183, 0
    %v789 = vsel %vm547, %v184, 0
    %791 = vmatpush.msra.mxu0 0.0
    %792 = vmatpush.msra.mxu0 0.0
    %793 = vmatpush.msra.mxu0 0.0
    %794 = vmatpush.msra.mxu0 0.0
    %795 = vmatpush.msra.mxu0 0.0
    %796 = vmatpush.msra.mxu0 0.0
    %797 = vmatpush.msra.mxu0 0.0
    %798 = vmatpush.msra.mxu0 0.0
    %799 = vmatpush.msra.mxu0 0.0
    %800 = vmatpush.msra.mxu0 0.0
    %801 = vmatpush.msra.mxu0 0.0
    %802 = vmatpush.msra.mxu0 0.0
    %803 = vmatpush.msra.mxu0 0.0
    %804 = vmatpush.msra.mxu0 0.0
    %805 = vmatpush.msra.mxu0 0.0
    %806 = vmatpush.msra.mxu0 %v783
    %807 = vmatmul.f32.gmra.mxu0 %v786
    %v808 = vpop.f32.mrf.mxu0
    %v809 = vadd.f32 0.0, %v808
    %810 = vmatmul.f32.gmra.mxu0 %v789
    %v811 = vpop.f32.mrf.mxu0
    %v812 = vadd.f32 0.0, %v811
    %813 = vdwg.mxu0
    %v814 = vadd.f32 %v779, %v809
    %v815 = vadd.f32 %v780, %v812
    %816 = vrot.lane.b32.xlu0 %v749, 126
    %v817 = vpop.permute.xlu0 %816
    %v820 = vsel %vm547, %v186, 0
    %v823 = vsel %vm547, %v187, 0
    %825 = vmatpush.msra.mxu0 0.0
    %826 = vmatpush.msra.mxu0 0.0
    %827 = vmatpush.msra.mxu0 0.0
    %828 = vmatpush.msra.mxu0 0.0
    %829 = vmatpush.msra.mxu0 0.0
    %830 = vmatpush.msra.mxu0 0.0
    %831 = vmatpush.msra.mxu0 0.0
    %832 = vmatpush.msra.mxu0 0.0
    %833 = vmatpush.msra.mxu0 0.0
    %834 = vmatpush.msra.mxu0 0.0
    %835 = vmatpush.msra.mxu0 0.0
    %836 = vmatpush.msra.mxu0 0.0
    %837 = vmatpush.msra.mxu0 0.0
    %838 = vmatpush.msra.mxu0 0.0
    %839 = vmatpush.msra.mxu0 0.0
    %840 = vmatpush.msra.mxu0 %v817
    %841 = vmatmul.f32.gmra.mxu0 %v820
    %v842 = vpop.f32.mrf.mxu0
    %v843 = vadd.f32 0.0, %v842
    %844 = vmatmul.f32.gmra.mxu0 %v823
    %v845 = vpop.f32.mrf.mxu0
    %v846 = vadd.f32 0.0, %v845
    %847 = vdwg.mxu0
    %v848 = vadd.f32 %v814, %v843
    %v849 = vadd.f32 %v815, %v846
    %v850 = vmax.f32 %v848, 0.0
    %v851 = vmax.f32 %v849, 0.0
    %853 = vset.pattern.permute.xlu0 0
    %854 = vperm.xlu0 %853, %v157
    %v855 = vpop.permute.xlu0 %854
    %858 = vset.pattern.permute.xlu0 0
    %859 = vperm.xlu0 %858, %v158
    %v860 = vpop.permute.xlu0 %859
    %v862 = vmul.f32 %v850, %v855
    %v863 = vmul.f32 %v851, %v860
    %865 = vset.pattern.permute.xlu0 0
    %866 = vperm.xlu0 %865, %v160
    %v867 = vpop.permute.xlu0 %866
    %870 = vset.pattern.permute.xlu0 0
    %871 = vperm.xlu0 %870, %v161
    %v872 = vpop.permute.xlu0 %871
    %v874 = vadd.f32 %v862, %v867
    %v875 = vadd.f32 %v863, %v872
    %s876 = smul.u32 %s534, 16
    %s877 = sadd.s32 %s876, 384
    %s878 = scalar_lea.vmem [#allocation3], %s877
    %vm879 = vcmask 195584
    %880 = vst.msk [vmem:[%s878] sm:$0xff] %vm879, %v874
    %881 = vst.msk [vmem:[%s878 + $0x8] sm:$0xff] %vm879, %v875
  $region75: #{gbn_net_forward.1} parent=0 // loop_footer
    %s538 = sadd.s32 1, %s534
  $region76: #{gbn_net_forward.1} parent=0 // loop_footer_branch
    %533 = sbr.rel target = $region72
  $region77: #{gbn_net_forward.1} parent=0 // loop_exit
    _
  %v882 = vld [vmem:[%s3] sm:$0xff]
  %v883 = vld [vmem:[%s9] sm:$0xff]
  %v884 = vld [vmem:[%s9 + $0x8] sm:$0xff]
  %v885 = vld [vmem:[%s9 + $0x10] sm:$0xff]
  %s886 = scalar_lea.vmem %s9, 24
  %v887 = vld [vmem:[%s886] sm:$0xff]
  %v888 = vld [vmem:[%s886 + $0x8] sm:$0xff]
  %v889 = vld [vmem:[%s886 + $0x10] sm:$0xff]
  loop: start=0, step=1, limit=12
  $region78: #{gbn_net_forward.1} parent=0 // loop_pre_header
    _
  $region79: #{gbn_net_forward.1} parent=0 // loop_header
    %s891 = sphi 0, %s895
    %p892 = scmp.ge.s32.totalorder %s891, 12
  $region80: #{gbn_net_forward.1} parent=0 // loop_header_branch
    %894 = sbr.rel (%p892) target = $region84
  $region81: #{gbn_net_forward.1} parent=0 // loop_body
    %s896 = smul.u32 %s891, 2
    %s897 = smul.u32 %s896, 16
    %s898 = scalar_lea.vmem [#allocation3], %s897
    %v899 = vld [vmem:[%s898] sm:$0xff]
    %v900 = vld [vmem:[%s898 + $0x8] sm:$0xff]
    %vm901 = vcmask 130048
    %v903 = vsel %vm901, %v882, 0
    %905 = vmatpush.msra.mxu0 0.0
    %906 = vmatpush.msra.mxu0 0.0
    %907 = vmatpush.msra.mxu0 0.0
    %908 = vmatpush.msra.mxu0 0.0
    %909 = vmatpush.msra.mxu0 0.0
    %910 = vmatpush.msra.mxu0 0.0
    %911 = vmatpush.msra.mxu0 0.0
    %912 = vmatpush.msra.mxu0 0.0
    %913 = vmatpush.msra.mxu0 0.0
    %914 = vmatpush.msra.mxu0 0.0
    %915 = vmatpush.msra.mxu0 0.0
    %916 = vmatpush.msra.mxu0 0.0
    %917 = vmatpush.msra.mxu0 0.0
    %918 = vmatpush.msra.mxu0 0.0
    %919 = vmatpush.msra.mxu0 %v900
    %920 = vmatpush.msra.mxu0 %v899
    %921 = vmatmul.f32.gmra.mxu0 %v903
    %v922 = vpop.f32.mrf.mxu0
    %v923 = vadd.f32 0.0, %v922
    %924 = vdwg.mxu0
    %s925 = sadd.s32 %s896, 1
    %s926 = smul.u32 %s925, 16
    %s927 = scalar_lea.vmem [#allocation3], %s926
    %v928 = vld [vmem:[%s927] sm:$0xff]
    %v929 = vld [vmem:[%s927 + $0x8] sm:$0xff]
    %930 = vmatpush.msra.mxu0 0.0
    %931 = vmatpush.msra.mxu0 0.0
    %932 = vmatpush.msra.mxu0 0.0
    %933 = vmatpush.msra.mxu0 0.0
    %934 = vmatpush.msra.mxu0 0.0
    %935 = vmatpush.msra.mxu0 0.0
    %936 = vmatpush.msra.mxu0 0.0
    %937 = vmatpush.msra.mxu0 0.0
    %938 = vmatpush.msra.mxu0 0.0
    %939 = vmatpush.msra.mxu0 0.0
    %940 = vmatpush.msra.mxu0 0.0
    %941 = vmatpush.msra.mxu0 0.0
    %942 = vmatpush.msra.mxu0 0.0
    %943 = vmatpush.msra.mxu0 0.0
    %944 = vmatpush.msra.mxu0 %v929
    %945 = vmatpush.msra.mxu0 %v928
    %946 = vmatmul.f32.gmra.mxu0 %v903
    %v947 = vpop.f32.mrf.mxu0
    %v948 = vadd.f32 0.0, %v947
    %949 = vdwg.mxu0
    %v950 = vmax.f32 %v923, %v948
    %vm951 = vcmask 195584
    %v953 = vsel %vm951, %v950, 0
    %955 = vmatpush.msra.mxu0 0.0
    %956 = vmatpush.msra.mxu0 0.0
    %957 = vmatpush.msra.mxu0 0.0
    %958 = vmatpush.msra.mxu0 0.0
    %959 = vmatpush.msra.mxu0 0.0
    %960 = vmatpush.msra.mxu0 0.0
    %961 = vmatpush.msra.mxu0 0.0
    %962 = vmatpush.msra.mxu0 0.0
    %963 = vmatpush.msra.mxu0 0.0
    %964 = vmatpush.msra.mxu0 0.0
    %965 = vmatpush.msra.mxu0 0.0
    %966 = vmatpush.msra.mxu0 0.0
    %967 = vmatpush.msra.mxu0 0.0
    %968 = vmatpush.msra.mxu0 %v885
    %969 = vmatpush.msra.mxu0 %v884
    %970 = vmatpush.msra.mxu0 %v883
    %971 = vmatmul.f32.gmra.mxu0 %v953
    %v972 = vpop.f32.mrf.mxu0
    %v973 = vadd.f32 0.0, %v972
    %974 = vdwg.mxu0
    %975 = vmatpush.msra.mxu0 0.0
    %976 = vmatpush.msra.mxu0 0.0
    %977 = vmatpush.msra.mxu0 0.0
    %978 = vmatpush.msra.mxu0 0.0
    %979 = vmatpush.msra.mxu0 0.0
    %980 = vmatpush.msra.mxu0 0.0
    %981 = vmatpush.msra.mxu0 0.0
    %982 = vmatpush.msra.mxu0 0.0
    %983 = vmatpush.msra.mxu0 0.0
    %984 = vmatpush.msra.mxu0 0.0
    %985 = vmatpush.msra.mxu0 0.0
    %986 = vmatpush.msra.mxu0 0.0
    %987 = vmatpush.msra.mxu0 0.0
    %988 = vmatpush.msra.mxu0 %v889
    %989 = vmatpush.msra.mxu0 %v888
    %990 = vmatpush.msra.mxu0 %v887
    %991 = vmatmul.f32.gmra.mxu0 %v953
    %v992 = vpop.f32.mrf.mxu0
    %v993 = vadd.f32 0.0, %v992
    %994 = vdwg.mxu0
    %v995 = vmax.f32 %v973, %v993
    %s996 = smul.u32 %s891, 8
    %s997 = scalar_lea.vmem [#allocation4], %s996
    %vm998 = vcmask 97280
    %999 = vst.msk [vmem:[%s997] sm:$0xff] %vm998, %v995
  $region82: #{gbn_net_forward.1} parent=0 // loop_footer
    %s895 = sadd.s32 1, %s891
  $region83: #{gbn_net_forward.1} parent=0 // loop_footer_branch
    %890 = sbr.rel target = $region79
  $region84: #{gbn_net_forward.1} parent=0 // loop_exit
    _
  loop: start=0, step=1, limit=12
  $region85: #{gbn_net_forward.1} parent=0 // loop_pre_header
    _
  $region86: #{gbn_net_forward.1} parent=0 // loop_header
    %s1001 = sphi 0, %s1005
    %p1002 = scmp.ge.s32.totalorder %s1001, 12
  $region87: #{gbn_net_forward.1} parent=0 // loop_header_branch
    %1004 = sbr.rel (%p1002) target = $region91
  $region88: #{gbn_net_forward.1} parent=0 // loop_body
    %s1006 = smul.u32 %s1001, 2
    %s1007 = smul.u32 %s1006, 16
    %s1008 = sadd.s32 %s1007, 384
    %s1009 = scalar_lea.vmem [#allocation3], %s1008
    %v1010 = vld [vmem:[%s1009] sm:$0xff]
    %v1011 = vld [vmem:[%s1009 + $0x8] sm:$0xff]
    %vm1012 = vcmask 130048
    %v1014 = vsel %vm1012, %v882, 0
    %1016 = vmatpush.msra.mxu0 0.0
    %1017 = vmatpush.msra.mxu0 0.0
    %1018 = vmatpush.msra.mxu0 0.0
    %1019 = vmatpush.msra.mxu0 0.0
    %1020 = vmatpush.msra.mxu0 0.0
    %1021 = vmatpush.msra.mxu0 0.0
    %1022 = vmatpush.msra.mxu0 0.0
    %1023 = vmatpush.msra.mxu0 0.0
    %1024 = vmatpush.msra.mxu0 0.0
    %1025 = vmatpush.msra.mxu0 0.0
    %1026 = vmatpush.msra.mxu0 0.0
    %1027 = vmatpush.msra.mxu0 0.0
    %1028 = vmatpush.msra.mxu0 0.0
    %1029 = vmatpush.msra.mxu0 0.0
    %1030 = vmatpush.msra.mxu0 %v1011
    %1031 = vmatpush.msra.mxu0 %v1010
    %1032 = vmatmul.f32.gmra.mxu0 %v1014
    %v1033 = vpop.f32.mrf.mxu0
    %v1034 = vadd.f32 0.0, %v1033
    %1035 = vdwg.mxu0
    %s1036 = sadd.s32 %s1006, 1
    %s1037 = smul.u32 %s1036, 16
    %s1038 = sadd.s32 %s1037, 384
    %s1039 = scalar_lea.vmem [#allocation3], %s1038
    %v1040 = vld [vmem:[%s1039] sm:$0xff]
    %v1041 = vld [vmem:[%s1039 + $0x8] sm:$0xff]
    %1042 = vmatpush.msra.mxu0 0.0
    %1043 = vmatpush.msra.mxu0 0.0
    %1044 = vmatpush.msra.mxu0 0.0
    %1045 = vmatpush.msra.mxu0 0.0
    %1046 = vmatpush.msra.mxu0 0.0
    %1047 = vmatpush.msra.mxu0 0.0
    %1048 = vmatpush.msra.mxu0 0.0
    %1049 = vmatpush.msra.mxu0 0.0
    %1050 = vmatpush.msra.mxu0 0.0
    %1051 = vmatpush.msra.mxu0 0.0
    %1052 = vmatpush.msra.mxu0 0.0
    %1053 = vmatpush.msra.mxu0 0.0
    %1054 = vmatpush.msra.mxu0 0.0
    %1055 = vmatpush.msra.mxu0 0.0
    %1056 = vmatpush.msra.mxu0 %v1041
    %1057 = vmatpush.msra.mxu0 %v1040
    %1058 = vmatmul.f32.gmra.mxu0 %v1014
    %v1059 = vpop.f32.mrf.mxu0
    %v1060 = vadd.f32 0.0, %v1059
    %1061 = vdwg.mxu0
    %v1062 = vmax.f32 %v1034, %v1060
    %vm1063 = vcmask 195584
    %v1065 = vsel %vm1063, %v1062, 0
    %1067 = vmatpush.msra.mxu0 0.0
    %1068 = vmatpush.msra.mxu0 0.0
    %1069 = vmatpush.msra.mxu0 0.0
    %1070 = vmatpush.msra.mxu0 0.0
    %1071 = vmatpush.msra.mxu0 0.0
    %1072 = vmatpush.msra.mxu0 0.0
    %1073 = vmatpush.msra.mxu0 0.0
    %1074 = vmatpush.msra.mxu0 0.0
    %1075 = vmatpush.msra.mxu0 0.0
    %1076 = vmatpush.msra.mxu0 0.0
    %1077 = vmatpush.msra.mxu0 0.0
    %1078 = vmatpush.msra.mxu0 0.0
    %1079 = vmatpush.msra.mxu0 0.0
    %1080 = vmatpush.msra.mxu0 %v885
    %1081 = vmatpush.msra.mxu0 %v884
    %1082 = vmatpush.msra.mxu0 %v883
    %1083 = vmatmul.f32.gmra.mxu0 %v1065
    %v1084 = vpop.f32.mrf.mxu0
    %v1085 = vadd.f32 0.0, %v1084
    %1086 = vdwg.mxu0
    %1087 = vmatpush.msra.mxu0 0.0
    %1088 = vmatpush.msra.mxu0 0.0
    %1089 = vmatpush.msra.mxu0 0.0
    %1090 = vmatpush.msra.mxu0 0.0
    %1091 = vmatpush.msra.mxu0 0.0
    %1092 = vmatpush.msra.mxu0 0.0
    %1093 = vmatpush.msra.mxu0 0.0
    %1094 = vmatpush.msra.mxu0 0.0
    %1095 = vmatpush.msra.mxu0 0.0
    %1096 = vmatpush.msra.mxu0 0.0
    %1097 = vmatpush.msra.mxu0 0.0
    %1098 = vmatpush.msra.mxu0 0.0
    %1099 = vmatpush.msra.mxu0 0.0
    %1100 = vmatpush.msra.mxu0 %v889
    %1101 = vmatpush.msra.mxu0 %v888
    %1102 = vmatpush.msra.mxu0 %v887
    %1103 = vmatmul.f32.gmra.mxu0 %v1065
    %v1104 = vpop.f32.mrf.mxu0
    %v1105 = vadd.f32 0.0, %v1104
    %1106 = vdwg.mxu0
    %v1107 = vmax.f32 %v1085, %v1105
    %s1108 = smul.u32 %s1001, 8
    %s1109 = sadd.s32 %s1108, 96
    %s1110 = scalar_lea.vmem [#allocation4], %s1109
    %vm1111 = vcmask 97280
    %1112 = vst.msk [vmem:[%s1110] sm:$0xff] %vm1111, %v1107
  $region89: #{gbn_net_forward.1} parent=0 // loop_footer
    %s1005 = sadd.s32 1, %s1001
  $region90: #{gbn_net_forward.1} parent=0 // loop_footer_branch
    %1000 = sbr.rel target = $region86
  $region91: #{gbn_net_forward.1} parent=0 // loop_exit
    _
  %s1113 = scalar_lea.vmem %s10, 32
  %v1114 = vld [vmem:[%s1113] sm:$0xff]
  %v1115 = vld [vmem:[%s1113 + $0x8] sm:$0xff]
  %s1116 = scalar_lea.vmem %s11, 32
  %v1117 = vld [vmem:[%s1116] sm:$0xff]
  %v1118 = vld [vmem:[%s1116 + $0x8] sm:$0xff]
  %v1119 = vld [vmem:[%s4] sm:$0xff]
  %v1120 = vld [vmem:[%s4 + $0x8] sm:$0xff]
  %s1121 = scalar_lea.vmem %s4, 16
  %v1122 = vld [vmem:[%s1121] sm:$0xff]
  %v1123 = vld [vmem:[%s1121 + $0x8] sm:$0xff]
  %s1124 = scalar_lea.vmem %s4, 32
  %v1125 = vld [vmem:[%s1124] sm:$0xff]
  %v1126 = vld [vmem:[%s1124 + $0x8] sm:$0xff]
  %s1127 = scalar_lea.vmem %s4, 48
  %v1128 = vld [vmem:[%s1127] sm:$0xff]
  %v1129 = vld [vmem:[%s1127 + $0x8] sm:$0xff]
  %s1130 = scalar_lea.vmem %s4, 64
  %v1131 = vld [vmem:[%s1130] sm:$0xff]
  %v1132 = vld [vmem:[%s1130 + $0x8] sm:$0xff]
  %s1133 = scalar_lea.vmem %s4, 80
  %v1134 = vld [vmem:[%s1133] sm:$0xff]
  %v1135 = vld [vmem:[%s1133 + $0x8] sm:$0xff]
  %s1136 = scalar_lea.vmem %s4, 96
  %v1137 = vld [vmem:[%s1136] sm:$0xff]
  %v1138 = vld [vmem:[%s1136 + $0x8] sm:$0xff]
  %s1139 = scalar_lea.vmem %s4, 112
  %v1140 = vld [vmem:[%s1139] sm:$0xff]
  %v1141 = vld [vmem:[%s1139 + $0x8] sm:$0xff]
  %s1142 = scalar_lea.vmem %s4, 128
  %v1143 = vld [vmem:[%s1142] sm:$0xff]
  %v1144 = vld [vmem:[%s1142 + $0x8] sm:$0xff]
  loop: start=0, step=1, limit=10
  $region92: #{gbn_net_forward.1} parent=0 // loop_pre_header
    _
  $region93: #{gbn_net_forward.1} parent=0 // loop_header
    %s1146 = sphi 0, %s1150
    %p1147 = scmp.ge.s32.totalorder %s1146, 10
  $region94: #{gbn_net_forward.1} parent=0 // loop_header_branch
    %1149 = sbr.rel (%p1147) target = $region98
  $region95: #{gbn_net_forward.1} parent=0 // loop_body
    %s1151 = smul.u32 %s1146, 8
    %s1152 = scalar_lea.vmem [#allocation4], %s1151
    %v1153 = vld [vmem:[%s1152] sm:$0xff]
    %1155 = vrot.lane.b32.xlu0 %v1153, 127
    %v1156 = vpop.permute.xlu0 %1155
    %vm1158 = vcmask 64512
    %v1160 = vsel %vm1158, %v1122, 0
    %v1163 = vsel %vm1158, %v1123, 0
    %1165 = vmatpush.msra.mxu0 0.0
    %1166 = vmatpush.msra.mxu0 0.0
    %1167 = vmatpush.msra.mxu0 0.0
    %1168 = vmatpush.msra.mxu0 0.0
    %1169 = vmatpush.msra.mxu0 0.0
    %1170 = vmatpush.msra.mxu0 0.0
    %1171 = vmatpush.msra.mxu0 0.0
    %1172 = vmatpush.msra.mxu0 0.0
    %1173 = vmatpush.msra.mxu0 0.0
    %1174 = vmatpush.msra.mxu0 0.0
    %1175 = vmatpush.msra.mxu0 0.0
    %1176 = vmatpush.msra.mxu0 0.0
    %1177 = vmatpush.msra.mxu0 0.0
    %1178 = vmatpush.msra.mxu0 0.0
    %1179 = vmatpush.msra.mxu0 0.0
    %1180 = vmatpush.msra.mxu0 %v1156
    %1181 = vmatmul.f32.gmra.mxu0 %v1160
    %v1182 = vpop.f32.mrf.mxu0
    %v1183 = vadd.f32 0.0, %v1182
    %1184 = vmatmul.f32.gmra.mxu0 %v1163
    %v1185 = vpop.f32.mrf.mxu0
    %v1186 = vadd.f32 0.0, %v1185
    %1187 = vdwg.mxu0
    %v1189 = vsel %vm1158, %v1119, 0
    %v1192 = vsel %vm1158, %v1120, 0
    %1194 = vmatpush.msra.mxu0 0.0
    %1195 = vmatpush.msra.mxu0 0.0
    %1196 = vmatpush.msra.mxu0 0.0
    %1197 = vmatpush.msra.mxu0 0.0
    %1198 = vmatpush.msra.mxu0 0.0
    %1199 = vmatpush.msra.mxu0 0.0
    %1200 = vmatpush.msra.mxu0 0.0
    %1201 = vmatpush.msra.mxu0 0.0
    %1202 = vmatpush.msra.mxu0 0.0
    %1203 = vmatpush.msra.mxu0 0.0
    %1204 = vmatpush.msra.mxu0 0.0
    %1205 = vmatpush.msra.mxu0 0.0
    %1206 = vmatpush.msra.mxu0 0.0
    %1207 = vmatpush.msra.mxu0 0.0
    %1208 = vmatpush.msra.mxu0 0.0
    %1209 = vmatpush.msra.mxu0 %v1153
    %1210 = vmatmul.f32.gmra.mxu0 %v1189
    %v1211 = vpop.f32.mrf.mxu0
    %v1212 = vadd.f32 %v1183, %v1211
    %1213 = vmatmul.f32.gmra.mxu0 %v1192
    %v1214 = vpop.f32.mrf.mxu0
    %v1215 = vadd.f32 %v1186, %v1214
    %1216 = vdwg.mxu0
    %1217 = vrot.lane.b32.xlu0 %v1153, 126
    %v1218 = vpop.permute.xlu0 %1217
    %v1221 = vsel %vm1158, %v1125, 0
    %v1224 = vsel %vm1158, %v1126, 0
    %1226 = vmatpush.msra.mxu0 0.0
    %1227 = vmatpush.msra.mxu0 0.0
    %1228 = vmatpush.msra.mxu0 0.0
    %1229 = vmatpush.msra.mxu0 0.0
    %1230 = vmatpush.msra.mxu0 0.0
    %1231 = vmatpush.msra.mxu0 0.0
    %1232 = vmatpush.msra.mxu0 0.0
    %1233 = vmatpush.msra.mxu0 0.0
    %1234 = vmatpush.msra.mxu0 0.0
    %1235 = vmatpush.msra.mxu0 0.0
    %1236 = vmatpush.msra.mxu0 0.0
    %1237 = vmatpush.msra.mxu0 0.0
    %1238 = vmatpush.msra.mxu0 0.0
    %1239 = vmatpush.msra.mxu0 0.0
    %1240 = vmatpush.msra.mxu0 0.0
    %1241 = vmatpush.msra.mxu0 %v1218
    %1242 = vmatmul.f32.gmra.mxu0 %v1221
    %v1243 = vpop.f32.mrf.mxu0
    %v1244 = vadd.f32 0.0, %v1243
    %1245 = vmatmul.f32.gmra.mxu0 %v1224
    %v1246 = vpop.f32.mrf.mxu0
    %v1247 = vadd.f32 0.0, %v1246
    %1248 = vdwg.mxu0
    %v1249 = vadd.f32 %v1212, %v1244
    %v1250 = vadd.f32 %v1215, %v1247
    %s1251 = sadd.s32 %s1146, 1
    %s1252 = smul.u32 %s1251, 8
    %s1253 = scalar_lea.vmem [#allocation4], %s1252
    %v1254 = vld [vmem:[%s1253] sm:$0xff]
    %v1256 = vsel %vm1158, %v1128, 0
    %v1259 = vsel %vm1158, %v1129, 0
    %1261 = vmatpush.msra.mxu0 0.0
    %1262 = vmatpush.msra.mxu0 0.0
    %1263 = vmatpush.msra.mxu0 0.0
    %1264 = vmatpush.msra.mxu0 0.0
    %1265 = vmatpush.msra.mxu0 0.0
    %1266 = vmatpush.msra.mxu0 0.0
    %1267 = vmatpush.msra.mxu0 0.0
    %1268 = vmatpush.msra.mxu0 0.0
    %1269 = vmatpush.msra.mxu0 0.0
    %1270 = vmatpush.msra.mxu0 0.0
    %1271 = vmatpush.msra.mxu0 0.0
    %1272 = vmatpush.msra.mxu0 0.0
    %1273 = vmatpush.msra.mxu0 0.0
    %1274 = vmatpush.msra.mxu0 0.0
    %1275 = vmatpush.msra.mxu0 0.0
    %1276 = vmatpush.msra.mxu0 %v1254
    %1277 = vmatmul.f32.gmra.mxu0 %v1256
    %v1278 = vpop.f32.mrf.mxu0
    %v1279 = vadd.f32 0.0, %v1278
    %1280 = vmatmul.f32.gmra.mxu0 %v1259
    %v1281 = vpop.f32.mrf.mxu0
    %v1282 = vadd.f32 0.0, %v1281
    %1283 = vdwg.mxu0
    %v1284 = vadd.f32 %v1249, %v1279
    %v1285 = vadd.f32 %v1250, %v1282
    %1287 = vrot.lane.b32.xlu0 %v1254, 127
    %v1288 = vpop.permute.xlu0 %1287
    %v1291 = vsel %vm1158, %v1131, 0
    %v1294 = vsel %vm1158, %v1132, 0
    %1296 = vmatpush.msra.mxu0 0.0
    %1297 = vmatpush.msra.mxu0 0.0
    %1298 = vmatpush.msra.mxu0 0.0
    %1299 = vmatpush.msra.mxu0 0.0
    %1300 = vmatpush.msra.mxu0 0.0
    %1301 = vmatpush.msra.mxu0 0.0
    %1302 = vmatpush.msra.mxu0 0.0
    %1303 = vmatpush.msra.mxu0 0.0
    %1304 = vmatpush.msra.mxu0 0.0
    %1305 = vmatpush.msra.mxu0 0.0
    %1306 = vmatpush.msra.mxu0 0.0
    %1307 = vmatpush.msra.mxu0 0.0
    %1308 = vmatpush.msra.mxu0 0.0
    %1309 = vmatpush.msra.mxu0 0.0
    %1310 = vmatpush.msra.mxu0 0.0
    %1311 = vmatpush.msra.mxu0 %v1288
    %1312 = vmatmul.f32.gmra.mxu0 %v1291
    %v1313 = vpop.f32.mrf.mxu0
    %v1314 = vadd.f32 0.0, %v1313
    %1315 = vmatmul.f32.gmra.mxu0 %v1294
    %v1316 = vpop.f32.mrf.mxu0
    %v1317 = vadd.f32 0.0, %v1316
    %1318 = vdwg.mxu0
    %v1319 = vadd.f32 %v1284, %v1314
    %v1320 = vadd.f32 %v1285, %v1317
    %1321 = vrot.lane.b32.xlu0 %v1254, 126
    %v1322 = vpop.permute.xlu0 %1321
    %v1325 = vsel %vm1158, %v1134, 0
    %v1328 = vsel %vm1158, %v1135, 0
    %1330 = vmatpush.msra.mxu0 0.0
    %1331 = vmatpush.msra.mxu0 0.0
    %1332 = vmatpush.msra.mxu0 0.0
    %1333 = vmatpush.msra.mxu0 0.0
    %1334 = vmatpush.msra.mxu0 0.0
    %1335 = vmatpush.msra.mxu0 0.0
    %1336 = vmatpush.msra.mxu0 0.0
    %1337 = vmatpush.msra.mxu0 0.0
    %1338 = vmatpush.msra.mxu0 0.0
    %1339 = vmatpush.msra.mxu0 0.0
    %1340 = vmatpush.msra.mxu0 0.0
    %1341 = vmatpush.msra.mxu0 0.0
    %1342 = vmatpush.msra.mxu0 0.0
    %1343 = vmatpush.msra.mxu0 0.0
    %1344 = vmatpush.msra.mxu0 0.0
    %1345 = vmatpush.msra.mxu0 %v1322
    %1346 = vmatmul.f32.gmra.mxu0 %v1325
    %v1347 = vpop.f32.mrf.mxu0
    %v1348 = vadd.f32 0.0, %v1347
    %1349 = vmatmul.f32.gmra.mxu0 %v1328
    %v1350 = vpop.f32.mrf.mxu0
    %v1351 = vadd.f32 0.0, %v1350
    %1352 = vdwg.mxu0
    %v1353 = vadd.f32 %v1319, %v1348
    %v1354 = vadd.f32 %v1320, %v1351
    %s1355 = sadd.s32 %s1146, 2
    %s1356 = smul.u32 %s1355, 8
    %s1357 = scalar_lea.vmem [#allocation4], %s1356
    %v1358 = vld [vmem:[%s1357] sm:$0xff]
    %v1360 = vsel %vm1158, %v1137, 0
    %v1363 = vsel %vm1158, %v1138, 0
    %1365 = vmatpush.msra.mxu0 0.0
    %1366 = vmatpush.msra.mxu0 0.0
    %1367 = vmatpush.msra.mxu0 0.0
    %1368 = vmatpush.msra.mxu0 0.0
    %1369 = vmatpush.msra.mxu0 0.0
    %1370 = vmatpush.msra.mxu0 0.0
    %1371 = vmatpush.msra.mxu0 0.0
    %1372 = vmatpush.msra.mxu0 0.0
    %1373 = vmatpush.msra.mxu0 0.0
    %1374 = vmatpush.msra.mxu0 0.0
    %1375 = vmatpush.msra.mxu0 0.0
    %1376 = vmatpush.msra.mxu0 0.0
    %1377 = vmatpush.msra.mxu0 0.0
    %1378 = vmatpush.msra.mxu0 0.0
    %1379 = vmatpush.msra.mxu0 0.0
    %1380 = vmatpush.msra.mxu0 %v1358
    %1381 = vmatmul.f32.gmra.mxu0 %v1360
    %v1382 = vpop.f32.mrf.mxu0
    %v1383 = vadd.f32 0.0, %v1382
    %1384 = vmatmul.f32.gmra.mxu0 %v1363
    %v1385 = vpop.f32.mrf.mxu0
    %v1386 = vadd.f32 0.0, %v1385
    %1387 = vdwg.mxu0
    %v1388 = vadd.f32 %v1353, %v1383
    %v1389 = vadd.f32 %v1354, %v1386
    %1391 = vrot.lane.b32.xlu0 %v1358, 127
    %v1392 = vpop.permute.xlu0 %1391
    %v1395 = vsel %vm1158, %v1140, 0
    %v1398 = vsel %vm1158, %v1141, 0
    %1400 = vmatpush.msra.mxu0 0.0
    %1401 = vmatpush.msra.mxu0 0.0
    %1402 = vmatpush.msra.mxu0 0.0
    %1403 = vmatpush.msra.mxu0 0.0
    %1404 = vmatpush.msra.mxu0 0.0
    %1405 = vmatpush.msra.mxu0 0.0
    %1406 = vmatpush.msra.mxu0 0.0
    %1407 = vmatpush.msra.mxu0 0.0
    %1408 = vmatpush.msra.mxu0 0.0
    %1409 = vmatpush.msra.mxu0 0.0
    %1410 = vmatpush.msra.mxu0 0.0
    %1411 = vmatpush.msra.mxu0 0.0
    %1412 = vmatpush.msra.mxu0 0.0
    %1413 = vmatpush.msra.mxu0 0.0
    %1414 = vmatpush.msra.mxu0 0.0
    %1415 = vmatpush.msra.mxu0 %v1392
    %1416 = vmatmul.f32.gmra.mxu0 %v1395
    %v1417 = vpop.f32.mrf.mxu0
    %v1418 = vadd.f32 0.0, %v1417
    %1419 = vmatmul.f32.gmra.mxu0 %v1398
    %v1420 = vpop.f32.mrf.mxu0
    %v1421 = vadd.f32 0.0, %v1420
    %1422 = vdwg.mxu0
    %v1423 = vadd.f32 %v1388, %v1418
    %v1424 = vadd.f32 %v1389, %v1421
    %1425 = vrot.lane.b32.xlu0 %v1358, 126
    %v1426 = vpop.permute.xlu0 %1425
    %v1429 = vsel %vm1158, %v1143, 0
    %v1432 = vsel %vm1158, %v1144, 0
    %1434 = vmatpush.msra.mxu0 0.0
    %1435 = vmatpush.msra.mxu0 0.0
    %1436 = vmatpush.msra.mxu0 0.0
    %1437 = vmatpush.msra.mxu0 0.0
    %1438 = vmatpush.msra.mxu0 0.0
    %1439 = vmatpush.msra.mxu0 0.0
    %1440 = vmatpush.msra.mxu0 0.0
    %1441 = vmatpush.msra.mxu0 0.0
    %1442 = vmatpush.msra.mxu0 0.0
    %1443 = vmatpush.msra.mxu0 0.0
    %1444 = vmatpush.msra.mxu0 0.0
    %1445 = vmatpush.msra.mxu0 0.0
    %1446 = vmatpush.msra.mxu0 0.0
    %1447 = vmatpush.msra.mxu0 0.0
    %1448 = vmatpush.msra.mxu0 0.0
    %1449 = vmatpush.msra.mxu0 %v1426
    %1450 = vmatmul.f32.gmra.mxu0 %v1429
    %v1451 = vpop.f32.mrf.mxu0
    %v1452 = vadd.f32 0.0, %v1451
    %1453 = vmatmul.f32.gmra.mxu0 %v1432
    %v1454 = vpop.f32.mrf.mxu0
    %v1455 = vadd.f32 0.0, %v1454
    %1456 = vdwg.mxu0
    %v1457 = vadd.f32 %v1423, %v1452
    %v1458 = vadd.f32 %v1424, %v1455
    %v1459 = vmax.f32 %v1457, 0.0
    %v1460 = vmax.f32 %v1458, 0.0
    %1462 = vset.pattern.permute.xlu0 0
    %1463 = vperm.xlu0 %1462, %v1114
    %v1464 = vpop.permute.xlu0 %1463
    %1467 = vset.pattern.permute.xlu0 0
    %1468 = vperm.xlu0 %1467, %v1115
    %v1469 = vpop.permute.xlu0 %1468
    %v1471 = vmul.f32 %v1459, %v1464
    %v1472 = vmul.f32 %v1460, %v1469
    %1474 = vset.pattern.permute.xlu0 0
    %1475 = vperm.xlu0 %1474, %v1117
    %v1476 = vpop.permute.xlu0 %1475
    %1479 = vset.pattern.permute.xlu0 0
    %1480 = vperm.xlu0 %1479, %v1118
    %v1481 = vpop.permute.xlu0 %1480
    %v1483 = vadd.f32 %v1471, %v1476
    %v1484 = vadd.f32 %v1472, %v1481
    %s1485 = smul.u32 %s1146, 16
    %s1486 = scalar_lea.vmem [#allocation5], %s1485
    %vm1487 = vcmask 80896
    %1488 = vst.msk [vmem:[%s1486] sm:$0xff] %vm1487, %v1483
    %1489 = vst.msk [vmem:[%s1486 + $0x8] sm:$0xff] %vm1487, %v1484
  $region96: #{gbn_net_forward.1} parent=0 // loop_footer
    %s1150 = sadd.s32 1, %s1146
  $region97: #{gbn_net_forward.1} parent=0 // loop_footer_branch
    %1145 = sbr.rel target = $region93
  $region98: #{gbn_net_forward.1} parent=0 // loop_exit
    _
  loop: start=0, step=1, limit=10
  $region99: #{gbn_net_forward.1} parent=0 // loop_pre_header
    _
  $region100: #{gbn_net_forward.1} parent=0 // loop_header
    %s1491 = sphi 0, %s1495
    %p1492 = scmp.ge.s32.totalorder %s1491, 10
  $region101: #{gbn_net_forward.1} parent=0 // loop_header_branch
    %1494 = sbr.rel (%p1492) target = $region105
  $region102: #{gbn_net_forward.1} parent=0 // loop_body
    %s1496 = smul.u32 %s1491, 8
    %s1497 = sadd.s32 %s1496, 96
    %s1498 = scalar_lea.vmem [#allocation4], %s1497
    %v1499 = vld [vmem:[%s1498] sm:$0xff]
    %1501 = vrot.lane.b32.xlu0 %v1499, 127
    %v1502 = vpop.permute.xlu0 %1501
    %vm1504 = vcmask 64512
    %v1506 = vsel %vm1504, %v1122, 0
    %v1509 = vsel %vm1504, %v1123, 0
    %1511 = vmatpush.msra.mxu0 0.0
    %1512 = vmatpush.msra.mxu0 0.0
    %1513 = vmatpush.msra.mxu0 0.0
    %1514 = vmatpush.msra.mxu0 0.0
    %1515 = vmatpush.msra.mxu0 0.0
    %1516 = vmatpush.msra.mxu0 0.0
    %1517 = vmatpush.msra.mxu0 0.0
    %1518 = vmatpush.msra.mxu0 0.0
    %1519 = vmatpush.msra.mxu0 0.0
    %1520 = vmatpush.msra.mxu0 0.0
    %1521 = vmatpush.msra.mxu0 0.0
    %1522 = vmatpush.msra.mxu0 0.0
    %1523 = vmatpush.msra.mxu0 0.0
    %1524 = vmatpush.msra.mxu0 0.0
    %1525 = vmatpush.msra.mxu0 0.0
    %1526 = vmatpush.msra.mxu0 %v1502
    %1527 = vmatmul.f32.gmra.mxu0 %v1506
    %v1528 = vpop.f32.mrf.mxu0
    %v1529 = vadd.f32 0.0, %v1528
    %1530 = vmatmul.f32.gmra.mxu0 %v1509
    %v1531 = vpop.f32.mrf.mxu0
    %v1532 = vadd.f32 0.0, %v1531
    %1533 = vdwg.mxu0
    %v1535 = vsel %vm1504, %v1119, 0
    %v1538 = vsel %vm1504, %v1120, 0
    %1540 = vmatpush.msra.mxu0 0.0
    %1541 = vmatpush.msra.mxu0 0.0
    %1542 = vmatpush.msra.mxu0 0.0
    %1543 = vmatpush.msra.mxu0 0.0
    %1544 = vmatpush.msra.mxu0 0.0
    %1545 = vmatpush.msra.mxu0 0.0
    %1546 = vmatpush.msra.mxu0 0.0
    %1547 = vmatpush.msra.mxu0 0.0
    %1548 = vmatpush.msra.mxu0 0.0
    %1549 = vmatpush.msra.mxu0 0.0
    %1550 = vmatpush.msra.mxu0 0.0
    %1551 = vmatpush.msra.mxu0 0.0
    %1552 = vmatpush.msra.mxu0 0.0
    %1553 = vmatpush.msra.mxu0 0.0
    %1554 = vmatpush.msra.mxu0 0.0
    %1555 = vmatpush.msra.mxu0 %v1499
    %1556 = vmatmul.f32.gmra.mxu0 %v1535
    %v1557 = vpop.f32.mrf.mxu0
    %v1558 = vadd.f32 %v1529, %v1557
    %1559 = vmatmul.f32.gmra.mxu0 %v1538
    %v1560 = vpop.f32.mrf.mxu0
    %v1561 = vadd.f32 %v1532, %v1560
    %1562 = vdwg.mxu0
    %1563 = vrot.lane.b32.xlu0 %v1499, 126
    %v1564 = vpop.permute.xlu0 %1563
    %v1567 = vsel %vm1504, %v1125, 0
    %v1570 = vsel %vm1504, %v1126, 0
    %1572 = vmatpush.msra.mxu0 0.0
    %1573 = vmatpush.msra.mxu0 0.0
    %1574 = vmatpush.msra.mxu0 0.0
    %1575 = vmatpush.msra.mxu0 0.0
    %1576 = vmatpush.msra.mxu0 0.0
    %1577 = vmatpush.msra.mxu0 0.0
    %1578 = vmatpush.msra.mxu0 0.0
    %1579 = vmatpush.msra.mxu0 0.0
    %1580 = vmatpush.msra.mxu0 0.0
    %1581 = vmatpush.msra.mxu0 0.0
    %1582 = vmatpush.msra.mxu0 0.0
    %1583 = vmatpush.msra.mxu0 0.0
    %1584 = vmatpush.msra.mxu0 0.0
    %1585 = vmatpush.msra.mxu0 0.0
    %1586 = vmatpush.msra.mxu0 0.0
    %1587 = vmatpush.msra.mxu0 %v1564
    %1588 = vmatmul.f32.gmra.mxu0 %v1567
    %v1589 = vpop.f32.mrf.mxu0
    %v1590 = vadd.f32 0.0, %v1589
    %1591 = vmatmul.f32.gmra.mxu0 %v1570
    %v1592 = vpop.f32.mrf.mxu0
    %v1593 = vadd.f32 0.0, %v1592
    %1594 = vdwg.mxu0
    %v1595 = vadd.f32 %v1558, %v1590
    %v1596 = vadd.f32 %v1561, %v1593
    %s1597 = sadd.s32 %s1491, 1
    %s1598 = smul.u32 %s1597, 8
    %s1599 = sadd.s32 %s1598, 96
    %s1600 = scalar_lea.vmem [#allocation4], %s1599
    %v1601 = vld [vmem:[%s1600] sm:$0xff]
    %v1603 = vsel %vm1504, %v1128, 0
    %v1606 = vsel %vm1504, %v1129, 0
    %1608 = vmatpush.msra.mxu0 0.0
    %1609 = vmatpush.msra.mxu0 0.0
    %1610 = vmatpush.msra.mxu0 0.0
    %1611 = vmatpush.msra.mxu0 0.0
    %1612 = vmatpush.msra.mxu0 0.0
    %1613 = vmatpush.msra.mxu0 0.0
    %1614 = vmatpush.msra.mxu0 0.0
    %1615 = vmatpush.msra.mxu0 0.0
    %1616 = vmatpush.msra.mxu0 0.0
    %1617 = vmatpush.msra.mxu0 0.0
    %1618 = vmatpush.msra.mxu0 0.0
    %1619 = vmatpush.msra.mxu0 0.0
    %1620 = vmatpush.msra.mxu0 0.0
    %1621 = vmatpush.msra.mxu0 0.0
    %1622 = vmatpush.msra.mxu0 0.0
    %1623 = vmatpush.msra.mxu0 %v1601
    %1624 = vmatmul.f32.gmra.mxu0 %v1603
    %v1625 = vpop.f32.mrf.mxu0
    %v1626 = vadd.f32 0.0, %v1625
    %1627 = vmatmul.f32.gmra.mxu0 %v1606
    %v1628 = vpop.f32.mrf.mxu0
    %v1629 = vadd.f32 0.0, %v1628
    %1630 = vdwg.mxu0
    %v1631 = vadd.f32 %v1595, %v1626
    %v1632 = vadd.f32 %v1596, %v1629
    %1634 = vrot.lane.b32.xlu0 %v1601, 127
    %v1635 = vpop.permute.xlu0 %1634
    %v1638 = vsel %vm1504, %v1131, 0
    %v1641 = vsel %vm1504, %v1132, 0
    %1643 = vmatpush.msra.mxu0 0.0
    %1644 = vmatpush.msra.mxu0 0.0
    %1645 = vmatpush.msra.mxu0 0.0
    %1646 = vmatpush.msra.mxu0 0.0
    %1647 = vmatpush.msra.mxu0 0.0
    %1648 = vmatpush.msra.mxu0 0.0
    %1649 = vmatpush.msra.mxu0 0.0
    %1650 = vmatpush.msra.mxu0 0.0
    %1651 = vmatpush.msra.mxu0 0.0
    %1652 = vmatpush.msra.mxu0 0.0
    %1653 = vmatpush.msra.mxu0 0.0
    %1654 = vmatpush.msra.mxu0 0.0
    %1655 = vmatpush.msra.mxu0 0.0
    %1656 = vmatpush.msra.mxu0 0.0
    %1657 = vmatpush.msra.mxu0 0.0
    %1658 = vmatpush.msra.mxu0 %v1635
    %1659 = vmatmul.f32.gmra.mxu0 %v1638
    %v1660 = vpop.f32.mrf.mxu0
    %v1661 = vadd.f32 0.0, %v1660
    %1662 = vmatmul.f32.gmra.mxu0 %v1641
    %v1663 = vpop.f32.mrf.mxu0
    %v1664 = vadd.f32 0.0, %v1663
    %1665 = vdwg.mxu0
    %v1666 = vadd.f32 %v1631, %v1661
    %v1667 = vadd.f32 %v1632, %v1664
    %1668 = vrot.lane.b32.xlu0 %v1601, 126
    %v1669 = vpop.permute.xlu0 %1668
    %v1672 = vsel %vm1504, %v1134, 0
    %v1675 = vsel %vm1504, %v1135, 0
    %1677 = vmatpush.msra.mxu0 0.0
    %1678 = vmatpush.msra.mxu0 0.0
    %1679 = vmatpush.msra.mxu0 0.0
    %1680 = vmatpush.msra.mxu0 0.0
    %1681 = vmatpush.msra.mxu0 0.0
    %1682 = vmatpush.msra.mxu0 0.0
    %1683 = vmatpush.msra.mxu0 0.0
    %1684 = vmatpush.msra.mxu0 0.0
    %1685 = vmatpush.msra.mxu0 0.0
    %1686 = vmatpush.msra.mxu0 0.0
    %1687 = vmatpush.msra.mxu0 0.0
    %1688 = vmatpush.msra.mxu0 0.0
    %1689 = vmatpush.msra.mxu0 0.0
    %1690 = vmatpush.msra.mxu0 0.0
    %1691 = vmatpush.msra.mxu0 0.0
    %1692 = vmatpush.msra.mxu0 %v1669
    %1693 = vmatmul.f32.gmra.mxu0 %v1672
    %v1694 = vpop.f32.mrf.mxu0
    %v1695 = vadd.f32 0.0, %v1694
    %1696 = vmatmul.f32.gmra.mxu0 %v1675
    %v1697 = vpop.f32.mrf.mxu0
    %v1698 = vadd.f32 0.0, %v1697
    %1699 = vdwg.mxu0
    %v1700 = vadd.f32 %v1666, %v1695
    %v1701 = vadd.f32 %v1667, %v1698
    %s1702 = sadd.s32 %s1491, 2
    %s1703 = smul.u32 %s1702, 8
    %s1704 = sadd.s32 %s1703, 96
    %s1705 = scalar_lea.vmem [#allocation4], %s1704
    %v1706 = vld [vmem:[%s1705] sm:$0xff]
    %v1708 = vsel %vm1504, %v1137, 0
    %v1711 = vsel %vm1504, %v1138, 0
    %1713 = vmatpush.msra.mxu0 0.0
    %1714 = vmatpush.msra.mxu0 0.0
    %1715 = vmatpush.msra.mxu0 0.0
    %1716 = vmatpush.msra.mxu0 0.0
    %1717 = vmatpush.msra.mxu0 0.0
    %1718 = vmatpush.msra.mxu0 0.0
    %1719 = vmatpush.msra.mxu0 0.0
    %1720 = vmatpush.msra.mxu0 0.0
    %1721 = vmatpush.msra.mxu0 0.0
    %1722 = vmatpush.msra.mxu0 0.0
    %1723 = vmatpush.msra.mxu0 0.0
    %1724 = vmatpush.msra.mxu0 0.0
    %1725 = vmatpush.msra.mxu0 0.0
    %1726 = vmatpush.msra.mxu0 0.0
    %1727 = vmatpush.msra.mxu0 0.0
    %1728 = vmatpush.msra.mxu0 %v1706
    %1729 = vmatmul.f32.gmra.mxu0 %v1708
    %v1730 = vpop.f32.mrf.mxu0
    %v1731 = vadd.f32 0.0, %v1730
    %1732 = vmatmul.f32.gmra.mxu0 %v1711
    %v1733 = vpop.f32.mrf.mxu0
    %v1734 = vadd.f32 0.0, %v1733
    %1735 = vdwg.mxu0
    %v1736 = vadd.f32 %v1700, %v1731
    %v1737 = vadd.f32 %v1701, %v1734
    %1739 = vrot.lane.b32.xlu0 %v1706, 127
    %v1740 = vpop.permute.xlu0 %1739
    %v1743 = vsel %vm1504, %v1140, 0
    %v1746 = vsel %vm1504, %v1141, 0
    %1748 = vmatpush.msra.mxu0 0.0
    %1749 = vmatpush.msra.mxu0 0.0
    %1750 = vmatpush.msra.mxu0 0.0
    %1751 = vmatpush.msra.mxu0 0.0
    %1752 = vmatpush.msra.mxu0 0.0
    %1753 = vmatpush.msra.mxu0 0.0
    %1754 = vmatpush.msra.mxu0 0.0
    %1755 = vmatpush.msra.mxu0 0.0
    %1756 = vmatpush.msra.mxu0 0.0
    %1757 = vmatpush.msra.mxu0 0.0
    %1758 = vmatpush.msra.mxu0 0.0
    %1759 = vmatpush.msra.mxu0 0.0
    %1760 = vmatpush.msra.mxu0 0.0
    %1761 = vmatpush.msra.mxu0 0.0
    %1762 = vmatpush.msra.mxu0 0.0
    %1763 = vmatpush.msra.mxu0 %v1740
    %1764 = vmatmul.f32.gmra.mxu0 %v1743
    %v1765 = vpop.f32.mrf.mxu0
    %v1766 = vadd.f32 0.0, %v1765
    %1767 = vmatmul.f32.gmra.mxu0 %v1746
    %v1768 = vpop.f32.mrf.mxu0
    %v1769 = vadd.f32 0.0, %v1768
    %1770 = vdwg.mxu0
    %v1771 = vadd.f32 %v1736, %v1766
    %v1772 = vadd.f32 %v1737, %v1769
    %1773 = vrot.lane.b32.xlu0 %v1706, 126
    %v1774 = vpop.permute.xlu0 %1773
    %v1777 = vsel %vm1504, %v1143, 0
    %v1780 = vsel %vm1504, %v1144, 0
    %1782 = vmatpush.msra.mxu0 0.0
    %1783 = vmatpush.msra.mxu0 0.0
    %1784 = vmatpush.msra.mxu0 0.0
    %1785 = vmatpush.msra.mxu0 0.0
    %1786 = vmatpush.msra.mxu0 0.0
    %1787 = vmatpush.msra.mxu0 0.0
    %1788 = vmatpush.msra.mxu0 0.0
    %1789 = vmatpush.msra.mxu0 0.0
    %1790 = vmatpush.msra.mxu0 0.0
    %1791 = vmatpush.msra.mxu0 0.0
    %1792 = vmatpush.msra.mxu0 0.0
    %1793 = vmatpush.msra.mxu0 0.0
    %1794 = vmatpush.msra.mxu0 0.0
    %1795 = vmatpush.msra.mxu0 0.0
    %1796 = vmatpush.msra.mxu0 0.0
    %1797 = vmatpush.msra.mxu0 %v1774
    %1798 = vmatmul.f32.gmra.mxu0 %v1777
    %v1799 = vpop.f32.mrf.mxu0
    %v1800 = vadd.f32 0.0, %v1799
    %1801 = vmatmul.f32.gmra.mxu0 %v1780
    %v1802 = vpop.f32.mrf.mxu0
    %v1803 = vadd.f32 0.0, %v1802
    %1804 = vdwg.mxu0
    %v1805 = vadd.f32 %v1771, %v1800
    %v1806 = vadd.f32 %v1772, %v1803
    %v1807 = vmax.f32 %v1805, 0.0
    %v1808 = vmax.f32 %v1806, 0.0
    %1810 = vset.pattern.permute.xlu0 0
    %1811 = vperm.xlu0 %1810, %v1114
    %v1812 = vpop.permute.xlu0 %1811
    %1815 = vset.pattern.permute.xlu0 0
    %1816 = vperm.xlu0 %1815, %v1115
    %v1817 = vpop.permute.xlu0 %1816
    %v1819 = vmul.f32 %v1807, %v1812
    %v1820 = vmul.f32 %v1808, %v1817
    %1822 = vset.pattern.permute.xlu0 0
    %1823 = vperm.xlu0 %1822, %v1117
    %v1824 = vpop.permute.xlu0 %1823
    %1827 = vset.pattern.permute.xlu0 0
    %1828 = vperm.xlu0 %1827, %v1118
    %v1829 = vpop.permute.xlu0 %1828
    %v1831 = vadd.f32 %v1819, %v1824
    %v1832 = vadd.f32 %v1820, %v1829
    %s1833 = smul.u32 %s1491, 16
    %s1834 = sadd.s32 %s1833, 160
    %s1835 = scalar_lea.vmem [#allocation5], %s1834
    %vm1836 = vcmask 80896
    %1837 = vst.msk [vmem:[%s1835] sm:$0xff] %vm1836, %v1831
    %1838 = vst.msk [vmem:[%s1835 + $0x8] sm:$0xff] %vm1836, %v1832
  $region103: #{gbn_net_forward.1} parent=0 // loop_footer
    %s1495 = sadd.s32 1, %s1491
  $region104: #{gbn_net_forward.1} parent=0 // loop_footer_branch
    %1490 = sbr.rel target = $region100
  $region105: #{gbn_net_forward.1} parent=0 // loop_exit
    _
  %s1839 = scalar_lea.vmem %s10, 48
  %v1840 = vld [vmem:[%s1839] sm:$0xff]
  %v1841 = vld [vmem:[%s1839 + $0x8] sm:$0xff]
  %s1842 = scalar_lea.vmem %s11, 48
  %v1843 = vld [vmem:[%s1842] sm:$0xff]
  %v1844 = vld [vmem:[%s1842 + $0x8] sm:$0xff]
  %v1845 = vld [vmem:[%s5] sm:$0xff]
  %v1846 = vld [vmem:[%s5 + $0x8] sm:$0xff]
  %s1847 = scalar_lea.vmem %s5, 16
  %v1848 = vld [vmem:[%s1847] sm:$0xff]
  %v1849 = vld [vmem:[%s1847 + $0x8] sm:$0xff]
  %s1850 = scalar_lea.vmem %s5, 32
  %v1851 = vld [vmem:[%s1850] sm:$0xff]
  %v1852 = vld [vmem:[%s1850 + $0x8] sm:$0xff]
  %s1853 = scalar_lea.vmem %s5, 48
  %v1854 = vld [vmem:[%s1853] sm:$0xff]
  %v1855 = vld [vmem:[%s1853 + $0x8] sm:$0xff]
  %s1856 = scalar_lea.vmem %s5, 64
  %v1857 = vld [vmem:[%s1856] sm:$0xff]
  %v1858 = vld [vmem:[%s1856 + $0x8] sm:$0xff]
  %s1859 = scalar_lea.vmem %s5, 80
  %v1860 = vld [vmem:[%s1859] sm:$0xff]
  %v1861 = vld [vmem:[%s1859 + $0x8] sm:$0xff]
  %s1862 = scalar_lea.vmem %s5, 96
  %v1863 = vld [vmem:[%s1862] sm:$0xff]
  %v1864 = vld [vmem:[%s1862 + $0x8] sm:$0xff]
  %s1865 = scalar_lea.vmem %s5, 112
  %v1866 = vld [vmem:[%s1865] sm:$0xff]
  %v1867 = vld [vmem:[%s1865 + $0x8] sm:$0xff]
  %s1868 = scalar_lea.vmem %s5, 128
  %v1869 = vld [vmem:[%s1868] sm:$0xff]
  %v1870 = vld [vmem:[%s1868 + $0x8] sm:$0xff]
  loop: start=0, step=1, limit=8
  $region106: #{gbn_net_forward.1} parent=0 // loop_pre_header
    _
  $region107: #{gbn_net_forward.1} parent=0 // loop_header
    %s1872 = sphi 0, %s1876
    %p1873 = scmp.ge.s32.totalorder %s1872, 8
  $region108: #{gbn_net_forward.1} parent=0 // loop_header_branch
    %1875 = sbr.rel (%p1873) target = $region112
  $region109: #{gbn_net_forward.1} parent=0 // loop_body
    %s1877 = smul.u32 %s1872, 16
    %s1878 = scalar_lea.vmem [#allocation5], %s1877
    %v1879 = vld [vmem:[%s1878] sm:$0xff]
    %v1880 = vld [vmem:[%s1878 + $0x8] sm:$0xff]
    %1883 = vrot.lane.b32.xlu0 %v1879, 127
    %v1884 = vpop.permute.xlu0 %1883
    %1885 = vrot.lane.b32.xlu0 %v1880, 127
    %v1886 = vpop.permute.xlu0 %1885
    %vm1889 = vcmask 130048
    %v1891 = vsel %vm1889, %v1848, 0
    %v1894 = vsel %vm1889, %v1849, 0
    %1896 = vmatpush.msra.mxu0 0.0
    %1897 = vmatpush.msra.mxu0 0.0
    %1898 = vmatpush.msra.mxu0 0.0
    %1899 = vmatpush.msra.mxu0 0.0
    %1900 = vmatpush.msra.mxu0 0.0
    %1901 = vmatpush.msra.mxu0 0.0
    %1902 = vmatpush.msra.mxu0 0.0
    %1903 = vmatpush.msra.mxu0 0.0
    %1904 = vmatpush.msra.mxu0 0.0
    %1905 = vmatpush.msra.mxu0 0.0
    %1906 = vmatpush.msra.mxu0 0.0
    %1907 = vmatpush.msra.mxu0 0.0
    %1908 = vmatpush.msra.mxu0 0.0
    %1909 = vmatpush.msra.mxu0 0.0
    %1910 = vmatpush.msra.mxu0 %v1886
    %1911 = vmatpush.msra.mxu0 %v1884
    %1912 = vmatmul.f32.gmra.mxu0 %v1891
    %v1913 = vpop.f32.mrf.mxu0
    %v1914 = vadd.f32 0.0, %v1913
    %1915 = vmatmul.f32.gmra.mxu0 %v1894
    %v1916 = vpop.f32.mrf.mxu0
    %v1917 = vadd.f32 0.0, %v1916
    %1918 = vdwg.mxu0
    %v1920 = vsel %vm1889, %v1845, 0
    %v1923 = vsel %vm1889, %v1846, 0
    %1925 = vmatpush.msra.mxu0 0.0
    %1926 = vmatpush.msra.mxu0 0.0
    %1927 = vmatpush.msra.mxu0 0.0
    %1928 = vmatpush.msra.mxu0 0.0
    %1929 = vmatpush.msra.mxu0 0.0
    %1930 = vmatpush.msra.mxu0 0.0
    %1931 = vmatpush.msra.mxu0 0.0
    %1932 = vmatpush.msra.mxu0 0.0
    %1933 = vmatpush.msra.mxu0 0.0
    %1934 = vmatpush.msra.mxu0 0.0
    %1935 = vmatpush.msra.mxu0 0.0
    %1936 = vmatpush.msra.mxu0 0.0
    %1937 = vmatpush.msra.mxu0 0.0
    %1938 = vmatpush.msra.mxu0 0.0
    %1939 = vmatpush.msra.mxu0 %v1880
    %1940 = vmatpush.msra.mxu0 %v1879
    %1941 = vmatmul.f32.gmra.mxu0 %v1920
    %v1942 = vpop.f32.mrf.mxu0
    %v1943 = vadd.f32 %v1914, %v1942
    %1944 = vmatmul.f32.gmra.mxu0 %v1923
    %v1945 = vpop.f32.mrf.mxu0
    %v1946 = vadd.f32 %v1917, %v1945
    %1947 = vdwg.mxu0
    %1948 = vrot.lane.b32.xlu0 %v1879, 126
    %v1949 = vpop.permute.xlu0 %1948
    %1950 = vrot.lane.b32.xlu0 %v1880, 126
    %v1951 = vpop.permute.xlu0 %1950
    %v1955 = vsel %vm1889, %v1851, 0
    %v1958 = vsel %vm1889, %v1852, 0
    %1960 = vmatpush.msra.mxu0 0.0
    %1961 = vmatpush.msra.mxu0 0.0
    %1962 = vmatpush.msra.mxu0 0.0
    %1963 = vmatpush.msra.mxu0 0.0
    %1964 = vmatpush.msra.mxu0 0.0
    %1965 = vmatpush.msra.mxu0 0.0
    %1966 = vmatpush.msra.mxu0 0.0
    %1967 = vmatpush.msra.mxu0 0.0
    %1968 = vmatpush.msra.mxu0 0.0
    %1969 = vmatpush.msra.mxu0 0.0
    %1970 = vmatpush.msra.mxu0 0.0
    %1971 = vmatpush.msra.mxu0 0.0
    %1972 = vmatpush.msra.mxu0 0.0
    %1973 = vmatpush.msra.mxu0 0.0
    %1974 = vmatpush.msra.mxu0 %v1951
    %1975 = vmatpush.msra.mxu0 %v1949
    %1976 = vmatmul.f32.gmra.mxu0 %v1955
    %v1977 = vpop.f32.mrf.mxu0
    %v1978 = vadd.f32 0.0, %v1977
    %1979 = vmatmul.f32.gmra.mxu0 %v1958
    %v1980 = vpop.f32.mrf.mxu0
    %v1981 = vadd.f32 0.0, %v1980
    %1982 = vdwg.mxu0
    %v1983 = vadd.f32 %v1943, %v1978
    %v1984 = vadd.f32 %v1946, %v1981
    %s1985 = sadd.s32 %s1872, 1
    %s1986 = smul.u32 %s1985, 16
    %s1987 = scalar_lea.vmem [#allocation5], %s1986
    %v1988 = vld [vmem:[%s1987] sm:$0xff]
    %v1989 = vld [vmem:[%s1987 + $0x8] sm:$0xff]
    %v1991 = vsel %vm1889, %v1854, 0
    %v1994 = vsel %vm1889, %v1855, 0
    %1996 = vmatpush.msra.mxu0 0.0
    %1997 = vmatpush.msra.mxu0 0.0
    %1998 = vmatpush.msra.mxu0 0.0
    %1999 = vmatpush.msra.mxu0 0.0
    %2000 = vmatpush.msra.mxu0 0.0
    %2001 = vmatpush.msra.mxu0 0.0
    %2002 = vmatpush.msra.mxu0 0.0
    %2003 = vmatpush.msra.mxu0 0.0
    %2004 = vmatpush.msra.mxu0 0.0
    %2005 = vmatpush.msra.mxu0 0.0
    %2006 = vmatpush.msra.mxu0 0.0
    %2007 = vmatpush.msra.mxu0 0.0
    %2008 = vmatpush.msra.mxu0 0.0
    %2009 = vmatpush.msra.mxu0 0.0
    %2010 = vmatpush.msra.mxu0 %v1989
    %2011 = vmatpush.msra.mxu0 %v1988
    %2012 = vmatmul.f32.gmra.mxu0 %v1991
    %v2013 = vpop.f32.mrf.mxu0
    %v2014 = vadd.f32 0.0, %v2013
    %2015 = vmatmul.f32.gmra.mxu0 %v1994
    %v2016 = vpop.f32.mrf.mxu0
    %v2017 = vadd.f32 0.0, %v2016
    %2018 = vdwg.mxu0
    %v2019 = vadd.f32 %v1983, %v2014
    %v2020 = vadd.f32 %v1984, %v2017
    %2023 = vrot.lane.b32.xlu0 %v1988, 127
    %v2024 = vpop.permute.xlu0 %2023
    %2025 = vrot.lane.b32.xlu0 %v1989, 127
    %v2026 = vpop.permute.xlu0 %2025
    %v2030 = vsel %vm1889, %v1857, 0
    %v2033 = vsel %vm1889, %v1858, 0
    %2035 = vmatpush.msra.mxu0 0.0
    %2036 = vmatpush.msra.mxu0 0.0
    %2037 = vmatpush.msra.mxu0 0.0
    %2038 = vmatpush.msra.mxu0 0.0
    %2039 = vmatpush.msra.mxu0 0.0
    %2040 = vmatpush.msra.mxu0 0.0
    %2041 = vmatpush.msra.mxu0 0.0
    %2042 = vmatpush.msra.mxu0 0.0
    %2043 = vmatpush.msra.mxu0 0.0
    %2044 = vmatpush.msra.mxu0 0.0
    %2045 = vmatpush.msra.mxu0 0.0
    %2046 = vmatpush.msra.mxu0 0.0
    %2047 = vmatpush.msra.mxu0 0.0
    %2048 = vmatpush.msra.mxu0 0.0
    %2049 = vmatpush.msra.mxu0 %v2026
    %2050 = vmatpush.msra.mxu0 %v2024
    %2051 = vmatmul.f32.gmra.mxu0 %v2030
    %v2052 = vpop.f32.mrf.mxu0
    %v2053 = vadd.f32 0.0, %v2052
    %2054 = vmatmul.f32.gmra.mxu0 %v2033
    %v2055 = vpop.f32.mrf.mxu0
    %v2056 = vadd.f32 0.0, %v2055
    %2057 = vdwg.mxu0
    %v2058 = vadd.f32 %v2019, %v2053
    %v2059 = vadd.f32 %v2020, %v2056
    %2060 = vrot.lane.b32.xlu0 %v1988, 126
    %v2061 = vpop.permute.xlu0 %2060
    %2062 = vrot.lane.b32.xlu0 %v1989, 126
    %v2063 = vpop.permute.xlu0 %2062
    %v2067 = vsel %vm1889, %v1860, 0
    %v2070 = vsel %vm1889, %v1861, 0
    %2072 = vmatpush.msra.mxu0 0.0
    %2073 = vmatpush.msra.mxu0 0.0
    %2074 = vmatpush.msra.mxu0 0.0
    %2075 = vmatpush.msra.mxu0 0.0
    %2076 = vmatpush.msra.mxu0 0.0
    %2077 = vmatpush.msra.mxu0 0.0
    %2078 = vmatpush.msra.mxu0 0.0
    %2079 = vmatpush.msra.mxu0 0.0
    %2080 = vmatpush.msra.mxu0 0.0
    %2081 = vmatpush.msra.mxu0 0.0
    %2082 = vmatpush.msra.mxu0 0.0
    %2083 = vmatpush.msra.mxu0 0.0
    %2084 = vmatpush.msra.mxu0 0.0
    %2085 = vmatpush.msra.mxu0 0.0
    %2086 = vmatpush.msra.mxu0 %v2063
    %2087 = vmatpush.msra.mxu0 %v2061
    %2088 = vmatmul.f32.gmra.mxu0 %v2067
    %v2089 = vpop.f32.mrf.mxu0
    %v2090 = vadd.f32 0.0, %v2089
    %2091 = vmatmul.f32.gmra.mxu0 %v2070
    %v2092 = vpop.f32.mrf.mxu0
    %v2093 = vadd.f32 0.0, %v2092
    %2094 = vdwg.mxu0
    %v2095 = vadd.f32 %v2058, %v2090
    %v2096 = vadd.f32 %v2059, %v2093
    %s2097 = sadd.s32 %s1872, 2
    %s2098 = smul.u32 %s2097, 16
    %s2099 = scalar_lea.vmem [#allocation5], %s2098
    %v2100 = vld [vmem:[%s2099] sm:$0xff]
    %v2101 = vld [vmem:[%s2099 + $0x8] sm:$0xff]
    %v2103 = vsel %vm1889, %v1863, 0
    %v2106 = vsel %vm1889, %v1864, 0
    %2108 = vmatpush.msra.mxu0 0.0
    %2109 = vmatpush.msra.mxu0 0.0
    %2110 = vmatpush.msra.mxu0 0.0
    %2111 = vmatpush.msra.mxu0 0.0
    %2112 = vmatpush.msra.mxu0 0.0
    %2113 = vmatpush.msra.mxu0 0.0
    %2114 = vmatpush.msra.mxu0 0.0
    %2115 = vmatpush.msra.mxu0 0.0
    %2116 = vmatpush.msra.mxu0 0.0
    %2117 = vmatpush.msra.mxu0 0.0
    %2118 = vmatpush.msra.mxu0 0.0
    %2119 = vmatpush.msra.mxu0 0.0
    %2120 = vmatpush.msra.mxu0 0.0
    %2121 = vmatpush.msra.mxu0 0.0
    %2122 = vmatpush.msra.mxu0 %v2101
    %2123 = vmatpush.msra.mxu0 %v2100
    %2124 = vmatmul.f32.gmra.mxu0 %v2103
    %v2125 = vpop.f32.mrf.mxu0
    %v2126 = vadd.f32 0.0, %v2125
    %2127 = vmatmul.f32.gmra.mxu0 %v2106
    %v2128 = vpop.f32.mrf.mxu0
    %v2129 = vadd.f32 0.0, %v2128
    %2130 = vdwg.mxu0
    %v2131 = vadd.f32 %v2095, %v2126
    %v2132 = vadd.f32 %v2096, %v2129
    %2135 = vrot.lane.b32.xlu0 %v2100, 127
    %v2136 = vpop.permute.xlu0 %2135
    %2137 = vrot.lane.b32.xlu0 %v2101, 127
    %v2138 = vpop.permute.xlu0 %2137
    %v2142 = vsel %vm1889, %v1866, 0
    %v2145 = vsel %vm1889, %v1867, 0
    %2147 = vmatpush.msra.mxu0 0.0
    %2148 = vmatpush.msra.mxu0 0.0
    %2149 = vmatpush.msra.mxu0 0.0
    %2150 = vmatpush.msra.mxu0 0.0
    %2151 = vmatpush.msra.mxu0 0.0
    %2152 = vmatpush.msra.mxu0 0.0
    %2153 = vmatpush.msra.mxu0 0.0
    %2154 = vmatpush.msra.mxu0 0.0
    %2155 = vmatpush.msra.mxu0 0.0
    %2156 = vmatpush.msra.mxu0 0.0
    %2157 = vmatpush.msra.mxu0 0.0
    %2158 = vmatpush.msra.mxu0 0.0
    %2159 = vmatpush.msra.mxu0 0.0
    %2160 = vmatpush.msra.mxu0 0.0
    %2161 = vmatpush.msra.mxu0 %v2138
    %2162 = vmatpush.msra.mxu0 %v2136
    %2163 = vmatmul.f32.gmra.mxu0 %v2142
    %v2164 = vpop.f32.mrf.mxu0
    %v2165 = vadd.f32 0.0, %v2164
    %2166 = vmatmul.f32.gmra.mxu0 %v2145
    %v2167 = vpop.f32.mrf.mxu0
    %v2168 = vadd.f32 0.0, %v2167
    %2169 = vdwg.mxu0
    %v2170 = vadd.f32 %v2131, %v2165
    %v2171 = vadd.f32 %v2132, %v2168
    %2172 = vrot.lane.b32.xlu0 %v2100, 126
    %v2173 = vpop.permute.xlu0 %2172
    %2174 = vrot.lane.b32.xlu0 %v2101, 126
    %v2175 = vpop.permute.xlu0 %2174
    %v2179 = vsel %vm1889, %v1869, 0
    %v2182 = vsel %vm1889, %v1870, 0
    %2184 = vmatpush.msra.mxu0 0.0
    %2185 = vmatpush.msra.mxu0 0.0
    %2186 = vmatpush.msra.mxu0 0.0
    %2187 = vmatpush.msra.mxu0 0.0
    %2188 = vmatpush.msra.mxu0 0.0
    %2189 = vmatpush.msra.mxu0 0.0
    %2190 = vmatpush.msra.mxu0 0.0
    %2191 = vmatpush.msra.mxu0 0.0
    %2192 = vmatpush.msra.mxu0 0.0
    %2193 = vmatpush.msra.mxu0 0.0
    %2194 = vmatpush.msra.mxu0 0.0
    %2195 = vmatpush.msra.mxu0 0.0
    %2196 = vmatpush.msra.mxu0 0.0
    %2197 = vmatpush.msra.mxu0 0.0
    %2198 = vmatpush.msra.mxu0 %v2175
    %2199 = vmatpush.msra.mxu0 %v2173
    %2200 = vmatmul.f32.gmra.mxu0 %v2179
    %v2201 = vpop.f32.mrf.mxu0
    %v2202 = vadd.f32 0.0, %v2201
    %2203 = vmatmul.f32.gmra.mxu0 %v2182
    %v2204 = vpop.f32.mrf.mxu0
    %v2205 = vadd.f32 0.0, %v2204
    %2206 = vdwg.mxu0
    %v2207 = vadd.f32 %v2170, %v2202
    %v2208 = vadd.f32 %v2171, %v2205
    %v2209 = vmax.f32 %v2207, 0.0
    %v2210 = vmax.f32 %v2208, 0.0
    %2212 = vset.pattern.permute.xlu0 0
    %2213 = vperm.xlu0 %2212, %v1840
    %v2214 = vpop.permute.xlu0 %2213
    %2217 = vset.pattern.permute.xlu0 0
    %2218 = vperm.xlu0 %2217, %v1841
    %v2219 = vpop.permute.xlu0 %2218
    %v2221 = vmul.f32 %v2209, %v2214
    %v2222 = vmul.f32 %v2210, %v2219
    %2224 = vset.pattern.permute.xlu0 0
    %2225 = vperm.xlu0 %2224, %v1843
    %v2226 = vpop.permute.xlu0 %2225
    %2229 = vset.pattern.permute.xlu0 0
    %2230 = vperm.xlu0 %2229, %v1844
    %v2231 = vpop.permute.xlu0 %2230
    %v2233 = vadd.f32 %v2221, %v2226
    %v2234 = vadd.f32 %v2222, %v2231
    %s2235 = scalar_lea.vmem [#allocation6], %s1877
    %vm2236 = vcmask 64512
    %2237 = vst.msk [vmem:[%s2235] sm:$0xff] %vm2236, %v2233
    %2238 = vst.msk [vmem:[%s2235 + $0x8] sm:$0xff] %vm2236, %v2234
  $region110: #{gbn_net_forward.1} parent=0 // loop_footer
    %s1876 = sadd.s32 1, %s1872
  $region111: #{gbn_net_forward.1} parent=0 // loop_footer_branch
    %1871 = sbr.rel target = $region107
  $region112: #{gbn_net_forward.1} parent=0 // loop_exit
    _
  loop: start=0, step=1, limit=8
  $region113: #{gbn_net_forward.1} parent=0 // loop_pre_header
    _
  $region114: #{gbn_net_forward.1} parent=0 // loop_header
    %s2240 = sphi 0, %s2244
    %p2241 = scmp.ge.s32.totalorder %s2240, 8
  $region115: #{gbn_net_forward.1} parent=0 // loop_header_branch
    %2243 = sbr.rel (%p2241) target = $region119
  $region116: #{gbn_net_forward.1} parent=0 // loop_body
    %s2245 = smul.u32 %s2240, 16
    %s2246 = sadd.s32 %s2245, 160
    %s2247 = scalar_lea.vmem [#allocation5], %s2246
    %v2248 = vld [vmem:[%s2247] sm:$0xff]
    %v2249 = vld [vmem:[%s2247 + $0x8] sm:$0xff]
    %2252 = vrot.lane.b32.xlu0 %v2248, 127
    %v2253 = vpop.permute.xlu0 %2252
    %2254 = vrot.lane.b32.xlu0 %v2249, 127
    %v2255 = vpop.permute.xlu0 %2254
    %vm2258 = vcmask 130048
    %v2260 = vsel %vm2258, %v1848, 0
    %v2263 = vsel %vm2258, %v1849, 0
    %2265 = vmatpush.msra.mxu0 0.0
    %2266 = vmatpush.msra.mxu0 0.0
    %2267 = vmatpush.msra.mxu0 0.0
    %2268 = vmatpush.msra.mxu0 0.0
    %2269 = vmatpush.msra.mxu0 0.0
    %2270 = vmatpush.msra.mxu0 0.0
    %2271 = vmatpush.msra.mxu0 0.0
    %2272 = vmatpush.msra.mxu0 0.0
    %2273 = vmatpush.msra.mxu0 0.0
    %2274 = vmatpush.msra.mxu0 0.0
    %2275 = vmatpush.msra.mxu0 0.0
    %2276 = vmatpush.msra.mxu0 0.0
    %2277 = vmatpush.msra.mxu0 0.0
    %2278 = vmatpush.msra.mxu0 0.0
    %2279 = vmatpush.msra.mxu0 %v2255
    %2280 = vmatpush.msra.mxu0 %v2253
    %2281 = vmatmul.f32.gmra.mxu0 %v2260
    %v2282 = vpop.f32.mrf.mxu0
    %v2283 = vadd.f32 0.0, %v2282
    %2284 = vmatmul.f32.gmra.mxu0 %v2263
    %v2285 = vpop.f32.mrf.mxu0
    %v2286 = vadd.f32 0.0, %v2285
    %2287 = vdwg.mxu0
    %v2289 = vsel %vm2258, %v1845, 0
    %v2292 = vsel %vm2258, %v1846, 0
    %2294 = vmatpush.msra.mxu0 0.0
    %2295 = vmatpush.msra.mxu0 0.0
    %2296 = vmatpush.msra.mxu0 0.0
    %2297 = vmatpush.msra.mxu0 0.0
    %2298 = vmatpush.msra.mxu0 0.0
    %2299 = vmatpush.msra.mxu0 0.0
    %2300 = vmatpush.msra.mxu0 0.0
    %2301 = vmatpush.msra.mxu0 0.0
    %2302 = vmatpush.msra.mxu0 0.0
    %2303 = vmatpush.msra.mxu0 0.0
    %2304 = vmatpush.msra.mxu0 0.0
    %2305 = vmatpush.msra.mxu0 0.0
    %2306 = vmatpush.msra.mxu0 0.0
    %2307 = vmatpush.msra.mxu0 0.0
    %2308 = vmatpush.msra.mxu0 %v2249
    %2309 = vmatpush.msra.mxu0 %v2248
    %2310 = vmatmul.f32.gmra.mxu0 %v2289
    %v2311 = vpop.f32.mrf.mxu0
    %v2312 = vadd.f32 %v2283, %v2311
    %2313 = vmatmul.f32.gmra.mxu0 %v2292
    %v2314 = vpop.f32.mrf.mxu0
    %v2315 = vadd.f32 %v2286, %v2314
    %2316 = vdwg.mxu0
    %2317 = vrot.lane.b32.xlu0 %v2248, 126
    %v2318 = vpop.permute.xlu0 %2317
    %2319 = vrot.lane.b32.xlu0 %v2249, 126
    %v2320 = vpop.permute.xlu0 %2319
    %v2324 = vsel %vm2258, %v1851, 0
    %v2327 = vsel %vm2258, %v1852, 0
    %2329 = vmatpush.msra.mxu0 0.0
    %2330 = vmatpush.msra.mxu0 0.0
    %2331 = vmatpush.msra.mxu0 0.0
    %2332 = vmatpush.msra.mxu0 0.0
    %2333 = vmatpush.msra.mxu0 0.0
    %2334 = vmatpush.msra.mxu0 0.0
    %2335 = vmatpush.msra.mxu0 0.0
    %2336 = vmatpush.msra.mxu0 0.0
    %2337 = vmatpush.msra.mxu0 0.0
    %2338 = vmatpush.msra.mxu0 0.0
    %2339 = vmatpush.msra.mxu0 0.0
    %2340 = vmatpush.msra.mxu0 0.0
    %2341 = vmatpush.msra.mxu0 0.0
    %2342 = vmatpush.msra.mxu0 0.0
    %2343 = vmatpush.msra.mxu0 %v2320
    %2344 = vmatpush.msra.mxu0 %v2318
    %2345 = vmatmul.f32.gmra.mxu0 %v2324
    %v2346 = vpop.f32.mrf.mxu0
    %v2347 = vadd.f32 0.0, %v2346
    %2348 = vmatmul.f32.gmra.mxu0 %v2327
    %v2349 = vpop.f32.mrf.mxu0
    %v2350 = vadd.f32 0.0, %v2349
    %2351 = vdwg.mxu0
    %v2352 = vadd.f32 %v2312, %v2347
    %v2353 = vadd.f32 %v2315, %v2350
    %s2354 = sadd.s32 %s2240, 1
    %s2355 = smul.u32 %s2354, 16
    %s2356 = sadd.s32 %s2355, 160
    %s2357 = scalar_lea.vmem [#allocation5], %s2356
    %v2358 = vld [vmem:[%s2357] sm:$0xff]
    %v2359 = vld [vmem:[%s2357 + $0x8] sm:$0xff]
    %v2361 = vsel %vm2258, %v1854, 0
    %v2364 = vsel %vm2258, %v1855, 0
    %2366 = vmatpush.msra.mxu0 0.0
    %2367 = vmatpush.msra.mxu0 0.0
    %2368 = vmatpush.msra.mxu0 0.0
    %2369 = vmatpush.msra.mxu0 0.0
    %2370 = vmatpush.msra.mxu0 0.0
    %2371 = vmatpush.msra.mxu0 0.0
    %2372 = vmatpush.msra.mxu0 0.0
    %2373 = vmatpush.msra.mxu0 0.0
    %2374 = vmatpush.msra.mxu0 0.0
    %2375 = vmatpush.msra.mxu0 0.0
    %2376 = vmatpush.msra.mxu0 0.0
    %2377 = vmatpush.msra.mxu0 0.0
    %2378 = vmatpush.msra.mxu0 0.0
    %2379 = vmatpush.msra.mxu0 0.0
    %2380 = vmatpush.msra.mxu0 %v2359
    %2381 = vmatpush.msra.mxu0 %v2358
    %2382 = vmatmul.f32.gmra.mxu0 %v2361
    %v2383 = vpop.f32.mrf.mxu0
    %v2384 = vadd.f32 0.0, %v2383
    %2385 = vmatmul.f32.gmra.mxu0 %v2364
    %v2386 = vpop.f32.mrf.mxu0
    %v2387 = vadd.f32 0.0, %v2386
    %2388 = vdwg.mxu0
    %v2389 = vadd.f32 %v2352, %v2384
    %v2390 = vadd.f32 %v2353, %v2387
    %2393 = vrot.lane.b32.xlu0 %v2358, 127
    %v2394 = vpop.permute.xlu0 %2393
    %2395 = vrot.lane.b32.xlu0 %v2359, 127
    %v2396 = vpop.permute.xlu0 %2395
    %v2400 = vsel %vm2258, %v1857, 0
    %v2403 = vsel %vm2258, %v1858, 0
    %2405 = vmatpush.msra.mxu0 0.0
    %2406 = vmatpush.msra.mxu0 0.0
    %2407 = vmatpush.msra.mxu0 0.0
    %2408 = vmatpush.msra.mxu0 0.0
    %2409 = vmatpush.msra.mxu0 0.0
    %2410 = vmatpush.msra.mxu0 0.0
    %2411 = vmatpush.msra.mxu0 0.0
    %2412 = vmatpush.msra.mxu0 0.0
    %2413 = vmatpush.msra.mxu0 0.0
    %2414 = vmatpush.msra.mxu0 0.0
    %2415 = vmatpush.msra.mxu0 0.0
    %2416 = vmatpush.msra.mxu0 0.0
    %2417 = vmatpush.msra.mxu0 0.0
    %2418 = vmatpush.msra.mxu0 0.0
    %2419 = vmatpush.msra.mxu0 %v2396
    %2420 = vmatpush.msra.mxu0 %v2394
    %2421 = vmatmul.f32.gmra.mxu0 %v2400
    %v2422 = vpop.f32.mrf.mxu0
    %v2423 = vadd.f32 0.0, %v2422
    %2424 = vmatmul.f32.gmra.mxu0 %v2403
    %v2425 = vpop.f32.mrf.mxu0
    %v2426 = vadd.f32 0.0, %v2425
    %2427 = vdwg.mxu0
    %v2428 = vadd.f32 %v2389, %v2423
    %v2429 = vadd.f32 %v2390, %v2426
    %2430 = vrot.lane.b32.xlu0 %v2358, 126
    %v2431 = vpop.permute.xlu0 %2430
    %2432 = vrot.lane.b32.xlu0 %v2359, 126
    %v2433 = vpop.permute.xlu0 %2432
    %v2437 = vsel %vm2258, %v1860, 0
    %v2440 = vsel %vm2258, %v1861, 0
    %2442 = vmatpush.msra.mxu0 0.0
    %2443 = vmatpush.msra.mxu0 0.0
    %2444 = vmatpush.msra.mxu0 0.0
    %2445 = vmatpush.msra.mxu0 0.0
    %2446 = vmatpush.msra.mxu0 0.0
    %2447 = vmatpush.msra.mxu0 0.0
    %2448 = vmatpush.msra.mxu0 0.0
    %2449 = vmatpush.msra.mxu0 0.0
    %2450 = vmatpush.msra.mxu0 0.0
    %2451 = vmatpush.msra.mxu0 0.0
    %2452 = vmatpush.msra.mxu0 0.0
    %2453 = vmatpush.msra.mxu0 0.0
    %2454 = vmatpush.msra.mxu0 0.0
    %2455 = vmatpush.msra.mxu0 0.0
    %2456 = vmatpush.msra.mxu0 %v2433
    %2457 = vmatpush.msra.mxu0 %v2431
    %2458 = vmatmul.f32.gmra.mxu0 %v2437
    %v2459 = vpop.f32.mrf.mxu0
    %v2460 = vadd.f32 0.0, %v2459
    %2461 = vmatmul.f32.gmra.mxu0 %v2440
    %v2462 = vpop.f32.mrf.mxu0
    %v2463 = vadd.f32 0.0, %v2462
    %2464 = vdwg.mxu0
    %v2465 = vadd.f32 %v2428, %v2460
    %v2466 = vadd.f32 %v2429, %v2463
    %s2467 = sadd.s32 %s2240, 2
    %s2468 = smul.u32 %s2467, 16
    %s2469 = sadd.s32 %s2468, 160
    %s2470 = scalar_lea.vmem [#allocation5], %s2469
    %v2471 = vld [vmem:[%s2470] sm:$0xff]
    %v2472 = vld [vmem:[%s2470 + $0x8] sm:$0xff]
    %v2474 = vsel %vm2258, %v1863, 0
    %v2477 = vsel %vm2258, %v1864, 0
    %2479 = vmatpush.msra.mxu0 0.0
    %2480 = vmatpush.msra.mxu0 0.0
    %2481 = vmatpush.msra.mxu0 0.0
    %2482 = vmatpush.msra.mxu0 0.0
    %2483 = vmatpush.msra.mxu0 0.0
    %2484 = vmatpush.msra.mxu0 0.0
    %2485 = vmatpush.msra.mxu0 0.0
    %2486 = vmatpush.msra.mxu0 0.0
    %2487 = vmatpush.msra.mxu0 0.0
    %2488 = vmatpush.msra.mxu0 0.0
    %2489 = vmatpush.msra.mxu0 0.0
    %2490 = vmatpush.msra.mxu0 0.0
    %2491 = vmatpush.msra.mxu0 0.0
    %2492 = vmatpush.msra.mxu0 0.0
    %2493 = vmatpush.msra.mxu0 %v2472
    %2494 = vmatpush.msra.mxu0 %v2471
    %2495 = vmatmul.f32.gmra.mxu0 %v2474
    %v2496 = vpop.f32.mrf.mxu0
    %v2497 = vadd.f32 0.0, %v2496
    %2498 = vmatmul.f32.gmra.mxu0 %v2477
    %v2499 = vpop.f32.mrf.mxu0
    %v2500 = vadd.f32 0.0, %v2499
    %2501 = vdwg.mxu0
    %v2502 = vadd.f32 %v2465, %v2497
    %v2503 = vadd.f32 %v2466, %v2500
    %2506 = vrot.lane.b32.xlu0 %v2471, 127
    %v2507 = vpop.permute.xlu0 %2506
    %2508 = vrot.lane.b32.xlu0 %v2472, 127
    %v2509 = vpop.permute.xlu0 %2508
    %v2513 = vsel %vm2258, %v1866, 0
    %v2516 = vsel %vm2258, %v1867, 0
    %2518 = vmatpush.msra.mxu0 0.0
    %2519 = vmatpush.msra.mxu0 0.0
    %2520 = vmatpush.msra.mxu0 0.0
    %2521 = vmatpush.msra.mxu0 0.0
    %2522 = vmatpush.msra.mxu0 0.0
    %2523 = vmatpush.msra.mxu0 0.0
    %2524 = vmatpush.msra.mxu0 0.0
    %2525 = vmatpush.msra.mxu0 0.0
    %2526 = vmatpush.msra.mxu0 0.0
    %2527 = vmatpush.msra.mxu0 0.0
    %2528 = vmatpush.msra.mxu0 0.0
    %2529 = vmatpush.msra.mxu0 0.0
    %2530 = vmatpush.msra.mxu0 0.0
    %2531 = vmatpush.msra.mxu0 0.0
    %2532 = vmatpush.msra.mxu0 %v2509
    %2533 = vmatpush.msra.mxu0 %v2507
    %2534 = vmatmul.f32.gmra.mxu0 %v2513
    %v2535 = vpop.f32.mrf.mxu0
    %v2536 = vadd.f32 0.0, %v2535
    %2537 = vmatmul.f32.gmra.mxu0 %v2516
    %v2538 = vpop.f32.mrf.mxu0
    %v2539 = vadd.f32 0.0, %v2538
    %2540 = vdwg.mxu0
    %v2541 = vadd.f32 %v2502, %v2536
    %v2542 = vadd.f32 %v2503, %v2539
    %2543 = vrot.lane.b32.xlu0 %v2471, 126
    %v2544 = vpop.permute.xlu0 %2543
    %2545 = vrot.lane.b32.xlu0 %v2472, 126
    %v2546 = vpop.permute.xlu0 %2545
    %v2550 = vsel %vm2258, %v1869, 0
    %v2553 = vsel %vm2258, %v1870, 0
    %2555 = vmatpush.msra.mxu0 0.0
    %2556 = vmatpush.msra.mxu0 0.0
    %2557 = vmatpush.msra.mxu0 0.0
    %2558 = vmatpush.msra.mxu0 0.0
    %2559 = vmatpush.msra.mxu0 0.0
    %2560 = vmatpush.msra.mxu0 0.0
    %2561 = vmatpush.msra.mxu0 0.0
    %2562 = vmatpush.msra.mxu0 0.0
    %2563 = vmatpush.msra.mxu0 0.0
    %2564 = vmatpush.msra.mxu0 0.0
    %2565 = vmatpush.msra.mxu0 0.0
    %2566 = vmatpush.msra.mxu0 0.0
    %2567 = vmatpush.msra.mxu0 0.0
    %2568 = vmatpush.msra.mxu0 0.0
    %2569 = vmatpush.msra.mxu0 %v2546
    %2570 = vmatpush.msra.mxu0 %v2544
    %2571 = vmatmul.f32.gmra.mxu0 %v2550
    %v2572 = vpop.f32.mrf.mxu0
    %v2573 = vadd.f32 0.0, %v2572
    %2574 = vmatmul.f32.gmra.mxu0 %v2553
    %v2575 = vpop.f32.mrf.mxu0
    %v2576 = vadd.f32 0.0, %v2575
    %2577 = vdwg.mxu0
    %v2578 = vadd.f32 %v2541, %v2573
    %v2579 = vadd.f32 %v2542, %v2576
    %v2580 = vmax.f32 %v2578, 0.0
    %v2581 = vmax.f32 %v2579, 0.0
    %2583 = vset.pattern.permute.xlu0 0
    %2584 = vperm.xlu0 %2583, %v1840
    %v2585 = vpop.permute.xlu0 %2584
    %2588 = vset.pattern.permute.xlu0 0
    %2589 = vperm.xlu0 %2588, %v1841
    %v2590 = vpop.permute.xlu0 %2589
    %v2592 = vmul.f32 %v2580, %v2585
    %v2593 = vmul.f32 %v2581, %v2590
    %2595 = vset.pattern.permute.xlu0 0
    %2596 = vperm.xlu0 %2595, %v1843
    %v2597 = vpop.permute.xlu0 %2596
    %2600 = vset.pattern.permute.xlu0 0
    %2601 = vperm.xlu0 %2600, %v1844
    %v2602 = vpop.permute.xlu0 %2601
    %v2604 = vadd.f32 %v2592, %v2597
    %v2605 = vadd.f32 %v2593, %v2602
    %s2606 = sadd.s32 %s2245, 128
    %s2607 = scalar_lea.vmem [#allocation6], %s2606
    %vm2608 = vcmask 64512
    %2609 = vst.msk [vmem:[%s2607] sm:$0xff] %vm2608, %v2604
    %2610 = vst.msk [vmem:[%s2607 + $0x8] sm:$0xff] %vm2608, %v2605
  $region117: #{gbn_net_forward.1} parent=0 // loop_footer
    %s2244 = sadd.s32 1, %s2240
  $region118: #{gbn_net_forward.1} parent=0 // loop_footer_branch
    %2239 = sbr.rel target = $region114
  $region119: #{gbn_net_forward.1} parent=0 // loop_exit
    _
  %vm2611 = vcmask 64512
  %2612 = vst.msk [vmem:[#allocation7] sm:$0xff] %vm2611, 0.0
  %2613 = vst.msk [vmem:[#allocation7 + $0x8] sm:$0xff] %vm2611, 0.0
  %2614 = vst.msk [vmem:[#allocation7 + $0x10] sm:$0xff] %vm2611, 0.0
  %2615 = vst.msk [vmem:[#allocation7 + $0x18] sm:$0xff] %vm2611, 0.0
  %2616 = vst.msk [vmem:[#allocation7 + $0x20] sm:$0xff] %vm2611, 0.0
  %2617 = vst.msk [vmem:[#allocation7 + $0x28] sm:$0xff] %vm2611, 0.0
  %2618 = vst.msk [vmem:[#allocation7 + $0x30] sm:$0xff] %vm2611, 0.0
  %2619 = vst.msk [vmem:[#allocation7 + $0x38] sm:$0xff] %vm2611, 0.0
  %2620 = vst.msk [vmem:[#allocation7 + $0x40] sm:$0xff] %vm2611, 0.0
  %2621 = vst.msk [vmem:[#allocation7 + $0x48] sm:$0xff] %vm2611, 0.0
  %2622 = vst.msk [vmem:[#allocation7 + $0x50] sm:$0xff] %vm2611, 0.0
  %2623 = vst.msk [vmem:[#allocation7 + $0x58] sm:$0xff] %vm2611, 0.0
  %2624 = vst.msk [vmem:[#allocation7 + $0x60] sm:$0xff] %vm2611, 0.0
  %2625 = vst.msk [vmem:[#allocation7 + $0x68] sm:$0xff] %vm2611, 0.0
  %2626 = vst.msk [vmem:[#allocation7 + $0x70] sm:$0xff] %vm2611, 0.0
  %2627 = vst.msk [vmem:[#allocation7 + $0x78] sm:$0xff] %vm2611, 0.0
  %2628 = vst.msk [vmem:[#allocation7 + $0x80] sm:$0xff] %vm2611, 0.0
  %2629 = vst.msk [vmem:[#allocation7 + $0x88] sm:$0xff] %vm2611, 0.0
  %2630 = vst.msk [vmem:[#allocation7 + $0x90] sm:$0xff] %vm2611, 0.0
  %2631 = vst.msk [vmem:[#allocation7 + $0x98] sm:$0xff] %vm2611, 0.0
  %2632 = vst.msk [vmem:[#allocation7 + $0xa0] sm:$0xff] %vm2611, 0.0
  %2633 = vst.msk [vmem:[#allocation7 + $0xa8] sm:$0xff] %vm2611, 0.0
  %2634 = vst.msk [vmem:[#allocation7 + $0xb0] sm:$0xff] %vm2611, 0.0
  %2635 = vst.msk [vmem:[#allocation7 + $0xb8] sm:$0xff] %vm2611, 0.0
  %2636 = vst.msk [vmem:[#allocation7 + $0xc0] sm:$0xff] %vm2611, 0.0
  %2637 = vst.msk [vmem:[#allocation7 + $0xc8] sm:$0xff] %vm2611, 0.0
  %2638 = vst.msk [vmem:[#allocation7 + $0xd0] sm:$0xff] %vm2611, 0.0
  %2639 = vst.msk [vmem:[#allocation7 + $0xd8] sm:$0xff] %vm2611, 0.0
  %2640 = vst.msk [vmem:[#allocation7 + $0xe0] sm:$0xff] %vm2611, 0.0
  %2641 = vst.msk [vmem:[#allocation7 + $0xe8] sm:$0xff] %vm2611, 0.0
  %2642 = vst.msk [vmem:[#allocation7 + $0xf0] sm:$0xff] %vm2611, 0.0
  %2643 = vst.msk [vmem:[#allocation7 + $0xf8] sm:$0xff] %vm2611, 0.0
  %s2644 = scalar_lea.vmem %s10, 64
  %v2645 = vld [vmem:[%s2644] sm:$0xff]
  %v2646 = vld [vmem:[%s2644 + $0x8] sm:$0xff]
  %s2647 = scalar_lea.vmem %s11, 64
  %v2648 = vld [vmem:[%s2647] sm:$0xff]
  %v2649 = vld [vmem:[%s2647 + $0x8] sm:$0xff]
  %v2650 = vld [vmem:[%s6] sm:$0xff]
  %v2651 = vld [vmem:[%s6 + $0x8] sm:$0xff]
  %s2652 = scalar_lea.vmem %s6, 16
  %v2653 = vld [vmem:[%s2652] sm:$0xff]
  %v2654 = vld [vmem:[%s2652 + $0x8] sm:$0xff]
  %s2655 = scalar_lea.vmem %s6, 32
  %v2656 = vld [vmem:[%s2655] sm:$0xff]
  %v2657 = vld [vmem:[%s2655 + $0x8] sm:$0xff]
  %s2658 = scalar_lea.vmem %s6, 48
  %v2659 = vld [vmem:[%s2658] sm:$0xff]
  %v2660 = vld [vmem:[%s2658 + $0x8] sm:$0xff]
  %s2661 = scalar_lea.vmem %s6, 64
  %v2662 = vld [vmem:[%s2661] sm:$0xff]
  %v2663 = vld [vmem:[%s2661 + $0x8] sm:$0xff]
  %s2664 = scalar_lea.vmem %s6, 80
  %v2665 = vld [vmem:[%s2664] sm:$0xff]
  %v2666 = vld [vmem:[%s2664 + $0x8] sm:$0xff]
  %s2667 = scalar_lea.vmem %s6, 96
  %v2668 = vld [vmem:[%s2667] sm:$0xff]
  %v2669 = vld [vmem:[%s2667 + $0x8] sm:$0xff]
  %s2670 = scalar_lea.vmem %s6, 112
  %v2671 = vld [vmem:[%s2670] sm:$0xff]
  %v2672 = vld [vmem:[%s2670 + $0x8] sm:$0xff]
  %s2673 = scalar_lea.vmem %s6, 128
  %v2674 = vld [vmem:[%s2673] sm:$0xff]
  %v2675 = vld [vmem:[%s2673 + $0x8] sm:$0xff]
  loop: start=0, step=1, limit=6
  $region120: #{gbn_net_forward.1} parent=0 // loop_pre_header
    _
  $region121: #{gbn_net_forward.1} parent=0 // loop_header
    %s2677 = sphi 0, %s2681
    %p2678 = scmp.ge.s32.totalorder %s2677, 6
  $region122: #{gbn_net_forward.1} parent=0 // loop_header_branch
    %2680 = sbr.rel (%p2678) target = $region126
  $region123: #{gbn_net_forward.1} parent=0 // loop_body
    %s2682 = smul.u32 %s2677, 16
    %s2683 = scalar_lea.vmem [#allocation6], %s2682
    %v2684 = vld [vmem:[%s2683] sm:$0xff]
    %v2685 = vld [vmem:[%s2683 + $0x8] sm:$0xff]
    %2688 = vrot.lane.b32.xlu0 %v2684, 127
    %v2689 = vpop.permute.xlu0 %2688
    %2690 = vrot.lane.b32.xlu0 %v2685, 127
    %v2691 = vpop.permute.xlu0 %2690
    %vm2694 = vcmask 130048
    %v2696 = vsel %vm2694, %v2653, 0
    %v2699 = vsel %vm2694, %v2654, 0
    %2701 = vmatpush.msra.mxu0 0.0
    %2702 = vmatpush.msra.mxu0 0.0
    %2703 = vmatpush.msra.mxu0 0.0
    %2704 = vmatpush.msra.mxu0 0.0
    %2705 = vmatpush.msra.mxu0 0.0
    %2706 = vmatpush.msra.mxu0 0.0
    %2707 = vmatpush.msra.mxu0 0.0
    %2708 = vmatpush.msra.mxu0 0.0
    %2709 = vmatpush.msra.mxu0 0.0
    %2710 = vmatpush.msra.mxu0 0.0
    %2711 = vmatpush.msra.mxu0 0.0
    %2712 = vmatpush.msra.mxu0 0.0
    %2713 = vmatpush.msra.mxu0 0.0
    %2714 = vmatpush.msra.mxu0 0.0
    %2715 = vmatpush.msra.mxu0 %v2691
    %2716 = vmatpush.msra.mxu0 %v2689
    %2717 = vmatmul.f32.gmra.mxu0 %v2696
    %v2718 = vpop.f32.mrf.mxu0
    %v2719 = vadd.f32 0.0, %v2718
    %2720 = vmatmul.f32.gmra.mxu0 %v2699
    %v2721 = vpop.f32.mrf.mxu0
    %v2722 = vadd.f32 0.0, %v2721
    %2723 = vdwg.mxu0
    %v2725 = vsel %vm2694, %v2650, 0
    %v2728 = vsel %vm2694, %v2651, 0
    %2730 = vmatpush.msra.mxu0 0.0
    %2731 = vmatpush.msra.mxu0 0.0
    %2732 = vmatpush.msra.mxu0 0.0
    %2733 = vmatpush.msra.mxu0 0.0
    %2734 = vmatpush.msra.mxu0 0.0
    %2735 = vmatpush.msra.mxu0 0.0
    %2736 = vmatpush.msra.mxu0 0.0
    %2737 = vmatpush.msra.mxu0 0.0
    %2738 = vmatpush.msra.mxu0 0.0
    %2739 = vmatpush.msra.mxu0 0.0
    %2740 = vmatpush.msra.mxu0 0.0
    %2741 = vmatpush.msra.mxu0 0.0
    %2742 = vmatpush.msra.mxu0 0.0
    %2743 = vmatpush.msra.mxu0 0.0
    %2744 = vmatpush.msra.mxu0 %v2685
    %2745 = vmatpush.msra.mxu0 %v2684
    %2746 = vmatmul.f32.gmra.mxu0 %v2725
    %v2747 = vpop.f32.mrf.mxu0
    %v2748 = vadd.f32 %v2719, %v2747
    %2749 = vmatmul.f32.gmra.mxu0 %v2728
    %v2750 = vpop.f32.mrf.mxu0
    %v2751 = vadd.f32 %v2722, %v2750
    %2752 = vdwg.mxu0
    %2753 = vrot.lane.b32.xlu0 %v2684, 126
    %v2754 = vpop.permute.xlu0 %2753
    %2755 = vrot.lane.b32.xlu0 %v2685, 126
    %v2756 = vpop.permute.xlu0 %2755
    %v2760 = vsel %vm2694, %v2656, 0
    %v2763 = vsel %vm2694, %v2657, 0
    %2765 = vmatpush.msra.mxu0 0.0
    %2766 = vmatpush.msra.mxu0 0.0
    %2767 = vmatpush.msra.mxu0 0.0
    %2768 = vmatpush.msra.mxu0 0.0
    %2769 = vmatpush.msra.mxu0 0.0
    %2770 = vmatpush.msra.mxu0 0.0
    %2771 = vmatpush.msra.mxu0 0.0
    %2772 = vmatpush.msra.mxu0 0.0
    %2773 = vmatpush.msra.mxu0 0.0
    %2774 = vmatpush.msra.mxu0 0.0
    %2775 = vmatpush.msra.mxu0 0.0
    %2776 = vmatpush.msra.mxu0 0.0
    %2777 = vmatpush.msra.mxu0 0.0
    %2778 = vmatpush.msra.mxu0 0.0
    %2779 = vmatpush.msra.mxu0 %v2756
    %2780 = vmatpush.msra.mxu0 %v2754
    %2781 = vmatmul.f32.gmra.mxu0 %v2760
    %v2782 = vpop.f32.mrf.mxu0
    %v2783 = vadd.f32 0.0, %v2782
    %2784 = vmatmul.f32.gmra.mxu0 %v2763
    %v2785 = vpop.f32.mrf.mxu0
    %v2786 = vadd.f32 0.0, %v2785
    %2787 = vdwg.mxu0
    %v2788 = vadd.f32 %v2748, %v2783
    %v2789 = vadd.f32 %v2751, %v2786
    %s2790 = sadd.s32 %s2677, 1
    %s2791 = smul.u32 %s2790, 16
    %s2792 = scalar_lea.vmem [#allocation6], %s2791
    %v2793 = vld [vmem:[%s2792] sm:$0xff]
    %v2794 = vld [vmem:[%s2792 + $0x8] sm:$0xff]
    %v2796 = vsel %vm2694, %v2659, 0
    %v2799 = vsel %vm2694, %v2660, 0
    %2801 = vmatpush.msra.mxu0 0.0
    %2802 = vmatpush.msra.mxu0 0.0
    %2803 = vmatpush.msra.mxu0 0.0
    %2804 = vmatpush.msra.mxu0 0.0
    %2805 = vmatpush.msra.mxu0 0.0
    %2806 = vmatpush.msra.mxu0 0.0
    %2807 = vmatpush.msra.mxu0 0.0
    %2808 = vmatpush.msra.mxu0 0.0
    %2809 = vmatpush.msra.mxu0 0.0
    %2810 = vmatpush.msra.mxu0 0.0
    %2811 = vmatpush.msra.mxu0 0.0
    %2812 = vmatpush.msra.mxu0 0.0
    %2813 = vmatpush.msra.mxu0 0.0
    %2814 = vmatpush.msra.mxu0 0.0
    %2815 = vmatpush.msra.mxu0 %v2794
    %2816 = vmatpush.msra.mxu0 %v2793
    %2817 = vmatmul.f32.gmra.mxu0 %v2796
    %v2818 = vpop.f32.mrf.mxu0
    %v2819 = vadd.f32 0.0, %v2818
    %2820 = vmatmul.f32.gmra.mxu0 %v2799
    %v2821 = vpop.f32.mrf.mxu0
    %v2822 = vadd.f32 0.0, %v2821
    %2823 = vdwg.mxu0
    %v2824 = vadd.f32 %v2788, %v2819
    %v2825 = vadd.f32 %v2789, %v2822
    %2828 = vrot.lane.b32.xlu0 %v2793, 127
    %v2829 = vpop.permute.xlu0 %2828
    %2830 = vrot.lane.b32.xlu0 %v2794, 127
    %v2831 = vpop.permute.xlu0 %2830
    %v2835 = vsel %vm2694, %v2662, 0
    %v2838 = vsel %vm2694, %v2663, 0
    %2840 = vmatpush.msra.mxu0 0.0
    %2841 = vmatpush.msra.mxu0 0.0
    %2842 = vmatpush.msra.mxu0 0.0
    %2843 = vmatpush.msra.mxu0 0.0
    %2844 = vmatpush.msra.mxu0 0.0
    %2845 = vmatpush.msra.mxu0 0.0
    %2846 = vmatpush.msra.mxu0 0.0
    %2847 = vmatpush.msra.mxu0 0.0
    %2848 = vmatpush.msra.mxu0 0.0
    %2849 = vmatpush.msra.mxu0 0.0
    %2850 = vmatpush.msra.mxu0 0.0
    %2851 = vmatpush.msra.mxu0 0.0
    %2852 = vmatpush.msra.mxu0 0.0
    %2853 = vmatpush.msra.mxu0 0.0
    %2854 = vmatpush.msra.mxu0 %v2831
    %2855 = vmatpush.msra.mxu0 %v2829
    %2856 = vmatmul.f32.gmra.mxu0 %v2835
    %v2857 = vpop.f32.mrf.mxu0
    %v2858 = vadd.f32 0.0, %v2857
    %2859 = vmatmul.f32.gmra.mxu0 %v2838
    %v2860 = vpop.f32.mrf.mxu0
    %v2861 = vadd.f32 0.0, %v2860
    %2862 = vdwg.mxu0
    %v2863 = vadd.f32 %v2824, %v2858
    %v2864 = vadd.f32 %v2825, %v2861
    %2865 = vrot.lane.b32.xlu0 %v2793, 126
    %v2866 = vpop.permute.xlu0 %2865
    %2867 = vrot.lane.b32.xlu0 %v2794, 126
    %v2868 = vpop.permute.xlu0 %2867
    %v2872 = vsel %vm2694, %v2665, 0
    %v2875 = vsel %vm2694, %v2666, 0
    %2877 = vmatpush.msra.mxu0 0.0
    %2878 = vmatpush.msra.mxu0 0.0
    %2879 = vmatpush.msra.mxu0 0.0
    %2880 = vmatpush.msra.mxu0 0.0
    %2881 = vmatpush.msra.mxu0 0.0
    %2882 = vmatpush.msra.mxu0 0.0
    %2883 = vmatpush.msra.mxu0 0.0
    %2884 = vmatpush.msra.mxu0 0.0
    %2885 = vmatpush.msra.mxu0 0.0
    %2886 = vmatpush.msra.mxu0 0.0
    %2887 = vmatpush.msra.mxu0 0.0
    %2888 = vmatpush.msra.mxu0 0.0
    %2889 = vmatpush.msra.mxu0 0.0
    %2890 = vmatpush.msra.mxu0 0.0
    %2891 = vmatpush.msra.mxu0 %v2868
    %2892 = vmatpush.msra.mxu0 %v2866
    %2893 = vmatmul.f32.gmra.mxu0 %v2872
    %v2894 = vpop.f32.mrf.mxu0
    %v2895 = vadd.f32 0.0, %v2894
    %2896 = vmatmul.f32.gmra.mxu0 %v2875
    %v2897 = vpop.f32.mrf.mxu0
    %v2898 = vadd.f32 0.0, %v2897
    %2899 = vdwg.mxu0
    %v2900 = vadd.f32 %v2863, %v2895
    %v2901 = vadd.f32 %v2864, %v2898
    %s2902 = sadd.s32 %s2677, 2
    %s2903 = smul.u32 %s2902, 16
    %s2904 = scalar_lea.vmem [#allocation6], %s2903
    %v2905 = vld [vmem:[%s2904] sm:$0xff]
    %v2906 = vld [vmem:[%s2904 + $0x8] sm:$0xff]
    %v2908 = vsel %vm2694, %v2668, 0
    %v2911 = vsel %vm2694, %v2669, 0
    %2913 = vmatpush.msra.mxu0 0.0
    %2914 = vmatpush.msra.mxu0 0.0
    %2915 = vmatpush.msra.mxu0 0.0
    %2916 = vmatpush.msra.mxu0 0.0
    %2917 = vmatpush.msra.mxu0 0.0
    %2918 = vmatpush.msra.mxu0 0.0
    %2919 = vmatpush.msra.mxu0 0.0
    %2920 = vmatpush.msra.mxu0 0.0
    %2921 = vmatpush.msra.mxu0 0.0
    %2922 = vmatpush.msra.mxu0 0.0
    %2923 = vmatpush.msra.mxu0 0.0
    %2924 = vmatpush.msra.mxu0 0.0
    %2925 = vmatpush.msra.mxu0 0.0
    %2926 = vmatpush.msra.mxu0 0.0
    %2927 = vmatpush.msra.mxu0 %v2906
    %2928 = vmatpush.msra.mxu0 %v2905
    %2929 = vmatmul.f32.gmra.mxu0 %v2908
    %v2930 = vpop.f32.mrf.mxu0
    %v2931 = vadd.f32 0.0, %v2930
    %2932 = vmatmul.f32.gmra.mxu0 %v2911
    %v2933 = vpop.f32.mrf.mxu0
    %v2934 = vadd.f32 0.0, %v2933
    %2935 = vdwg.mxu0
    %v2936 = vadd.f32 %v2900, %v2931
    %v2937 = vadd.f32 %v2901, %v2934
    %2940 = vrot.lane.b32.xlu0 %v2905, 127
    %v2941 = vpop.permute.xlu0 %2940
    %2942 = vrot.lane.b32.xlu0 %v2906, 127
    %v2943 = vpop.permute.xlu0 %2942
    %v2947 = vsel %vm2694, %v2671, 0
    %v2950 = vsel %vm2694, %v2672, 0
    %2952 = vmatpush.msra.mxu0 0.0
    %2953 = vmatpush.msra.mxu0 0.0
    %2954 = vmatpush.msra.mxu0 0.0
    %2955 = vmatpush.msra.mxu0 0.0
    %2956 = vmatpush.msra.mxu0 0.0
    %2957 = vmatpush.msra.mxu0 0.0
    %2958 = vmatpush.msra.mxu0 0.0
    %2959 = vmatpush.msra.mxu0 0.0
    %2960 = vmatpush.msra.mxu0 0.0
    %2961 = vmatpush.msra.mxu0 0.0
    %2962 = vmatpush.msra.mxu0 0.0
    %2963 = vmatpush.msra.mxu0 0.0
    %2964 = vmatpush.msra.mxu0 0.0
    %2965 = vmatpush.msra.mxu0 0.0
    %2966 = vmatpush.msra.mxu0 %v2943
    %2967 = vmatpush.msra.mxu0 %v2941
    %2968 = vmatmul.f32.gmra.mxu0 %v2947
    %v2969 = vpop.f32.mrf.mxu0
    %v2970 = vadd.f32 0.0, %v2969
    %2971 = vmatmul.f32.gmra.mxu0 %v2950
    %v2972 = vpop.f32.mrf.mxu0
    %v2973 = vadd.f32 0.0, %v2972
    %2974 = vdwg.mxu0
    %v2975 = vadd.f32 %v2936, %v2970
    %v2976 = vadd.f32 %v2937, %v2973
    %2977 = vrot.lane.b32.xlu0 %v2905, 126
    %v2978 = vpop.permute.xlu0 %2977
    %2979 = vrot.lane.b32.xlu0 %v2906, 126
    %v2980 = vpop.permute.xlu0 %2979
    %v2984 = vsel %vm2694, %v2674, 0
    %v2987 = vsel %vm2694, %v2675, 0
    %2989 = vmatpush.msra.mxu0 0.0
    %2990 = vmatpush.msra.mxu0 0.0
    %2991 = vmatpush.msra.mxu0 0.0
    %2992 = vmatpush.msra.mxu0 0.0
    %2993 = vmatpush.msra.mxu0 0.0
    %2994 = vmatpush.msra.mxu0 0.0
    %2995 = vmatpush.msra.mxu0 0.0
    %2996 = vmatpush.msra.mxu0 0.0
    %2997 = vmatpush.msra.mxu0 0.0
    %2998 = vmatpush.msra.mxu0 0.0
    %2999 = vmatpush.msra.mxu0 0.0
    %3000 = vmatpush.msra.mxu0 0.0
    %3001 = vmatpush.msra.mxu0 0.0
    %3002 = vmatpush.msra.mxu0 0.0
    %3003 = vmatpush.msra.mxu0 %v2980
    %3004 = vmatpush.msra.mxu0 %v2978
    %3005 = vmatmul.f32.gmra.mxu0 %v2984
    %v3006 = vpop.f32.mrf.mxu0
    %v3007 = vadd.f32 0.0, %v3006
    %3008 = vmatmul.f32.gmra.mxu0 %v2987
    %v3009 = vpop.f32.mrf.mxu0
    %v3010 = vadd.f32 0.0, %v3009
    %3011 = vdwg.mxu0
    %v3012 = vadd.f32 %v2975, %v3007
    %v3013 = vadd.f32 %v2976, %v3010
    %v3014 = vmax.f32 %v3012, 0.0
    %v3015 = vmax.f32 %v3013, 0.0
    %3017 = vset.pattern.permute.xlu0 0
    %3018 = vperm.xlu0 %3017, %v2645
    %v3019 = vpop.permute.xlu0 %3018
    %3022 = vset.pattern.permute.xlu0 0
    %3023 = vperm.xlu0 %3022, %v2646
    %v3024 = vpop.permute.xlu0 %3023
    %v3026 = vmul.f32 %v3014, %v3019
    %v3027 = vmul.f32 %v3015, %v3024
    %3029 = vset.pattern.permute.xlu0 0
    %3030 = vperm.xlu0 %3029, %v2648
    %v3031 = vpop.permute.xlu0 %3030
    %3034 = vset.pattern.permute.xlu0 0
    %3035 = vperm.xlu0 %3034, %v2649
    %v3036 = vpop.permute.xlu0 %3035
    %v3038 = vadd.f32 %v3026, %v3031
    %v3039 = vadd.f32 %v3027, %v3036
    %3042 = vrot.lane.b32.xlu0 %v3038, 1
    %v3043 = vpop.permute.xlu0 %3042
    %3044 = vrot.lane.b32.xlu0 %v3039, 1
    %v3045 = vpop.permute.xlu0 %3044
    %s3048 = scalar_lea.vmem [#allocation7], %s2791
    %vm3049 = vcmask 56328
    %3050 = vst.msk [vmem:[%s3048] sm:$0xff] %vm3049, %v3043
    %3051 = vst.msk [vmem:[%s3048 + $0x8] sm:$0xff] %vm3049, %v3045
  $region124: #{gbn_net_forward.1} parent=0 // loop_footer
    %s2681 = sadd.s32 1, %s2677
  $region125: #{gbn_net_forward.1} parent=0 // loop_footer_branch
    %2676 = sbr.rel target = $region121
  $region126: #{gbn_net_forward.1} parent=0 // loop_exit
    _
  loop: start=0, step=1, limit=6
  $region127: #{gbn_net_forward.1} parent=0 // loop_pre_header
    _
  $region128: #{gbn_net_forward.1} parent=0 // loop_header
    %s3053 = sphi 0, %s3057
    %p3054 = scmp.ge.s32.totalorder %s3053, 6
  $region129: #{gbn_net_forward.1} parent=0 // loop_header_branch
    %3056 = sbr.rel (%p3054) target = $region133
  $region130: #{gbn_net_forward.1} parent=0 // loop_body
    %s3058 = smul.u32 %s3053, 16
    %s3059 = sadd.s32 %s3058, 128
    %s3060 = scalar_lea.vmem [#allocation6], %s3059
    %v3061 = vld [vmem:[%s3060] sm:$0xff]
    %v3062 = vld [vmem:[%s3060 + $0x8] sm:$0xff]
    %3065 = vrot.lane.b32.xlu0 %v3061, 127
    %v3066 = vpop.permute.xlu0 %3065
    %3067 = vrot.lane.b32.xlu0 %v3062, 127
    %v3068 = vpop.permute.xlu0 %3067
    %vm3071 = vcmask 130048
    %v3073 = vsel %vm3071, %v2653, 0
    %v3076 = vsel %vm3071, %v2654, 0
    %3078 = vmatpush.msra.mxu0 0.0
    %3079 = vmatpush.msra.mxu0 0.0
    %3080 = vmatpush.msra.mxu0 0.0
    %3081 = vmatpush.msra.mxu0 0.0
    %3082 = vmatpush.msra.mxu0 0.0
    %3083 = vmatpush.msra.mxu0 0.0
    %3084 = vmatpush.msra.mxu0 0.0
    %3085 = vmatpush.msra.mxu0 0.0
    %3086 = vmatpush.msra.mxu0 0.0
    %3087 = vmatpush.msra.mxu0 0.0
    %3088 = vmatpush.msra.mxu0 0.0
    %3089 = vmatpush.msra.mxu0 0.0
    %3090 = vmatpush.msra.mxu0 0.0
    %3091 = vmatpush.msra.mxu0 0.0
    %3092 = vmatpush.msra.mxu0 %v3068
    %3093 = vmatpush.msra.mxu0 %v3066
    %3094 = vmatmul.f32.gmra.mxu0 %v3073
    %v3095 = vpop.f32.mrf.mxu0
    %v3096 = vadd.f32 0.0, %v3095
    %3097 = vmatmul.f32.gmra.mxu0 %v3076
    %v3098 = vpop.f32.mrf.mxu0
    %v3099 = vadd.f32 0.0, %v3098
    %3100 = vdwg.mxu0
    %v3102 = vsel %vm3071, %v2650, 0
    %v3105 = vsel %vm3071, %v2651, 0
    %3107 = vmatpush.msra.mxu0 0.0
    %3108 = vmatpush.msra.mxu0 0.0
    %3109 = vmatpush.msra.mxu0 0.0
    %3110 = vmatpush.msra.mxu0 0.0
    %3111 = vmatpush.msra.mxu0 0.0
    %3112 = vmatpush.msra.mxu0 0.0
    %3113 = vmatpush.msra.mxu0 0.0
    %3114 = vmatpush.msra.mxu0 0.0
    %3115 = vmatpush.msra.mxu0 0.0
    %3116 = vmatpush.msra.mxu0 0.0
    %3117 = vmatpush.msra.mxu0 0.0
    %3118 = vmatpush.msra.mxu0 0.0
    %3119 = vmatpush.msra.mxu0 0.0
    %3120 = vmatpush.msra.mxu0 0.0
    %3121 = vmatpush.msra.mxu0 %v3062
    %3122 = vmatpush.msra.mxu0 %v3061
    %3123 = vmatmul.f32.gmra.mxu0 %v3102
    %v3124 = vpop.f32.mrf.mxu0
    %v3125 = vadd.f32 %v3096, %v3124
    %3126 = vmatmul.f32.gmra.mxu0 %v3105
    %v3127 = vpop.f32.mrf.mxu0
    %v3128 = vadd.f32 %v3099, %v3127
    %3129 = vdwg.mxu0
    %3130 = vrot.lane.b32.xlu0 %v3061, 126
    %v3131 = vpop.permute.xlu0 %3130
    %3132 = vrot.lane.b32.xlu0 %v3062, 126
    %v3133 = vpop.permute.xlu0 %3132
    %v3137 = vsel %vm3071, %v2656, 0
    %v3140 = vsel %vm3071, %v2657, 0
    %3142 = vmatpush.msra.mxu0 0.0
    %3143 = vmatpush.msra.mxu0 0.0
    %3144 = vmatpush.msra.mxu0 0.0
    %3145 = vmatpush.msra.mxu0 0.0
    %3146 = vmatpush.msra.mxu0 0.0
    %3147 = vmatpush.msra.mxu0 0.0
    %3148 = vmatpush.msra.mxu0 0.0
    %3149 = vmatpush.msra.mxu0 0.0
    %3150 = vmatpush.msra.mxu0 0.0
    %3151 = vmatpush.msra.mxu0 0.0
    %3152 = vmatpush.msra.mxu0 0.0
    %3153 = vmatpush.msra.mxu0 0.0
    %3154 = vmatpush.msra.mxu0 0.0
    %3155 = vmatpush.msra.mxu0 0.0
    %3156 = vmatpush.msra.mxu0 %v3133
    %3157 = vmatpush.msra.mxu0 %v3131
    %3158 = vmatmul.f32.gmra.mxu0 %v3137
    %v3159 = vpop.f32.mrf.mxu0
    %v3160 = vadd.f32 0.0, %v3159
    %3161 = vmatmul.f32.gmra.mxu0 %v3140
    %v3162 = vpop.f32.mrf.mxu0
    %v3163 = vadd.f32 0.0, %v3162
    %3164 = vdwg.mxu0
    %v3165 = vadd.f32 %v3125, %v3160
    %v3166 = vadd.f32 %v3128, %v3163
    %s3167 = sadd.s32 %s3053, 1
    %s3168 = smul.u32 %s3167, 16
    %s3169 = sadd.s32 %s3168, 128
    %s3170 = scalar_lea.vmem [#allocation6], %s3169
    %v3171 = vld [vmem:[%s3170] sm:$0xff]
    %v3172 = vld [vmem:[%s3170 + $0x8] sm:$0xff]
    %v3174 = vsel %vm3071, %v2659, 0
    %v3177 = vsel %vm3071, %v2660, 0
    %3179 = vmatpush.msra.mxu0 0.0
    %3180 = vmatpush.msra.mxu0 0.0
    %3181 = vmatpush.msra.mxu0 0.0
    %3182 = vmatpush.msra.mxu0 0.0
    %3183 = vmatpush.msra.mxu0 0.0
    %3184 = vmatpush.msra.mxu0 0.0
    %3185 = vmatpush.msra.mxu0 0.0
    %3186 = vmatpush.msra.mxu0 0.0
    %3187 = vmatpush.msra.mxu0 0.0
    %3188 = vmatpush.msra.mxu0 0.0
    %3189 = vmatpush.msra.mxu0 0.0
    %3190 = vmatpush.msra.mxu0 0.0
    %3191 = vmatpush.msra.mxu0 0.0
    %3192 = vmatpush.msra.mxu0 0.0
    %3193 = vmatpush.msra.mxu0 %v3172
    %3194 = vmatpush.msra.mxu0 %v3171
    %3195 = vmatmul.f32.gmra.mxu0 %v3174
    %v3196 = vpop.f32.mrf.mxu0
    %v3197 = vadd.f32 0.0, %v3196
    %3198 = vmatmul.f32.gmra.mxu0 %v3177
    %v3199 = vpop.f32.mrf.mxu0
    %v3200 = vadd.f32 0.0, %v3199
    %3201 = vdwg.mxu0
    %v3202 = vadd.f32 %v3165, %v3197
    %v3203 = vadd.f32 %v3166, %v3200
    %3206 = vrot.lane.b32.xlu0 %v3171, 127
    %v3207 = vpop.permute.xlu0 %3206
    %3208 = vrot.lane.b32.xlu0 %v3172, 127
    %v3209 = vpop.permute.xlu0 %3208
    %v3213 = vsel %vm3071, %v2662, 0
    %v3216 = vsel %vm3071, %v2663, 0
    %3218 = vmatpush.msra.mxu0 0.0
    %3219 = vmatpush.msra.mxu0 0.0
    %3220 = vmatpush.msra.mxu0 0.0
    %3221 = vmatpush.msra.mxu0 0.0
    %3222 = vmatpush.msra.mxu0 0.0
    %3223 = vmatpush.msra.mxu0 0.0
    %3224 = vmatpush.msra.mxu0 0.0
    %3225 = vmatpush.msra.mxu0 0.0
    %3226 = vmatpush.msra.mxu0 0.0
    %3227 = vmatpush.msra.mxu0 0.0
    %3228 = vmatpush.msra.mxu0 0.0
    %3229 = vmatpush.msra.mxu0 0.0
    %3230 = vmatpush.msra.mxu0 0.0
    %3231 = vmatpush.msra.mxu0 0.0
    %3232 = vmatpush.msra.mxu0 %v3209
    %3233 = vmatpush.msra.mxu0 %v3207
    %3234 = vmatmul.f32.gmra.mxu0 %v3213
    %v3235 = vpop.f32.mrf.mxu0
    %v3236 = vadd.f32 0.0, %v3235
    %3237 = vmatmul.f32.gmra.mxu0 %v3216
    %v3238 = vpop.f32.mrf.mxu0
    %v3239 = vadd.f32 0.0, %v3238
    %3240 = vdwg.mxu0
    %v3241 = vadd.f32 %v3202, %v3236
    %v3242 = vadd.f32 %v3203, %v3239
    %3243 = vrot.lane.b32.xlu0 %v3171, 126
    %v3244 = vpop.permute.xlu0 %3243
    %3245 = vrot.lane.b32.xlu0 %v3172, 126
    %v3246 = vpop.permute.xlu0 %3245
    %v3250 = vsel %vm3071, %v2665, 0
    %v3253 = vsel %vm3071, %v2666, 0
    %3255 = vmatpush.msra.mxu0 0.0
    %3256 = vmatpush.msra.mxu0 0.0
    %3257 = vmatpush.msra.mxu0 0.0
    %3258 = vmatpush.msra.mxu0 0.0
    %3259 = vmatpush.msra.mxu0 0.0
    %3260 = vmatpush.msra.mxu0 0.0
    %3261 = vmatpush.msra.mxu0 0.0
    %3262 = vmatpush.msra.mxu0 0.0
    %3263 = vmatpush.msra.mxu0 0.0
    %3264 = vmatpush.msra.mxu0 0.0
    %3265 = vmatpush.msra.mxu0 0.0
    %3266 = vmatpush.msra.mxu0 0.0
    %3267 = vmatpush.msra.mxu0 0.0
    %3268 = vmatpush.msra.mxu0 0.0
    %3269 = vmatpush.msra.mxu0 %v3246
    %3270 = vmatpush.msra.mxu0 %v3244
    %3271 = vmatmul.f32.gmra.mxu0 %v3250
    %v3272 = vpop.f32.mrf.mxu0
    %v3273 = vadd.f32 0.0, %v3272
    %3274 = vmatmul.f32.gmra.mxu0 %v3253
    %v3275 = vpop.f32.mrf.mxu0
    %v3276 = vadd.f32 0.0, %v3275
    %3277 = vdwg.mxu0
    %v3278 = vadd.f32 %v3241, %v3273
    %v3279 = vadd.f32 %v3242, %v3276
    %s3280 = sadd.s32 %s3053, 2
    %s3281 = smul.u32 %s3280, 16
    %s3282 = sadd.s32 %s3281, 128
    %s3283 = scalar_lea.vmem [#allocation6], %s3282
    %v3284 = vld [vmem:[%s3283] sm:$0xff]
    %v3285 = vld [vmem:[%s3283 + $0x8] sm:$0xff]
    %v3287 = vsel %vm3071, %v2668, 0
    %v3290 = vsel %vm3071, %v2669, 0
    %3292 = vmatpush.msra.mxu0 0.0
    %3293 = vmatpush.msra.mxu0 0.0
    %3294 = vmatpush.msra.mxu0 0.0
    %3295 = vmatpush.msra.mxu0 0.0
    %3296 = vmatpush.msra.mxu0 0.0
    %3297 = vmatpush.msra.mxu0 0.0
    %3298 = vmatpush.msra.mxu0 0.0
    %3299 = vmatpush.msra.mxu0 0.0
    %3300 = vmatpush.msra.mxu0 0.0
    %3301 = vmatpush.msra.mxu0 0.0
    %3302 = vmatpush.msra.mxu0 0.0
    %3303 = vmatpush.msra.mxu0 0.0
    %3304 = vmatpush.msra.mxu0 0.0
    %3305 = vmatpush.msra.mxu0 0.0
    %3306 = vmatpush.msra.mxu0 %v3285
    %3307 = vmatpush.msra.mxu0 %v3284
    %3308 = vmatmul.f32.gmra.mxu0 %v3287
    %v3309 = vpop.f32.mrf.mxu0
    %v3310 = vadd.f32 0.0, %v3309
    %3311 = vmatmul.f32.gmra.mxu0 %v3290
    %v3312 = vpop.f32.mrf.mxu0
    %v3313 = vadd.f32 0.0, %v3312
    %3314 = vdwg.mxu0
    %v3315 = vadd.f32 %v3278, %v3310
    %v3316 = vadd.f32 %v3279, %v3313
    %3319 = vrot.lane.b32.xlu0 %v3284, 127
    %v3320 = vpop.permute.xlu0 %3319
    %3321 = vrot.lane.b32.xlu0 %v3285, 127
    %v3322 = vpop.permute.xlu0 %3321
    %v3326 = vsel %vm3071, %v2671, 0
    %v3329 = vsel %vm3071, %v2672, 0
    %3331 = vmatpush.msra.mxu0 0.0
    %3332 = vmatpush.msra.mxu0 0.0
    %3333 = vmatpush.msra.mxu0 0.0
    %3334 = vmatpush.msra.mxu0 0.0
    %3335 = vmatpush.msra.mxu0 0.0
    %3336 = vmatpush.msra.mxu0 0.0
    %3337 = vmatpush.msra.mxu0 0.0
    %3338 = vmatpush.msra.mxu0 0.0
    %3339 = vmatpush.msra.mxu0 0.0
    %3340 = vmatpush.msra.mxu0 0.0
    %3341 = vmatpush.msra.mxu0 0.0
    %3342 = vmatpush.msra.mxu0 0.0
    %3343 = vmatpush.msra.mxu0 0.0
    %3344 = vmatpush.msra.mxu0 0.0
    %3345 = vmatpush.msra.mxu0 %v3322
    %3346 = vmatpush.msra.mxu0 %v3320
    %3347 = vmatmul.f32.gmra.mxu0 %v3326
    %v3348 = vpop.f32.mrf.mxu0
    %v3349 = vadd.f32 0.0, %v3348
    %3350 = vmatmul.f32.gmra.mxu0 %v3329
    %v3351 = vpop.f32.mrf.mxu0
    %v3352 = vadd.f32 0.0, %v3351
    %3353 = vdwg.mxu0
    %v3354 = vadd.f32 %v3315, %v3349
    %v3355 = vadd.f32 %v3316, %v3352
    %3356 = vrot.lane.b32.xlu0 %v3284, 126
    %v3357 = vpop.permute.xlu0 %3356
    %3358 = vrot.lane.b32.xlu0 %v3285, 126
    %v3359 = vpop.permute.xlu0 %3358
    %v3363 = vsel %vm3071, %v2674, 0
    %v3366 = vsel %vm3071, %v2675, 0
    %3368 = vmatpush.msra.mxu0 0.0
    %3369 = vmatpush.msra.mxu0 0.0
    %3370 = vmatpush.msra.mxu0 0.0
    %3371 = vmatpush.msra.mxu0 0.0
    %3372 = vmatpush.msra.mxu0 0.0
    %3373 = vmatpush.msra.mxu0 0.0
    %3374 = vmatpush.msra.mxu0 0.0
    %3375 = vmatpush.msra.mxu0 0.0
    %3376 = vmatpush.msra.mxu0 0.0
    %3377 = vmatpush.msra.mxu0 0.0
    %3378 = vmatpush.msra.mxu0 0.0
    %3379 = vmatpush.msra.mxu0 0.0
    %3380 = vmatpush.msra.mxu0 0.0
    %3381 = vmatpush.msra.mxu0 0.0
    %3382 = vmatpush.msra.mxu0 %v3359
    %3383 = vmatpush.msra.mxu0 %v3357
    %3384 = vmatmul.f32.gmra.mxu0 %v3363
    %v3385 = vpop.f32.mrf.mxu0
    %v3386 = vadd.f32 0.0, %v3385
    %3387 = vmatmul.f32.gmra.mxu0 %v3366
    %v3388 = vpop.f32.mrf.mxu0
    %v3389 = vadd.f32 0.0, %v3388
    %3390 = vdwg.mxu0
    %v3391 = vadd.f32 %v3354, %v3386
    %v3392 = vadd.f32 %v3355, %v3389
    %v3393 = vmax.f32 %v3391, 0.0
    %v3394 = vmax.f32 %v3392, 0.0
    %3396 = vset.pattern.permute.xlu0 0
    %3397 = vperm.xlu0 %3396, %v2645
    %v3398 = vpop.permute.xlu0 %3397
    %3401 = vset.pattern.permute.xlu0 0
    %3402 = vperm.xlu0 %3401, %v2646
    %v3403 = vpop.permute.xlu0 %3402
    %v3405 = vmul.f32 %v3393, %v3398
    %v3406 = vmul.f32 %v3394, %v3403
    %3408 = vset.pattern.permute.xlu0 0
    %3409 = vperm.xlu0 %3408, %v2648
    %v3410 = vpop.permute.xlu0 %3409
    %3413 = vset.pattern.permute.xlu0 0
    %3414 = vperm.xlu0 %3413, %v2649
    %v3415 = vpop.permute.xlu0 %3414
    %v3417 = vadd.f32 %v3405, %v3410
    %v3418 = vadd.f32 %v3406, %v3415
    %3421 = vrot.lane.b32.xlu0 %v3417, 1
    %v3422 = vpop.permute.xlu0 %3421
    %3423 = vrot.lane.b32.xlu0 %v3418, 1
    %v3424 = vpop.permute.xlu0 %3423
    %s3427 = scalar_lea.vmem [#allocation7], %s3169
    %vm3428 = vcmask 56328
    %3429 = vst.msk [vmem:[%s3427] sm:$0xff] %vm3428, %v3422
    %3430 = vst.msk [vmem:[%s3427 + $0x8] sm:$0xff] %vm3428, %v3424
  $region131: #{gbn_net_forward.1} parent=0 // loop_footer
    %s3057 = sadd.s32 1, %s3053
  $region132: #{gbn_net_forward.1} parent=0 // loop_footer_branch
    %3052 = sbr.rel target = $region128
  $region133: #{gbn_net_forward.1} parent=0 // loop_exit
    _
  %s3431 = scalar_lea.vmem %s10, 80
  %v3432 = vld [vmem:[%s3431] sm:$0xff]
  %v3433 = vld [vmem:[%s3431 + $0x8] sm:$0xff]
  %s3434 = scalar_lea.vmem %s11, 80
  %v3435 = vld [vmem:[%s3434] sm:$0xff]
  %v3436 = vld [vmem:[%s3434 + $0x8] sm:$0xff]
  %v3437 = vld [vmem:[%s7] sm:$0xff]
  %v3438 = vld [vmem:[%s7 + $0x8] sm:$0xff]
  %s3439 = scalar_lea.vmem %s7, 16
  %v3440 = vld [vmem:[%s3439] sm:$0xff]
  %v3441 = vld [vmem:[%s3439 + $0x8] sm:$0xff]
  %s3442 = scalar_lea.vmem %s7, 32
  %v3443 = vld [vmem:[%s3442] sm:$0xff]
  %v3444 = vld [vmem:[%s3442 + $0x8] sm:$0xff]
  %s3445 = scalar_lea.vmem %s7, 48
  %v3446 = vld [vmem:[%s3445] sm:$0xff]
  %v3447 = vld [vmem:[%s3445 + $0x8] sm:$0xff]
  %s3448 = scalar_lea.vmem %s7, 64
  %v3449 = vld [vmem:[%s3448] sm:$0xff]
  %v3450 = vld [vmem:[%s3448 + $0x8] sm:$0xff]
  %s3451 = scalar_lea.vmem %s7, 80
  %v3452 = vld [vmem:[%s3451] sm:$0xff]
  %v3453 = vld [vmem:[%s3451 + $0x8] sm:$0xff]
  %s3454 = scalar_lea.vmem %s7, 96
  %v3455 = vld [vmem:[%s3454] sm:$0xff]
  %v3456 = vld [vmem:[%s3454 + $0x8] sm:$0xff]
  %s3457 = scalar_lea.vmem %s7, 112
  %v3458 = vld [vmem:[%s3457] sm:$0xff]
  %v3459 = vld [vmem:[%s3457 + $0x8] sm:$0xff]
  %s3460 = scalar_lea.vmem %s7, 128
  %v3461 = vld [vmem:[%s3460] sm:$0xff]
  %v3462 = vld [vmem:[%s3460 + $0x8] sm:$0xff]
  loop: start=0, step=1, limit=6
  $region134: #{gbn_net_forward.1} parent=0 // loop_pre_header
    _
  $region135: #{gbn_net_forward.1} parent=0 // loop_header
    %s3464 = sphi 0, %s3468
    %p3465 = scmp.ge.s32.totalorder %s3464, 6
  $region136: #{gbn_net_forward.1} parent=0 // loop_header_branch
    %3467 = sbr.rel (%p3465) target = $region140
  $region137: #{gbn_net_forward.1} parent=0 // loop_body
    %s3469 = smul.u32 %s3464, 16
    %s3470 = scalar_lea.vmem [#allocation7], %s3469
    %v3471 = vld [vmem:[%s3470] sm:$0xff]
    %v3472 = vld [vmem:[%s3470 + $0x8] sm:$0xff]
    %3475 = vrot.lane.b32.xlu0 %v3471, 127
    %v3476 = vpop.permute.xlu0 %3475
    %3477 = vrot.lane.b32.xlu0 %v3472, 127
    %v3478 = vpop.permute.xlu0 %3477
    %vm3481 = vcmask 130048
    %v3483 = vsel %vm3481, %v3440, 0
    %v3486 = vsel %vm3481, %v3441, 0
    %3488 = vmatpush.msra.mxu0 0.0
    %3489 = vmatpush.msra.mxu0 0.0
    %3490 = vmatpush.msra.mxu0 0.0
    %3491 = vmatpush.msra.mxu0 0.0
    %3492 = vmatpush.msra.mxu0 0.0
    %3493 = vmatpush.msra.mxu0 0.0
    %3494 = vmatpush.msra.mxu0 0.0
    %3495 = vmatpush.msra.mxu0 0.0
    %3496 = vmatpush.msra.mxu0 0.0
    %3497 = vmatpush.msra.mxu0 0.0
    %3498 = vmatpush.msra.mxu0 0.0
    %3499 = vmatpush.msra.mxu0 0.0
    %3500 = vmatpush.msra.mxu0 0.0
    %3501 = vmatpush.msra.mxu0 0.0
    %3502 = vmatpush.msra.mxu0 %v3478
    %3503 = vmatpush.msra.mxu0 %v3476
    %3504 = vmatmul.f32.gmra.mxu0 %v3483
    %v3505 = vpop.f32.mrf.mxu0
    %v3506 = vadd.f32 0.0, %v3505
    %3507 = vmatmul.f32.gmra.mxu0 %v3486
    %v3508 = vpop.f32.mrf.mxu0
    %v3509 = vadd.f32 0.0, %v3508
    %3510 = vdwg.mxu0
    %v3512 = vsel %vm3481, %v3437, 0
    %v3515 = vsel %vm3481, %v3438, 0
    %3517 = vmatpush.msra.mxu0 0.0
    %3518 = vmatpush.msra.mxu0 0.0
    %3519 = vmatpush.msra.mxu0 0.0
    %3520 = vmatpush.msra.mxu0 0.0
    %3521 = vmatpush.msra.mxu0 0.0
    %3522 = vmatpush.msra.mxu0 0.0
    %3523 = vmatpush.msra.mxu0 0.0
    %3524 = vmatpush.msra.mxu0 0.0
    %3525 = vmatpush.msra.mxu0 0.0
    %3526 = vmatpush.msra.mxu0 0.0
    %3527 = vmatpush.msra.mxu0 0.0
    %3528 = vmatpush.msra.mxu0 0.0
    %3529 = vmatpush.msra.mxu0 0.0
    %3530 = vmatpush.msra.mxu0 0.0
    %3531 = vmatpush.msra.mxu0 %v3472
    %3532 = vmatpush.msra.mxu0 %v3471
    %3533 = vmatmul.f32.gmra.mxu0 %v3512
    %v3534 = vpop.f32.mrf.mxu0
    %v3535 = vadd.f32 %v3506, %v3534
    %3536 = vmatmul.f32.gmra.mxu0 %v3515
    %v3537 = vpop.f32.mrf.mxu0
    %v3538 = vadd.f32 %v3509, %v3537
    %3539 = vdwg.mxu0
    %3540 = vrot.lane.b32.xlu0 %v3471, 126
    %v3541 = vpop.permute.xlu0 %3540
    %3542 = vrot.lane.b32.xlu0 %v3472, 126
    %v3543 = vpop.permute.xlu0 %3542
    %v3547 = vsel %vm3481, %v3443, 0
    %v3550 = vsel %vm3481, %v3444, 0
    %3552 = vmatpush.msra.mxu0 0.0
    %3553 = vmatpush.msra.mxu0 0.0
    %3554 = vmatpush.msra.mxu0 0.0
    %3555 = vmatpush.msra.mxu0 0.0
    %3556 = vmatpush.msra.mxu0 0.0
    %3557 = vmatpush.msra.mxu0 0.0
    %3558 = vmatpush.msra.mxu0 0.0
    %3559 = vmatpush.msra.mxu0 0.0
    %3560 = vmatpush.msra.mxu0 0.0
    %3561 = vmatpush.msra.mxu0 0.0
    %3562 = vmatpush.msra.mxu0 0.0
    %3563 = vmatpush.msra.mxu0 0.0
    %3564 = vmatpush.msra.mxu0 0.0
    %3565 = vmatpush.msra.mxu0 0.0
    %3566 = vmatpush.msra.mxu0 %v3543
    %3567 = vmatpush.msra.mxu0 %v3541
    %3568 = vmatmul.f32.gmra.mxu0 %v3547
    %v3569 = vpop.f32.mrf.mxu0
    %v3570 = vadd.f32 0.0, %v3569
    %3571 = vmatmul.f32.gmra.mxu0 %v3550
    %v3572 = vpop.f32.mrf.mxu0
    %v3573 = vadd.f32 0.0, %v3572
    %3574 = vdwg.mxu0
    %v3575 = vadd.f32 %v3535, %v3570
    %v3576 = vadd.f32 %v3538, %v3573
    %s3577 = sadd.s32 %s3464, 1
    %s3578 = smul.u32 %s3577, 16
    %s3579 = scalar_lea.vmem [#allocation7], %s3578
    %v3580 = vld [vmem:[%s3579] sm:$0xff]
    %v3581 = vld [vmem:[%s3579 + $0x8] sm:$0xff]
    %v3583 = vsel %vm3481, %v3446, 0
    %v3586 = vsel %vm3481, %v3447, 0
    %3588 = vmatpush.msra.mxu0 0.0
    %3589 = vmatpush.msra.mxu0 0.0
    %3590 = vmatpush.msra.mxu0 0.0
    %3591 = vmatpush.msra.mxu0 0.0
    %3592 = vmatpush.msra.mxu0 0.0
    %3593 = vmatpush.msra.mxu0 0.0
    %3594 = vmatpush.msra.mxu0 0.0
    %3595 = vmatpush.msra.mxu0 0.0
    %3596 = vmatpush.msra.mxu0 0.0
    %3597 = vmatpush.msra.mxu0 0.0
    %3598 = vmatpush.msra.mxu0 0.0
    %3599 = vmatpush.msra.mxu0 0.0
    %3600 = vmatpush.msra.mxu0 0.0
    %3601 = vmatpush.msra.mxu0 0.0
    %3602 = vmatpush.msra.mxu0 %v3581
    %3603 = vmatpush.msra.mxu0 %v3580
    %3604 = vmatmul.f32.gmra.mxu0 %v3583
    %v3605 = vpop.f32.mrf.mxu0
    %v3606 = vadd.f32 0.0, %v3605
    %3607 = vmatmul.f32.gmra.mxu0 %v3586
    %v3608 = vpop.f32.mrf.mxu0
    %v3609 = vadd.f32 0.0, %v3608
    %3610 = vdwg.mxu0
    %v3611 = vadd.f32 %v3575, %v3606
    %v3612 = vadd.f32 %v3576, %v3609
    %3615 = vrot.lane.b32.xlu0 %v3580, 127
    %v3616 = vpop.permute.xlu0 %3615
    %3617 = vrot.lane.b32.xlu0 %v3581, 127
    %v3618 = vpop.permute.xlu0 %3617
    %v3622 = vsel %vm3481, %v3449, 0
    %v3625 = vsel %vm3481, %v3450, 0
    %3627 = vmatpush.msra.mxu0 0.0
    %3628 = vmatpush.msra.mxu0 0.0
    %3629 = vmatpush.msra.mxu0 0.0
    %3630 = vmatpush.msra.mxu0 0.0
    %3631 = vmatpush.msra.mxu0 0.0
    %3632 = vmatpush.msra.mxu0 0.0
    %3633 = vmatpush.msra.mxu0 0.0
    %3634 = vmatpush.msra.mxu0 0.0
    %3635 = vmatpush.msra.mxu0 0.0
    %3636 = vmatpush.msra.mxu0 0.0
    %3637 = vmatpush.msra.mxu0 0.0
    %3638 = vmatpush.msra.mxu0 0.0
    %3639 = vmatpush.msra.mxu0 0.0
    %3640 = vmatpush.msra.mxu0 0.0
    %3641 = vmatpush.msra.mxu0 %v3618
    %3642 = vmatpush.msra.mxu0 %v3616
    %3643 = vmatmul.f32.gmra.mxu0 %v3622
    %v3644 = vpop.f32.mrf.mxu0
    %v3645 = vadd.f32 0.0, %v3644
    %3646 = vmatmul.f32.gmra.mxu0 %v3625
    %v3647 = vpop.f32.mrf.mxu0
    %v3648 = vadd.f32 0.0, %v3647
    %3649 = vdwg.mxu0
    %v3650 = vadd.f32 %v3611, %v3645
    %v3651 = vadd.f32 %v3612, %v3648
    %3652 = vrot.lane.b32.xlu0 %v3580, 126
    %v3653 = vpop.permute.xlu0 %3652
    %3654 = vrot.lane.b32.xlu0 %v3581, 126
    %v3655 = vpop.permute.xlu0 %3654
    %v3659 = vsel %vm3481, %v3452, 0
    %v3662 = vsel %vm3481, %v3453, 0
    %3664 = vmatpush.msra.mxu0 0.0
    %3665 = vmatpush.msra.mxu0 0.0
    %3666 = vmatpush.msra.mxu0 0.0
    %3667 = vmatpush.msra.mxu0 0.0
    %3668 = vmatpush.msra.mxu0 0.0
    %3669 = vmatpush.msra.mxu0 0.0
    %3670 = vmatpush.msra.mxu0 0.0
    %3671 = vmatpush.msra.mxu0 0.0
    %3672 = vmatpush.msra.mxu0 0.0
    %3673 = vmatpush.msra.mxu0 0.0
    %3674 = vmatpush.msra.mxu0 0.0
    %3675 = vmatpush.msra.mxu0 0.0
    %3676 = vmatpush.msra.mxu0 0.0
    %3677 = vmatpush.msra.mxu0 0.0
    %3678 = vmatpush.msra.mxu0 %v3655
    %3679 = vmatpush.msra.mxu0 %v3653
    %3680 = vmatmul.f32.gmra.mxu0 %v3659
    %v3681 = vpop.f32.mrf.mxu0
    %v3682 = vadd.f32 0.0, %v3681
    %3683 = vmatmul.f32.gmra.mxu0 %v3662
    %v3684 = vpop.f32.mrf.mxu0
    %v3685 = vadd.f32 0.0, %v3684
    %3686 = vdwg.mxu0
    %v3687 = vadd.f32 %v3650, %v3682
    %v3688 = vadd.f32 %v3651, %v3685
    %s3689 = sadd.s32 %s3464, 2
    %s3690 = smul.u32 %s3689, 16
    %s3691 = scalar_lea.vmem [#allocation7], %s3690
    %v3692 = vld [vmem:[%s3691] sm:$0xff]
    %v3693 = vld [vmem:[%s3691 + $0x8] sm:$0xff]
    %v3695 = vsel %vm3481, %v3455, 0
    %v3698 = vsel %vm3481, %v3456, 0
    %3700 = vmatpush.msra.mxu0 0.0
    %3701 = vmatpush.msra.mxu0 0.0
    %3702 = vmatpush.msra.mxu0 0.0
    %3703 = vmatpush.msra.mxu0 0.0
    %3704 = vmatpush.msra.mxu0 0.0
    %3705 = vmatpush.msra.mxu0 0.0
    %3706 = vmatpush.msra.mxu0 0.0
    %3707 = vmatpush.msra.mxu0 0.0
    %3708 = vmatpush.msra.mxu0 0.0
    %3709 = vmatpush.msra.mxu0 0.0
    %3710 = vmatpush.msra.mxu0 0.0
    %3711 = vmatpush.msra.mxu0 0.0
    %3712 = vmatpush.msra.mxu0 0.0
    %3713 = vmatpush.msra.mxu0 0.0
    %3714 = vmatpush.msra.mxu0 %v3693
    %3715 = vmatpush.msra.mxu0 %v3692
    %3716 = vmatmul.f32.gmra.mxu0 %v3695
    %v3717 = vpop.f32.mrf.mxu0
    %v3718 = vadd.f32 0.0, %v3717
    %3719 = vmatmul.f32.gmra.mxu0 %v3698
    %v3720 = vpop.f32.mrf.mxu0
    %v3721 = vadd.f32 0.0, %v3720
    %3722 = vdwg.mxu0
    %v3723 = vadd.f32 %v3687, %v3718
    %v3724 = vadd.f32 %v3688, %v3721
    %3727 = vrot.lane.b32.xlu0 %v3692, 127
    %v3728 = vpop.permute.xlu0 %3727
    %3729 = vrot.lane.b32.xlu0 %v3693, 127
    %v3730 = vpop.permute.xlu0 %3729
    %v3734 = vsel %vm3481, %v3458, 0
    %v3737 = vsel %vm3481, %v3459, 0
    %3739 = vmatpush.msra.mxu0 0.0
    %3740 = vmatpush.msra.mxu0 0.0
    %3741 = vmatpush.msra.mxu0 0.0
    %3742 = vmatpush.msra.mxu0 0.0
    %3743 = vmatpush.msra.mxu0 0.0
    %3744 = vmatpush.msra.mxu0 0.0
    %3745 = vmatpush.msra.mxu0 0.0
    %3746 = vmatpush.msra.mxu0 0.0
    %3747 = vmatpush.msra.mxu0 0.0
    %3748 = vmatpush.msra.mxu0 0.0
    %3749 = vmatpush.msra.mxu0 0.0
    %3750 = vmatpush.msra.mxu0 0.0
    %3751 = vmatpush.msra.mxu0 0.0
    %3752 = vmatpush.msra.mxu0 0.0
    %3753 = vmatpush.msra.mxu0 %v3730
    %3754 = vmatpush.msra.mxu0 %v3728
    %3755 = vmatmul.f32.gmra.mxu0 %v3734
    %v3756 = vpop.f32.mrf.mxu0
    %v3757 = vadd.f32 0.0, %v3756
    %3758 = vmatmul.f32.gmra.mxu0 %v3737
    %v3759 = vpop.f32.mrf.mxu0
    %v3760 = vadd.f32 0.0, %v3759
    %3761 = vdwg.mxu0
    %v3762 = vadd.f32 %v3723, %v3757
    %v3763 = vadd.f32 %v3724, %v3760
    %3764 = vrot.lane.b32.xlu0 %v3692, 126
    %v3765 = vpop.permute.xlu0 %3764
    %3766 = vrot.lane.b32.xlu0 %v3693, 126
    %v3767 = vpop.permute.xlu0 %3766
    %v3771 = vsel %vm3481, %v3461, 0
    %v3774 = vsel %vm3481, %v3462, 0
    %3776 = vmatpush.msra.mxu0 0.0
    %3777 = vmatpush.msra.mxu0 0.0
    %3778 = vmatpush.msra.mxu0 0.0
    %3779 = vmatpush.msra.mxu0 0.0
    %3780 = vmatpush.msra.mxu0 0.0
    %3781 = vmatpush.msra.mxu0 0.0
    %3782 = vmatpush.msra.mxu0 0.0
    %3783 = vmatpush.msra.mxu0 0.0
    %3784 = vmatpush.msra.mxu0 0.0
    %3785 = vmatpush.msra.mxu0 0.0
    %3786 = vmatpush.msra.mxu0 0.0
    %3787 = vmatpush.msra.mxu0 0.0
    %3788 = vmatpush.msra.mxu0 0.0
    %3789 = vmatpush.msra.mxu0 0.0
    %3790 = vmatpush.msra.mxu0 %v3767
    %3791 = vmatpush.msra.mxu0 %v3765
    %3792 = vmatmul.f32.gmra.mxu0 %v3771
    %v3793 = vpop.f32.mrf.mxu0
    %v3794 = vadd.f32 0.0, %v3793
    %3795 = vmatmul.f32.gmra.mxu0 %v3774
    %v3796 = vpop.f32.mrf.mxu0
    %v3797 = vadd.f32 0.0, %v3796
    %3798 = vdwg.mxu0
    %v3799 = vadd.f32 %v3762, %v3794
    %v3800 = vadd.f32 %v3763, %v3797
    %v3801 = vmax.f32 %v3799, 0.0
    %v3802 = vmax.f32 %v3800, 0.0
    %3804 = vset.pattern.permute.xlu0 0
    %3805 = vperm.xlu0 %3804, %v3432
    %v3806 = vpop.permute.xlu0 %3805
    %3809 = vset.pattern.permute.xlu0 0
    %3810 = vperm.xlu0 %3809, %v3433
    %v3811 = vpop.permute.xlu0 %3810
    %v3813 = vmul.f32 %v3801, %v3806
    %v3814 = vmul.f32 %v3802, %v3811
    %3816 = vset.pattern.permute.xlu0 0
    %3817 = vperm.xlu0 %3816, %v3435
    %v3818 = vpop.permute.xlu0 %3817
    %3821 = vset.pattern.permute.xlu0 0
    %3822 = vperm.xlu0 %3821, %v3436
    %v3823 = vpop.permute.xlu0 %3822
    %v3825 = vadd.f32 %v3813, %v3818
    %v3826 = vadd.f32 %v3814, %v3823
    %s3827 = scalar_lea.vmem [#allocation8], %s3469
    %vm3828 = vcmask 48128
    %3829 = vst.msk [vmem:[%s3827] sm:$0xff] %vm3828, %v3825
    %3830 = vst.msk [vmem:[%s3827 + $0x8] sm:$0xff] %vm3828, %v3826
  $region138: #{gbn_net_forward.1} parent=0 // loop_footer
    %s3468 = sadd.s32 1, %s3464
  $region139: #{gbn_net_forward.1} parent=0 // loop_footer_branch
    %3463 = sbr.rel target = $region135
  $region140: #{gbn_net_forward.1} parent=0 // loop_exit
    _
  loop: start=0, step=1, limit=6
  $region141: #{gbn_net_forward.1} parent=0 // loop_pre_header
    _
  $region142: #{gbn_net_forward.1} parent=0 // loop_header
    %s3832 = sphi 0, %s3836
    %p3833 = scmp.ge.s32.totalorder %s3832, 6
  $region143: #{gbn_net_forward.1} parent=0 // loop_header_branch
    %3835 = sbr.rel (%p3833) target = $region147
  $region144: #{gbn_net_forward.1} parent=0 // loop_body
    %s3837 = smul.u32 %s3832, 16
    %s3838 = sadd.s32 %s3837, 128
    %s3839 = scalar_lea.vmem [#allocation7], %s3838
    %v3840 = vld [vmem:[%s3839] sm:$0xff]
    %v3841 = vld [vmem:[%s3839 + $0x8] sm:$0xff]
    %3844 = vrot.lane.b32.xlu0 %v3840, 127
    %v3845 = vpop.permute.xlu0 %3844
    %3846 = vrot.lane.b32.xlu0 %v3841, 127
    %v3847 = vpop.permute.xlu0 %3846
    %vm3850 = vcmask 130048
    %v3852 = vsel %vm3850, %v3440, 0
    %v3855 = vsel %vm3850, %v3441, 0
    %3857 = vmatpush.msra.mxu0 0.0
    %3858 = vmatpush.msra.mxu0 0.0
    %3859 = vmatpush.msra.mxu0 0.0
    %3860 = vmatpush.msra.mxu0 0.0
    %3861 = vmatpush.msra.mxu0 0.0
    %3862 = vmatpush.msra.mxu0 0.0
    %3863 = vmatpush.msra.mxu0 0.0
    %3864 = vmatpush.msra.mxu0 0.0
    %3865 = vmatpush.msra.mxu0 0.0
    %3866 = vmatpush.msra.mxu0 0.0
    %3867 = vmatpush.msra.mxu0 0.0
    %3868 = vmatpush.msra.mxu0 0.0
    %3869 = vmatpush.msra.mxu0 0.0
    %3870 = vmatpush.msra.mxu0 0.0
    %3871 = vmatpush.msra.mxu0 %v3847
    %3872 = vmatpush.msra.mxu0 %v3845
    %3873 = vmatmul.f32.gmra.mxu0 %v3852
    %v3874 = vpop.f32.mrf.mxu0
    %v3875 = vadd.f32 0.0, %v3874
    %3876 = vmatmul.f32.gmra.mxu0 %v3855
    %v3877 = vpop.f32.mrf.mxu0
    %v3878 = vadd.f32 0.0, %v3877
    %3879 = vdwg.mxu0
    %v3881 = vsel %vm3850, %v3437, 0
    %v3884 = vsel %vm3850, %v3438, 0
    %3886 = vmatpush.msra.mxu0 0.0
    %3887 = vmatpush.msra.mxu0 0.0
    %3888 = vmatpush.msra.mxu0 0.0
    %3889 = vmatpush.msra.mxu0 0.0
    %3890 = vmatpush.msra.mxu0 0.0
    %3891 = vmatpush.msra.mxu0 0.0
    %3892 = vmatpush.msra.mxu0 0.0
    %3893 = vmatpush.msra.mxu0 0.0
    %3894 = vmatpush.msra.mxu0 0.0
    %3895 = vmatpush.msra.mxu0 0.0
    %3896 = vmatpush.msra.mxu0 0.0
    %3897 = vmatpush.msra.mxu0 0.0
    %3898 = vmatpush.msra.mxu0 0.0
    %3899 = vmatpush.msra.mxu0 0.0
    %3900 = vmatpush.msra.mxu0 %v3841
    %3901 = vmatpush.msra.mxu0 %v3840
    %3902 = vmatmul.f32.gmra.mxu0 %v3881
    %v3903 = vpop.f32.mrf.mxu0
    %v3904 = vadd.f32 %v3875, %v3903
    %3905 = vmatmul.f32.gmra.mxu0 %v3884
    %v3906 = vpop.f32.mrf.mxu0
    %v3907 = vadd.f32 %v3878, %v3906
    %3908 = vdwg.mxu0
    %3909 = vrot.lane.b32.xlu0 %v3840, 126
    %v3910 = vpop.permute.xlu0 %3909
    %3911 = vrot.lane.b32.xlu0 %v3841, 126
    %v3912 = vpop.permute.xlu0 %3911
    %v3916 = vsel %vm3850, %v3443, 0
    %v3919 = vsel %vm3850, %v3444, 0
    %3921 = vmatpush.msra.mxu0 0.0
    %3922 = vmatpush.msra.mxu0 0.0
    %3923 = vmatpush.msra.mxu0 0.0
    %3924 = vmatpush.msra.mxu0 0.0
    %3925 = vmatpush.msra.mxu0 0.0
    %3926 = vmatpush.msra.mxu0 0.0
    %3927 = vmatpush.msra.mxu0 0.0
    %3928 = vmatpush.msra.mxu0 0.0
    %3929 = vmatpush.msra.mxu0 0.0
    %3930 = vmatpush.msra.mxu0 0.0
    %3931 = vmatpush.msra.mxu0 0.0
    %3932 = vmatpush.msra.mxu0 0.0
    %3933 = vmatpush.msra.mxu0 0.0
    %3934 = vmatpush.msra.mxu0 0.0
    %3935 = vmatpush.msra.mxu0 %v3912
    %3936 = vmatpush.msra.mxu0 %v3910
    %3937 = vmatmul.f32.gmra.mxu0 %v3916
    %v3938 = vpop.f32.mrf.mxu0
    %v3939 = vadd.f32 0.0, %v3938
    %3940 = vmatmul.f32.gmra.mxu0 %v3919
    %v3941 = vpop.f32.mrf.mxu0
    %v3942 = vadd.f32 0.0, %v3941
    %3943 = vdwg.mxu0
    %v3944 = vadd.f32 %v3904, %v3939
    %v3945 = vadd.f32 %v3907, %v3942
    %s3946 = sadd.s32 %s3832, 1
    %s3947 = smul.u32 %s3946, 16
    %s3948 = sadd.s32 %s3947, 128
    %s3949 = scalar_lea.vmem [#allocation7], %s3948
    %v3950 = vld [vmem:[%s3949] sm:$0xff]
    %v3951 = vld [vmem:[%s3949 + $0x8] sm:$0xff]
    %v3953 = vsel %vm3850, %v3446, 0
    %v3956 = vsel %vm3850, %v3447, 0
    %3958 = vmatpush.msra.mxu0 0.0
    %3959 = vmatpush.msra.mxu0 0.0
    %3960 = vmatpush.msra.mxu0 0.0
    %3961 = vmatpush.msra.mxu0 0.0
    %3962 = vmatpush.msra.mxu0 0.0
    %3963 = vmatpush.msra.mxu0 0.0
    %3964 = vmatpush.msra.mxu0 0.0
    %3965 = vmatpush.msra.mxu0 0.0
    %3966 = vmatpush.msra.mxu0 0.0
    %3967 = vmatpush.msra.mxu0 0.0
    %3968 = vmatpush.msra.mxu0 0.0
    %3969 = vmatpush.msra.mxu0 0.0
    %3970 = vmatpush.msra.mxu0 0.0
    %3971 = vmatpush.msra.mxu0 0.0
    %3972 = vmatpush.msra.mxu0 %v3951
    %3973 = vmatpush.msra.mxu0 %v3950
    %3974 = vmatmul.f32.gmra.mxu0 %v3953
    %v3975 = vpop.f32.mrf.mxu0
    %v3976 = vadd.f32 0.0, %v3975
    %3977 = vmatmul.f32.gmra.mxu0 %v3956
    %v3978 = vpop.f32.mrf.mxu0
    %v3979 = vadd.f32 0.0, %v3978
    %3980 = vdwg.mxu0
    %v3981 = vadd.f32 %v3944, %v3976
    %v3982 = vadd.f32 %v3945, %v3979
    %3985 = vrot.lane.b32.xlu0 %v3950, 127
    %v3986 = vpop.permute.xlu0 %3985
    %3987 = vrot.lane.b32.xlu0 %v3951, 127
    %v3988 = vpop.permute.xlu0 %3987
    %v3992 = vsel %vm3850, %v3449, 0
    %v3995 = vsel %vm3850, %v3450, 0
    %3997 = vmatpush.msra.mxu0 0.0
    %3998 = vmatpush.msra.mxu0 0.0
    %3999 = vmatpush.msra.mxu0 0.0
    %4000 = vmatpush.msra.mxu0 0.0
    %4001 = vmatpush.msra.mxu0 0.0
    %4002 = vmatpush.msra.mxu0 0.0
    %4003 = vmatpush.msra.mxu0 0.0
    %4004 = vmatpush.msra.mxu0 0.0
    %4005 = vmatpush.msra.mxu0 0.0
    %4006 = vmatpush.msra.mxu0 0.0
    %4007 = vmatpush.msra.mxu0 0.0
    %4008 = vmatpush.msra.mxu0 0.0
    %4009 = vmatpush.msra.mxu0 0.0
    %4010 = vmatpush.msra.mxu0 0.0
    %4011 = vmatpush.msra.mxu0 %v3988
    %4012 = vmatpush.msra.mxu0 %v3986
    %4013 = vmatmul.f32.gmra.mxu0 %v3992
    %v4014 = vpop.f32.mrf.mxu0
    %v4015 = vadd.f32 0.0, %v4014
    %4016 = vmatmul.f32.gmra.mxu0 %v3995
    %v4017 = vpop.f32.mrf.mxu0
    %v4018 = vadd.f32 0.0, %v4017
    %4019 = vdwg.mxu0
    %v4020 = vadd.f32 %v3981, %v4015
    %v4021 = vadd.f32 %v3982, %v4018
    %4022 = vrot.lane.b32.xlu0 %v3950, 126
    %v4023 = vpop.permute.xlu0 %4022
    %4024 = vrot.lane.b32.xlu0 %v3951, 126
    %v4025 = vpop.permute.xlu0 %4024
    %v4029 = vsel %vm3850, %v3452, 0
    %v4032 = vsel %vm3850, %v3453, 0
    %4034 = vmatpush.msra.mxu0 0.0
    %4035 = vmatpush.msra.mxu0 0.0
    %4036 = vmatpush.msra.mxu0 0.0
    %4037 = vmatpush.msra.mxu0 0.0
    %4038 = vmatpush.msra.mxu0 0.0
    %4039 = vmatpush.msra.mxu0 0.0
    %4040 = vmatpush.msra.mxu0 0.0
    %4041 = vmatpush.msra.mxu0 0.0
    %4042 = vmatpush.msra.mxu0 0.0
    %4043 = vmatpush.msra.mxu0 0.0
    %4044 = vmatpush.msra.mxu0 0.0
    %4045 = vmatpush.msra.mxu0 0.0
    %4046 = vmatpush.msra.mxu0 0.0
    %4047 = vmatpush.msra.mxu0 0.0
    %4048 = vmatpush.msra.mxu0 %v4025
    %4049 = vmatpush.msra.mxu0 %v4023
    %4050 = vmatmul.f32.gmra.mxu0 %v4029
    %v4051 = vpop.f32.mrf.mxu0
    %v4052 = vadd.f32 0.0, %v4051
    %4053 = vmatmul.f32.gmra.mxu0 %v4032
    %v4054 = vpop.f32.mrf.mxu0
    %v4055 = vadd.f32 0.0, %v4054
    %4056 = vdwg.mxu0
    %v4057 = vadd.f32 %v4020, %v4052
    %v4058 = vadd.f32 %v4021, %v4055
    %s4059 = sadd.s32 %s3832, 2
    %s4060 = smul.u32 %s4059, 16
    %s4061 = sadd.s32 %s4060, 128
    %s4062 = scalar_lea.vmem [#allocation7], %s4061
    %v4063 = vld [vmem:[%s4062] sm:$0xff]
    %v4064 = vld [vmem:[%s4062 + $0x8] sm:$0xff]
    %v4066 = vsel %vm3850, %v3455, 0
    %v4069 = vsel %vm3850, %v3456, 0
    %4071 = vmatpush.msra.mxu0 0.0
    %4072 = vmatpush.msra.mxu0 0.0
    %4073 = vmatpush.msra.mxu0 0.0
    %4074 = vmatpush.msra.mxu0 0.0
    %4075 = vmatpush.msra.mxu0 0.0
    %4076 = vmatpush.msra.mxu0 0.0
    %4077 = vmatpush.msra.mxu0 0.0
    %4078 = vmatpush.msra.mxu0 0.0
    %4079 = vmatpush.msra.mxu0 0.0
    %4080 = vmatpush.msra.mxu0 0.0
    %4081 = vmatpush.msra.mxu0 0.0
    %4082 = vmatpush.msra.mxu0 0.0
    %4083 = vmatpush.msra.mxu0 0.0
    %4084 = vmatpush.msra.mxu0 0.0
    %4085 = vmatpush.msra.mxu0 %v4064
    %4086 = vmatpush.msra.mxu0 %v4063
    %4087 = vmatmul.f32.gmra.mxu0 %v4066
    %v4088 = vpop.f32.mrf.mxu0
    %v4089 = vadd.f32 0.0, %v4088
    %4090 = vmatmul.f32.gmra.mxu0 %v4069
    %v4091 = vpop.f32.mrf.mxu0
    %v4092 = vadd.f32 0.0, %v4091
    %4093 = vdwg.mxu0
    %v4094 = vadd.f32 %v4057, %v4089
    %v4095 = vadd.f32 %v4058, %v4092
    %4098 = vrot.lane.b32.xlu0 %v4063, 127
    %v4099 = vpop.permute.xlu0 %4098
    %4100 = vrot.lane.b32.xlu0 %v4064, 127
    %v4101 = vpop.permute.xlu0 %4100
    %v4105 = vsel %vm3850, %v3458, 0
    %v4108 = vsel %vm3850, %v3459, 0
    %4110 = vmatpush.msra.mxu0 0.0
    %4111 = vmatpush.msra.mxu0 0.0
    %4112 = vmatpush.msra.mxu0 0.0
    %4113 = vmatpush.msra.mxu0 0.0
    %4114 = vmatpush.msra.mxu0 0.0
    %4115 = vmatpush.msra.mxu0 0.0
    %4116 = vmatpush.msra.mxu0 0.0
    %4117 = vmatpush.msra.mxu0 0.0
    %4118 = vmatpush.msra.mxu0 0.0
    %4119 = vmatpush.msra.mxu0 0.0
    %4120 = vmatpush.msra.mxu0 0.0
    %4121 = vmatpush.msra.mxu0 0.0
    %4122 = vmatpush.msra.mxu0 0.0
    %4123 = vmatpush.msra.mxu0 0.0
    %4124 = vmatpush.msra.mxu0 %v4101
    %4125 = vmatpush.msra.mxu0 %v4099
    %4126 = vmatmul.f32.gmra.mxu0 %v4105
    %v4127 = vpop.f32.mrf.mxu0
    %v4128 = vadd.f32 0.0, %v4127
    %4129 = vmatmul.f32.gmra.mxu0 %v4108
    %v4130 = vpop.f32.mrf.mxu0
    %v4131 = vadd.f32 0.0, %v4130
    %4132 = vdwg.mxu0
    %v4133 = vadd.f32 %v4094, %v4128
    %v4134 = vadd.f32 %v4095, %v4131
    %4135 = vrot.lane.b32.xlu0 %v4063, 126
    %v4136 = vpop.permute.xlu0 %4135
    %4137 = vrot.lane.b32.xlu0 %v4064, 126
    %v4138 = vpop.permute.xlu0 %4137
    %v4142 = vsel %vm3850, %v3461, 0
    %v4145 = vsel %vm3850, %v3462, 0
    %4147 = vmatpush.msra.mxu0 0.0
    %4148 = vmatpush.msra.mxu0 0.0
    %4149 = vmatpush.msra.mxu0 0.0
    %4150 = vmatpush.msra.mxu0 0.0
    %4151 = vmatpush.msra.mxu0 0.0
    %4152 = vmatpush.msra.mxu0 0.0
    %4153 = vmatpush.msra.mxu0 0.0
    %4154 = vmatpush.msra.mxu0 0.0
    %4155 = vmatpush.msra.mxu0 0.0
    %4156 = vmatpush.msra.mxu0 0.0
    %4157 = vmatpush.msra.mxu0 0.0
    %4158 = vmatpush.msra.mxu0 0.0
    %4159 = vmatpush.msra.mxu0 0.0
    %4160 = vmatpush.msra.mxu0 0.0
    %4161 = vmatpush.msra.mxu0 %v4138
    %4162 = vmatpush.msra.mxu0 %v4136
    %4163 = vmatmul.f32.gmra.mxu0 %v4142
    %v4164 = vpop.f32.mrf.mxu0
    %v4165 = vadd.f32 0.0, %v4164
    %4166 = vmatmul.f32.gmra.mxu0 %v4145
    %v4167 = vpop.f32.mrf.mxu0
    %v4168 = vadd.f32 0.0, %v4167
    %4169 = vdwg.mxu0
    %v4170 = vadd.f32 %v4133, %v4165
    %v4171 = vadd.f32 %v4134, %v4168
    %v4172 = vmax.f32 %v4170, 0.0
    %v4173 = vmax.f32 %v4171, 0.0
    %4175 = vset.pattern.permute.xlu0 0
    %4176 = vperm.xlu0 %4175, %v3432
    %v4177 = vpop.permute.xlu0 %4176
    %4180 = vset.pattern.permute.xlu0 0
    %4181 = vperm.xlu0 %4180, %v3433
    %v4182 = vpop.permute.xlu0 %4181
    %v4184 = vmul.f32 %v4172, %v4177
    %v4185 = vmul.f32 %v4173, %v4182
    %4187 = vset.pattern.permute.xlu0 0
    %4188 = vperm.xlu0 %4187, %v3435
    %v4189 = vpop.permute.xlu0 %4188
    %4192 = vset.pattern.permute.xlu0 0
    %4193 = vperm.xlu0 %4192, %v3436
    %v4194 = vpop.permute.xlu0 %4193
    %v4196 = vadd.f32 %v4184, %v4189
    %v4197 = vadd.f32 %v4185, %v4194
    %s4198 = sadd.s32 %s3837, 96
    %s4199 = scalar_lea.vmem [#allocation8], %s4198
    %vm4200 = vcmask 48128
    %4201 = vst.msk [vmem:[%s4199] sm:$0xff] %vm4200, %v4196
    %4202 = vst.msk [vmem:[%s4199 + $0x8] sm:$0xff] %vm4200, %v4197
  $region145: #{gbn_net_forward.1} parent=0 // loop_footer
    %s3836 = sadd.s32 1, %s3832
  $region146: #{gbn_net_forward.1} parent=0 // loop_footer_branch
    %3831 = sbr.rel target = $region142
  $region147: #{gbn_net_forward.1} parent=0 // loop_exit
    _
  %v4203 = vld [vmem:[#allocation8] sm:$0xff]
  %v4204 = vld [vmem:[#allocation8 + $0x8] sm:$0xff]
  %vm4205 = vcmask 48128
  %v4206 = vsel %vm4205, %v4203, 0.0
  %4207 = vadd.xlane.f32.xlu0 %v4206
  %v4208 = vpop.xlane.xlu0 %4207
  %v4209 = vsel %vm4205, %v4204, 0.0
  %4210 = vadd.xlane.f32.xlu0 %v4209
  %v4211 = vpop.xlane.xlu0 %4210
  %v4212 = vadd.f32 %v4208, 0.0
  %v4213 = vadd.f32 %v4211, 0.0
  %s4214 = scalar_lea.vmem [#allocation8], 16
  %v4215 = vld [vmem:[%s4214] sm:$0xff]
  %v4216 = vld [vmem:[%s4214 + $0x8] sm:$0xff]
  %v4217 = vsel %vm4205, %v4215, 0.0
  %4218 = vadd.xlane.f32.xlu0 %v4217
  %v4219 = vpop.xlane.xlu0 %4218
  %v4220 = vsel %vm4205, %v4216, 0.0
  %4221 = vadd.xlane.f32.xlu0 %v4220
  %v4222 = vpop.xlane.xlu0 %4221
  %v4223 = vadd.f32 %v4212, %v4219
  %v4224 = vadd.f32 %v4213, %v4222
  %s4225 = scalar_lea.vmem [#allocation8], 32
  %v4226 = vld [vmem:[%s4225] sm:$0xff]
  %v4227 = vld [vmem:[%s4225 + $0x8] sm:$0xff]
  %v4228 = vsel %vm4205, %v4226, 0.0
  %4229 = vadd.xlane.f32.xlu0 %v4228
  %v4230 = vpop.xlane.xlu0 %4229
  %v4231 = vsel %vm4205, %v4227, 0.0
  %4232 = vadd.xlane.f32.xlu0 %v4231
  %v4233 = vpop.xlane.xlu0 %4232
  %v4234 = vadd.f32 %v4223, %v4230
  %v4235 = vadd.f32 %v4224, %v4233
  %s4236 = scalar_lea.vmem [#allocation8], 48
  %v4237 = vld [vmem:[%s4236] sm:$0xff]
  %v4238 = vld [vmem:[%s4236 + $0x8] sm:$0xff]
  %v4239 = vsel %vm4205, %v4237, 0.0
  %4240 = vadd.xlane.f32.xlu0 %v4239
  %v4241 = vpop.xlane.xlu0 %4240
  %v4242 = vsel %vm4205, %v4238, 0.0
  %4243 = vadd.xlane.f32.xlu0 %v4242
  %v4244 = vpop.xlane.xlu0 %4243
  %v4245 = vadd.f32 %v4234, %v4241
  %v4246 = vadd.f32 %v4235, %v4244
  %s4247 = scalar_lea.vmem [#allocation8], 64
  %v4248 = vld [vmem:[%s4247] sm:$0xff]
  %v4249 = vld [vmem:[%s4247 + $0x8] sm:$0xff]
  %v4250 = vsel %vm4205, %v4248, 0.0
  %4251 = vadd.xlane.f32.xlu0 %v4250
  %v4252 = vpop.xlane.xlu0 %4251
  %v4253 = vsel %vm4205, %v4249, 0.0
  %4254 = vadd.xlane.f32.xlu0 %v4253
  %v4255 = vpop.xlane.xlu0 %4254
  %v4256 = vadd.f32 %v4245, %v4252
  %v4257 = vadd.f32 %v4246, %v4255
  %s4258 = scalar_lea.vmem [#allocation8], 80
  %v4259 = vld [vmem:[%s4258] sm:$0xff]
  %v4260 = vld [vmem:[%s4258 + $0x8] sm:$0xff]
  %v4261 = vsel %vm4205, %v4259, 0.0
  %4262 = vadd.xlane.f32.xlu0 %v4261
  %v4263 = vpop.xlane.xlu0 %4262
  %v4264 = vsel %vm4205, %v4260, 0.0
  %4265 = vadd.xlane.f32.xlu0 %v4264
  %v4266 = vpop.xlane.xlu0 %4265
  %v4267 = vadd.f32 %v4256, %v4263
  %v4268 = vadd.f32 %v4257, %v4266
  %v4269 = vmul.f32 %v4267, 0.027777778
  %v4270 = vmul.f32 %v4268, 0.027777778
  %vm4271 = vcmask 7168
  %4272 = vst.msk [vmem:[#allocation9] sm:$0xff] %vm4271, %v4269
  %4273 = vst.msk [vmem:[#allocation9 + $0x8] sm:$0xff] %vm4271, %v4270
  %s4274 = scalar_lea.vmem [#allocation8], 96
  %v4275 = vld [vmem:[%s4274] sm:$0xff]
  %v4276 = vld [vmem:[%s4274 + $0x8] sm:$0xff]
  %v4277 = vsel %vm4205, %v4275, 0.0
  %4278 = vadd.xlane.f32.xlu0 %v4277
  %v4279 = vpop.xlane.xlu0 %4278
  %v4280 = vsel %vm4205, %v4276, 0.0
  %4281 = vadd.xlane.f32.xlu0 %v4280
  %v4282 = vpop.xlane.xlu0 %4281
  %v4283 = vadd.f32 %v4279, 0.0
  %v4284 = vadd.f32 %v4282, 0.0
  %s4285 = scalar_lea.vmem [#allocation8], 112
  %v4286 = vld [vmem:[%s4285] sm:$0xff]
  %v4287 = vld [vmem:[%s4285 + $0x8] sm:$0xff]
  %v4288 = vsel %vm4205, %v4286, 0.0
  %4289 = vadd.xlane.f32.xlu0 %v4288
  %v4290 = vpop.xlane.xlu0 %4289
  %v4291 = vsel %vm4205, %v4287, 0.0
  %4292 = vadd.xlane.f32.xlu0 %v4291
  %v4293 = vpop.xlane.xlu0 %4292
  %v4294 = vadd.f32 %v4283, %v4290
  %v4295 = vadd.f32 %v4284, %v4293
  %s4296 = scalar_lea.vmem [#allocation8], 128
  %v4297 = vld [vmem:[%s4296] sm:$0xff]
  %v4298 = vld [vmem:[%s4296 + $0x8] sm:$0xff]
  %v4299 = vsel %vm4205, %v4297, 0.0
  %4300 = vadd.xlane.f32.xlu0 %v4299
  %v4301 = vpop.xlane.xlu0 %4300
  %v4302 = vsel %vm4205, %v4298, 0.0
  %4303 = vadd.xlane.f32.xlu0 %v4302
  %v4304 = vpop.xlane.xlu0 %4303
  %v4305 = vadd.f32 %v4294, %v4301
  %v4306 = vadd.f32 %v4295, %v4304
  %s4307 = scalar_lea.vmem [#allocation8], 144
  %v4308 = vld [vmem:[%s4307] sm:$0xff]
  %v4309 = vld [vmem:[%s4307 + $0x8] sm:$0xff]
  %v4310 = vsel %vm4205, %v4308, 0.0
  %4311 = vadd.xlane.f32.xlu0 %v4310
  %v4312 = vpop.xlane.xlu0 %4311
  %v4313 = vsel %vm4205, %v4309, 0.0
  %4314 = vadd.xlane.f32.xlu0 %v4313
  %v4315 = vpop.xlane.xlu0 %4314
  %v4316 = vadd.f32 %v4305, %v4312
  %v4317 = vadd.f32 %v4306, %v4315
  %s4318 = scalar_lea.vmem [#allocation8], 160
  %v4319 = vld [vmem:[%s4318] sm:$0xff]
  %v4320 = vld [vmem:[%s4318 + $0x8] sm:$0xff]
  %v4321 = vsel %vm4205, %v4319, 0.0
  %4322 = vadd.xlane.f32.xlu0 %v4321
  %v4323 = vpop.xlane.xlu0 %4322
  %v4324 = vsel %vm4205, %v4320, 0.0
  %4325 = vadd.xlane.f32.xlu0 %v4324
  %v4326 = vpop.xlane.xlu0 %4325
  %v4327 = vadd.f32 %v4316, %v4323
  %v4328 = vadd.f32 %v4317, %v4326
  %s4329 = scalar_lea.vmem [#allocation8], 176
  %v4330 = vld [vmem:[%s4329] sm:$0xff]
  %v4331 = vld [vmem:[%s4329 + $0x8] sm:$0xff]
  %v4332 = vsel %vm4205, %v4330, 0.0
  %4333 = vadd.xlane.f32.xlu0 %v4332
  %v4334 = vpop.xlane.xlu0 %4333
  %v4335 = vsel %vm4205, %v4331, 0.0
  %4336 = vadd.xlane.f32.xlu0 %v4335
  %v4337 = vpop.xlane.xlu0 %4336
  %v4338 = vadd.f32 %v4327, %v4334
  %v4339 = vadd.f32 %v4328, %v4337
  %v4340 = vmul.f32 %v4338, 0.027777778
  %v4341 = vmul.f32 %v4339, 0.027777778
  %vm4342 = vcmask 15368
  %4343 = vst.msk [vmem:[#allocation9] sm:$0xff] %vm4342, %v4340
  %4344 = vst.msk [vmem:[#allocation9 + $0x8] sm:$0xff] %vm4342, %v4341
  %v4345 = vld [vmem:[%s8] sm:$0xff]
  %v4346 = vld [vmem:[%s8 + $0x8] sm:$0x3]
  %v4347 = vld [vmem:[#allocation9] sm:$0xff]
  %v4348 = vld [vmem:[#allocation9 + $0x8] sm:$0xff]
  %vm4349 = vcmask 130048
  %v4351 = vsel %vm4349, %v4345, 0
  %v4354 = vsel %vm4349, %v4346, 0
  %4356 = vmatpush.msra.mxu0 0.0
  %4357 = vmatpush.msra.mxu0 0.0
  %4358 = vmatpush.msra.mxu0 0.0
  %4359 = vmatpush.msra.mxu0 0.0
  %4360 = vmatpush.msra.mxu0 0.0
  %4361 = vmatpush.msra.mxu0 0.0
  %4362 = vmatpush.msra.mxu0 0.0
  %4363 = vmatpush.msra.mxu0 0.0
  %4364 = vmatpush.msra.mxu0 0.0
  %4365 = vmatpush.msra.mxu0 0.0
  %4366 = vmatpush.msra.mxu0 0.0
  %4367 = vmatpush.msra.mxu0 0.0
  %4368 = vmatpush.msra.mxu0 0.0
  %4369 = vmatpush.msra.mxu0 0.0
  %4370 = vmatpush.msra.mxu0 %v4348
  %4371 = vmatpush.msra.mxu0 %v4347
  %4372 = vmatmul.f32.gmra.mxu0 %v4351
  %v4373 = vpop.f32.mrf.mxu0
  %v4374 = vadd.f32 0.0, %v4373
  %4375 = vmatmul.f32.gmra.mxu0 %v4354
  %v4376 = vpop.f32.mrf.mxu0
  %v4377 = vadd.f32 0.0, %v4376
  %4378 = vdwg.mxu0
  %vm4379 = vcmask 15360
  %v4380 = vsel %vm4379, %v4374, -inf
  %vm4381 = vcmask 9216
  %v4382 = vsel %vm4381, %v4377, -inf
  %v4383 = vmax.f32 %v4380, %v4382
  %v4384 = vrot.slane %v4383, 4
  %v4385 = vmax.f32 %v4383, %v4384
  %v4386 = vrot.slane %v4385, 2
  %v4387 = vmax.f32 %v4385, %v4386
  %v4388 = vrot.slane %v4387, 1
  %v4389 = vmax.f32 %v4387, %v4388
  %v4390 = vsub.f32 %v4374, %v4389
  %v4391 = vsub.f32 %v4377, %v4389
  %v4392 = vmul.f32 %v4390, 1.442695
  %v4393 = vpow.pop %v4392
  %v4394 = vmul.f32 %v4391, 1.442695
  %v4395 = vpow.pop %v4394
  %v4396 = vsel %vm4379, %v4393, 0.0
  %v4397 = vsel %vm4381, %v4395, 0.0
  %v4398 = vadd.f32 %v4396, %v4397
  %v4399 = vrot.slane %v4398, 4
  %v4400 = vadd.f32 %v4398, %v4399
  %v4401 = vrot.slane %v4400, 2
  %v4402 = vadd.f32 %v4400, %v4401
  %v4403 = vrot.slane %v4402, 1
  %v4404 = vadd.f32 %v4402, %v4403
  %v4405 = vlog2.pop %v4404
  %v4406 = vmul.f32 %v4405, 0.6931472
  %v4407 = vsub.f32 %v4390, %v4406
  %v4408 = vsub.f32 %v4391, %v4406
  %4409 = vst.msk [vmem:[%s12] sm:$0xff] %vm4379, %v4407
  %4410 = vst.msk [vmem:[%s12 + $0x8] sm:$0x3] %vm4381, %v4408
  // Predicated region
  $region148: #{gbn_net_forward.1} parent=0 // pred_check
    _
  $region149: #{gbn_net_forward.1} parent=0 // pred_check_branch
    %4412 = sbr.rel (0) target = $region151
  $region150: #{gbn_net_forward.1} parent=0 // pred_region
    _
  $region151: #{gbn_net_forward.1} parent=0 // pred_fallthru
    _
  // Predicated region
  $region152: #{gbn_net_forward.1} parent=0 // pred_check
    _
  $region153: #{gbn_net_forward.1} parent=0 // pred_check_branch
    %4414 = sbr.rel (0) target = $region155
  $region154: #{gbn_net_forward.1} parent=0 // pred_region
    _
  $region155: #{gbn_net_forward.1} parent=0 // pred_fallthru
    _

</llo_original>
